<compile_context>
chip_gen: v7x
topology: tpu7x:2x2x1
jax: 0.10.0
libtpu: 0.0.40
codegen_flags: <defaults>
</compile_context>

<pallas_src>
import math

import jax
import jax.numpy as jnp
from jax.experimental import pallas as pl
from jax.experimental.pallas import tpu as pltpu

LAYERS = [2, 60, 60, 60, 60, 60, 2]
HIDDEN = 60
HIDDEN_PAD = 64          # 60 padded up to the 8-sublane multiple (zero padding is exact)
IN_DIM = 2
OUT_DIM = 2

_PRECISION = jax.lax.Precision.HIGHEST   # exact-f32 MXU; tanh (EUP) is the bottleneck anyway


def _round_up(x, m):
    return (x + m - 1) // m * m


def pinn_forward_kernel(stats_ref,
                        x_ref,
                        w0_ref, b0_ref,
                        w1_ref, b1_ref,
                        w2_ref, b2_ref,
                        w3_ref, b3_ref,
                        w5_ref, b5_ref,
                        o_ref):
    # Global scaling stats (precomputed in the wrapper; must NOT be per-tile).
    mean = stats_ref[0, 0]
    inv_std = stats_ref[0, 1]

    # (2, TILE_N) lane-dense tile of collocation points.
    a = (x_ref[...] - mean) * inv_std

    # Hidden layers 0..3: z = W @ a + b ; a = tanh(z)    (W stored as (out, in))
    for w_ref, b_ref in ((w0_ref, b0_ref), (w1_ref, b1_ref),
                         (w2_ref, b2_ref), (w3_ref, b3_ref)):
        z = jnp.dot(w_ref[...], a,
                    preferred_element_type=jnp.float32,
                    precision=_PRECISION) + b_ref[...]
        a = jnp.tanh(z)

    # Extra tanh applied again (faithful to the reference forward).
    a = jnp.tanh(a)

    # Final layer linears[-1] (linears[4] is skipped, as in the reference).
    o_ref[...] = (jnp.dot(w5_ref[...], a,
                          preferred_element_type=jnp.float32,
                          precision=_PRECISION) + b5_ref[...]).astype(o_ref.dtype)


def make_params(key):
    """PyTorch nn.Linear-style init: U(-1/sqrt(fan_in), +1/sqrt(fan_in)).

    Weights in PyTorch orientation (out, in), biases (out,). Includes the
    unused linears[4] to mirror the module exactly."""
    params = []
    for i in range(len(LAYERS) - 1):
        fan_in, fan_out = LAYERS[i], LAYERS[i + 1]
        key, kw, kb = jax.random.split(key, 3)
        bound = 1.0 / math.sqrt(fan_in)
        w = jax.random.uniform(kw, (fan_out, fan_in), jnp.float32, -bound, bound)
        b = jax.random.uniform(kb, (fan_out,), jnp.float32, -bound, bound)
        params.append((w, b))
    return params


def _pad2d(a, rows, cols):
    out = jnp.zeros((rows, cols), jnp.float32)
    return out.at[:a.shape[0], :a.shape[1]].set(a.astype(jnp.float32))


def prepare_kernel_params(params):
    """One-time pad 60->64 (zero rows/cols: padded outputs get bias 0, tanh(0)=0,
    and the next layer's padded input columns are zero, so results are exact)."""
    (w0, b0), (w1, b1), (w2, b2), (w3, b3), _unused4, (w5, b5) = params
    kp = [_pad2d(w0, HIDDEN_PAD, IN_DIM), _pad2d(b0[:, None], HIDDEN_PAD, 1)]
    for w, b in ((w1, b1), (w2, b2), (w3, b3)):
        kp += [_pad2d(w, HIDDEN_PAD, HIDDEN_PAD), _pad2d(b[:, None], HIDDEN_PAD, 1)]
    kp += [_pad2d(w5, OUT_DIM, HIDDEN_PAD), _pad2d(b5[:, None], OUT_DIM, 1)]
    return kp


def potential_flow_pinn_forward(x, params, *, tile_n=1024):
    """Forward pass. x: (N, 2) float32 collocation points -> (N, 2) predictions."""
    x = x.astype(jnp.float32)
    n = x.shape[0]

    # ---- global scaling stats (global reduction, hoisted out of the tiled kernel) ----
    n_elems = x.size
    mean = jnp.sum(x) / n_elems
    var = jnp.sum((x - mean) ** 2) / (n_elems - 1)       # torch.std: unbiased
    inv_std = 1.0 / jnp.sqrt(var)
    stats = jnp.stack([mean, inv_std]).reshape(1, 2)

    # ---- lane-dense transposed layout, N padded to a multiple of tile_n ----
    tile_n = min(tile_n, _round_up(max(n, 1), 128))      # both are multiples of 128
    n_pad = _round_up(n, tile_n)
    xt = jnp.zeros((IN_DIM, n_pad), jnp.float32).at[:, :n].set(x.T)

    kparams = prepare_kernel_params(params)

    grid = (n_pad // tile_n,)

    def _full(shape):                                    # VMEM-resident across the grid
        return pl.BlockSpec(shape, lambda i: (0, 0))

    in_specs = [
        pl.BlockSpec((1, 2), lambda i: (0, 0),
                     memory_space=pltpu.MemorySpace.SMEM),         # [mean, 1/std]
        pl.BlockSpec((IN_DIM, tile_n), lambda i: (0, i)),          # x tile (streamed)
        _full((HIDDEN_PAD, IN_DIM)),     _full((HIDDEN_PAD, 1)),   # layer 0
        _full((HIDDEN_PAD, HIDDEN_PAD)), _full((HIDDEN_PAD, 1)),   # layer 1
        _full((HIDDEN_PAD, HIDDEN_PAD)), _full((HIDDEN_PAD, 1)),   # layer 2
        _full((HIDDEN_PAD, HIDDEN_PAD)), _full((HIDDEN_PAD, 1)),   # layer 3
        _full((OUT_DIM, HIDDEN_PAD)),    _full((OUT_DIM, 1)),      # layer 5 (final)
    ]
    out_specs = pl.BlockSpec((OUT_DIM, tile_n), lambda i: (0, i))

    # Advisory cost: this kernel is transcendental(EUP)-bound, not MXU-bound.
    flops = int(n_pad) * 2 * (HIDDEN_PAD * IN_DIM
                              + 3 * HIDDEN_PAD * HIDDEN_PAD
                              + OUT_DIM * HIDDEN_PAD)
    transcendentals = int(n_pad) * 5 * HIDDEN_PAD
    weight_bytes = 4 * (HIDDEN_PAD * IN_DIM + 3 * HIDDEN_PAD * HIDDEN_PAD
                        + OUT_DIM * HIDDEN_PAD + 4 * HIDDEN_PAD + OUT_DIM)
    bytes_accessed = 4 * (IN_DIM + OUT_DIM) * int(n_pad) + weight_bytes

    out_t = pl.pallas_call(
        pinn_forward_kernel,
        out_shape=jax.ShapeDtypeStruct((OUT_DIM, n_pad), jnp.float32),
        grid=grid,
        in_specs=in_specs,
        out_specs=out_specs,
        compiler_params=pltpu.CompilerParams(
            dimension_semantics=("parallel",),   # shard N across TCs on v7x; no-op on v5e/v6e
            vmem_limit_bytes=32 << 20,           # tiny footprint; well under v7x's 64 MiB VMEM
        ),
        cost_estimate=pl.CostEstimate(flops=flops,
                                      transcendentals=transcendentals,
                                      bytes_accessed=bytes_accessed),
    )(stats, xt, *kparams)

    return out_t[:, :n].T                                # back to (N, 2)


def reference_forward(x, params):
    """Pure-JAX reference of the exact PyTorch forward semantics (for checking)."""
    x = x.astype(jnp.float32)
    n_elems = x.size
    mean = jnp.sum(x) / n_elems
    centered = x - mean
    std = jnp.sqrt(jnp.sum(centered * centered) / (n_elems - 1))
    a = centered / std
    for i in range(4):
        w, b = params[i]
        a = jnp.tanh(jnp.dot(a, w.T, precision=_PRECISION) + b)
    a = jnp.tanh(a)                       # extra tanh, as in the source
    w5, b5 = params[5]                    # linears[4] unused, as in the source
    return jnp.dot(a, w5.T, precision=_PRECISION) + b5


if __name__ == "__main__":
    key = jax.random.PRNGKey(0)
    key, kx, ky = jax.random.split(key, 3)

    # Small demo consistent with preprocessing(): N points in [-8, 8] x [-4, 4].
    # N chosen non-multiple-of-128 to exercise padding and a >1-step grid.
    N = 1000
    xs = jax.random.uniform(kx, (N, 1), jnp.float32, minval=-8.0, maxval=8.0)
    ys = jax.random.uniform(ky, (N, 1), jnp.float32, minval=-4.0, maxval=4.0)
    x_in = jnp.concatenate([xs, ys], axis=1)

    params = make_params(jax.random.PRNGKey(0))

    out = potential_flow_pinn_forward(x_in, params, tile_n=512)   # grid = (2,)
    out = jax.block_until_ready(out)

    ref = reference_forward(x_in, params)
    assert out.shape == (N, 2) and out.dtype == jnp.float32
    err = float(jnp.max(jnp.abs(out - ref)))
    assert jnp.allclose(out, ref, atol=1e-5, rtol=1e-5), f"mismatch vs reference, max|err|={err}"

    print("KERNEL_OK")
</pallas_src>

<mosaic_0001>
module attributes {stable_mosaic.version = 11 : i64} {
  func.func @pinn_forward_kernel(%arg0: i32, %arg1: memref<1x2xf32, #tpu.memory_space<smem>>, %arg2: memref<2x512xf32, #tpu.memory_space<vmem>>, %arg3: memref<64x2xf32, #tpu.memory_space<vmem>>, %arg4: memref<64x1xf32, #tpu.memory_space<vmem>>, %arg5: memref<64x64xf32, #tpu.memory_space<vmem>>, %arg6: memref<64x1xf32, #tpu.memory_space<vmem>>, %arg7: memref<64x64xf32, #tpu.memory_space<vmem>>, %arg8: memref<64x1xf32, #tpu.memory_space<vmem>>, %arg9: memref<64x64xf32, #tpu.memory_space<vmem>>, %arg10: memref<64x1xf32, #tpu.memory_space<vmem>>, %arg11: memref<2x64xf32, #tpu.memory_space<vmem>>, %arg12: memref<2x1xf32, #tpu.memory_space<vmem>>, %arg13: memref<2x512xf32, #tpu.memory_space<vmem>>) attributes {dimension_semantics = [#tpu.dimension_semantics<parallel>], iteration_bounds = array<i64: 2>, scalar_prefetch = 0 : i64, scratch_operands = 0 : i64, tpu.core_type = #tpu.core_type<tc>, window_params = [{transform_indices = @transform_0, window_bounds = array<i64: 1, 2>}, {transform_indices = @transform_1, window_bounds = array<i64: 2, 512>}, {pipeline_mode = #tpu.pipeline_mode<synchronous>, transform_indices = @transform_2, window_bounds = array<i64: 64, 2>}, {pipeline_mode = #tpu.pipeline_mode<synchronous>, transform_indices = @transform_3, window_bounds = array<i64: 64, 1>}, {pipeline_mode = #tpu.pipeline_mode<synchronous>, transform_indices = @transform_4, window_bounds = array<i64: 64, 64>}, {pipeline_mode = #tpu.pipeline_mode<synchronous>, transform_indices = @transform_5, window_bounds = array<i64: 64, 1>}, {pipeline_mode = #tpu.pipeline_mode<synchronous>, transform_indices = @transform_6, window_bounds = array<i64: 64, 64>}, {pipeline_mode = #tpu.pipeline_mode<synchronous>, transform_indices = @transform_7, window_bounds = array<i64: 64, 1>}, {pipeline_mode = #tpu.pipeline_mode<synchronous>, transform_indices = @transform_8, window_bounds = array<i64: 64, 64>}, {pipeline_mode = #tpu.pipeline_mode<synchronous>, transform_indices = @transform_9, window_bounds = array<i64: 64, 1>}, {pipeline_mode = #tpu.pipeline_mode<synchronous>, transform_indices = @transform_10, window_bounds = array<i64: 2, 64>}, {pipeline_mode = #tpu.pipeline_mode<synchronous>, transform_indices = @transform_11, window_bounds = array<i64: 2, 1>}, {transform_indices = @transform_12, window_bounds = array<i64: 2, 512>}]} {
    %c0 = arith.constant 0 : index
    %c0_0 = arith.constant 0 : index
    %0 = memref.load %arg1[%c0, %c0_0] : memref<1x2xf32, #tpu.memory_space<smem>>
    %c0_1 = arith.constant 0 : index
    %c1 = arith.constant 1 : index
    %1 = memref.load %arg1[%c0_1, %c1] : memref<1x2xf32, #tpu.memory_space<smem>>
    %c0_2 = arith.constant 0 : index
    %c0_3 = arith.constant 0 : index
    %2 = vector.load %arg2[%c0_2, %c0_3] : memref<2x512xf32, #tpu.memory_space<vmem>>, vector<2x512xf32>
    %3 = vector.broadcast %0 : f32 to vector<2x512xf32>
    %4 = arith.subf %2, %3 : vector<2x512xf32>
    %5 = vector.broadcast %1 : f32 to vector<2x512xf32>
    %6 = arith.mulf %4, %5 : vector<2x512xf32>
    %c0_4 = arith.constant 0 : index
    %c0_5 = arith.constant 0 : index
    %7 = vector.load %arg3[%c0_4, %c0_5] : memref<64x2xf32, #tpu.memory_space<vmem>>, vector<64x2xf32>
    %cst = arith.constant dense<0.000000e+00> : vector<64x512xf32>
    %8 = tpu.matmul %7, %6, %cst {dimension_numbers = #tpu.dot_dimension_numbers<[1], [0], [0], [1], [0, 0, 1, 1], [], []>, precision = #tpu.contract_precision<fp32>} : vector<64x2xf32>, vector<2x512xf32>, vector<64x512xf32> -> vector<64x512xf32>
    %c0_6 = arith.constant 0 : index
    %c0_7 = arith.constant 0 : index
    %9 = vector.load %arg4[%c0_6, %c0_7] : memref<64x1xf32, #tpu.memory_space<vmem>>, vector<64x1xf32>
    %10 = vector.broadcast %9 : vector<64x1xf32> to vector<64x512xf32>
    %11 = arith.addf %8, %10 : vector<64x512xf32>
    %12 = math.tanh %11 : vector<64x512xf32>
    %c0_8 = arith.constant 0 : index
    %c0_9 = arith.constant 0 : index
    %13 = vector.load %arg5[%c0_8, %c0_9] : memref<64x64xf32, #tpu.memory_space<vmem>>, vector<64x64xf32>
    %cst_10 = arith.constant dense<0.000000e+00> : vector<64x512xf32>
    %14 = tpu.matmul %13, %12, %cst_10 {dimension_numbers = #tpu.dot_dimension_numbers<[1], [0], [0], [1], [0, 0, 1, 1], [], []>, precision = #tpu.contract_precision<fp32>} : vector<64x64xf32>, vector<64x512xf32>, vector<64x512xf32> -> vector<64x512xf32>
    %c0_11 = arith.constant 0 : index
    %c0_12 = arith.constant 0 : index
    %15 = vector.load %arg6[%c0_11, %c0_12] : memref<64x1xf32, #tpu.memory_space<vmem>>, vector<64x1xf32>
    %16 = vector.broadcast %15 : vector<64x1xf32> to vector<64x512xf32>
    %17 = arith.addf %14, %16 : vector<64x512xf32>
    %18 = math.tanh %17 : vector<64x512xf32>
    %c0_13 = arith.constant 0 : index
    %c0_14 = arith.constant 0 : index
    %19 = vector.load %arg7[%c0_13, %c0_14] : memref<64x64xf32, #tpu.memory_space<vmem>>, vector<64x64xf32>
    %cst_15 = arith.constant dense<0.000000e+00> : vector<64x512xf32>
    %20 = tpu.matmul %19, %18, %cst_15 {dimension_numbers = #tpu.dot_dimension_numbers<[1], [0], [0], [1], [0, 0, 1, 1], [], []>, precision = #tpu.contract_precision<fp32>} : vector<64x64xf32>, vector<64x512xf32>, vector<64x512xf32> -> vector<64x512xf32>
    %c0_16 = arith.constant 0 : index
    %c0_17 = arith.constant 0 : index
    %21 = vector.load %arg8[%c0_16, %c0_17] : memref<64x1xf32, #tpu.memory_space<vmem>>, vector<64x1xf32>
    %22 = vector.broadcast %21 : vector<64x1xf32> to vector<64x512xf32>
    %23 = arith.addf %20, %22 : vector<64x512xf32>
    %24 = math.tanh %23 : vector<64x512xf32>
    %c0_18 = arith.constant 0 : index
    %c0_19 = arith.constant 0 : index
    %25 = vector.load %arg9[%c0_18, %c0_19] : memref<64x64xf32, #tpu.memory_space<vmem>>, vector<64x64xf32>
    %cst_20 = arith.constant dense<0.000000e+00> : vector<64x512xf32>
    %26 = tpu.matmul %25, %24, %cst_20 {dimension_numbers = #tpu.dot_dimension_numbers<[1], [0], [0], [1], [0, 0, 1, 1], [], []>, precision = #tpu.contract_precision<fp32>} : vector<64x64xf32>, vector<64x512xf32>, vector<64x512xf32> -> vector<64x512xf32>
    %c0_21 = arith.constant 0 : index
    %c0_22 = arith.constant 0 : index
    %27 = vector.load %arg10[%c0_21, %c0_22] : memref<64x1xf32, #tpu.memory_space<vmem>>, vector<64x1xf32>
    %28 = vector.broadcast %27 : vector<64x1xf32> to vector<64x512xf32>
    %29 = arith.addf %26, %28 : vector<64x512xf32>
    %30 = math.tanh %29 : vector<64x512xf32>
    %31 = math.tanh %30 : vector<64x512xf32>
    %c0_23 = arith.constant 0 : index
    %c0_24 = arith.constant 0 : index
    %32 = vector.load %arg11[%c0_23, %c0_24] : memref<2x64xf32, #tpu.memory_space<vmem>>, vector<2x64xf32>
    %cst_25 = arith.constant dense<0.000000e+00> : vector<2x512xf32>
    %33 = tpu.matmul %32, %31, %cst_25 {dimension_numbers = #tpu.dot_dimension_numbers<[1], [0], [0], [1], [0, 0, 1, 1], [], []>, precision = #tpu.contract_precision<fp32>} : vector<2x64xf32>, vector<64x512xf32>, vector<2x512xf32> -> vector<2x512xf32>
    %c0_26 = arith.constant 0 : index
    %c0_27 = arith.constant 0 : index
    %34 = vector.load %arg12[%c0_26, %c0_27] : memref<2x1xf32, #tpu.memory_space<vmem>>, vector<2x1xf32>
    %35 = vector.broadcast %34 : vector<2x1xf32> to vector<2x512xf32>
    %36 = arith.addf %33, %35 : vector<2x512xf32>
    %c0_28 = arith.constant 0 : index
    %c0_29 = arith.constant 0 : index
    %37 = vector.load %arg13[%c0_28, %c0_29] : memref<2x512xf32, #tpu.memory_space<vmem>>, vector<2x512xf32>
    tpu.vector_store %arg13[%c0_28, %c0_29], %36 {strides = array<i32>} : memref<2x512xf32, #tpu.memory_space<vmem>>, vector<2x512xf32>,
    return
  }
  func.func @transform_0(%arg0: i32) -> (i32, i32) {
    %c0_i32 = arith.constant 0 : i32
    %c0_i32_0 = arith.constant 0 : i32
    %c0_i32_1 = arith.constant 0 : i32
    return %c0_i32, %c0_i32_0 : i32, i32
  }
  func.func @transform_1(%arg0: i32) -> (i32, i32) {
    %c0_i32 = arith.constant 0 : i32
    %c0_i32_0 = arith.constant 0 : i32
    return %c0_i32, %arg0 : i32, i32
  }
  func.func @transform_2(%arg0: i32) -> (i32, i32) {
    %c0_i32 = arith.constant 0 : i32
    %c0_i32_0 = arith.constant 0 : i32
    %c0_i32_1 = arith.constant 0 : i32
    return %c0_i32, %c0_i32_0 : i32, i32
  }
  func.func @transform_3(%arg0: i32) -> (i32, i32) {
    %c0_i32 = arith.constant 0 : i32
    %c0_i32_0 = arith.constant 0 : i32
    %c0_i32_1 = arith.constant 0 : i32
    return %c0_i32, %c0_i32_0 : i32, i32
  }
  func.func @transform_4(%arg0: i32) -> (i32, i32) {
    %c0_i32 = arith.constant 0 : i32
    %c0_i32_0 = arith.constant 0 : i32
    %c0_i32_1 = arith.constant 0 : i32
    return %c0_i32, %c0_i32_0 : i32, i32
  }
  func.func @transform_5(%arg0: i32) -> (i32, i32) {
    %c0_i32 = arith.constant 0 : i32
    %c0_i32_0 = arith.constant 0 : i32
    %c0_i32_1 = arith.constant 0 : i32
    return %c0_i32, %c0_i32_0 : i32, i32
  }
  func.func @transform_6(%arg0: i32) -> (i32, i32) {
    %c0_i32 = arith.constant 0 : i32
    %c0_i32_0 = arith.constant 0 : i32
    %c0_i32_1 = arith.constant 0 : i32
    return %c0_i32, %c0_i32_0 : i32, i32
  }
  func.func @transform_7(%arg0: i32) -> (i32, i32) {
    %c0_i32 = arith.constant 0 : i32
    %c0_i32_0 = arith.constant 0 : i32
    %c0_i32_1 = arith.constant 0 : i32
    return %c0_i32, %c0_i32_0 : i32, i32
  }
  func.func @transform_8(%arg0: i32) -> (i32, i32) {
    %c0_i32 = arith.constant 0 : i32
    %c0_i32_0 = arith.constant 0 : i32
    %c0_i32_1 = arith.constant 0 : i32
    return %c0_i32, %c0_i32_0 : i32, i32
  }
  func.func @transform_9(%arg0: i32) -> (i32, i32) {
    %c0_i32 = arith.constant 0 : i32
    %c0_i32_0 = arith.constant 0 : i32
    %c0_i32_1 = arith.constant 0 : i32
    return %c0_i32, %c0_i32_0 : i32, i32
  }
  func.func @transform_10(%arg0: i32) -> (i32, i32) {
    %c0_i32 = arith.constant 0 : i32
    %c0_i32_0 = arith.constant 0 : i32
    %c0_i32_1 = arith.constant 0 : i32
    return %c0_i32, %c0_i32_0 : i32, i32
  }
  func.func @transform_11(%arg0: i32) -> (i32, i32) {
    %c0_i32 = arith.constant 0 : i32
    %c0_i32_0 = arith.constant 0 : i32
    %c0_i32_1 = arith.constant 0 : i32
    return %c0_i32, %c0_i32_0 : i32, i32
  }
  func.func @transform_12(%arg0: i32) -> (i32, i32) {
    %c0_i32 = arith.constant 0 : i32
    %c0_i32_0 = arith.constant 0 : i32
    return %c0_i32, %arg0 : i32, i32
  }
}

</mosaic_0001>

<llo_original>
// kernel: tpu_custom_call.1
$region0: #{tpu_custom_call.1}
  #allocation0 [shape = 'u32[]', space=smem, size = 0x4, offset = 0x4, fixed_abs, tag = 'smem constant byte address 0x4 - core index']
  #allocation1 [shape = 'u32[144,128]{1,0:T(1,128)}', space=vmem, size = 0x12000, scoped, tag = 'internal scratch']
  %s0 = inlined_call_operand.vmem [shape: f32[1,2], index: 0, kind: input, shape index: {}]
  %s1 = inlined_call_operand.vmem [shape: f32[2,1024], index: 1, kind: input, shape index: {}]
  %s2 = inlined_call_operand.vmem [shape: f32[64,2], index: 2, kind: input, shape index: {}]
  %s3 = inlined_call_operand.vmem [shape: f32[64,1], index: 3, kind: input, shape index: {}]
  %s4 = inlined_call_operand.vmem [shape: f32[64,64], index: 4, kind: input, shape index: {}]
  %s5 = inlined_call_operand.vmem [shape: f32[64,1], index: 5, kind: input, shape index: {}]
  %s6 = inlined_call_operand.vmem [shape: f32[64,64], index: 6, kind: input, shape index: {}]
  %s7 = inlined_call_operand.vmem [shape: f32[64,1], index: 7, kind: input, shape index: {}]
  %s8 = inlined_call_operand.vmem [shape: f32[64,64], index: 8, kind: input, shape index: {}]
  %s9 = inlined_call_operand.vmem [shape: f32[64,1], index: 9, kind: input, shape index: {}]
  %s10 = inlined_call_operand.vmem [shape: f32[2,64], index: 10, kind: input, shape index: {}]
  %s11 = inlined_call_operand.vmem [shape: f32[2,1], index: 11, kind: input, shape index: {}]
  %s12 = inlined_call_operand.hbm [shape: f32[2,1024], index: 12, kind: output, shape index: {}]
  %s13 = sld [smem:[#allocation0]]
  $region85: #{tpu_custom_call.1} parent=0
    _
  %s15 = ssub.s32 1, %s13
  %s16 = scalar_select 0, %s15, %s13
  $region1: #{tpu_custom_call.1} parent=0
    #allocation2 [shape = 'u8[512]{0}', space=smem, size = 0x200, scoped, tag = 'input window, operand 0, single buffered']
    #allocation3 [shape = 's32[2]{0}', space=sflag, size = 0x8, scoped, tag = 'scoped memory for tpu_custom_call.1']
    #allocation4 [shape = 's32[2]{0}', space=sflag, size = 0x8, scoped, tag = 'scoped memory for tpu_custom_call.1']
    #allocation5 [shape = 'u8[8192]{0}', space=vmem, size = 0x2000, scoped, tag = 'output window, operand 0']
    %17 = vsyncpa [#allocation4], 0
    %18 = vsyncpa [#allocation3], 0
    %s19 = scalar_lea.sflag [#allocation3], 1
    %20 = vsyncpa %s19, 0
    loop: start=0, step=1, limit=4
    $region2: #{tpu_custom_call.1} parent=1 // loop_pre_header
      _
    $region3: #{tpu_custom_call.1} parent=1 // loop_header
      %s22 = sphi 0, %s26
      %p23 = scmp.ge.s32.totalorder %s22, 4
      %s30 = sphi 0, %s30
      %s32 = sphi 0, %s30
      %s33 = sphi 0, %s32
      %s47 = sphi 0, %s33
      %s53 = sphi 0, %s55
      %s56 = sphi 0, %s53
      %s57 = sphi 0, %s56
      %s73 = sphi 0, %s57
      %s77 = sphi 0, %s77
      %s79 = sphi 0, %s77
      %s80 = sphi 0, %s79
      %s94 = sphi 0, %s80
      %s98 = sphi 0, %s98
      %s100 = sphi 0, %s98
      %s101 = sphi 0, %s100
      %s115 = sphi 0, %s101
      %s119 = sphi 0, %s119
      %s121 = sphi 0, %s119
      %s122 = sphi 0, %s121
      %s136 = sphi 0, %s122
      %s140 = sphi 0, %s140
      %s142 = sphi 0, %s140
      %s143 = sphi 0, %s142
      %s157 = sphi 0, %s143
      %s161 = sphi 0, %s161
      %s163 = sphi 0, %s161
      %s164 = sphi 0, %s163
      %s178 = sphi 0, %s164
      %s182 = sphi 0, %s182
      %s184 = sphi 0, %s182
      %s185 = sphi 0, %s184
      %s199 = sphi 0, %s185
      %s203 = sphi 0, %s203
      %s205 = sphi 0, %s203
      %s206 = sphi 0, %s205
      %s220 = sphi 0, %s206
      %s224 = sphi 0, %s224
      %s226 = sphi 0, %s224
      %s227 = sphi 0, %s226
      %s241 = sphi 0, %s227
      %s245 = sphi 0, %s245
      %s247 = sphi 0, %s245
      %s248 = sphi 0, %s247
      %s262 = sphi 0, %s248
      %s266 = sphi 0, %s266
      %s268 = sphi 0, %s266
      %s269 = sphi 0, %s268
      %s283 = sphi 0, %s269
      %s289 = sphi 0, %s291
      %s292 = sphi 0, %s289
      %s293 = sphi 0, %s292
      %s309 = sphi 0, %s293
    $region4: #{tpu_custom_call.1} parent=1 // loop_header_branch
      %25 = sbr.rel (%p23) target = $region8
    $region5: #{tpu_custom_call.1} parent=1 // loop_body
      %s27 = ssub.s32 %s22, 1
      %s28 = ssub.s32 %s22, 2
      %s29 = sadd.s32 %s22, 1
      %s31 = sadd.s32 %s30, 1
      %p34 = scmp.eq.s32.totalorder %s22, 1
      %p35 = scmp.ne.s32.totalorder %s30, %s32
      %p36 = scmp.eq.s32.totalorder %s22, 0
      %p37 = por %p35, %p36
      %p38 = scmp.ne.s32.totalorder %s30, %s32
      %p39 = scmp.eq.s32.totalorder %s27, 1
      %p40 = por %p38, %p39
      %p41 = scmp.ne.s32.totalorder %s32, %s33
      %p42 = scmp.eq.s32.totalorder %s27, 0
      %p43 = por %p41, %p42
      %p44 = scmp.ne.s32.totalorder %s32, %s33
      %p45 = scmp.eq.s32.totalorder %s28, 1
      %p46 = por %p44, %p45
      %p48 = scmp.ne.s32.totalorder %s33, %s47
      %p49 = scmp.eq.s32.totalorder %s28, 0
      %p50 = por %p48, %p49
      %s51 = ssub.s32 %s22, %s29
      %p52 = scmp.eq.s32.totalorder %s51, 0
      %s54 = sadd.s32 %s53, 1
      %s55 = scalar_select %p52, %s53, %s54
      %p58 = pneg %p52
      %p59 = scmp.eq.s32.totalorder %s22, 1
      %p60 = por %p58, %p59
      %p61 = scmp.ne.s32.totalorder %s53, %s56
      %p62 = scmp.eq.s32.totalorder %s22, 0
      %p63 = por %p61, %p62
      %p64 = scmp.ne.s32.totalorder %s53, %s56
      %p65 = scmp.eq.s32.totalorder %s27, 1
      %p66 = por %p64, %p65
      %p67 = scmp.ne.s32.totalorder %s56, %s57
      %p68 = scmp.eq.s32.totalorder %s27, 0
      %p69 = por %p67, %p68
      %p70 = scmp.ne.s32.totalorder %s56, %s57
      %p71 = scmp.eq.s32.totalorder %s28, 1
      %p72 = por %p70, %p71
      %p74 = scmp.ne.s32.totalorder %s57, %s73
      %p75 = scmp.eq.s32.totalorder %s28, 0
      %p76 = por %p74, %p75
      %s78 = sadd.s32 %s77, 1
      %p81 = scmp.eq.s32.totalorder %s22, 1
      %p82 = scmp.ne.s32.totalorder %s77, %s79
      %p83 = scmp.eq.s32.totalorder %s22, 0
      %p84 = por %p82, %p83
      %p85 = scmp.ne.s32.totalorder %s77, %s79
      %p86 = scmp.eq.s32.totalorder %s27, 1
      %p87 = por %p85, %p86
      %p88 = scmp.ne.s32.totalorder %s79, %s80
      %p89 = scmp.eq.s32.totalorder %s27, 0
      %p90 = por %p88, %p89
      %p91 = scmp.ne.s32.totalorder %s79, %s80
      %p92 = scmp.eq.s32.totalorder %s28, 1
      %p93 = por %p91, %p92
      %p95 = scmp.ne.s32.totalorder %s80, %s94
      %p96 = scmp.eq.s32.totalorder %s28, 0
      %p97 = por %p95, %p96
      %s99 = sadd.s32 %s98, 1
      %p102 = scmp.eq.s32.totalorder %s22, 1
      %p103 = scmp.ne.s32.totalorder %s98, %s100
      %p104 = scmp.eq.s32.totalorder %s22, 0
      %p105 = por %p103, %p104
      %p106 = scmp.ne.s32.totalorder %s98, %s100
      %p107 = scmp.eq.s32.totalorder %s27, 1
      %p108 = por %p106, %p107
      %p109 = scmp.ne.s32.totalorder %s100, %s101
      %p110 = scmp.eq.s32.totalorder %s27, 0
      %p111 = por %p109, %p110
      %p112 = scmp.ne.s32.totalorder %s100, %s101
      %p113 = scmp.eq.s32.totalorder %s28, 1
      %p114 = por %p112, %p113
      %p116 = scmp.ne.s32.totalorder %s101, %s115
      %p117 = scmp.eq.s32.totalorder %s28, 0
      %p118 = por %p116, %p117
      %s120 = sadd.s32 %s119, 1
      %p123 = scmp.eq.s32.totalorder %s22, 1
      %p124 = scmp.ne.s32.totalorder %s119, %s121
      %p125 = scmp.eq.s32.totalorder %s22, 0
      %p126 = por %p124, %p125
      %p127 = scmp.ne.s32.totalorder %s119, %s121
      %p128 = scmp.eq.s32.totalorder %s27, 1
      %p129 = por %p127, %p128
      %p130 = scmp.ne.s32.totalorder %s121, %s122
      %p131 = scmp.eq.s32.totalorder %s27, 0
      %p132 = por %p130, %p131
      %p133 = scmp.ne.s32.totalorder %s121, %s122
      %p134 = scmp.eq.s32.totalorder %s28, 1
      %p135 = por %p133, %p134
      %p137 = scmp.ne.s32.totalorder %s122, %s136
      %p138 = scmp.eq.s32.totalorder %s28, 0
      %p139 = por %p137, %p138
      %s141 = sadd.s32 %s140, 1
      %p144 = scmp.eq.s32.totalorder %s22, 1
      %p145 = scmp.ne.s32.totalorder %s140, %s142
      %p146 = scmp.eq.s32.totalorder %s22, 0
      %p147 = por %p145, %p146
      %p148 = scmp.ne.s32.totalorder %s140, %s142
      %p149 = scmp.eq.s32.totalorder %s27, 1
      %p150 = por %p148, %p149
      %p151 = scmp.ne.s32.totalorder %s142, %s143
      %p152 = scmp.eq.s32.totalorder %s27, 0
      %p153 = por %p151, %p152
      %p154 = scmp.ne.s32.totalorder %s142, %s143
      %p155 = scmp.eq.s32.totalorder %s28, 1
      %p156 = por %p154, %p155
      %p158 = scmp.ne.s32.totalorder %s143, %s157
      %p159 = scmp.eq.s32.totalorder %s28, 0
      %p160 = por %p158, %p159
      %s162 = sadd.s32 %s161, 1
      %p165 = scmp.eq.s32.totalorder %s22, 1
      %p166 = scmp.ne.s32.totalorder %s161, %s163
      %p167 = scmp.eq.s32.totalorder %s22, 0
      %p168 = por %p166, %p167
      %p169 = scmp.ne.s32.totalorder %s161, %s163
      %p170 = scmp.eq.s32.totalorder %s27, 1
      %p171 = por %p169, %p170
      %p172 = scmp.ne.s32.totalorder %s163, %s164
      %p173 = scmp.eq.s32.totalorder %s27, 0
      %p174 = por %p172, %p173
      %p175 = scmp.ne.s32.totalorder %s163, %s164
      %p176 = scmp.eq.s32.totalorder %s28, 1
      %p177 = por %p175, %p176
      %p179 = scmp.ne.s32.totalorder %s164, %s178
      %p180 = scmp.eq.s32.totalorder %s28, 0
      %p181 = por %p179, %p180
      %s183 = sadd.s32 %s182, 1
      %p186 = scmp.eq.s32.totalorder %s22, 1
      %p187 = scmp.ne.s32.totalorder %s182, %s184
      %p188 = scmp.eq.s32.totalorder %s22, 0
      %p189 = por %p187, %p188
      %p190 = scmp.ne.s32.totalorder %s182, %s184
      %p191 = scmp.eq.s32.totalorder %s27, 1
      %p192 = por %p190, %p191
      %p193 = scmp.ne.s32.totalorder %s184, %s185
      %p194 = scmp.eq.s32.totalorder %s27, 0
      %p195 = por %p193, %p194
      %p196 = scmp.ne.s32.totalorder %s184, %s185
      %p197 = scmp.eq.s32.totalorder %s28, 1
      %p198 = por %p196, %p197
      %p200 = scmp.ne.s32.totalorder %s185, %s199
      %p201 = scmp.eq.s32.totalorder %s28, 0
      %p202 = por %p200, %p201
      %s204 = sadd.s32 %s203, 1
      %p207 = scmp.eq.s32.totalorder %s22, 1
      %p208 = scmp.ne.s32.totalorder %s203, %s205
      %p209 = scmp.eq.s32.totalorder %s22, 0
      %p210 = por %p208, %p209
      %p211 = scmp.ne.s32.totalorder %s203, %s205
      %p212 = scmp.eq.s32.totalorder %s27, 1
      %p213 = por %p211, %p212
      %p214 = scmp.ne.s32.totalorder %s205, %s206
      %p215 = scmp.eq.s32.totalorder %s27, 0
      %p216 = por %p214, %p215
      %p217 = scmp.ne.s32.totalorder %s205, %s206
      %p218 = scmp.eq.s32.totalorder %s28, 1
      %p219 = por %p217, %p218
      %p221 = scmp.ne.s32.totalorder %s206, %s220
      %p222 = scmp.eq.s32.totalorder %s28, 0
      %p223 = por %p221, %p222
      %s225 = sadd.s32 %s224, 1
      %p228 = scmp.eq.s32.totalorder %s22, 1
      %p229 = scmp.ne.s32.totalorder %s224, %s226
      %p230 = scmp.eq.s32.totalorder %s22, 0
      %p231 = por %p229, %p230
      %p232 = scmp.ne.s32.totalorder %s224, %s226
      %p233 = scmp.eq.s32.totalorder %s27, 1
      %p234 = por %p232, %p233
      %p235 = scmp.ne.s32.totalorder %s226, %s227
      %p236 = scmp.eq.s32.totalorder %s27, 0
      %p237 = por %p235, %p236
      %p238 = scmp.ne.s32.totalorder %s226, %s227
      %p239 = scmp.eq.s32.totalorder %s28, 1
      %p240 = por %p238, %p239
      %p242 = scmp.ne.s32.totalorder %s227, %s241
      %p243 = scmp.eq.s32.totalorder %s28, 0
      %p244 = por %p242, %p243
      %s246 = sadd.s32 %s245, 1
      %p249 = scmp.eq.s32.totalorder %s22, 1
      %p250 = scmp.ne.s32.totalorder %s245, %s247
      %p251 = scmp.eq.s32.totalorder %s22, 0
      %p252 = por %p250, %p251
      %p253 = scmp.ne.s32.totalorder %s245, %s247
      %p254 = scmp.eq.s32.totalorder %s27, 1
      %p255 = por %p253, %p254
      %p256 = scmp.ne.s32.totalorder %s247, %s248
      %p257 = scmp.eq.s32.totalorder %s27, 0
      %p258 = por %p256, %p257
      %p259 = scmp.ne.s32.totalorder %s247, %s248
      %p260 = scmp.eq.s32.totalorder %s28, 1
      %p261 = por %p259, %p260
      %p263 = scmp.ne.s32.totalorder %s248, %s262
      %p264 = scmp.eq.s32.totalorder %s28, 0
      %p265 = por %p263, %p264
      %s267 = sadd.s32 %s266, 1
      %p270 = scmp.eq.s32.totalorder %s22, 1
      %p271 = scmp.ne.s32.totalorder %s266, %s268
      %p272 = scmp.eq.s32.totalorder %s22, 0
      %p273 = por %p271, %p272
      %p274 = scmp.ne.s32.totalorder %s266, %s268
      %p275 = scmp.eq.s32.totalorder %s27, 1
      %p276 = por %p274, %p275
      %p277 = scmp.ne.s32.totalorder %s268, %s269
      %p278 = scmp.eq.s32.totalorder %s27, 0
      %p279 = por %p277, %p278
      %p280 = scmp.ne.s32.totalorder %s268, %s269
      %p281 = scmp.eq.s32.totalorder %s28, 1
      %p282 = por %p280, %p281
      %p284 = scmp.ne.s32.totalorder %s269, %s283
      %p285 = scmp.eq.s32.totalorder %s28, 0
      %p286 = por %p284, %p285
      %s287 = ssub.s32 %s22, %s29
      %p288 = scmp.eq.s32.totalorder %s287, 0
      %s290 = sadd.s32 %s289, 1
      %s291 = scalar_select %p288, %s289, %s290
      %p294 = pneg %p288
      %p295 = scmp.eq.s32.totalorder %s22, 1
      %p296 = por %p294, %p295
      %p297 = scmp.ne.s32.totalorder %s289, %s292
      %p298 = scmp.eq.s32.totalorder %s22, 0
      %p299 = por %p297, %p298
      %p300 = scmp.ne.s32.totalorder %s289, %s292
      %p301 = scmp.eq.s32.totalorder %s27, 1
      %p302 = por %p300, %p301
      %p303 = scmp.ne.s32.totalorder %s292, %s293
      %p304 = scmp.eq.s32.totalorder %s27, 0
      %p305 = por %p303, %p304
      %p306 = scmp.ne.s32.totalorder %s292, %s293
      %p307 = scmp.eq.s32.totalorder %s28, 1
      %p308 = por %p306, %p307
      %p310 = scmp.ne.s32.totalorder %s293, %s309
      %p311 = scmp.eq.s32.totalorder %s28, 0
      %p312 = por %p310, %p311
      %p313 = scmp.le.s32.totalorder 1, %s22
      %p314 = scmp.lt.s32.totalorder %s22, 3
      %p315 = pnand %p313, %p314
      %p316 = pneg %p315
      // Predicated region
      $region9: #{tpu_custom_call.1} parent=5 // pred_check
        _
      $region10: #{tpu_custom_call.1} parent=5 // pred_check_branch
        %318 = sbr.rel (%p315) target = $region12
      $region11: #{tpu_custom_call.1} parent=5 // pred_region
        %s319 = ssub.s32 %s22, 1
        // Predicated region
        $region13: #{tpu_custom_call.1} parent=11 // pred_check
          %p320 = pneg %p43
        $region14: #{tpu_custom_call.1} parent=11 // pred_check_branch
          %322 = sbr.rel (%p320) target = $region16
        $region15: #{tpu_custom_call.1} parent=11 // pred_region
          %s324 = ssub.s32 16, 16
          %325 = vsyncadd [#allocation4], %s324
          %s327 = sshll.u32 %s0, 4
          %s328 = int_to_ptr.vmem [resolvable:$true] %s327
          %330 = dma.vmem_to_smem %s328, 16, [#allocation2], [#allocation4]
        $region16: #{tpu_custom_call.1} parent=11 // pred_fallthru
          _
        // Predicated region
        $region17: #{tpu_custom_call.1} parent=11 // pred_check
          %p331 = pneg %p90
        $region18: #{tpu_custom_call.1} parent=11 // pred_check_branch
          %333 = sbr.rel (%p331) target = $region20
        $region19: #{tpu_custom_call.1} parent=11 // pred_region
          _
        $region20: #{tpu_custom_call.1} parent=11 // pred_fallthru
          _
        // Predicated region
        $region21: #{tpu_custom_call.1} parent=11 // pred_check
          %p334 = pneg %p111
        $region22: #{tpu_custom_call.1} parent=11 // pred_check_branch
          %336 = sbr.rel (%p334) target = $region24
        $region23: #{tpu_custom_call.1} parent=11 // pred_region
          _
        $region24: #{tpu_custom_call.1} parent=11 // pred_fallthru
          _
        // Predicated region
        $region25: #{tpu_custom_call.1} parent=11 // pred_check
          %p337 = pneg %p132
        $region26: #{tpu_custom_call.1} parent=11 // pred_check_branch
          %339 = sbr.rel (%p337) target = $region28
        $region27: #{tpu_custom_call.1} parent=11 // pred_region
          _
        $region28: #{tpu_custom_call.1} parent=11 // pred_fallthru
          _
        // Predicated region
        $region29: #{tpu_custom_call.1} parent=11 // pred_check
          %p340 = pneg %p153
        $region30: #{tpu_custom_call.1} parent=11 // pred_check_branch
          %342 = sbr.rel (%p340) target = $region32
        $region31: #{tpu_custom_call.1} parent=11 // pred_region
          _
        $region32: #{tpu_custom_call.1} parent=11 // pred_fallthru
          _
        // Predicated region
        $region33: #{tpu_custom_call.1} parent=11 // pred_check
          %p343 = pneg %p174
        $region34: #{tpu_custom_call.1} parent=11 // pred_check_branch
          %345 = sbr.rel (%p343) target = $region36
        $region35: #{tpu_custom_call.1} parent=11 // pred_region
          _
        $region36: #{tpu_custom_call.1} parent=11 // pred_fallthru
          _
        // Predicated region
        $region37: #{tpu_custom_call.1} parent=11 // pred_check
          %p346 = pneg %p195
        $region38: #{tpu_custom_call.1} parent=11 // pred_check_branch
          %348 = sbr.rel (%p346) target = $region40
        $region39: #{tpu_custom_call.1} parent=11 // pred_region
          _
        $region40: #{tpu_custom_call.1} parent=11 // pred_fallthru
          _
        // Predicated region
        $region41: #{tpu_custom_call.1} parent=11 // pred_check
          %p349 = pneg %p216
        $region42: #{tpu_custom_call.1} parent=11 // pred_check_branch
          %351 = sbr.rel (%p349) target = $region44
        $region43: #{tpu_custom_call.1} parent=11 // pred_region
          _
        $region44: #{tpu_custom_call.1} parent=11 // pred_fallthru
          _
        // Predicated region
        $region45: #{tpu_custom_call.1} parent=11 // pred_check
          %p352 = pneg %p237
        $region46: #{tpu_custom_call.1} parent=11 // pred_check_branch
          %354 = sbr.rel (%p352) target = $region48
        $region47: #{tpu_custom_call.1} parent=11 // pred_region
          _
        $region48: #{tpu_custom_call.1} parent=11 // pred_fallthru
          _
        // Predicated region
        $region49: #{tpu_custom_call.1} parent=11 // pred_check
          %p355 = pneg %p258
        $region50: #{tpu_custom_call.1} parent=11 // pred_check_branch
          %357 = sbr.rel (%p355) target = $region52
        $region51: #{tpu_custom_call.1} parent=11 // pred_region
          _
        $region52: #{tpu_custom_call.1} parent=11 // pred_fallthru
          _
        // Predicated region
        $region53: #{tpu_custom_call.1} parent=11 // pred_check
          %p358 = pneg %p279
        $region54: #{tpu_custom_call.1} parent=11 // pred_check_branch
          %360 = sbr.rel (%p358) target = $region56
        $region55: #{tpu_custom_call.1} parent=11 // pred_region
          _
        $region56: #{tpu_custom_call.1} parent=11 // pred_fallthru
          _
      $region12: #{tpu_custom_call.1} parent=5 // pred_fallthru
        _
      %p361 = scmp.lt.s32.totalorder %s22, 2
      // Predicated region
      $region57: #{tpu_custom_call.1} parent=5 // pred_check
        %p362 = pneg %p361
      $region58: #{tpu_custom_call.1} parent=5 // pred_check_branch
        %364 = sbr.rel (%p362) target = $region60
      $region59: #{tpu_custom_call.1} parent=5 // pred_region
        // Predicated region
        $region61: #{tpu_custom_call.1} parent=59 // pred_check
          %p365 = pneg %p63
        $region62: #{tpu_custom_call.1} parent=59 // pred_check_branch
          %367 = sbr.rel (%p365) target = $region64
        $region63: #{tpu_custom_call.1} parent=59 // pred_region
          %s368 = smul.u32 4, %s22
          %p369 = scmp.lt.s32.totalorder %s368, 7
          %s370 = scalar_select %p369, %s368, 7
          %s371 = smul.addr %s370, 2
          %s372 = scalar_lea.vmem %s1, %s371
          %s373 = smul.u32 4, %s22
        $region64: #{tpu_custom_call.1} parent=59 // pred_fallthru
          _
      $region60: #{tpu_custom_call.1} parent=5 // pred_fallthru
        _
      %p374 = scmp.le.s32.totalorder 1, %s22
      %p375 = scmp.lt.s32.totalorder %s22, 3
      %p376 = pnand %p374, %p375
      %p377 = pneg %p376
      // Predicated region
      $region65: #{tpu_custom_call.1} parent=5 // pred_check
        _
      $region66: #{tpu_custom_call.1} parent=5 // pred_check_branch
        %379 = sbr.rel (%p376) target = $region68
      $region67: #{tpu_custom_call.1} parent=5 // pred_region
        %s380 = ssub.s32 %s22, 1
        // Predicated region
        $region69: #{tpu_custom_call.1} parent=67 // pred_check
          %p381 = pneg %p43
        $region70: #{tpu_custom_call.1} parent=67 // pred_check_branch
          %383 = sbr.rel (%p381) target = $region72
        $region71: #{tpu_custom_call.1} parent=67 // pred_region
          %384 = dma.done [#allocation4], 16
        $region72: #{tpu_custom_call.1} parent=67 // pred_fallthru
          _
        %385 = sfence
        %p386 = pneg %p43
        %p387 = pneg %p40
        %s388 = smul.u32 4, %s27
        %p389 = scmp.lt.s32.totalorder %s388, 7
        %s390 = scalar_select %p389, %s388, 7
        %s391 = smul.addr %s390, 2
        %s392 = scalar_lea.vmem %s1, %s391
        %p393 = pneg %p69
        %p394 = pneg %p66
        %p395 = pneg %p90
        %p396 = pneg %p87
        %p397 = pneg %p111
        %p398 = pneg %p108
        %p399 = pneg %p132
        %p400 = pneg %p129
        %p401 = pneg %p153
        %p402 = pneg %p150
        %p403 = pneg %p174
        %p404 = pneg %p171
        %p405 = pneg %p195
        %p406 = pneg %p192
        %p407 = pneg %p216
        %p408 = pneg %p213
        %p409 = pneg %p237
        %p410 = pneg %p234
        %p411 = pneg %p258
        %p412 = pneg %p255
        %p413 = pneg %p279
        %p414 = pneg %p276
        %p415 = pneg %p305
        %p416 = pneg %p302
        %s417 = sand.u32 %s292, 1
        %s418 = scalar_lea.sflag [#allocation3], %s417
        %s419 = sand.u32 %s292, 1
        %s420 = smul.addr %s419, 8
        %s421 = scalar_lea.vmem [#allocation5], %s420
        %s422 = smul.u32 4, %s27
        %p423 = scmp.lt.s32.totalorder %s422, 7
        %s424 = scalar_select %p423, %s422, 7
        %s425 = smul.addr %s424, 2
        %s426 = scalar_lea.vmem %s1, %s425
        %s427 = smul.u32 4, %s27
        %s428 = smul.u32 4, %s27
        %s429 = sld [smem:[#allocation2]]
        %s430 = sld [smem:[#allocation2 + $0x1]]
        %v431 = vld [vmem:[%s426] sm:$0xff]
        %v432 = vstv %s429
        %v433 = vsub.f32 %v431, %v432
        %v434 = vstv %s430
        %v435 = vmul.f32 %v433, %v434
        %v436 = vld [vmem:[%s2] sm:$0xff]
        %v437 = vld [vmem:[%s2 + $0x8] sm:$0xff]
        %v438 = vld [vmem:[%s2 + $0x10] sm:$0xff]
        %v439 = vld [vmem:[%s2 + $0x18] sm:$0xff]
        %v440 = vld [vmem:[%s2 + $0x20] sm:$0xff]
        %v441 = vld [vmem:[%s2 + $0x28] sm:$0xff]
        %v442 = vld [vmem:[%s2 + $0x30] sm:$0xff]
        %v443 = vld [vmem:[%s2 + $0x38] sm:$0xff]
        %v444 = vld [vmem:[%s3] sm:$0xff]
        %v445 = vld [vmem:[%s3 + $0x8] sm:$0xff]
        %v446 = vld [vmem:[%s3 + $0x10] sm:$0xff]
        %v447 = vld [vmem:[%s3 + $0x18] sm:$0xff]
        %v448 = vld [vmem:[%s3 + $0x20] sm:$0xff]
        %v449 = vld [vmem:[%s3 + $0x28] sm:$0xff]
        %v450 = vld [vmem:[%s3 + $0x30] sm:$0xff]
        %v451 = vld [vmem:[%s3 + $0x38] sm:$0xff]
        %453 = vset.pattern.permute.xlu0 0
        %454 = vperm.xlu0 %453, %v444
        %v455 = vpop.permute.xlu0 %454
        %458 = vset.pattern.permute.xlu0 0
        %459 = vperm.xlu0 %458, %v445
        %v460 = vpop.permute.xlu0 %459
        %463 = vset.pattern.permute.xlu0 0
        %464 = vperm.xlu0 %463, %v446
        %v465 = vpop.permute.xlu0 %464
        %468 = vset.pattern.permute.xlu0 0
        %469 = vperm.xlu0 %468, %v447
        %v470 = vpop.permute.xlu0 %469
        %473 = vset.pattern.permute.xlu0 0
        %474 = vperm.xlu0 %473, %v448
        %v475 = vpop.permute.xlu0 %474
        %478 = vset.pattern.permute.xlu0 0
        %479 = vperm.xlu0 %478, %v449
        %v480 = vpop.permute.xlu0 %479
        %483 = vset.pattern.permute.xlu0 0
        %484 = vperm.xlu0 %483, %v450
        %v485 = vpop.permute.xlu0 %484
        %488 = vset.pattern.permute.xlu0 0
        %489 = vperm.xlu0 %488, %v451
        %v490 = vpop.permute.xlu0 %489
        %v493 = vcombine.high %v435, %v435
        %v495 = vunpack.c.l.s4 1983009808
        %v496 = vunpack.c.0.s8 %v495
        %v497 = vlaneseq
        %v498 = vshrl.u32 %v497, 7
        %v499 = vsub.s32 %v496, %v498
        %v500 = vrot.slane %v435, %v499
        %v502 = vunpack.c.l.s4 1983009808
        %v503 = vunpack.c.0.s8 %v502
        %v504 = vlaneseq
        %v505 = vshrl.u32 %v504, 7
        %v506 = vsub.s32 %v503, %v505
        %v507 = vrot.slane %v493, %v506
        %v508 = vcombine.high %v500, %v500
        %v509 = vcombine.high %v507, %v507
        %vm510 = vcmask 15360
        %v512 = vsel %vm510, %v436, 0
        %v515 = vsel %vm510, %v437, 0
        %v518 = vsel %vm510, %v438, 0
        %v521 = vsel %vm510, %v439, 0
        %v524 = vsel %vm510, %v440, 0
        %v527 = vsel %vm510, %v441, 0
        %v530 = vsel %vm510, %v442, 0
        %v533 = vsel %vm510, %v443, 0
        %vm535 = vcmask 1041408
        %v536 = vsel %vm535, %v500, 0
        %v538 = vsel %vm535, %v508, 0
        %v540 = vsel %vm535, %v507, 0
        %v542 = vsel %vm535, %v509, 0
        %v544 = vand.u32 %v538, 4294901760
        %545 = vmatprep.subr.mxu0 %v544
        %v546 = vand.u32 %v536, 4294901760
        %547 = vmatpush1.msra.mxu0 %v546
        %548 = vmatprep.subr.mxu0 0.0
        %549 = vmatpush1.msra.mxu0 0.0
        %550 = vmatprep.subr.mxu0 0.0
        %551 = vmatpush1.msra.mxu0 0.0
        %552 = vmatprep.subr.mxu0 0.0
        %553 = vmatpush1.msra.mxu0 0.0
        %554 = vmatprep.subr.mxu0 0.0
        %555 = vmatpush1.msra.mxu0 0.0
        %556 = vmatprep.subr.mxu0 0.0
        %557 = vmatpush1.msra.mxu0 0.0
        %558 = vmatprep.subr.mxu0 0.0
        %559 = vmatpush1.msra.mxu0 0.0
        %560 = vmatprep.subr.mxu0 0.0
        %561 = vmatpush1.msra.mxu0 0.0
        %562 = vmatprep.subr.mxu0 0.0
        %563 = vmatpush1.msra.mxu0 0.0
        %564 = vmatprep.subr.mxu0 0.0
        %565 = vmatpush1.msra.mxu0 0.0
        %566 = vmatprep.subr.mxu0 0.0
        %567 = vmatpush1.msra.mxu0 0.0
        %568 = vmatprep.subr.mxu0 0.0
        %569 = vmatpush1.msra.mxu0 0.0
        %570 = vmatprep.subr.mxu0 0.0
        %571 = vmatpush1.msra.mxu0 0.0
        %572 = vmatprep.subr.mxu0 0.0
        %573 = vmatpush1.msra.mxu0 0.0
        %574 = vmatprep.subr.mxu0 0.0
        %575 = vmatpush1.msra.mxu0 0.0
        %576 = vmatprep.subr.mxu0 0.0
        %577 = vmatpush1.msra.mxu0 0.0
        %578 = vmatprep.subr.mxu0 0.0
        %579 = vmatpush1.msra.mxu0 0.0
        %580 = vmatprep.subr.mxu0 0.0
        %581 = vmatpush1.msra.mxu0 0.0
        %582 = vmatprep.subr.mxu0 0.0
        %583 = vmatpush1.msra.mxu0 0.0
        %584 = vmatprep.subr.mxu0 0.0
        %585 = vmatpush1.msra.mxu0 0.0
        %586 = vmatprep.subr.mxu0 0.0
        %587 = vmatpush1.msra.mxu0 0.0
        %588 = vmatprep.subr.mxu0 0.0
        %589 = vmatpush1.msra.mxu0 0.0
        %590 = vmatprep.subr.mxu0 0.0
        %591 = vmatpush1.msra.mxu0 0.0
        %592 = vmatprep.subr.mxu0 0.0
        %593 = vmatpush1.msra.mxu0 0.0
        %594 = vmatprep.subr.mxu0 0.0
        %595 = vmatpush1.msra.mxu0 0.0
        %596 = vmatprep.subr.mxu0 0.0
        %597 = vmatpush1.msra.mxu0 0.0
        %598 = vmatprep.subr.mxu0 0.0
        %599 = vmatpush1.msra.mxu0 0.0
        %600 = vmatprep.subr.mxu0 0.0
        %601 = vmatpush1.msra.mxu0 0.0
        %602 = vmatprep.subr.mxu0 0.0
        %603 = vmatpush1.msra.mxu0 0.0
        %604 = vmatprep.subr.mxu0 0.0
        %605 = vmatpush1.msra.mxu0 0.0
        %606 = vmatprep.subr.mxu0 0.0
        %607 = vmatpush1.msra.mxu0 0.0
        %608 = vmatprep.subr.mxu0 0.0
        %609 = vmatpush1.msra.mxu0 0.0
        %610 = vmatprep.mubr.f32.mxu0 0.0
        %v611 = vand.u32 %v512, 4294901760
        %v612 = vsub.f32 %v512, %v611
        %v613 = vand.u32 %v612, 4294901760
        %v614 = vsub.f32 %v612, %v613
        %v615 = vand.u32 %v614, 4294901760
        %616 = vmatmul.mubr.f32.gmra.mrb[0].mxu0 %v615
        %v617 = vpop.f32.mrb[0].mxu0
        %v618 = vadd.f32 %v455, %v617
        %v619 = vpop.f32.mrb[0].mxu0
        %v620 = vadd.f32 %v455, %v619
        %621 = vmatprep.mubr.f32.mxu0 0.0
        %v622 = vand.u32 %v515, 4294901760
        %v623 = vsub.f32 %v515, %v622
        %v624 = vand.u32 %v623, 4294901760
        %v625 = vsub.f32 %v623, %v624
        %v626 = vand.u32 %v625, 4294901760
        %627 = vmatmul.mubr.f32.gmra.mrb[0].mxu0 %v626
        %v628 = vpop.f32.mrb[0].mxu0
        %v629 = vadd.f32 %v460, %v628
        %v630 = vpop.f32.mrb[0].mxu0
        %v631 = vadd.f32 %v460, %v630
        %632 = vmatprep.mubr.f32.mxu0 0.0
        %v633 = vand.u32 %v518, 4294901760
        %v634 = vsub.f32 %v518, %v633
        %v635 = vand.u32 %v634, 4294901760
        %v636 = vsub.f32 %v634, %v635
        %v637 = vand.u32 %v636, 4294901760
        %638 = vmatmul.mubr.f32.gmra.mrb[0].mxu0 %v637
        %v639 = vpop.f32.mrb[0].mxu0
        %v640 = vadd.f32 %v465, %v639
        %v641 = vpop.f32.mrb[0].mxu0
        %v642 = vadd.f32 %v465, %v641
        %643 = vmatprep.mubr.f32.mxu0 0.0
        %v644 = vand.u32 %v521, 4294901760
        %v645 = vsub.f32 %v521, %v644
        %v646 = vand.u32 %v645, 4294901760
        %v647 = vsub.f32 %v645, %v646
        %v648 = vand.u32 %v647, 4294901760
        %649 = vmatmul.mubr.f32.gmra.mrb[0].mxu0 %v648
        %v650 = vpop.f32.mrb[0].mxu0
        %v651 = vadd.f32 %v470, %v650
        %v652 = vpop.f32.mrb[0].mxu0
        %v653 = vadd.f32 %v470, %v652
        %654 = vmatprep.mubr.f32.mxu0 0.0
        %v655 = vand.u32 %v524, 4294901760
        %v656 = vsub.f32 %v524, %v655
        %v657 = vand.u32 %v656, 4294901760
        %v658 = vsub.f32 %v656, %v657
        %v659 = vand.u32 %v658, 4294901760
        %660 = vmatmul.mubr.f32.gmra.mrb[0].mxu0 %v659
        %v661 = vpop.f32.mrb[0].mxu0
        %v662 = vadd.f32 %v475, %v661
        %v663 = vpop.f32.mrb[0].mxu0
        %v664 = vadd.f32 %v475, %v663
        %665 = vmatprep.mubr.f32.mxu0 0.0
        %v666 = vand.u32 %v527, 4294901760
        %v667 = vsub.f32 %v527, %v666
        %v668 = vand.u32 %v667, 4294901760
        %v669 = vsub.f32 %v667, %v668
        %v670 = vand.u32 %v669, 4294901760
        %671 = vmatmul.mubr.f32.gmra.mrb[0].mxu0 %v670
        %v672 = vpop.f32.mrb[0].mxu0
        %v673 = vadd.f32 %v480, %v672
        %v674 = vpop.f32.mrb[0].mxu0
        %v675 = vadd.f32 %v480, %v674
        %676 = vmatprep.mubr.f32.mxu0 0.0
        %v677 = vand.u32 %v530, 4294901760
        %v678 = vsub.f32 %v530, %v677
        %v679 = vand.u32 %v678, 4294901760
        %v680 = vsub.f32 %v678, %v679
        %v681 = vand.u32 %v680, 4294901760
        %682 = vmatmul.mubr.f32.gmra.mrb[0].mxu0 %v681
        %v683 = vpop.f32.mrb[0].mxu0
        %v684 = vadd.f32 %v485, %v683
        %v685 = vpop.f32.mrb[0].mxu0
        %v686 = vadd.f32 %v485, %v685
        %687 = vmatprep.mubr.f32.mxu0 0.0
        %v688 = vand.u32 %v533, 4294901760
        %v689 = vsub.f32 %v533, %v688
        %v690 = vand.u32 %v689, 4294901760
        %v691 = vsub.f32 %v689, %v690
        %v692 = vand.u32 %v691, 4294901760
        %693 = vmatmul.mubr.f32.gmra.mrb[0].mxu0 %v692
        %v694 = vpop.f32.mrb[0].mxu0
        %v695 = vadd.f32 %v490, %v694
        %v696 = vpop.f32.mrb[0].mxu0
        %v697 = vadd.f32 %v490, %v696
        %698 = vdwg.mxu0
        %v699 = vand.u32 %v538, 4294901760
        %v700 = vsub.f32 %v538, %v699
        %v701 = vand.u32 %v700, 4294901760
        %v702 = vsub.f32 %v700, %v701
        %v703 = vand.u32 %v702, 4294901760
        %704 = vmatprep.subr.mxu0 %v703
        %v705 = vand.u32 %v536, 4294901760
        %v706 = vsub.f32 %v536, %v705
        %v707 = vand.u32 %v706, 4294901760
        %v708 = vsub.f32 %v706, %v707
        %v709 = vand.u32 %v708, 4294901760
        %710 = vmatpush1.msra.mxu0 %v709
        %711 = vmatprep.subr.mxu0 0.0
        %712 = vmatpush1.msra.mxu0 0.0
        %713 = vmatprep.subr.mxu0 0.0
        %714 = vmatpush1.msra.mxu0 0.0
        %715 = vmatprep.subr.mxu0 0.0
        %716 = vmatpush1.msra.mxu0 0.0
        %717 = vmatprep.subr.mxu0 0.0
        %718 = vmatpush1.msra.mxu0 0.0
        %719 = vmatprep.subr.mxu0 0.0
        %720 = vmatpush1.msra.mxu0 0.0
        %721 = vmatprep.subr.mxu0 0.0
        %722 = vmatpush1.msra.mxu0 0.0
        %723 = vmatprep.subr.mxu0 0.0
        %724 = vmatpush1.msra.mxu0 0.0
        %725 = vmatprep.subr.mxu0 0.0
        %726 = vmatpush1.msra.mxu0 0.0
        %727 = vmatprep.subr.mxu0 0.0
        %728 = vmatpush1.msra.mxu0 0.0
        %729 = vmatprep.subr.mxu0 0.0
        %730 = vmatpush1.msra.mxu0 0.0
        %731 = vmatprep.subr.mxu0 0.0
        %732 = vmatpush1.msra.mxu0 0.0
        %733 = vmatprep.subr.mxu0 0.0
        %734 = vmatpush1.msra.mxu0 0.0
        %735 = vmatprep.subr.mxu0 0.0
        %736 = vmatpush1.msra.mxu0 0.0
        %737 = vmatprep.subr.mxu0 0.0
        %738 = vmatpush1.msra.mxu0 0.0
        %739 = vmatprep.subr.mxu0 0.0
        %740 = vmatpush1.msra.mxu0 0.0
        %741 = vmatprep.subr.mxu0 0.0
        %742 = vmatpush1.msra.mxu0 0.0
        %743 = vmatprep.subr.mxu0 0.0
        %744 = vmatpush1.msra.mxu0 0.0
        %745 = vmatprep.subr.mxu0 0.0
        %746 = vmatpush1.msra.mxu0 0.0
        %747 = vmatprep.subr.mxu0 0.0
        %748 = vmatpush1.msra.mxu0 0.0
        %749 = vmatprep.subr.mxu0 0.0
        %750 = vmatpush1.msra.mxu0 0.0
        %751 = vmatprep.subr.mxu0 0.0
        %752 = vmatpush1.msra.mxu0 0.0
        %753 = vmatprep.subr.mxu0 0.0
        %754 = vmatpush1.msra.mxu0 0.0
        %755 = vmatprep.subr.mxu0 0.0
        %756 = vmatpush1.msra.mxu0 0.0
        %757 = vmatprep.subr.mxu0 0.0
        %758 = vmatpush1.msra.mxu0 0.0
        %759 = vmatprep.subr.mxu0 0.0
        %760 = vmatpush1.msra.mxu0 0.0
        %761 = vmatprep.subr.mxu0 0.0
        %762 = vmatpush1.msra.mxu0 0.0
        %763 = vmatprep.subr.mxu0 0.0
        %764 = vmatpush1.msra.mxu0 0.0
        %765 = vmatprep.subr.mxu0 0.0
        %766 = vmatpush1.msra.mxu0 0.0
        %767 = vmatprep.subr.mxu0 0.0
        %768 = vmatpush1.msra.mxu0 0.0
        %769 = vmatprep.subr.mxu0 0.0
        %770 = vmatpush1.msra.mxu0 0.0
        %771 = vmatprep.subr.mxu0 0.0
        %772 = vmatpush1.msra.mxu0 0.0
        %773 = vmatprep.mubr.f32.mxu0 0.0
        %v774 = vand.u32 %v512, 4294901760
        %775 = vmatmul.mubr.f32.gmra.mrb[0].mxu0 %v774
        %v776 = vpop.f32.mrb[0].mxu0
        %v777 = vadd.f32 %v618, %v776
        %v778 = vpop.f32.mrb[0].mxu0
        %v779 = vadd.f32 %v620, %v778
        %780 = vmatprep.mubr.f32.mxu0 0.0
        %v781 = vand.u32 %v515, 4294901760
        %782 = vmatmul.mubr.f32.gmra.mrb[0].mxu0 %v781
        %v783 = vpop.f32.mrb[0].mxu0
        %v784 = vadd.f32 %v629, %v783
        %v785 = vpop.f32.mrb[0].mxu0
        %v786 = vadd.f32 %v631, %v785
        %787 = vmatprep.mubr.f32.mxu0 0.0
        %v788 = vand.u32 %v518, 4294901760
        %789 = vmatmul.mubr.f32.gmra.mrb[0].mxu0 %v788
        %v790 = vpop.f32.mrb[0].mxu0
        %v791 = vadd.f32 %v640, %v790
        %v792 = vpop.f32.mrb[0].mxu0
        %v793 = vadd.f32 %v642, %v792
        %794 = vmatprep.mubr.f32.mxu0 0.0
        %v795 = vand.u32 %v521, 4294901760
        %796 = vmatmul.mubr.f32.gmra.mrb[0].mxu0 %v795
        %v797 = vpop.f32.mrb[0].mxu0
        %v798 = vadd.f32 %v651, %v797
        %v799 = vpop.f32.mrb[0].mxu0
        %v800 = vadd.f32 %v653, %v799
        %801 = vmatprep.mubr.f32.mxu0 0.0
        %v802 = vand.u32 %v524, 4294901760
        %803 = vmatmul.mubr.f32.gmra.mrb[0].mxu0 %v802
        %v804 = vpop.f32.mrb[0].mxu0
        %v805 = vadd.f32 %v662, %v804
        %v806 = vpop.f32.mrb[0].mxu0
        %v807 = vadd.f32 %v664, %v806
        %808 = vmatprep.mubr.f32.mxu0 0.0
        %v809 = vand.u32 %v527, 4294901760
        %810 = vmatmul.mubr.f32.gmra.mrb[0].mxu0 %v809
        %v811 = vpop.f32.mrb[0].mxu0
        %v812 = vadd.f32 %v673, %v811
        %v813 = vpop.f32.mrb[0].mxu0
        %v814 = vadd.f32 %v675, %v813
        %815 = vmatprep.mubr.f32.mxu0 0.0
        %v816 = vand.u32 %v530, 4294901760
        %817 = vmatmul.mubr.f32.gmra.mrb[0].mxu0 %v816
        %v818 = vpop.f32.mrb[0].mxu0
        %v819 = vadd.f32 %v684, %v818
        %v820 = vpop.f32.mrb[0].mxu0
        %v821 = vadd.f32 %v686, %v820
        %822 = vmatprep.mubr.f32.mxu0 0.0
        %v823 = vand.u32 %v533, 4294901760
        %824 = vmatmul.mubr.f32.gmra.mrb[0].mxu0 %v823
        %v825 = vpop.f32.mrb[0].mxu0
        %v826 = vadd.f32 %v695, %v825
        %v827 = vpop.f32.mrb[0].mxu0
        %v828 = vadd.f32 %v697, %v827
        %829 = vdwg.mxu0
        %v830 = vand.u32 %v538, 4294901760
        %v831 = vsub.f32 %v538, %v830
        %832 = vmatprep.subr.mxu0 %v831
        %v833 = vand.u32 %v536, 4294901760
        %v834 = vsub.f32 %v536, %v833
        %835 = vmatpush1.msra.mxu0 %v834
        %836 = vmatprep.subr.mxu0 0.0
        %837 = vmatpush1.msra.mxu0 0.0
        %838 = vmatprep.subr.mxu0 0.0
        %839 = vmatpush1.msra.mxu0 0.0
        %840 = vmatprep.subr.mxu0 0.0
        %841 = vmatpush1.msra.mxu0 0.0
        %842 = vmatprep.subr.mxu0 0.0
        %843 = vmatpush1.msra.mxu0 0.0
        %844 = vmatprep.subr.mxu0 0.0
        %845 = vmatpush1.msra.mxu0 0.0
        %846 = vmatprep.subr.mxu0 0.0
        %847 = vmatpush1.msra.mxu0 0.0
        %848 = vmatprep.subr.mxu0 0.0
        %849 = vmatpush1.msra.mxu0 0.0
        %850 = vmatprep.subr.mxu0 0.0
        %851 = vmatpush1.msra.mxu0 0.0
        %852 = vmatprep.subr.mxu0 0.0
        %853 = vmatpush1.msra.mxu0 0.0
        %854 = vmatprep.subr.mxu0 0.0
        %855 = vmatpush1.msra.mxu0 0.0
        %856 = vmatprep.subr.mxu0 0.0
        %857 = vmatpush1.msra.mxu0 0.0
        %858 = vmatprep.subr.mxu0 0.0
        %859 = vmatpush1.msra.mxu0 0.0
        %860 = vmatprep.subr.mxu0 0.0
        %861 = vmatpush1.msra.mxu0 0.0
        %862 = vmatprep.subr.mxu0 0.0
        %863 = vmatpush1.msra.mxu0 0.0
        %864 = vmatprep.subr.mxu0 0.0
        %865 = vmatpush1.msra.mxu0 0.0
        %866 = vmatprep.subr.mxu0 0.0
        %867 = vmatpush1.msra.mxu0 0.0
        %868 = vmatprep.subr.mxu0 0.0
        %869 = vmatpush1.msra.mxu0 0.0
        %870 = vmatprep.subr.mxu0 0.0
        %871 = vmatpush1.msra.mxu0 0.0
        %872 = vmatprep.subr.mxu0 0.0
        %873 = vmatpush1.msra.mxu0 0.0
        %874 = vmatprep.subr.mxu0 0.0
        %875 = vmatpush1.msra.mxu0 0.0
        %876 = vmatprep.subr.mxu0 0.0
        %877 = vmatpush1.msra.mxu0 0.0
        %878 = vmatprep.subr.mxu0 0.0
        %879 = vmatpush1.msra.mxu0 0.0
        %880 = vmatprep.subr.mxu0 0.0
        %881 = vmatpush1.msra.mxu0 0.0
        %882 = vmatprep.subr.mxu0 0.0
        %883 = vmatpush1.msra.mxu0 0.0
        %884 = vmatprep.subr.mxu0 0.0
        %885 = vmatpush1.msra.mxu0 0.0
        %886 = vmatprep.subr.mxu0 0.0
        %887 = vmatpush1.msra.mxu0 0.0
        %888 = vmatprep.subr.mxu0 0.0
        %889 = vmatpush1.msra.mxu0 0.0
        %890 = vmatprep.subr.mxu0 0.0
        %891 = vmatpush1.msra.mxu0 0.0
        %892 = vmatprep.subr.mxu0 0.0
        %893 = vmatpush1.msra.mxu0 0.0
        %894 = vmatprep.subr.mxu0 0.0
        %895 = vmatpush1.msra.mxu0 0.0
        %896 = vmatprep.subr.mxu0 0.0
        %897 = vmatpush1.msra.mxu0 0.0
        %898 = vmatprep.mubr.f32.mxu0 0.0
        %v899 = vand.u32 %v512, 4294901760
        %v900 = vsub.f32 %v512, %v899
        %901 = vmatmul.mubr.f32.gmra.mrb[0].mxu0 %v900
        %v902 = vpop.f32.mrb[0].mxu0
        %v903 = vadd.f32 %v777, %v902
        %v904 = vpop.f32.mrb[0].mxu0
        %v905 = vadd.f32 %v779, %v904
        %906 = vmatprep.mubr.f32.mxu0 0.0
        %v907 = vand.u32 %v515, 4294901760
        %v908 = vsub.f32 %v515, %v907
        %909 = vmatmul.mubr.f32.gmra.mrb[0].mxu0 %v908
        %v910 = vpop.f32.mrb[0].mxu0
        %v911 = vadd.f32 %v784, %v910
        %v912 = vpop.f32.mrb[0].mxu0
        %v913 = vadd.f32 %v786, %v912
        %914 = vmatprep.mubr.f32.mxu0 0.0
        %v915 = vand.u32 %v518, 4294901760
        %v916 = vsub.f32 %v518, %v915
        %917 = vmatmul.mubr.f32.gmra.mrb[0].mxu0 %v916
        %v918 = vpop.f32.mrb[0].mxu0
        %v919 = vadd.f32 %v791, %v918
        %v920 = vpop.f32.mrb[0].mxu0
        %v921 = vadd.f32 %v793, %v920
        %922 = vmatprep.mubr.f32.mxu0 0.0
        %v923 = vand.u32 %v521, 4294901760
        %v924 = vsub.f32 %v521, %v923
        %925 = vmatmul.mubr.f32.gmra.mrb[0].mxu0 %v924
        %v926 = vpop.f32.mrb[0].mxu0
        %v927 = vadd.f32 %v798, %v926
        %v928 = vpop.f32.mrb[0].mxu0
        %v929 = vadd.f32 %v800, %v928
        %930 = vmatprep.mubr.f32.mxu0 0.0
        %v931 = vand.u32 %v524, 4294901760
        %v932 = vsub.f32 %v524, %v931
        %933 = vmatmul.mubr.f32.gmra.mrb[0].mxu0 %v932
        %v934 = vpop.f32.mrb[0].mxu0
        %v935 = vadd.f32 %v805, %v934
        %v936 = vpop.f32.mrb[0].mxu0
        %v937 = vadd.f32 %v807, %v936
        %938 = vmatprep.mubr.f32.mxu0 0.0
        %v939 = vand.u32 %v527, 4294901760
        %v940 = vsub.f32 %v527, %v939
        %941 = vmatmul.mubr.f32.gmra.mrb[0].mxu0 %v940
        %v942 = vpop.f32.mrb[0].mxu0
        %v943 = vadd.f32 %v812, %v942
        %v944 = vpop.f32.mrb[0].mxu0
        %v945 = vadd.f32 %v814, %v944
        %946 = vmatprep.mubr.f32.mxu0 0.0
        %v947 = vand.u32 %v530, 4294901760
        %v948 = vsub.f32 %v530, %v947
        %949 = vmatmul.mubr.f32.gmra.mrb[0].mxu0 %v948
        %v950 = vpop.f32.mrb[0].mxu0
        %v951 = vadd.f32 %v819, %v950
        %v952 = vpop.f32.mrb[0].mxu0
        %v953 = vadd.f32 %v821, %v952
        %954 = vmatprep.mubr.f32.mxu0 0.0
        %v955 = vand.u32 %v533, 4294901760
        %v956 = vsub.f32 %v533, %v955
        %957 = vmatmul.mubr.f32.gmra.mrb[0].mxu0 %v956
        %v958 = vpop.f32.mrb[0].mxu0
        %v959 = vadd.f32 %v826, %v958
        %v960 = vpop.f32.mrb[0].mxu0
        %v961 = vadd.f32 %v828, %v960
        %962 = vdwg.mxu0
        %v963 = vand.u32 %v538, 4294901760
        %964 = vmatprep.subr.mxu0 %v963
        %v965 = vand.u32 %v536, 4294901760
        %966 = vmatpush1.msra.mxu0 %v965
        %967 = vmatprep.subr.mxu0 0.0
        %968 = vmatpush1.msra.mxu0 0.0
        %969 = vmatprep.subr.mxu0 0.0
        %970 = vmatpush1.msra.mxu0 0.0
        %971 = vmatprep.subr.mxu0 0.0
        %972 = vmatpush1.msra.mxu0 0.0
        %973 = vmatprep.subr.mxu0 0.0
        %974 = vmatpush1.msra.mxu0 0.0
        %975 = vmatprep.subr.mxu0 0.0
        %976 = vmatpush1.msra.mxu0 0.0
        %977 = vmatprep.subr.mxu0 0.0
        %978 = vmatpush1.msra.mxu0 0.0
        %979 = vmatprep.subr.mxu0 0.0
        %980 = vmatpush1.msra.mxu0 0.0
        %981 = vmatprep.subr.mxu0 0.0
        %982 = vmatpush1.msra.mxu0 0.0
        %983 = vmatprep.subr.mxu0 0.0
        %984 = vmatpush1.msra.mxu0 0.0
        %985 = vmatprep.subr.mxu0 0.0
        %986 = vmatpush1.msra.mxu0 0.0
        %987 = vmatprep.subr.mxu0 0.0
        %988 = vmatpush1.msra.mxu0 0.0
        %989 = vmatprep.subr.mxu0 0.0
        %990 = vmatpush1.msra.mxu0 0.0
        %991 = vmatprep.subr.mxu0 0.0
        %992 = vmatpush1.msra.mxu0 0.0
        %993 = vmatprep.subr.mxu0 0.0
        %994 = vmatpush1.msra.mxu0 0.0
        %995 = vmatprep.subr.mxu0 0.0
        %996 = vmatpush1.msra.mxu0 0.0
        %997 = vmatprep.subr.mxu0 0.0
        %998 = vmatpush1.msra.mxu0 0.0
        %999 = vmatprep.subr.mxu0 0.0
        %1000 = vmatpush1.msra.mxu0 0.0
        %1001 = vmatprep.subr.mxu0 0.0
        %1002 = vmatpush1.msra.mxu0 0.0
        %1003 = vmatprep.subr.mxu0 0.0
        %1004 = vmatpush1.msra.mxu0 0.0
        %1005 = vmatprep.subr.mxu0 0.0
        %1006 = vmatpush1.msra.mxu0 0.0
        %1007 = vmatprep.subr.mxu0 0.0
        %1008 = vmatpush1.msra.mxu0 0.0
        %1009 = vmatprep.subr.mxu0 0.0
        %1010 = vmatpush1.msra.mxu0 0.0
        %1011 = vmatprep.subr.mxu0 0.0
        %1012 = vmatpush1.msra.mxu0 0.0
        %1013 = vmatprep.subr.mxu0 0.0
        %1014 = vmatpush1.msra.mxu0 0.0
        %1015 = vmatprep.subr.mxu0 0.0
        %1016 = vmatpush1.msra.mxu0 0.0
        %1017 = vmatprep.subr.mxu0 0.0
        %1018 = vmatpush1.msra.mxu0 0.0
        %1019 = vmatprep.subr.mxu0 0.0
        %1020 = vmatpush1.msra.mxu0 0.0
        %1021 = vmatprep.subr.mxu0 0.0
        %1022 = vmatpush1.msra.mxu0 0.0
        %1023 = vmatprep.subr.mxu0 0.0
        %1024 = vmatpush1.msra.mxu0 0.0
        %1025 = vmatprep.subr.mxu0 0.0
        %1026 = vmatpush1.msra.mxu0 0.0
        %1027 = vmatprep.subr.mxu0 0.0
        %1028 = vmatpush1.msra.mxu0 0.0
        %1029 = vmatprep.mubr.f32.mxu0 0.0
        %v1030 = vand.u32 %v512, 4294901760
        %v1031 = vsub.f32 %v512, %v1030
        %v1032 = vand.u32 %v1031, 4294901760
        %1033 = vmatmul.mubr.f32.gmra.mrb[0].mxu0 %v1032
        %v1034 = vpop.f32.mrb[0].mxu0
        %v1035 = vadd.f32 %v903, %v1034
        %v1036 = vpop.f32.mrb[0].mxu0
        %v1037 = vadd.f32 %v905, %v1036
        %1038 = vmatprep.mubr.f32.mxu0 0.0
        %v1039 = vand.u32 %v515, 4294901760
        %v1040 = vsub.f32 %v515, %v1039
        %v1041 = vand.u32 %v1040, 4294901760
        %1042 = vmatmul.mubr.f32.gmra.mrb[0].mxu0 %v1041
        %v1043 = vpop.f32.mrb[0].mxu0
        %v1044 = vadd.f32 %v911, %v1043
        %v1045 = vpop.f32.mrb[0].mxu0
        %v1046 = vadd.f32 %v913, %v1045
        %1047 = vmatprep.mubr.f32.mxu0 0.0
        %v1048 = vand.u32 %v518, 4294901760
        %v1049 = vsub.f32 %v518, %v1048
        %v1050 = vand.u32 %v1049, 4294901760
        %1051 = vmatmul.mubr.f32.gmra.mrb[0].mxu0 %v1050
        %v1052 = vpop.f32.mrb[0].mxu0
        %v1053 = vadd.f32 %v919, %v1052
        %v1054 = vpop.f32.mrb[0].mxu0
        %v1055 = vadd.f32 %v921, %v1054
        %1056 = vmatprep.mubr.f32.mxu0 0.0
        %v1057 = vand.u32 %v521, 4294901760
        %v1058 = vsub.f32 %v521, %v1057
        %v1059 = vand.u32 %v1058, 4294901760
        %1060 = vmatmul.mubr.f32.gmra.mrb[0].mxu0 %v1059
        %v1061 = vpop.f32.mrb[0].mxu0
        %v1062 = vadd.f32 %v927, %v1061
        %v1063 = vpop.f32.mrb[0].mxu0
        %v1064 = vadd.f32 %v929, %v1063
        %1065 = vmatprep.mubr.f32.mxu0 0.0
        %v1066 = vand.u32 %v524, 4294901760
        %v1067 = vsub.f32 %v524, %v1066
        %v1068 = vand.u32 %v1067, 4294901760
        %1069 = vmatmul.mubr.f32.gmra.mrb[0].mxu0 %v1068
        %v1070 = vpop.f32.mrb[0].mxu0
        %v1071 = vadd.f32 %v935, %v1070
        %v1072 = vpop.f32.mrb[0].mxu0
        %v1073 = vadd.f32 %v937, %v1072
        %1074 = vmatprep.mubr.f32.mxu0 0.0
        %v1075 = vand.u32 %v527, 4294901760
        %v1076 = vsub.f32 %v527, %v1075
        %v1077 = vand.u32 %v1076, 4294901760
        %1078 = vmatmul.mubr.f32.gmra.mrb[0].mxu0 %v1077
        %v1079 = vpop.f32.mrb[0].mxu0
        %v1080 = vadd.f32 %v943, %v1079
        %v1081 = vpop.f32.mrb[0].mxu0
        %v1082 = vadd.f32 %v945, %v1081
        %1083 = vmatprep.mubr.f32.mxu0 0.0
        %v1084 = vand.u32 %v530, 4294901760
        %v1085 = vsub.f32 %v530, %v1084
        %v1086 = vand.u32 %v1085, 4294901760
        %1087 = vmatmul.mubr.f32.gmra.mrb[0].mxu0 %v1086
        %v1088 = vpop.f32.mrb[0].mxu0
        %v1089 = vadd.f32 %v951, %v1088
        %v1090 = vpop.f32.mrb[0].mxu0
        %v1091 = vadd.f32 %v953, %v1090
        %1092 = vmatprep.mubr.f32.mxu0 0.0
        %v1093 = vand.u32 %v533, 4294901760
        %v1094 = vsub.f32 %v533, %v1093
        %v1095 = vand.u32 %v1094, 4294901760
        %1096 = vmatmul.mubr.f32.gmra.mrb[0].mxu0 %v1095
        %v1097 = vpop.f32.mrb[0].mxu0
        %v1098 = vadd.f32 %v959, %v1097
        %v1099 = vpop.f32.mrb[0].mxu0
        %v1100 = vadd.f32 %v961, %v1099
        %1101 = vdwg.mxu0
        %v1102 = vand.u32 %v538, 4294901760
        %v1103 = vsub.f32 %v538, %v1102
        %v1104 = vand.u32 %v1103, 4294901760
        %1105 = vmatprep.subr.mxu0 %v1104
        %v1106 = vand.u32 %v536, 4294901760
        %v1107 = vsub.f32 %v536, %v1106
        %v1108 = vand.u32 %v1107, 4294901760
        %1109 = vmatpush1.msra.mxu0 %v1108
        %1110 = vmatprep.subr.mxu0 0.0
        %1111 = vmatpush1.msra.mxu0 0.0
        %1112 = vmatprep.subr.mxu0 0.0
        %1113 = vmatpush1.msra.mxu0 0.0
        %1114 = vmatprep.subr.mxu0 0.0
        %1115 = vmatpush1.msra.mxu0 0.0
        %1116 = vmatprep.subr.mxu0 0.0
        %1117 = vmatpush1.msra.mxu0 0.0
        %1118 = vmatprep.subr.mxu0 0.0
        %1119 = vmatpush1.msra.mxu0 0.0
        %1120 = vmatprep.subr.mxu0 0.0
        %1121 = vmatpush1.msra.mxu0 0.0
        %1122 = vmatprep.subr.mxu0 0.0
        %1123 = vmatpush1.msra.mxu0 0.0
        %1124 = vmatprep.subr.mxu0 0.0
        %1125 = vmatpush1.msra.mxu0 0.0
        %1126 = vmatprep.subr.mxu0 0.0
        %1127 = vmatpush1.msra.mxu0 0.0
        %1128 = vmatprep.subr.mxu0 0.0
        %1129 = vmatpush1.msra.mxu0 0.0
        %1130 = vmatprep.subr.mxu0 0.0
        %1131 = vmatpush1.msra.mxu0 0.0
        %1132 = vmatprep.subr.mxu0 0.0
        %1133 = vmatpush1.msra.mxu0 0.0
        %1134 = vmatprep.subr.mxu0 0.0
        %1135 = vmatpush1.msra.mxu0 0.0
        %1136 = vmatprep.subr.mxu0 0.0
        %1137 = vmatpush1.msra.mxu0 0.0
        %1138 = vmatprep.subr.mxu0 0.0
        %1139 = vmatpush1.msra.mxu0 0.0
        %1140 = vmatprep.subr.mxu0 0.0
        %1141 = vmatpush1.msra.mxu0 0.0
        %1142 = vmatprep.subr.mxu0 0.0
        %1143 = vmatpush1.msra.mxu0 0.0
        %1144 = vmatprep.subr.mxu0 0.0
        %1145 = vmatpush1.msra.mxu0 0.0
        %1146 = vmatprep.subr.mxu0 0.0
        %1147 = vmatpush1.msra.mxu0 0.0
        %1148 = vmatprep.subr.mxu0 0.0
        %1149 = vmatpush1.msra.mxu0 0.0
        %1150 = vmatprep.subr.mxu0 0.0
        %1151 = vmatpush1.msra.mxu0 0.0
        %1152 = vmatprep.subr.mxu0 0.0
        %1153 = vmatpush1.msra.mxu0 0.0
        %1154 = vmatprep.subr.mxu0 0.0
        %1155 = vmatpush1.msra.mxu0 0.0
        %1156 = vmatprep.subr.mxu0 0.0
        %1157 = vmatpush1.msra.mxu0 0.0
        %1158 = vmatprep.subr.mxu0 0.0
        %1159 = vmatpush1.msra.mxu0 0.0
        %1160 = vmatprep.subr.mxu0 0.0
        %1161 = vmatpush1.msra.mxu0 0.0
        %1162 = vmatprep.subr.mxu0 0.0
        %1163 = vmatpush1.msra.mxu0 0.0
        %1164 = vmatprep.subr.mxu0 0.0
        %1165 = vmatpush1.msra.mxu0 0.0
        %1166 = vmatprep.subr.mxu0 0.0
        %1167 = vmatpush1.msra.mxu0 0.0
        %1168 = vmatprep.subr.mxu0 0.0
        %1169 = vmatpush1.msra.mxu0 0.0
        %1170 = vmatprep.subr.mxu0 0.0
        %1171 = vmatpush1.msra.mxu0 0.0
        %1172 = vmatprep.mubr.f32.mxu0 0.0
        %v1173 = vand.u32 %v512, 4294901760
        %1174 = vmatmul.mubr.f32.gmra.mrb[0].mxu0 %v1173
        %v1175 = vpop.f32.mrb[0].mxu0
        %v1176 = vadd.f32 %v1035, %v1175
        %v1177 = vpop.f32.mrb[0].mxu0
        %v1178 = vadd.f32 %v1037, %v1177
        %1179 = vmatprep.mubr.f32.mxu0 0.0
        %v1180 = vand.u32 %v515, 4294901760
        %1181 = vmatmul.mubr.f32.gmra.mrb[0].mxu0 %v1180
        %v1182 = vpop.f32.mrb[0].mxu0
        %v1183 = vadd.f32 %v1044, %v1182
        %v1184 = vpop.f32.mrb[0].mxu0
        %v1185 = vadd.f32 %v1046, %v1184
        %1186 = vmatprep.mubr.f32.mxu0 0.0
        %v1187 = vand.u32 %v518, 4294901760
        %1188 = vmatmul.mubr.f32.gmra.mrb[0].mxu0 %v1187
        %v1189 = vpop.f32.mrb[0].mxu0
        %v1190 = vadd.f32 %v1053, %v1189
        %v1191 = vpop.f32.mrb[0].mxu0
        %v1192 = vadd.f32 %v1055, %v1191
        %1193 = vmatprep.mubr.f32.mxu0 0.0
        %v1194 = vand.u32 %v521, 4294901760
        %1195 = vmatmul.mubr.f32.gmra.mrb[0].mxu0 %v1194
        %v1196 = vpop.f32.mrb[0].mxu0
        %v1197 = vadd.f32 %v1062, %v1196
        %v1198 = vpop.f32.mrb[0].mxu0
        %v1199 = vadd.f32 %v1064, %v1198
        %1200 = vmatprep.mubr.f32.mxu0 0.0
        %v1201 = vand.u32 %v524, 4294901760
        %1202 = vmatmul.mubr.f32.gmra.mrb[0].mxu0 %v1201
        %v1203 = vpop.f32.mrb[0].mxu0
        %v1204 = vadd.f32 %v1071, %v1203
        %v1205 = vpop.f32.mrb[0].mxu0
        %v1206 = vadd.f32 %v1073, %v1205
        %1207 = vmatprep.mubr.f32.mxu0 0.0
        %v1208 = vand.u32 %v527, 4294901760
        %1209 = vmatmul.mubr.f32.gmra.mrb[0].mxu0 %v1208
        %v1210 = vpop.f32.mrb[0].mxu0
        %v1211 = vadd.f32 %v1080, %v1210
        %v1212 = vpop.f32.mrb[0].mxu0
        %v1213 = vadd.f32 %v1082, %v1212
        %1214 = vmatprep.mubr.f32.mxu0 0.0
        %v1215 = vand.u32 %v530, 4294901760
        %1216 = vmatmul.mubr.f32.gmra.mrb[0].mxu0 %v1215
        %v1217 = vpop.f32.mrb[0].mxu0
        %v1218 = vadd.f32 %v1089, %v1217
        %v1219 = vpop.f32.mrb[0].mxu0
        %v1220 = vadd.f32 %v1091, %v1219
        %1221 = vmatprep.mubr.f32.mxu0 0.0
        %v1222 = vand.u32 %v533, 4294901760
        %1223 = vmatmul.mubr.f32.gmra.mrb[0].mxu0 %v1222
        %v1224 = vpop.f32.mrb[0].mxu0
        %v1225 = vadd.f32 %v1098, %v1224
        %v1226 = vpop.f32.mrb[0].mxu0
        %v1227 = vadd.f32 %v1100, %v1226
        %1228 = vdwg.mxu0
        %v1229 = vand.u32 %v538, 4294901760
        %1230 = vmatprep.subr.mxu0 %v1229
        %v1231 = vand.u32 %v536, 4294901760
        %1232 = vmatpush1.msra.mxu0 %v1231
        %1233 = vmatprep.subr.mxu0 0.0
        %1234 = vmatpush1.msra.mxu0 0.0
        %1235 = vmatprep.subr.mxu0 0.0
        %1236 = vmatpush1.msra.mxu0 0.0
        %1237 = vmatprep.subr.mxu0 0.0
        %1238 = vmatpush1.msra.mxu0 0.0
        %1239 = vmatprep.subr.mxu0 0.0
        %1240 = vmatpush1.msra.mxu0 0.0
        %1241 = vmatprep.subr.mxu0 0.0
        %1242 = vmatpush1.msra.mxu0 0.0
        %1243 = vmatprep.subr.mxu0 0.0
        %1244 = vmatpush1.msra.mxu0 0.0
        %1245 = vmatprep.subr.mxu0 0.0
        %1246 = vmatpush1.msra.mxu0 0.0
        %1247 = vmatprep.subr.mxu0 0.0
        %1248 = vmatpush1.msra.mxu0 0.0
        %1249 = vmatprep.subr.mxu0 0.0
        %1250 = vmatpush1.msra.mxu0 0.0
        %1251 = vmatprep.subr.mxu0 0.0
        %1252 = vmatpush1.msra.mxu0 0.0
        %1253 = vmatprep.subr.mxu0 0.0
        %1254 = vmatpush1.msra.mxu0 0.0
        %1255 = vmatprep.subr.mxu0 0.0
        %1256 = vmatpush1.msra.mxu0 0.0
        %1257 = vmatprep.subr.mxu0 0.0
        %1258 = vmatpush1.msra.mxu0 0.0
        %1259 = vmatprep.subr.mxu0 0.0
        %1260 = vmatpush1.msra.mxu0 0.0
        %1261 = vmatprep.subr.mxu0 0.0
        %1262 = vmatpush1.msra.mxu0 0.0
        %1263 = vmatprep.subr.mxu0 0.0
        %1264 = vmatpush1.msra.mxu0 0.0
        %1265 = vmatprep.subr.mxu0 0.0
        %1266 = vmatpush1.msra.mxu0 0.0
        %1267 = vmatprep.subr.mxu0 0.0
        %1268 = vmatpush1.msra.mxu0 0.0
        %1269 = vmatprep.subr.mxu0 0.0
        %1270 = vmatpush1.msra.mxu0 0.0
        %1271 = vmatprep.subr.mxu0 0.0
        %1272 = vmatpush1.msra.mxu0 0.0
        %1273 = vmatprep.subr.mxu0 0.0
        %1274 = vmatpush1.msra.mxu0 0.0
        %1275 = vmatprep.subr.mxu0 0.0
        %1276 = vmatpush1.msra.mxu0 0.0
        %1277 = vmatprep.subr.mxu0 0.0
        %1278 = vmatpush1.msra.mxu0 0.0
        %1279 = vmatprep.subr.mxu0 0.0
        %1280 = vmatpush1.msra.mxu0 0.0
        %1281 = vmatprep.subr.mxu0 0.0
        %1282 = vmatpush1.msra.mxu0 0.0
        %1283 = vmatprep.subr.mxu0 0.0
        %1284 = vmatpush1.msra.mxu0 0.0
        %1285 = vmatprep.subr.mxu0 0.0
        %1286 = vmatpush1.msra.mxu0 0.0
        %1287 = vmatprep.subr.mxu0 0.0
        %1288 = vmatpush1.msra.mxu0 0.0
        %1289 = vmatprep.subr.mxu0 0.0
        %1290 = vmatpush1.msra.mxu0 0.0
        %1291 = vmatprep.subr.mxu0 0.0
        %1292 = vmatpush1.msra.mxu0 0.0
        %1293 = vmatprep.subr.mxu0 0.0
        %1294 = vmatpush1.msra.mxu0 0.0
        %1295 = vmatprep.mubr.f32.mxu0 0.0
        %v1296 = vand.u32 %v512, 4294901760
        %1297 = vmatmul.mubr.f32.gmra.mrb[0].mxu0 %v1296
        %v1298 = vpop.f32.mrb[0].mxu0
        %v1299 = vadd.f32 %v1176, %v1298
        %v1300 = vpop.f32.mrb[0].mxu0
        %v1301 = vadd.f32 %v1178, %v1300
        %1302 = vmatprep.mubr.f32.mxu0 0.0
        %v1303 = vand.u32 %v515, 4294901760
        %1304 = vmatmul.mubr.f32.gmra.mrb[0].mxu0 %v1303
        %v1305 = vpop.f32.mrb[0].mxu0
        %v1306 = vadd.f32 %v1183, %v1305
        %v1307 = vpop.f32.mrb[0].mxu0
        %v1308 = vadd.f32 %v1185, %v1307
        %1309 = vmatprep.mubr.f32.mxu0 0.0
        %v1310 = vand.u32 %v518, 4294901760
        %1311 = vmatmul.mubr.f32.gmra.mrb[0].mxu0 %v1310
        %v1312 = vpop.f32.mrb[0].mxu0
        %v1313 = vadd.f32 %v1190, %v1312
        %v1314 = vpop.f32.mrb[0].mxu0
        %v1315 = vadd.f32 %v1192, %v1314
        %1316 = vmatprep.mubr.f32.mxu0 0.0
        %v1317 = vand.u32 %v521, 4294901760
        %1318 = vmatmul.mubr.f32.gmra.mrb[0].mxu0 %v1317
        %v1319 = vpop.f32.mrb[0].mxu0
        %v1320 = vadd.f32 %v1197, %v1319
        %v1321 = vpop.f32.mrb[0].mxu0
        %v1322 = vadd.f32 %v1199, %v1321
        %1323 = vmatprep.mubr.f32.mxu0 0.0
        %v1324 = vand.u32 %v524, 4294901760
        %1325 = vmatmul.mubr.f32.gmra.mrb[0].mxu0 %v1324
        %v1326 = vpop.f32.mrb[0].mxu0
        %v1327 = vadd.f32 %v1204, %v1326
        %v1328 = vpop.f32.mrb[0].mxu0
        %v1329 = vadd.f32 %v1206, %v1328
        %1330 = vmatprep.mubr.f32.mxu0 0.0
        %v1331 = vand.u32 %v527, 4294901760
        %1332 = vmatmul.mubr.f32.gmra.mrb[0].mxu0 %v1331
        %v1333 = vpop.f32.mrb[0].mxu0
        %v1334 = vadd.f32 %v1211, %v1333
        %v1335 = vpop.f32.mrb[0].mxu0
        %v1336 = vadd.f32 %v1213, %v1335
        %1337 = vmatprep.mubr.f32.mxu0 0.0
        %v1338 = vand.u32 %v530, 4294901760
        %1339 = vmatmul.mubr.f32.gmra.mrb[0].mxu0 %v1338
        %v1340 = vpop.f32.mrb[0].mxu0
        %v1341 = vadd.f32 %v1218, %v1340
        %v1342 = vpop.f32.mrb[0].mxu0
        %v1343 = vadd.f32 %v1220, %v1342
        %1344 = vmatprep.mubr.f32.mxu0 0.0
        %v1345 = vand.u32 %v533, 4294901760
        %1346 = vmatmul.mubr.f32.gmra.mrb[0].mxu0 %v1345
        %v1347 = vpop.f32.mrb[0].mxu0
        %v1348 = vadd.f32 %v1225, %v1347
        %v1349 = vpop.f32.mrb[0].mxu0
        %v1350 = vadd.f32 %v1227, %v1349
        %1351 = vdwg.mxu0
        %v1352 = vand.u32 %v542, 4294901760
        %1353 = vmatprep.subr.mxu0 %v1352
        %v1354 = vand.u32 %v540, 4294901760
        %1355 = vmatpush1.msra.mxu0 %v1354
        %1356 = vmatprep.subr.mxu0 0.0
        %1357 = vmatpush1.msra.mxu0 0.0
        %1358 = vmatprep.subr.mxu0 0.0
        %1359 = vmatpush1.msra.mxu0 0.0
        %1360 = vmatprep.subr.mxu0 0.0
        %1361 = vmatpush1.msra.mxu0 0.0
        %1362 = vmatprep.subr.mxu0 0.0
        %1363 = vmatpush1.msra.mxu0 0.0
        %1364 = vmatprep.subr.mxu0 0.0
        %1365 = vmatpush1.msra.mxu0 0.0
        %1366 = vmatprep.subr.mxu0 0.0
        %1367 = vmatpush1.msra.mxu0 0.0
        %1368 = vmatprep.subr.mxu0 0.0
        %1369 = vmatpush1.msra.mxu0 0.0
        %1370 = vmatprep.subr.mxu0 0.0
        %1371 = vmatpush1.msra.mxu0 0.0
        %1372 = vmatprep.subr.mxu0 0.0
        %1373 = vmatpush1.msra.mxu0 0.0
        %1374 = vmatprep.subr.mxu0 0.0
        %1375 = vmatpush1.msra.mxu0 0.0
        %1376 = vmatprep.subr.mxu0 0.0
        %1377 = vmatpush1.msra.mxu0 0.0
        %1378 = vmatprep.subr.mxu0 0.0
        %1379 = vmatpush1.msra.mxu0 0.0
        %1380 = vmatprep.subr.mxu0 0.0
        %1381 = vmatpush1.msra.mxu0 0.0
        %1382 = vmatprep.subr.mxu0 0.0
        %1383 = vmatpush1.msra.mxu0 0.0
        %1384 = vmatprep.subr.mxu0 0.0
        %1385 = vmatpush1.msra.mxu0 0.0
        %1386 = vmatprep.subr.mxu0 0.0
        %1387 = vmatpush1.msra.mxu0 0.0
        %1388 = vmatprep.subr.mxu0 0.0
        %1389 = vmatpush1.msra.mxu0 0.0
        %1390 = vmatprep.subr.mxu0 0.0
        %1391 = vmatpush1.msra.mxu0 0.0
        %1392 = vmatprep.subr.mxu0 0.0
        %1393 = vmatpush1.msra.mxu0 0.0
        %1394 = vmatprep.subr.mxu0 0.0
        %1395 = vmatpush1.msra.mxu0 0.0
        %1396 = vmatprep.subr.mxu0 0.0
        %1397 = vmatpush1.msra.mxu0 0.0
        %1398 = vmatprep.subr.mxu0 0.0
        %1399 = vmatpush1.msra.mxu0 0.0
        %1400 = vmatprep.subr.mxu0 0.0
        %1401 = vmatpush1.msra.mxu0 0.0
        %1402 = vmatprep.subr.mxu0 0.0
        %1403 = vmatpush1.msra.mxu0 0.0
        %1404 = vmatprep.subr.mxu0 0.0
        %1405 = vmatpush1.msra.mxu0 0.0
        %1406 = vmatprep.subr.mxu0 0.0
        %1407 = vmatpush1.msra.mxu0 0.0
        %1408 = vmatprep.subr.mxu0 0.0
        %1409 = vmatpush1.msra.mxu0 0.0
        %1410 = vmatprep.subr.mxu0 0.0
        %1411 = vmatpush1.msra.mxu0 0.0
        %1412 = vmatprep.subr.mxu0 0.0
        %1413 = vmatpush1.msra.mxu0 0.0
        %1414 = vmatprep.subr.mxu0 0.0
        %1415 = vmatpush1.msra.mxu0 0.0
        %1416 = vmatprep.subr.mxu0 0.0
        %1417 = vmatpush1.msra.mxu0 0.0
        %1418 = vmatprep.mubr.f32.mxu0 0.0
        %v1419 = vand.u32 %v512, 4294901760
        %v1420 = vsub.f32 %v512, %v1419
        %v1421 = vand.u32 %v1420, 4294901760
        %v1422 = vsub.f32 %v1420, %v1421
        %v1423 = vand.u32 %v1422, 4294901760
        %1424 = vmatmul.mubr.f32.gmra.mrb[0].mxu0 %v1423
        %v1425 = vpop.f32.mrb[0].mxu0
        %v1426 = vadd.f32 %v455, %v1425
        %v1427 = vpop.f32.mrb[0].mxu0
        %v1428 = vadd.f32 %v455, %v1427
        %1429 = vmatprep.mubr.f32.mxu0 0.0
        %v1430 = vand.u32 %v515, 4294901760
        %v1431 = vsub.f32 %v515, %v1430
        %v1432 = vand.u32 %v1431, 4294901760
        %v1433 = vsub.f32 %v1431, %v1432
        %v1434 = vand.u32 %v1433, 4294901760
        %1435 = vmatmul.mubr.f32.gmra.mrb[0].mxu0 %v1434
        %v1436 = vpop.f32.mrb[0].mxu0
        %v1437 = vadd.f32 %v460, %v1436
        %v1438 = vpop.f32.mrb[0].mxu0
        %v1439 = vadd.f32 %v460, %v1438
        %1440 = vmatprep.mubr.f32.mxu0 0.0
        %v1441 = vand.u32 %v518, 4294901760
        %v1442 = vsub.f32 %v518, %v1441
        %v1443 = vand.u32 %v1442, 4294901760
        %v1444 = vsub.f32 %v1442, %v1443
        %v1445 = vand.u32 %v1444, 4294901760
        %1446 = vmatmul.mubr.f32.gmra.mrb[0].mxu0 %v1445
        %v1447 = vpop.f32.mrb[0].mxu0
        %v1448 = vadd.f32 %v465, %v1447
        %v1449 = vpop.f32.mrb[0].mxu0
        %v1450 = vadd.f32 %v465, %v1449
        %1451 = vmatprep.mubr.f32.mxu0 0.0
        %v1452 = vand.u32 %v521, 4294901760
        %v1453 = vsub.f32 %v521, %v1452
        %v1454 = vand.u32 %v1453, 4294901760
        %v1455 = vsub.f32 %v1453, %v1454
        %v1456 = vand.u32 %v1455, 4294901760
        %1457 = vmatmul.mubr.f32.gmra.mrb[0].mxu0 %v1456
        %v1458 = vpop.f32.mrb[0].mxu0
        %v1459 = vadd.f32 %v470, %v1458
        %v1460 = vpop.f32.mrb[0].mxu0
        %v1461 = vadd.f32 %v470, %v1460
        %1462 = vmatprep.mubr.f32.mxu0 0.0
        %v1463 = vand.u32 %v524, 4294901760
        %v1464 = vsub.f32 %v524, %v1463
        %v1465 = vand.u32 %v1464, 4294901760
        %v1466 = vsub.f32 %v1464, %v1465
        %v1467 = vand.u32 %v1466, 4294901760
        %1468 = vmatmul.mubr.f32.gmra.mrb[0].mxu0 %v1467
        %v1469 = vpop.f32.mrb[0].mxu0
        %v1470 = vadd.f32 %v475, %v1469
        %v1471 = vpop.f32.mrb[0].mxu0
        %v1472 = vadd.f32 %v475, %v1471
        %1473 = vmatprep.mubr.f32.mxu0 0.0
        %v1474 = vand.u32 %v527, 4294901760
        %v1475 = vsub.f32 %v527, %v1474
        %v1476 = vand.u32 %v1475, 4294901760
        %v1477 = vsub.f32 %v1475, %v1476
        %v1478 = vand.u32 %v1477, 4294901760
        %1479 = vmatmul.mubr.f32.gmra.mrb[0].mxu0 %v1478
        %v1480 = vpop.f32.mrb[0].mxu0
        %v1481 = vadd.f32 %v480, %v1480
        %v1482 = vpop.f32.mrb[0].mxu0
        %v1483 = vadd.f32 %v480, %v1482
        %1484 = vmatprep.mubr.f32.mxu0 0.0
        %v1485 = vand.u32 %v530, 4294901760
        %v1486 = vsub.f32 %v530, %v1485
        %v1487 = vand.u32 %v1486, 4294901760
        %v1488 = vsub.f32 %v1486, %v1487
        %v1489 = vand.u32 %v1488, 4294901760
        %1490 = vmatmul.mubr.f32.gmra.mrb[0].mxu0 %v1489
        %v1491 = vpop.f32.mrb[0].mxu0
        %v1492 = vadd.f32 %v485, %v1491
        %v1493 = vpop.f32.mrb[0].mxu0
        %v1494 = vadd.f32 %v485, %v1493
        %1495 = vmatprep.mubr.f32.mxu0 0.0
        %v1496 = vand.u32 %v533, 4294901760
        %v1497 = vsub.f32 %v533, %v1496
        %v1498 = vand.u32 %v1497, 4294901760
        %v1499 = vsub.f32 %v1497, %v1498
        %v1500 = vand.u32 %v1499, 4294901760
        %1501 = vmatmul.mubr.f32.gmra.mrb[0].mxu0 %v1500
        %v1502 = vpop.f32.mrb[0].mxu0
        %v1503 = vadd.f32 %v490, %v1502
        %v1504 = vpop.f32.mrb[0].mxu0
        %v1505 = vadd.f32 %v490, %v1504
        %1506 = vdwg.mxu0
        %v1507 = vand.u32 %v542, 4294901760
        %v1508 = vsub.f32 %v542, %v1507
        %v1509 = vand.u32 %v1508, 4294901760
        %v1510 = vsub.f32 %v1508, %v1509
        %v1511 = vand.u32 %v1510, 4294901760
        %1512 = vmatprep.subr.mxu0 %v1511
        %v1513 = vand.u32 %v540, 4294901760
        %v1514 = vsub.f32 %v540, %v1513
        %v1515 = vand.u32 %v1514, 4294901760
        %v1516 = vsub.f32 %v1514, %v1515
        %v1517 = vand.u32 %v1516, 4294901760
        %1518 = vmatpush1.msra.mxu0 %v1517
        %1519 = vmatprep.subr.mxu0 0.0
        %1520 = vmatpush1.msra.mxu0 0.0
        %1521 = vmatprep.subr.mxu0 0.0
        %1522 = vmatpush1.msra.mxu0 0.0
        %1523 = vmatprep.subr.mxu0 0.0
        %1524 = vmatpush1.msra.mxu0 0.0
        %1525 = vmatprep.subr.mxu0 0.0
        %1526 = vmatpush1.msra.mxu0 0.0
        %1527 = vmatprep.subr.mxu0 0.0
        %1528 = vmatpush1.msra.mxu0 0.0
        %1529 = vmatprep.subr.mxu0 0.0
        %1530 = vmatpush1.msra.mxu0 0.0
        %1531 = vmatprep.subr.mxu0 0.0
        %1532 = vmatpush1.msra.mxu0 0.0
        %1533 = vmatprep.subr.mxu0 0.0
        %1534 = vmatpush1.msra.mxu0 0.0
        %1535 = vmatprep.subr.mxu0 0.0
        %1536 = vmatpush1.msra.mxu0 0.0
        %1537 = vmatprep.subr.mxu0 0.0
        %1538 = vmatpush1.msra.mxu0 0.0
        %1539 = vmatprep.subr.mxu0 0.0
        %1540 = vmatpush1.msra.mxu0 0.0
        %1541 = vmatprep.subr.mxu0 0.0
        %1542 = vmatpush1.msra.mxu0 0.0
        %1543 = vmatprep.subr.mxu0 0.0
        %1544 = vmatpush1.msra.mxu0 0.0
        %1545 = vmatprep.subr.mxu0 0.0
        %1546 = vmatpush1.msra.mxu0 0.0
        %1547 = vmatprep.subr.mxu0 0.0
        %1548 = vmatpush1.msra.mxu0 0.0
        %1549 = vmatprep.subr.mxu0 0.0
        %1550 = vmatpush1.msra.mxu0 0.0
        %1551 = vmatprep.subr.mxu0 0.0
        %1552 = vmatpush1.msra.mxu0 0.0
        %1553 = vmatprep.subr.mxu0 0.0
        %1554 = vmatpush1.msra.mxu0 0.0
        %1555 = vmatprep.subr.mxu0 0.0
        %1556 = vmatpush1.msra.mxu0 0.0
        %1557 = vmatprep.subr.mxu0 0.0
        %1558 = vmatpush1.msra.mxu0 0.0
        %1559 = vmatprep.subr.mxu0 0.0
        %1560 = vmatpush1.msra.mxu0 0.0
        %1561 = vmatprep.subr.mxu0 0.0
        %1562 = vmatpush1.msra.mxu0 0.0
        %1563 = vmatprep.subr.mxu0 0.0
        %1564 = vmatpush1.msra.mxu0 0.0
        %1565 = vmatprep.subr.mxu0 0.0
        %1566 = vmatpush1.msra.mxu0 0.0
        %1567 = vmatprep.subr.mxu0 0.0
        %1568 = vmatpush1.msra.mxu0 0.0
        %1569 = vmatprep.subr.mxu0 0.0
        %1570 = vmatpush1.msra.mxu0 0.0
        %1571 = vmatprep.subr.mxu0 0.0
        %1572 = vmatpush1.msra.mxu0 0.0
        %1573 = vmatprep.subr.mxu0 0.0
        %1574 = vmatpush1.msra.mxu0 0.0
        %1575 = vmatprep.subr.mxu0 0.0
        %1576 = vmatpush1.msra.mxu0 0.0
        %1577 = vmatprep.subr.mxu0 0.0
        %1578 = vmatpush1.msra.mxu0 0.0
        %1579 = vmatprep.subr.mxu0 0.0
        %1580 = vmatpush1.msra.mxu0 0.0
        %1581 = vmatprep.mubr.f32.mxu0 0.0
        %v1582 = vand.u32 %v512, 4294901760
        %1583 = vmatmul.mubr.f32.gmra.mrb[0].mxu0 %v1582
        %v1584 = vpop.f32.mrb[0].mxu0
        %v1585 = vadd.f32 %v1426, %v1584
        %v1586 = vpop.f32.mrb[0].mxu0
        %v1587 = vadd.f32 %v1428, %v1586
        %1588 = vmatprep.mubr.f32.mxu0 0.0
        %v1589 = vand.u32 %v515, 4294901760
        %1590 = vmatmul.mubr.f32.gmra.mrb[0].mxu0 %v1589
        %v1591 = vpop.f32.mrb[0].mxu0
        %v1592 = vadd.f32 %v1437, %v1591
        %v1593 = vpop.f32.mrb[0].mxu0
        %v1594 = vadd.f32 %v1439, %v1593
        %1595 = vmatprep.mubr.f32.mxu0 0.0
        %v1596 = vand.u32 %v518, 4294901760
        %1597 = vmatmul.mubr.f32.gmra.mrb[0].mxu0 %v1596
        %v1598 = vpop.f32.mrb[0].mxu0
        %v1599 = vadd.f32 %v1448, %v1598
        %v1600 = vpop.f32.mrb[0].mxu0
        %v1601 = vadd.f32 %v1450, %v1600
        %1602 = vmatprep.mubr.f32.mxu0 0.0
        %v1603 = vand.u32 %v521, 4294901760
        %1604 = vmatmul.mubr.f32.gmra.mrb[0].mxu0 %v1603
        %v1605 = vpop.f32.mrb[0].mxu0
        %v1606 = vadd.f32 %v1459, %v1605
        %v1607 = vpop.f32.mrb[0].mxu0
        %v1608 = vadd.f32 %v1461, %v1607
        %1609 = vmatprep.mubr.f32.mxu0 0.0
        %v1610 = vand.u32 %v524, 4294901760
        %1611 = vmatmul.mubr.f32.gmra.mrb[0].mxu0 %v1610
        %v1612 = vpop.f32.mrb[0].mxu0
        %v1613 = vadd.f32 %v1470, %v1612
        %v1614 = vpop.f32.mrb[0].mxu0
        %v1615 = vadd.f32 %v1472, %v1614
        %1616 = vmatprep.mubr.f32.mxu0 0.0
        %v1617 = vand.u32 %v527, 4294901760
        %1618 = vmatmul.mubr.f32.gmra.mrb[0].mxu0 %v1617
        %v1619 = vpop.f32.mrb[0].mxu0
        %v1620 = vadd.f32 %v1481, %v1619
        %v1621 = vpop.f32.mrb[0].mxu0
        %v1622 = vadd.f32 %v1483, %v1621
        %1623 = vmatprep.mubr.f32.mxu0 0.0
        %v1624 = vand.u32 %v530, 4294901760
        %1625 = vmatmul.mubr.f32.gmra.mrb[0].mxu0 %v1624
        %v1626 = vpop.f32.mrb[0].mxu0
        %v1627 = vadd.f32 %v1492, %v1626
        %v1628 = vpop.f32.mrb[0].mxu0
        %v1629 = vadd.f32 %v1494, %v1628
        %1630 = vmatprep.mubr.f32.mxu0 0.0
        %v1631 = vand.u32 %v533, 4294901760
        %1632 = vmatmul.mubr.f32.gmra.mrb[0].mxu0 %v1631
        %v1633 = vpop.f32.mrb[0].mxu0
        %v1634 = vadd.f32 %v1503, %v1633
        %v1635 = vpop.f32.mrb[0].mxu0
        %v1636 = vadd.f32 %v1505, %v1635
        %1637 = vdwg.mxu0
        %v1638 = vand.u32 %v542, 4294901760
        %v1639 = vsub.f32 %v542, %v1638
        %1640 = vmatprep.subr.mxu0 %v1639
        %v1641 = vand.u32 %v540, 4294901760
        %v1642 = vsub.f32 %v540, %v1641
        %1643 = vmatpush1.msra.mxu0 %v1642
        %1644 = vmatprep.subr.mxu0 0.0
        %1645 = vmatpush1.msra.mxu0 0.0
        %1646 = vmatprep.subr.mxu0 0.0
        %1647 = vmatpush1.msra.mxu0 0.0
        %1648 = vmatprep.subr.mxu0 0.0
        %1649 = vmatpush1.msra.mxu0 0.0
        %1650 = vmatprep.subr.mxu0 0.0
        %1651 = vmatpush1.msra.mxu0 0.0
        %1652 = vmatprep.subr.mxu0 0.0
        %1653 = vmatpush1.msra.mxu0 0.0
        %1654 = vmatprep.subr.mxu0 0.0
        %1655 = vmatpush1.msra.mxu0 0.0
        %1656 = vmatprep.subr.mxu0 0.0
        %1657 = vmatpush1.msra.mxu0 0.0
        %1658 = vmatprep.subr.mxu0 0.0
        %1659 = vmatpush1.msra.mxu0 0.0
        %1660 = vmatprep.subr.mxu0 0.0
        %1661 = vmatpush1.msra.mxu0 0.0
        %1662 = vmatprep.subr.mxu0 0.0
        %1663 = vmatpush1.msra.mxu0 0.0
        %1664 = vmatprep.subr.mxu0 0.0
        %1665 = vmatpush1.msra.mxu0 0.0
        %1666 = vmatprep.subr.mxu0 0.0
        %1667 = vmatpush1.msra.mxu0 0.0
        %1668 = vmatprep.subr.mxu0 0.0
        %1669 = vmatpush1.msra.mxu0 0.0
        %1670 = vmatprep.subr.mxu0 0.0
        %1671 = vmatpush1.msra.mxu0 0.0
        %1672 = vmatprep.subr.mxu0 0.0
        %1673 = vmatpush1.msra.mxu0 0.0
        %1674 = vmatprep.subr.mxu0 0.0
        %1675 = vmatpush1.msra.mxu0 0.0
        %1676 = vmatprep.subr.mxu0 0.0
        %1677 = vmatpush1.msra.mxu0 0.0
        %1678 = vmatprep.subr.mxu0 0.0
        %1679 = vmatpush1.msra.mxu0 0.0
        %1680 = vmatprep.subr.mxu0 0.0
        %1681 = vmatpush1.msra.mxu0 0.0
        %1682 = vmatprep.subr.mxu0 0.0
        %1683 = vmatpush1.msra.mxu0 0.0
        %1684 = vmatprep.subr.mxu0 0.0
        %1685 = vmatpush1.msra.mxu0 0.0
        %1686 = vmatprep.subr.mxu0 0.0
        %1687 = vmatpush1.msra.mxu0 0.0
        %1688 = vmatprep.subr.mxu0 0.0
        %1689 = vmatpush1.msra.mxu0 0.0
        %1690 = vmatprep.subr.mxu0 0.0
        %1691 = vmatpush1.msra.mxu0 0.0
        %1692 = vmatprep.subr.mxu0 0.0
        %1693 = vmatpush1.msra.mxu0 0.0
        %1694 = vmatprep.subr.mxu0 0.0
        %1695 = vmatpush1.msra.mxu0 0.0
        %1696 = vmatprep.subr.mxu0 0.0
        %1697 = vmatpush1.msra.mxu0 0.0
        %1698 = vmatprep.subr.mxu0 0.0
        %1699 = vmatpush1.msra.mxu0 0.0
        %1700 = vmatprep.subr.mxu0 0.0
        %1701 = vmatpush1.msra.mxu0 0.0
        %1702 = vmatprep.subr.mxu0 0.0
        %1703 = vmatpush1.msra.mxu0 0.0
        %1704 = vmatprep.subr.mxu0 0.0
        %1705 = vmatpush1.msra.mxu0 0.0
        %1706 = vmatprep.mubr.f32.mxu0 0.0
        %v1707 = vand.u32 %v512, 4294901760
        %v1708 = vsub.f32 %v512, %v1707
        %1709 = vmatmul.mubr.f32.gmra.mrb[0].mxu0 %v1708
        %v1710 = vpop.f32.mrb[0].mxu0
        %v1711 = vadd.f32 %v1585, %v1710
        %v1712 = vpop.f32.mrb[0].mxu0
        %v1713 = vadd.f32 %v1587, %v1712
        %1714 = vmatprep.mubr.f32.mxu0 0.0
        %v1715 = vand.u32 %v515, 4294901760
        %v1716 = vsub.f32 %v515, %v1715
        %1717 = vmatmul.mubr.f32.gmra.mrb[0].mxu0 %v1716
        %v1718 = vpop.f32.mrb[0].mxu0
        %v1719 = vadd.f32 %v1592, %v1718
        %v1720 = vpop.f32.mrb[0].mxu0
        %v1721 = vadd.f32 %v1594, %v1720
        %1722 = vmatprep.mubr.f32.mxu0 0.0
        %v1723 = vand.u32 %v518, 4294901760
        %v1724 = vsub.f32 %v518, %v1723
        %1725 = vmatmul.mubr.f32.gmra.mrb[0].mxu0 %v1724
        %v1726 = vpop.f32.mrb[0].mxu0
        %v1727 = vadd.f32 %v1599, %v1726
        %v1728 = vpop.f32.mrb[0].mxu0
        %v1729 = vadd.f32 %v1601, %v1728
        %1730 = vmatprep.mubr.f32.mxu0 0.0
        %v1731 = vand.u32 %v521, 4294901760
        %v1732 = vsub.f32 %v521, %v1731
        %1733 = vmatmul.mubr.f32.gmra.mrb[0].mxu0 %v1732
        %v1734 = vpop.f32.mrb[0].mxu0
        %v1735 = vadd.f32 %v1606, %v1734
        %v1736 = vpop.f32.mrb[0].mxu0
        %v1737 = vadd.f32 %v1608, %v1736
        %1738 = vmatprep.mubr.f32.mxu0 0.0
        %v1739 = vand.u32 %v524, 4294901760
        %v1740 = vsub.f32 %v524, %v1739
        %1741 = vmatmul.mubr.f32.gmra.mrb[0].mxu0 %v1740
        %v1742 = vpop.f32.mrb[0].mxu0
        %v1743 = vadd.f32 %v1613, %v1742
        %v1744 = vpop.f32.mrb[0].mxu0
        %v1745 = vadd.f32 %v1615, %v1744
        %1746 = vmatprep.mubr.f32.mxu0 0.0
        %v1747 = vand.u32 %v527, 4294901760
        %v1748 = vsub.f32 %v527, %v1747
        %1749 = vmatmul.mubr.f32.gmra.mrb[0].mxu0 %v1748
        %v1750 = vpop.f32.mrb[0].mxu0
        %v1751 = vadd.f32 %v1620, %v1750
        %v1752 = vpop.f32.mrb[0].mxu0
        %v1753 = vadd.f32 %v1622, %v1752
        %1754 = vmatprep.mubr.f32.mxu0 0.0
        %v1755 = vand.u32 %v530, 4294901760
        %v1756 = vsub.f32 %v530, %v1755
        %1757 = vmatmul.mubr.f32.gmra.mrb[0].mxu0 %v1756
        %v1758 = vpop.f32.mrb[0].mxu0
        %v1759 = vadd.f32 %v1627, %v1758
        %v1760 = vpop.f32.mrb[0].mxu0
        %v1761 = vadd.f32 %v1629, %v1760
        %1762 = vmatprep.mubr.f32.mxu0 0.0
        %v1763 = vand.u32 %v533, 4294901760
        %v1764 = vsub.f32 %v533, %v1763
        %1765 = vmatmul.mubr.f32.gmra.mrb[0].mxu0 %v1764
        %v1766 = vpop.f32.mrb[0].mxu0
        %v1767 = vadd.f32 %v1634, %v1766
        %v1768 = vpop.f32.mrb[0].mxu0
        %v1769 = vadd.f32 %v1636, %v1768
        %1770 = vdwg.mxu0
        %v1771 = vand.u32 %v542, 4294901760
        %1772 = vmatprep.subr.mxu0 %v1771
        %v1773 = vand.u32 %v540, 4294901760
        %1774 = vmatpush1.msra.mxu0 %v1773
        %1775 = vmatprep.subr.mxu0 0.0
        %1776 = vmatpush1.msra.mxu0 0.0
        %1777 = vmatprep.subr.mxu0 0.0
        %1778 = vmatpush1.msra.mxu0 0.0
        %1779 = vmatprep.subr.mxu0 0.0
        %1780 = vmatpush1.msra.mxu0 0.0
        %1781 = vmatprep.subr.mxu0 0.0
        %1782 = vmatpush1.msra.mxu0 0.0
        %1783 = vmatprep.subr.mxu0 0.0
        %1784 = vmatpush1.msra.mxu0 0.0
        %1785 = vmatprep.subr.mxu0 0.0
        %1786 = vmatpush1.msra.mxu0 0.0
        %1787 = vmatprep.subr.mxu0 0.0
        %1788 = vmatpush1.msra.mxu0 0.0
        %1789 = vmatprep.subr.mxu0 0.0
        %1790 = vmatpush1.msra.mxu0 0.0
        %1791 = vmatprep.subr.mxu0 0.0
        %1792 = vmatpush1.msra.mxu0 0.0
        %1793 = vmatprep.subr.mxu0 0.0
        %1794 = vmatpush1.msra.mxu0 0.0
        %1795 = vmatprep.subr.mxu0 0.0
        %1796 = vmatpush1.msra.mxu0 0.0
        %1797 = vmatprep.subr.mxu0 0.0
        %1798 = vmatpush1.msra.mxu0 0.0
        %1799 = vmatprep.subr.mxu0 0.0
        %1800 = vmatpush1.msra.mxu0 0.0
        %1801 = vmatprep.subr.mxu0 0.0
        %1802 = vmatpush1.msra.mxu0 0.0
        %1803 = vmatprep.subr.mxu0 0.0
        %1804 = vmatpush1.msra.mxu0 0.0
        %1805 = vmatprep.subr.mxu0 0.0
        %1806 = vmatpush1.msra.mxu0 0.0
        %1807 = vmatprep.subr.mxu0 0.0
        %1808 = vmatpush1.msra.mxu0 0.0
        %1809 = vmatprep.subr.mxu0 0.0
        %1810 = vmatpush1.msra.mxu0 0.0
        %1811 = vmatprep.subr.mxu0 0.0
        %1812 = vmatpush1.msra.mxu0 0.0
        %1813 = vmatprep.subr.mxu0 0.0
        %1814 = vmatpush1.msra.mxu0 0.0
        %1815 = vmatprep.subr.mxu0 0.0
        %1816 = vmatpush1.msra.mxu0 0.0
        %1817 = vmatprep.subr.mxu0 0.0
        %1818 = vmatpush1.msra.mxu0 0.0
        %1819 = vmatprep.subr.mxu0 0.0
        %1820 = vmatpush1.msra.mxu0 0.0
        %1821 = vmatprep.subr.mxu0 0.0
        %1822 = vmatpush1.msra.mxu0 0.0
        %1823 = vmatprep.subr.mxu0 0.0
        %1824 = vmatpush1.msra.mxu0 0.0
        %1825 = vmatprep.subr.mxu0 0.0
        %1826 = vmatpush1.msra.mxu0 0.0
        %1827 = vmatprep.subr.mxu0 0.0
        %1828 = vmatpush1.msra.mxu0 0.0
        %1829 = vmatprep.subr.mxu0 0.0
        %1830 = vmatpush1.msra.mxu0 0.0
        %1831 = vmatprep.subr.mxu0 0.0
        %1832 = vmatpush1.msra.mxu0 0.0
        %1833 = vmatprep.subr.mxu0 0.0
        %1834 = vmatpush1.msra.mxu0 0.0
        %1835 = vmatprep.subr.mxu0 0.0
        %1836 = vmatpush1.msra.mxu0 0.0
        %1837 = vmatprep.mubr.f32.mxu0 0.0
        %v1838 = vand.u32 %v512, 4294901760
        %v1839 = vsub.f32 %v512, %v1838
        %v1840 = vand.u32 %v1839, 4294901760
        %1841 = vmatmul.mubr.f32.gmra.mrb[0].mxu0 %v1840
        %v1842 = vpop.f32.mrb[0].mxu0
        %v1843 = vadd.f32 %v1711, %v1842
        %v1844 = vpop.f32.mrb[0].mxu0
        %v1845 = vadd.f32 %v1713, %v1844
        %1846 = vmatprep.mubr.f32.mxu0 0.0
        %v1847 = vand.u32 %v515, 4294901760
        %v1848 = vsub.f32 %v515, %v1847
        %v1849 = vand.u32 %v1848, 4294901760
        %1850 = vmatmul.mubr.f32.gmra.mrb[0].mxu0 %v1849
        %v1851 = vpop.f32.mrb[0].mxu0
        %v1852 = vadd.f32 %v1719, %v1851
        %v1853 = vpop.f32.mrb[0].mxu0
        %v1854 = vadd.f32 %v1721, %v1853
        %1855 = vmatprep.mubr.f32.mxu0 0.0
        %v1856 = vand.u32 %v518, 4294901760
        %v1857 = vsub.f32 %v518, %v1856
        %v1858 = vand.u32 %v1857, 4294901760
        %1859 = vmatmul.mubr.f32.gmra.mrb[0].mxu0 %v1858
        %v1860 = vpop.f32.mrb[0].mxu0
        %v1861 = vadd.f32 %v1727, %v1860
        %v1862 = vpop.f32.mrb[0].mxu0
        %v1863 = vadd.f32 %v1729, %v1862
        %1864 = vmatprep.mubr.f32.mxu0 0.0
        %v1865 = vand.u32 %v521, 4294901760
        %v1866 = vsub.f32 %v521, %v1865
        %v1867 = vand.u32 %v1866, 4294901760
        %1868 = vmatmul.mubr.f32.gmra.mrb[0].mxu0 %v1867
        %v1869 = vpop.f32.mrb[0].mxu0
        %v1870 = vadd.f32 %v1735, %v1869
        %v1871 = vpop.f32.mrb[0].mxu0
        %v1872 = vadd.f32 %v1737, %v1871
        %1873 = vmatprep.mubr.f32.mxu0 0.0
        %v1874 = vand.u32 %v524, 4294901760
        %v1875 = vsub.f32 %v524, %v1874
        %v1876 = vand.u32 %v1875, 4294901760
        %1877 = vmatmul.mubr.f32.gmra.mrb[0].mxu0 %v1876
        %v1878 = vpop.f32.mrb[0].mxu0
        %v1879 = vadd.f32 %v1743, %v1878
        %v1880 = vpop.f32.mrb[0].mxu0
        %v1881 = vadd.f32 %v1745, %v1880
        %1882 = vmatprep.mubr.f32.mxu0 0.0
        %v1883 = vand.u32 %v527, 4294901760
        %v1884 = vsub.f32 %v527, %v1883
        %v1885 = vand.u32 %v1884, 4294901760
        %1886 = vmatmul.mubr.f32.gmra.mrb[0].mxu0 %v1885
        %v1887 = vpop.f32.mrb[0].mxu0
        %v1888 = vadd.f32 %v1751, %v1887
        %v1889 = vpop.f32.mrb[0].mxu0
        %v1890 = vadd.f32 %v1753, %v1889
        %1891 = vmatprep.mubr.f32.mxu0 0.0
        %v1892 = vand.u32 %v530, 4294901760
        %v1893 = vsub.f32 %v530, %v1892
        %v1894 = vand.u32 %v1893, 4294901760
        %1895 = vmatmul.mubr.f32.gmra.mrb[0].mxu0 %v1894
        %v1896 = vpop.f32.mrb[0].mxu0
        %v1897 = vadd.f32 %v1759, %v1896
        %v1898 = vpop.f32.mrb[0].mxu0
        %v1899 = vadd.f32 %v1761, %v1898
        %1900 = vmatprep.mubr.f32.mxu0 0.0
        %v1901 = vand.u32 %v533, 4294901760
        %v1902 = vsub.f32 %v533, %v1901
        %v1903 = vand.u32 %v1902, 4294901760
        %1904 = vmatmul.mubr.f32.gmra.mrb[0].mxu0 %v1903
        %v1905 = vpop.f32.mrb[0].mxu0
        %v1906 = vadd.f32 %v1767, %v1905
        %v1907 = vpop.f32.mrb[0].mxu0
        %v1908 = vadd.f32 %v1769, %v1907
        %1909 = vdwg.mxu0
        %v1910 = vand.u32 %v542, 4294901760
        %v1911 = vsub.f32 %v542, %v1910
        %v1912 = vand.u32 %v1911, 4294901760
        %1913 = vmatprep.subr.mxu0 %v1912
        %v1914 = vand.u32 %v540, 4294901760
        %v1915 = vsub.f32 %v540, %v1914
        %v1916 = vand.u32 %v1915, 4294901760
        %1917 = vmatpush1.msra.mxu0 %v1916
        %1918 = vmatprep.subr.mxu0 0.0
        %1919 = vmatpush1.msra.mxu0 0.0
        %1920 = vmatprep.subr.mxu0 0.0
        %1921 = vmatpush1.msra.mxu0 0.0
        %1922 = vmatprep.subr.mxu0 0.0
        %1923 = vmatpush1.msra.mxu0 0.0
        %1924 = vmatprep.subr.mxu0 0.0
        %1925 = vmatpush1.msra.mxu0 0.0
        %1926 = vmatprep.subr.mxu0 0.0
        %1927 = vmatpush1.msra.mxu0 0.0
        %1928 = vmatprep.subr.mxu0 0.0
        %1929 = vmatpush1.msra.mxu0 0.0
        %1930 = vmatprep.subr.mxu0 0.0
        %1931 = vmatpush1.msra.mxu0 0.0
        %1932 = vmatprep.subr.mxu0 0.0
        %1933 = vmatpush1.msra.mxu0 0.0
        %1934 = vmatprep.subr.mxu0 0.0
        %1935 = vmatpush1.msra.mxu0 0.0
        %1936 = vmatprep.subr.mxu0 0.0
        %1937 = vmatpush1.msra.mxu0 0.0
        %1938 = vmatprep.subr.mxu0 0.0
        %1939 = vmatpush1.msra.mxu0 0.0
        %1940 = vmatprep.subr.mxu0 0.0
        %1941 = vmatpush1.msra.mxu0 0.0
        %1942 = vmatprep.subr.mxu0 0.0
        %1943 = vmatpush1.msra.mxu0 0.0
        %1944 = vmatprep.subr.mxu0 0.0
        %1945 = vmatpush1.msra.mxu0 0.0
        %1946 = vmatprep.subr.mxu0 0.0
        %1947 = vmatpush1.msra.mxu0 0.0
        %1948 = vmatprep.subr.mxu0 0.0
        %1949 = vmatpush1.msra.mxu0 0.0
        %1950 = vmatprep.subr.mxu0 0.0
        %1951 = vmatpush1.msra.mxu0 0.0
        %1952 = vmatprep.subr.mxu0 0.0
        %1953 = vmatpush1.msra.mxu0 0.0
        %1954 = vmatprep.subr.mxu0 0.0
        %1955 = vmatpush1.msra.mxu0 0.0
        %1956 = vmatprep.subr.mxu0 0.0
        %1957 = vmatpush1.msra.mxu0 0.0
        %1958 = vmatprep.subr.mxu0 0.0
        %1959 = vmatpush1.msra.mxu0 0.0
        %1960 = vmatprep.subr.mxu0 0.0
        %1961 = vmatpush1.msra.mxu0 0.0
        %1962 = vmatprep.subr.mxu0 0.0
        %1963 = vmatpush1.msra.mxu0 0.0
        %1964 = vmatprep.subr.mxu0 0.0
        %1965 = vmatpush1.msra.mxu0 0.0
        %1966 = vmatprep.subr.mxu0 0.0
        %1967 = vmatpush1.msra.mxu0 0.0
        %1968 = vmatprep.subr.mxu0 0.0
        %1969 = vmatpush1.msra.mxu0 0.0
        %1970 = vmatprep.subr.mxu0 0.0
        %1971 = vmatpush1.msra.mxu0 0.0
        %1972 = vmatprep.subr.mxu0 0.0
        %1973 = vmatpush1.msra.mxu0 0.0
        %1974 = vmatprep.subr.mxu0 0.0
        %1975 = vmatpush1.msra.mxu0 0.0
        %1976 = vmatprep.subr.mxu0 0.0
        %1977 = vmatpush1.msra.mxu0 0.0
        %1978 = vmatprep.subr.mxu0 0.0
        %1979 = vmatpush1.msra.mxu0 0.0
        %1980 = vmatprep.mubr.f32.mxu0 0.0
        %v1981 = vand.u32 %v512, 4294901760
        %1982 = vmatmul.mubr.f32.gmra.mrb[0].mxu0 %v1981
        %v1983 = vpop.f32.mrb[0].mxu0
        %v1984 = vadd.f32 %v1843, %v1983
        %v1985 = vpop.f32.mrb[0].mxu0
        %v1986 = vadd.f32 %v1845, %v1985
        %1987 = vmatprep.mubr.f32.mxu0 0.0
        %v1988 = vand.u32 %v515, 4294901760
        %1989 = vmatmul.mubr.f32.gmra.mrb[0].mxu0 %v1988
        %v1990 = vpop.f32.mrb[0].mxu0
        %v1991 = vadd.f32 %v1852, %v1990
        %v1992 = vpop.f32.mrb[0].mxu0
        %v1993 = vadd.f32 %v1854, %v1992
        %1994 = vmatprep.mubr.f32.mxu0 0.0
        %v1995 = vand.u32 %v518, 4294901760
        %1996 = vmatmul.mubr.f32.gmra.mrb[0].mxu0 %v1995
        %v1997 = vpop.f32.mrb[0].mxu0
        %v1998 = vadd.f32 %v1861, %v1997
        %v1999 = vpop.f32.mrb[0].mxu0
        %v2000 = vadd.f32 %v1863, %v1999
        %2001 = vmatprep.mubr.f32.mxu0 0.0
        %v2002 = vand.u32 %v521, 4294901760
        %2003 = vmatmul.mubr.f32.gmra.mrb[0].mxu0 %v2002
        %v2004 = vpop.f32.mrb[0].mxu0
        %v2005 = vadd.f32 %v1870, %v2004
        %v2006 = vpop.f32.mrb[0].mxu0
        %v2007 = vadd.f32 %v1872, %v2006
        %2008 = vmatprep.mubr.f32.mxu0 0.0
        %v2009 = vand.u32 %v524, 4294901760
        %2010 = vmatmul.mubr.f32.gmra.mrb[0].mxu0 %v2009
        %v2011 = vpop.f32.mrb[0].mxu0
        %v2012 = vadd.f32 %v1879, %v2011
        %v2013 = vpop.f32.mrb[0].mxu0
        %v2014 = vadd.f32 %v1881, %v2013
        %2015 = vmatprep.mubr.f32.mxu0 0.0
        %v2016 = vand.u32 %v527, 4294901760
        %2017 = vmatmul.mubr.f32.gmra.mrb[0].mxu0 %v2016
        %v2018 = vpop.f32.mrb[0].mxu0
        %v2019 = vadd.f32 %v1888, %v2018
        %v2020 = vpop.f32.mrb[0].mxu0
        %v2021 = vadd.f32 %v1890, %v2020
        %2022 = vmatprep.mubr.f32.mxu0 0.0
        %v2023 = vand.u32 %v530, 4294901760
        %2024 = vmatmul.mubr.f32.gmra.mrb[0].mxu0 %v2023
        %v2025 = vpop.f32.mrb[0].mxu0
        %v2026 = vadd.f32 %v1897, %v2025
        %v2027 = vpop.f32.mrb[0].mxu0
        %v2028 = vadd.f32 %v1899, %v2027
        %2029 = vmatprep.mubr.f32.mxu0 0.0
        %v2030 = vand.u32 %v533, 4294901760
        %2031 = vmatmul.mubr.f32.gmra.mrb[0].mxu0 %v2030
        %v2032 = vpop.f32.mrb[0].mxu0
        %v2033 = vadd.f32 %v1906, %v2032
        %v2034 = vpop.f32.mrb[0].mxu0
        %v2035 = vadd.f32 %v1908, %v2034
        %2036 = vdwg.mxu0
        %v2037 = vand.u32 %v542, 4294901760
        %2038 = vmatprep.subr.mxu0 %v2037
        %v2039 = vand.u32 %v540, 4294901760
        %2040 = vmatpush1.msra.mxu0 %v2039
        %2041 = vmatprep.subr.mxu0 0.0
        %2042 = vmatpush1.msra.mxu0 0.0
        %2043 = vmatprep.subr.mxu0 0.0
        %2044 = vmatpush1.msra.mxu0 0.0
        %2045 = vmatprep.subr.mxu0 0.0
        %2046 = vmatpush1.msra.mxu0 0.0
        %2047 = vmatprep.subr.mxu0 0.0
        %2048 = vmatpush1.msra.mxu0 0.0
        %2049 = vmatprep.subr.mxu0 0.0
        %2050 = vmatpush1.msra.mxu0 0.0
        %2051 = vmatprep.subr.mxu0 0.0
        %2052 = vmatpush1.msra.mxu0 0.0
        %2053 = vmatprep.subr.mxu0 0.0
        %2054 = vmatpush1.msra.mxu0 0.0
        %2055 = vmatprep.subr.mxu0 0.0
        %2056 = vmatpush1.msra.mxu0 0.0
        %2057 = vmatprep.subr.mxu0 0.0
        %2058 = vmatpush1.msra.mxu0 0.0
        %2059 = vmatprep.subr.mxu0 0.0
        %2060 = vmatpush1.msra.mxu0 0.0
        %2061 = vmatprep.subr.mxu0 0.0
        %2062 = vmatpush1.msra.mxu0 0.0
        %2063 = vmatprep.subr.mxu0 0.0
        %2064 = vmatpush1.msra.mxu0 0.0
        %2065 = vmatprep.subr.mxu0 0.0
        %2066 = vmatpush1.msra.mxu0 0.0
        %2067 = vmatprep.subr.mxu0 0.0
        %2068 = vmatpush1.msra.mxu0 0.0
        %2069 = vmatprep.subr.mxu0 0.0
        %2070 = vmatpush1.msra.mxu0 0.0
        %2071 = vmatprep.subr.mxu0 0.0
        %2072 = vmatpush1.msra.mxu0 0.0
        %2073 = vmatprep.subr.mxu0 0.0
        %2074 = vmatpush1.msra.mxu0 0.0
        %2075 = vmatprep.subr.mxu0 0.0
        %2076 = vmatpush1.msra.mxu0 0.0
        %2077 = vmatprep.subr.mxu0 0.0
        %2078 = vmatpush1.msra.mxu0 0.0
        %2079 = vmatprep.subr.mxu0 0.0
        %2080 = vmatpush1.msra.mxu0 0.0
        %2081 = vmatprep.subr.mxu0 0.0
        %2082 = vmatpush1.msra.mxu0 0.0
        %2083 = vmatprep.subr.mxu0 0.0
        %2084 = vmatpush1.msra.mxu0 0.0
        %2085 = vmatprep.subr.mxu0 0.0
        %2086 = vmatpush1.msra.mxu0 0.0
        %2087 = vmatprep.subr.mxu0 0.0
        %2088 = vmatpush1.msra.mxu0 0.0
        %2089 = vmatprep.subr.mxu0 0.0
        %2090 = vmatpush1.msra.mxu0 0.0
        %2091 = vmatprep.subr.mxu0 0.0
        %2092 = vmatpush1.msra.mxu0 0.0
        %2093 = vmatprep.subr.mxu0 0.0
        %2094 = vmatpush1.msra.mxu0 0.0
        %2095 = vmatprep.subr.mxu0 0.0
        %2096 = vmatpush1.msra.mxu0 0.0
        %2097 = vmatprep.subr.mxu0 0.0
        %2098 = vmatpush1.msra.mxu0 0.0
        %2099 = vmatprep.subr.mxu0 0.0
        %2100 = vmatpush1.msra.mxu0 0.0
        %2101 = vmatprep.subr.mxu0 0.0
        %2102 = vmatpush1.msra.mxu0 0.0
        %2103 = vmatprep.mubr.f32.mxu0 0.0
        %v2104 = vand.u32 %v512, 4294901760
        %2105 = vmatmul.mubr.f32.gmra.mrb[0].mxu0 %v2104
        %v2106 = vpop.f32.mrb[0].mxu0
        %v2107 = vadd.f32 %v1984, %v2106
        %v2108 = vpop.f32.mrb[0].mxu0
        %v2109 = vadd.f32 %v1986, %v2108
        %2110 = vmatprep.mubr.f32.mxu0 0.0
        %v2111 = vand.u32 %v515, 4294901760
        %2112 = vmatmul.mubr.f32.gmra.mrb[0].mxu0 %v2111
        %v2113 = vpop.f32.mrb[0].mxu0
        %v2114 = vadd.f32 %v1991, %v2113
        %v2115 = vpop.f32.mrb[0].mxu0
        %v2116 = vadd.f32 %v1993, %v2115
        %2117 = vmatprep.mubr.f32.mxu0 0.0
        %v2118 = vand.u32 %v518, 4294901760
        %2119 = vmatmul.mubr.f32.gmra.mrb[0].mxu0 %v2118
        %v2120 = vpop.f32.mrb[0].mxu0
        %v2121 = vadd.f32 %v1998, %v2120
        %v2122 = vpop.f32.mrb[0].mxu0
        %v2123 = vadd.f32 %v2000, %v2122
        %2124 = vmatprep.mubr.f32.mxu0 0.0
        %v2125 = vand.u32 %v521, 4294901760
        %2126 = vmatmul.mubr.f32.gmra.mrb[0].mxu0 %v2125
        %v2127 = vpop.f32.mrb[0].mxu0
        %v2128 = vadd.f32 %v2005, %v2127
        %v2129 = vpop.f32.mrb[0].mxu0
        %v2130 = vadd.f32 %v2007, %v2129
        %2131 = vmatprep.mubr.f32.mxu0 0.0
        %v2132 = vand.u32 %v524, 4294901760
        %2133 = vmatmul.mubr.f32.gmra.mrb[0].mxu0 %v2132
        %v2134 = vpop.f32.mrb[0].mxu0
        %v2135 = vadd.f32 %v2012, %v2134
        %v2136 = vpop.f32.mrb[0].mxu0
        %v2137 = vadd.f32 %v2014, %v2136
        %2138 = vmatprep.mubr.f32.mxu0 0.0
        %v2139 = vand.u32 %v527, 4294901760
        %2140 = vmatmul.mubr.f32.gmra.mrb[0].mxu0 %v2139
        %v2141 = vpop.f32.mrb[0].mxu0
        %v2142 = vadd.f32 %v2019, %v2141
        %v2143 = vpop.f32.mrb[0].mxu0
        %v2144 = vadd.f32 %v2021, %v2143
        %2145 = vmatprep.mubr.f32.mxu0 0.0
        %v2146 = vand.u32 %v530, 4294901760
        %2147 = vmatmul.mubr.f32.gmra.mrb[0].mxu0 %v2146
        %v2148 = vpop.f32.mrb[0].mxu0
        %v2149 = vadd.f32 %v2026, %v2148
        %v2150 = vpop.f32.mrb[0].mxu0
        %v2151 = vadd.f32 %v2028, %v2150
        %2152 = vmatprep.mubr.f32.mxu0 0.0
        %v2153 = vand.u32 %v533, 4294901760
        %2154 = vmatmul.mubr.f32.gmra.mrb[0].mxu0 %v2153
        %v2155 = vpop.f32.mrb[0].mxu0
        %v2156 = vadd.f32 %v2033, %v2155
        %v2157 = vpop.f32.mrb[0].mxu0
        %v2158 = vadd.f32 %v2035, %v2157
        %2159 = vdwg.mxu0
        %v2160 = vtanh.pop %v1299
        %v2161 = vtanh.pop %v1301
        %v2162 = vtanh.pop %v2107
        %v2163 = vtanh.pop %v2109
        %v2164 = vtanh.pop %v1306
        %v2165 = vtanh.pop %v1308
        %v2166 = vtanh.pop %v2114
        %v2167 = vtanh.pop %v2116
        %v2168 = vtanh.pop %v1313
        %v2169 = vtanh.pop %v1315
        %v2170 = vtanh.pop %v2121
        %v2171 = vtanh.pop %v2123
        %v2172 = vtanh.pop %v1320
        %v2173 = vtanh.pop %v1322
        %v2174 = vtanh.pop %v2128
        %v2175 = vtanh.pop %v2130
        %v2176 = vtanh.pop %v1327
        %v2177 = vtanh.pop %v1329
        %v2178 = vtanh.pop %v2135
        %v2179 = vtanh.pop %v2137
        %v2180 = vtanh.pop %v1334
        %v2181 = vtanh.pop %v1336
        %v2182 = vtanh.pop %v2142
        %v2183 = vtanh.pop %v2144
        %v2184 = vtanh.pop %v1341
        %v2185 = vtanh.pop %v1343
        %v2186 = vtanh.pop %v2149
        %v2187 = vtanh.pop %v2151
        %v2188 = vtanh.pop %v1348
        %v2189 = vtanh.pop %v1350
        %v2190 = vtanh.pop %v2156
        %v2191 = vtanh.pop %v2158
        %v2192 = vld [vmem:[%s4] sm:$0xff]
        %v2193 = vld [vmem:[%s4 + $0x8] sm:$0xff]
        %v2194 = vld [vmem:[%s4 + $0x10] sm:$0xff]
        %v2195 = vld [vmem:[%s4 + $0x18] sm:$0xff]
        %v2196 = vld [vmem:[%s4 + $0x20] sm:$0xff]
        %v2197 = vld [vmem:[%s4 + $0x28] sm:$0xff]
        %v2198 = vld [vmem:[%s4 + $0x30] sm:$0xff]
        %v2199 = vld [vmem:[%s4 + $0x38] sm:$0xff]
        %v2200 = vld [vmem:[%s5] sm:$0xff]
        %v2201 = vld [vmem:[%s5 + $0x8] sm:$0xff]
        %v2202 = vld [vmem:[%s5 + $0x10] sm:$0xff]
        %v2203 = vld [vmem:[%s5 + $0x18] sm:$0xff]
        %v2204 = vld [vmem:[%s5 + $0x20] sm:$0xff]
        %v2205 = vld [vmem:[%s5 + $0x28] sm:$0xff]
        %v2206 = vld [vmem:[%s5 + $0x30] sm:$0xff]
        %v2207 = vld [vmem:[%s5 + $0x38] sm:$0xff]
        %2209 = vset.pattern.permute.xlu0 0
        %2210 = vperm.xlu0 %2209, %v2200
        %v2211 = vpop.permute.xlu0 %2210
        %2214 = vset.pattern.permute.xlu0 0
        %2215 = vperm.xlu0 %2214, %v2201
        %v2216 = vpop.permute.xlu0 %2215
        %2219 = vset.pattern.permute.xlu0 0
        %2220 = vperm.xlu0 %2219, %v2202
        %v2221 = vpop.permute.xlu0 %2220
        %2224 = vset.pattern.permute.xlu0 0
        %2225 = vperm.xlu0 %2224, %v2203
        %v2226 = vpop.permute.xlu0 %2225
        %2229 = vset.pattern.permute.xlu0 0
        %2230 = vperm.xlu0 %2229, %v2204
        %v2231 = vpop.permute.xlu0 %2230
        %2234 = vset.pattern.permute.xlu0 0
        %2235 = vperm.xlu0 %2234, %v2205
        %v2236 = vpop.permute.xlu0 %2235
        %2239 = vset.pattern.permute.xlu0 0
        %2240 = vperm.xlu0 %2239, %v2206
        %v2241 = vpop.permute.xlu0 %2240
        %2244 = vset.pattern.permute.xlu0 0
        %2245 = vperm.xlu0 %2244, %v2207
        %v2246 = vpop.permute.xlu0 %2245
        %vm2248 = vcmask 523264
        %v2250 = vsel %vm2248, %v2192, 0
        %v2253 = vsel %vm2248, %v2193, 0
        %v2256 = vsel %vm2248, %v2194, 0
        %v2259 = vsel %vm2248, %v2195, 0
        %v2262 = vsel %vm2248, %v2196, 0
        %v2265 = vsel %vm2248, %v2197, 0
        %v2268 = vsel %vm2248, %v2198, 0
        %v2271 = vsel %vm2248, %v2199, 0
        %v2273 = vand.u32 %v2161, 4294901760
        %2274 = vmatprep.subr.mxu0 %v2273
        %v2275 = vand.u32 %v2160, 4294901760
        %2276 = vmatpush1.msra.mxu0 %v2275
        %v2277 = vand.u32 %v2165, 4294901760
        %2278 = vmatprep.subr.mxu0 %v2277
        %v2279 = vand.u32 %v2164, 4294901760
        %2280 = vmatpush1.msra.mxu0 %v2279
        %v2281 = vand.u32 %v2169, 4294901760
        %2282 = vmatprep.subr.mxu0 %v2281
        %v2283 = vand.u32 %v2168, 4294901760
        %2284 = vmatpush1.msra.mxu0 %v2283
        %v2285 = vand.u32 %v2173, 4294901760
        %2286 = vmatprep.subr.mxu0 %v2285
        %v2287 = vand.u32 %v2172, 4294901760
        %2288 = vmatpush1.msra.mxu0 %v2287
        %v2289 = vand.u32 %v2177, 4294901760
        %2290 = vmatprep.subr.mxu0 %v2289
        %v2291 = vand.u32 %v2176, 4294901760
        %2292 = vmatpush1.msra.mxu0 %v2291
        %v2293 = vand.u32 %v2181, 4294901760
        %2294 = vmatprep.subr.mxu0 %v2293
        %v2295 = vand.u32 %v2180, 4294901760
        %2296 = vmatpush1.msra.mxu0 %v2295
        %v2297 = vand.u32 %v2185, 4294901760
        %2298 = vmatprep.subr.mxu0 %v2297
        %v2299 = vand.u32 %v2184, 4294901760
        %2300 = vmatpush1.msra.mxu0 %v2299
        %v2301 = vand.u32 %v2189, 4294901760
        %2302 = vmatprep.subr.mxu0 %v2301
        %v2303 = vand.u32 %v2188, 4294901760
        %2304 = vmatpush1.msra.mxu0 %v2303
        %2305 = vmatprep.subr.mxu0 0.0
        %2306 = vmatpush1.msra.mxu0 0.0
        %2307 = vmatprep.subr.mxu0 0.0
        %2308 = vmatpush1.msra.mxu0 0.0
        %2309 = vmatprep.subr.mxu0 0.0
        %2310 = vmatpush1.msra.mxu0 0.0
        %2311 = vmatprep.subr.mxu0 0.0
        %2312 = vmatpush1.msra.mxu0 0.0
        %2313 = vmatprep.subr.mxu0 0.0
        %2314 = vmatpush1.msra.mxu0 0.0
        %2315 = vmatprep.subr.mxu0 0.0
        %2316 = vmatpush1.msra.mxu0 0.0
        %2317 = vmatprep.subr.mxu0 0.0
        %2318 = vmatpush1.msra.mxu0 0.0
        %2319 = vmatprep.subr.mxu0 0.0
        %2320 = vmatpush1.msra.mxu0 0.0
        %2321 = vmatprep.subr.mxu0 0.0
        %2322 = vmatpush1.msra.mxu0 0.0
        %2323 = vmatprep.subr.mxu0 0.0
        %2324 = vmatpush1.msra.mxu0 0.0
        %2325 = vmatprep.subr.mxu0 0.0
        %2326 = vmatpush1.msra.mxu0 0.0
        %2327 = vmatprep.subr.mxu0 0.0
        %2328 = vmatpush1.msra.mxu0 0.0
        %2329 = vmatprep.subr.mxu0 0.0
        %2330 = vmatpush1.msra.mxu0 0.0
        %2331 = vmatprep.subr.mxu0 0.0
        %2332 = vmatpush1.msra.mxu0 0.0
        %2333 = vmatprep.subr.mxu0 0.0
        %2334 = vmatpush1.msra.mxu0 0.0
        %2335 = vmatprep.subr.mxu0 0.0
        %2336 = vmatpush1.msra.mxu0 0.0
        %2337 = vmatprep.subr.mxu0 0.0
        %2338 = vmatpush1.msra.mxu0 0.0
        %2339 = vmatprep.subr.mxu0 0.0
        %2340 = vmatpush1.msra.mxu0 0.0
        %2341 = vmatprep.subr.mxu0 0.0
        %2342 = vmatpush1.msra.mxu0 0.0
        %2343 = vmatprep.subr.mxu0 0.0
        %2344 = vmatpush1.msra.mxu0 0.0
        %2345 = vmatprep.subr.mxu0 0.0
        %2346 = vmatpush1.msra.mxu0 0.0
        %2347 = vmatprep.subr.mxu0 0.0
        %2348 = vmatpush1.msra.mxu0 0.0
        %2349 = vmatprep.subr.mxu0 0.0
        %2350 = vmatpush1.msra.mxu0 0.0
        %2351 = vmatprep.subr.mxu0 0.0
        %2352 = vmatpush1.msra.mxu0 0.0
        %2353 = vmatprep.mubr.f32.mxu0 0.0
        %v2354 = vand.u32 %v2250, 4294901760
        %v2355 = vsub.f32 %v2250, %v2354
        %v2356 = vand.u32 %v2355, 4294901760
        %v2357 = vsub.f32 %v2355, %v2356
        %v2358 = vand.u32 %v2357, 4294901760
        %2359 = vmatmul.mubr.f32.gmra.mrb[0].mxu0 %v2358
        %v2360 = vpop.f32.mrb[0].mxu0
        %v2361 = vadd.f32 %v2211, %v2360
        %v2362 = vpop.f32.mrb[0].mxu0
        %v2363 = vadd.f32 %v2211, %v2362
        %2364 = vmatprep.mubr.f32.mxu0 0.0
        %v2365 = vand.u32 %v2253, 4294901760
        %v2366 = vsub.f32 %v2253, %v2365
        %v2367 = vand.u32 %v2366, 4294901760
        %v2368 = vsub.f32 %v2366, %v2367
        %v2369 = vand.u32 %v2368, 4294901760
        %2370 = vmatmul.mubr.f32.gmra.mrb[0].mxu0 %v2369
        %v2371 = vpop.f32.mrb[0].mxu0
        %v2372 = vadd.f32 %v2216, %v2371
        %v2373 = vpop.f32.mrb[0].mxu0
        %v2374 = vadd.f32 %v2216, %v2373
        %2375 = vmatprep.mubr.f32.mxu0 0.0
        %v2376 = vand.u32 %v2256, 4294901760
        %v2377 = vsub.f32 %v2256, %v2376
        %v2378 = vand.u32 %v2377, 4294901760
        %v2379 = vsub.f32 %v2377, %v2378
        %v2380 = vand.u32 %v2379, 4294901760
        %2381 = vmatmul.mubr.f32.gmra.mrb[0].mxu0 %v2380
        %v2382 = vpop.f32.mrb[0].mxu0
        %v2383 = vadd.f32 %v2221, %v2382
        %v2384 = vpop.f32.mrb[0].mxu0
        %v2385 = vadd.f32 %v2221, %v2384
        %2386 = vmatprep.mubr.f32.mxu0 0.0
        %v2387 = vand.u32 %v2259, 4294901760
        %v2388 = vsub.f32 %v2259, %v2387
        %v2389 = vand.u32 %v2388, 4294901760
        %v2390 = vsub.f32 %v2388, %v2389
        %v2391 = vand.u32 %v2390, 4294901760
        %2392 = vmatmul.mubr.f32.gmra.mrb[0].mxu0 %v2391
        %v2393 = vpop.f32.mrb[0].mxu0
        %v2394 = vadd.f32 %v2226, %v2393
        %v2395 = vpop.f32.mrb[0].mxu0
        %v2396 = vadd.f32 %v2226, %v2395
        %2397 = vmatprep.mubr.f32.mxu0 0.0
        %v2398 = vand.u32 %v2262, 4294901760
        %v2399 = vsub.f32 %v2262, %v2398
        %v2400 = vand.u32 %v2399, 4294901760
        %v2401 = vsub.f32 %v2399, %v2400
        %v2402 = vand.u32 %v2401, 4294901760
        %2403 = vmatmul.mubr.f32.gmra.mrb[0].mxu0 %v2402
        %v2404 = vpop.f32.mrb[0].mxu0
        %v2405 = vadd.f32 %v2231, %v2404
        %v2406 = vpop.f32.mrb[0].mxu0
        %v2407 = vadd.f32 %v2231, %v2406
        %2408 = vmatprep.mubr.f32.mxu0 0.0
        %v2409 = vand.u32 %v2265, 4294901760
        %v2410 = vsub.f32 %v2265, %v2409
        %v2411 = vand.u32 %v2410, 4294901760
        %v2412 = vsub.f32 %v2410, %v2411
        %v2413 = vand.u32 %v2412, 4294901760
        %2414 = vmatmul.mubr.f32.gmra.mrb[0].mxu0 %v2413
        %v2415 = vpop.f32.mrb[0].mxu0
        %v2416 = vadd.f32 %v2236, %v2415
        %v2417 = vpop.f32.mrb[0].mxu0
        %v2418 = vadd.f32 %v2236, %v2417
        %2419 = vmatprep.mubr.f32.mxu0 0.0
        %v2420 = vand.u32 %v2268, 4294901760
        %v2421 = vsub.f32 %v2268, %v2420
        %v2422 = vand.u32 %v2421, 4294901760
        %v2423 = vsub.f32 %v2421, %v2422
        %v2424 = vand.u32 %v2423, 4294901760
        %2425 = vmatmul.mubr.f32.gmra.mrb[0].mxu0 %v2424
        %v2426 = vpop.f32.mrb[0].mxu0
        %v2427 = vadd.f32 %v2241, %v2426
        %v2428 = vpop.f32.mrb[0].mxu0
        %v2429 = vadd.f32 %v2241, %v2428
        %2430 = vmatprep.mubr.f32.mxu0 0.0
        %v2431 = vand.u32 %v2271, 4294901760
        %v2432 = vsub.f32 %v2271, %v2431
        %v2433 = vand.u32 %v2432, 4294901760
        %v2434 = vsub.f32 %v2432, %v2433
        %v2435 = vand.u32 %v2434, 4294901760
        %2436 = vmatmul.mubr.f32.gmra.mrb[0].mxu0 %v2435
        %v2437 = vpop.f32.mrb[0].mxu0
        %v2438 = vadd.f32 %v2246, %v2437
        %v2439 = vpop.f32.mrb[0].mxu0
        %v2440 = vadd.f32 %v2246, %v2439
        %2441 = vdwg.mxu0
        %v2442 = vand.u32 %v2161, 4294901760
        %v2443 = vsub.f32 %v2161, %v2442
        %v2444 = vand.u32 %v2443, 4294901760
        %v2445 = vsub.f32 %v2443, %v2444
        %v2446 = vand.u32 %v2445, 4294901760
        %2447 = vmatprep.subr.mxu0 %v2446
        %v2448 = vand.u32 %v2160, 4294901760
        %v2449 = vsub.f32 %v2160, %v2448
        %v2450 = vand.u32 %v2449, 4294901760
        %v2451 = vsub.f32 %v2449, %v2450
        %v2452 = vand.u32 %v2451, 4294901760
        %2453 = vmatpush1.msra.mxu0 %v2452
        %v2454 = vand.u32 %v2165, 4294901760
        %v2455 = vsub.f32 %v2165, %v2454
        %v2456 = vand.u32 %v2455, 4294901760
        %v2457 = vsub.f32 %v2455, %v2456
        %v2458 = vand.u32 %v2457, 4294901760
        %2459 = vmatprep.subr.mxu0 %v2458
        %v2460 = vand.u32 %v2164, 4294901760
        %v2461 = vsub.f32 %v2164, %v2460
        %v2462 = vand.u32 %v2461, 4294901760
        %v2463 = vsub.f32 %v2461, %v2462
        %v2464 = vand.u32 %v2463, 4294901760
        %2465 = vmatpush1.msra.mxu0 %v2464
        %v2466 = vand.u32 %v2169, 4294901760
        %v2467 = vsub.f32 %v2169, %v2466
        %v2468 = vand.u32 %v2467, 4294901760
        %v2469 = vsub.f32 %v2467, %v2468
        %v2470 = vand.u32 %v2469, 4294901760
        %2471 = vmatprep.subr.mxu0 %v2470
        %v2472 = vand.u32 %v2168, 4294901760
        %v2473 = vsub.f32 %v2168, %v2472
        %v2474 = vand.u32 %v2473, 4294901760
        %v2475 = vsub.f32 %v2473, %v2474
        %v2476 = vand.u32 %v2475, 4294901760
        %2477 = vmatpush1.msra.mxu0 %v2476
        %v2478 = vand.u32 %v2173, 4294901760
        %v2479 = vsub.f32 %v2173, %v2478
        %v2480 = vand.u32 %v2479, 4294901760
        %v2481 = vsub.f32 %v2479, %v2480
        %v2482 = vand.u32 %v2481, 4294901760
        %2483 = vmatprep.subr.mxu0 %v2482
        %v2484 = vand.u32 %v2172, 4294901760
        %v2485 = vsub.f32 %v2172, %v2484
        %v2486 = vand.u32 %v2485, 4294901760
        %v2487 = vsub.f32 %v2485, %v2486
        %v2488 = vand.u32 %v2487, 4294901760
        %2489 = vmatpush1.msra.mxu0 %v2488
        %v2490 = vand.u32 %v2177, 4294901760
        %v2491 = vsub.f32 %v2177, %v2490
        %v2492 = vand.u32 %v2491, 4294901760
        %v2493 = vsub.f32 %v2491, %v2492
        %v2494 = vand.u32 %v2493, 4294901760
        %2495 = vmatprep.subr.mxu0 %v2494
        %v2496 = vand.u32 %v2176, 4294901760
        %v2497 = vsub.f32 %v2176, %v2496
        %v2498 = vand.u32 %v2497, 4294901760
        %v2499 = vsub.f32 %v2497, %v2498
        %v2500 = vand.u32 %v2499, 4294901760
        %2501 = vmatpush1.msra.mxu0 %v2500
        %v2502 = vand.u32 %v2181, 4294901760
        %v2503 = vsub.f32 %v2181, %v2502
        %v2504 = vand.u32 %v2503, 4294901760
        %v2505 = vsub.f32 %v2503, %v2504
        %v2506 = vand.u32 %v2505, 4294901760
        %2507 = vmatprep.subr.mxu0 %v2506
        %v2508 = vand.u32 %v2180, 4294901760
        %v2509 = vsub.f32 %v2180, %v2508
        %v2510 = vand.u32 %v2509, 4294901760
        %v2511 = vsub.f32 %v2509, %v2510
        %v2512 = vand.u32 %v2511, 4294901760
        %2513 = vmatpush1.msra.mxu0 %v2512
        %v2514 = vand.u32 %v2185, 4294901760
        %v2515 = vsub.f32 %v2185, %v2514
        %v2516 = vand.u32 %v2515, 4294901760
        %v2517 = vsub.f32 %v2515, %v2516
        %v2518 = vand.u32 %v2517, 4294901760
        %2519 = vmatprep.subr.mxu0 %v2518
        %v2520 = vand.u32 %v2184, 4294901760
        %v2521 = vsub.f32 %v2184, %v2520
        %v2522 = vand.u32 %v2521, 4294901760
        %v2523 = vsub.f32 %v2521, %v2522
        %v2524 = vand.u32 %v2523, 4294901760
        %2525 = vmatpush1.msra.mxu0 %v2524
        %v2526 = vand.u32 %v2189, 4294901760
        %v2527 = vsub.f32 %v2189, %v2526
        %v2528 = vand.u32 %v2527, 4294901760
        %v2529 = vsub.f32 %v2527, %v2528
        %v2530 = vand.u32 %v2529, 4294901760
        %2531 = vmatprep.subr.mxu0 %v2530
        %v2532 = vand.u32 %v2188, 4294901760
        %v2533 = vsub.f32 %v2188, %v2532
        %v2534 = vand.u32 %v2533, 4294901760
        %v2535 = vsub.f32 %v2533, %v2534
        %v2536 = vand.u32 %v2535, 4294901760
        %2537 = vmatpush1.msra.mxu0 %v2536
        %2538 = vmatprep.subr.mxu0 0.0
        %2539 = vmatpush1.msra.mxu0 0.0
        %2540 = vmatprep.subr.mxu0 0.0
        %2541 = vmatpush1.msra.mxu0 0.0
        %2542 = vmatprep.subr.mxu0 0.0
        %2543 = vmatpush1.msra.mxu0 0.0
        %2544 = vmatprep.subr.mxu0 0.0
        %2545 = vmatpush1.msra.mxu0 0.0
        %2546 = vmatprep.subr.mxu0 0.0
        %2547 = vmatpush1.msra.mxu0 0.0
        %2548 = vmatprep.subr.mxu0 0.0
        %2549 = vmatpush1.msra.mxu0 0.0
        %2550 = vmatprep.subr.mxu0 0.0
        %2551 = vmatpush1.msra.mxu0 0.0
        %2552 = vmatprep.subr.mxu0 0.0
        %2553 = vmatpush1.msra.mxu0 0.0
        %2554 = vmatprep.subr.mxu0 0.0
        %2555 = vmatpush1.msra.mxu0 0.0
        %2556 = vmatprep.subr.mxu0 0.0
        %2557 = vmatpush1.msra.mxu0 0.0
        %2558 = vmatprep.subr.mxu0 0.0
        %2559 = vmatpush1.msra.mxu0 0.0
        %2560 = vmatprep.subr.mxu0 0.0
        %2561 = vmatpush1.msra.mxu0 0.0
        %2562 = vmatprep.subr.mxu0 0.0
        %2563 = vmatpush1.msra.mxu0 0.0
        %2564 = vmatprep.subr.mxu0 0.0
        %2565 = vmatpush1.msra.mxu0 0.0
        %2566 = vmatprep.subr.mxu0 0.0
        %2567 = vmatpush1.msra.mxu0 0.0
        %2568 = vmatprep.subr.mxu0 0.0
        %2569 = vmatpush1.msra.mxu0 0.0
        %2570 = vmatprep.subr.mxu0 0.0
        %2571 = vmatpush1.msra.mxu0 0.0
        %2572 = vmatprep.subr.mxu0 0.0
        %2573 = vmatpush1.msra.mxu0 0.0
        %2574 = vmatprep.subr.mxu0 0.0
        %2575 = vmatpush1.msra.mxu0 0.0
        %2576 = vmatprep.subr.mxu0 0.0
        %2577 = vmatpush1.msra.mxu0 0.0
        %2578 = vmatprep.subr.mxu0 0.0
        %2579 = vmatpush1.msra.mxu0 0.0
        %2580 = vmatprep.subr.mxu0 0.0
        %2581 = vmatpush1.msra.mxu0 0.0
        %2582 = vmatprep.subr.mxu0 0.0
        %2583 = vmatpush1.msra.mxu0 0.0
        %2584 = vmatprep.subr.mxu0 0.0
        %2585 = vmatpush1.msra.mxu0 0.0
        %2586 = vmatprep.mubr.f32.mxu0 0.0
        %v2587 = vand.u32 %v2250, 4294901760
        %2588 = vmatmul.mubr.f32.gmra.mrb[0].mxu0 %v2587
        %v2589 = vpop.f32.mrb[0].mxu0
        %v2590 = vadd.f32 %v2361, %v2589
        %v2591 = vpop.f32.mrb[0].mxu0
        %v2592 = vadd.f32 %v2363, %v2591
        %2593 = vmatprep.mubr.f32.mxu0 0.0
        %v2594 = vand.u32 %v2253, 4294901760
        %2595 = vmatmul.mubr.f32.gmra.mrb[0].mxu0 %v2594
        %v2596 = vpop.f32.mrb[0].mxu0
        %v2597 = vadd.f32 %v2372, %v2596
        %v2598 = vpop.f32.mrb[0].mxu0
        %v2599 = vadd.f32 %v2374, %v2598
        %2600 = vmatprep.mubr.f32.mxu0 0.0
        %v2601 = vand.u32 %v2256, 4294901760
        %2602 = vmatmul.mubr.f32.gmra.mrb[0].mxu0 %v2601
        %v2603 = vpop.f32.mrb[0].mxu0
        %v2604 = vadd.f32 %v2383, %v2603
        %v2605 = vpop.f32.mrb[0].mxu0
        %v2606 = vadd.f32 %v2385, %v2605
        %2607 = vmatprep.mubr.f32.mxu0 0.0
        %v2608 = vand.u32 %v2259, 4294901760
        %2609 = vmatmul.mubr.f32.gmra.mrb[0].mxu0 %v2608
        %v2610 = vpop.f32.mrb[0].mxu0
        %v2611 = vadd.f32 %v2394, %v2610
        %v2612 = vpop.f32.mrb[0].mxu0
        %v2613 = vadd.f32 %v2396, %v2612
        %2614 = vmatprep.mubr.f32.mxu0 0.0
        %v2615 = vand.u32 %v2262, 4294901760
        %2616 = vmatmul.mubr.f32.gmra.mrb[0].mxu0 %v2615
        %v2617 = vpop.f32.mrb[0].mxu0
        %v2618 = vadd.f32 %v2405, %v2617
        %v2619 = vpop.f32.mrb[0].mxu0
        %v2620 = vadd.f32 %v2407, %v2619
        %2621 = vmatprep.mubr.f32.mxu0 0.0
        %v2622 = vand.u32 %v2265, 4294901760
        %2623 = vmatmul.mubr.f32.gmra.mrb[0].mxu0 %v2622
        %v2624 = vpop.f32.mrb[0].mxu0
        %v2625 = vadd.f32 %v2416, %v2624
        %v2626 = vpop.f32.mrb[0].mxu0
        %v2627 = vadd.f32 %v2418, %v2626
        %2628 = vmatprep.mubr.f32.mxu0 0.0
        %v2629 = vand.u32 %v2268, 4294901760
        %2630 = vmatmul.mubr.f32.gmra.mrb[0].mxu0 %v2629
        %v2631 = vpop.f32.mrb[0].mxu0
        %v2632 = vadd.f32 %v2427, %v2631
        %v2633 = vpop.f32.mrb[0].mxu0
        %v2634 = vadd.f32 %v2429, %v2633
        %2635 = vmatprep.mubr.f32.mxu0 0.0
        %v2636 = vand.u32 %v2271, 4294901760
        %2637 = vmatmul.mubr.f32.gmra.mrb[0].mxu0 %v2636
        %v2638 = vpop.f32.mrb[0].mxu0
        %v2639 = vadd.f32 %v2438, %v2638
        %v2640 = vpop.f32.mrb[0].mxu0
        %v2641 = vadd.f32 %v2440, %v2640
        %2642 = vdwg.mxu0
        %v2643 = vand.u32 %v2161, 4294901760
        %v2644 = vsub.f32 %v2161, %v2643
        %2645 = vmatprep.subr.mxu0 %v2644
        %v2646 = vand.u32 %v2160, 4294901760
        %v2647 = vsub.f32 %v2160, %v2646
        %2648 = vmatpush1.msra.mxu0 %v2647
        %v2649 = vand.u32 %v2165, 4294901760
        %v2650 = vsub.f32 %v2165, %v2649
        %2651 = vmatprep.subr.mxu0 %v2650
        %v2652 = vand.u32 %v2164, 4294901760
        %v2653 = vsub.f32 %v2164, %v2652
        %2654 = vmatpush1.msra.mxu0 %v2653
        %v2655 = vand.u32 %v2169, 4294901760
        %v2656 = vsub.f32 %v2169, %v2655
        %2657 = vmatprep.subr.mxu0 %v2656
        %v2658 = vand.u32 %v2168, 4294901760
        %v2659 = vsub.f32 %v2168, %v2658
        %2660 = vmatpush1.msra.mxu0 %v2659
        %v2661 = vand.u32 %v2173, 4294901760
        %v2662 = vsub.f32 %v2173, %v2661
        %2663 = vmatprep.subr.mxu0 %v2662
        %v2664 = vand.u32 %v2172, 4294901760
        %v2665 = vsub.f32 %v2172, %v2664
        %2666 = vmatpush1.msra.mxu0 %v2665
        %v2667 = vand.u32 %v2177, 4294901760
        %v2668 = vsub.f32 %v2177, %v2667
        %2669 = vmatprep.subr.mxu0 %v2668
        %v2670 = vand.u32 %v2176, 4294901760
        %v2671 = vsub.f32 %v2176, %v2670
        %2672 = vmatpush1.msra.mxu0 %v2671
        %v2673 = vand.u32 %v2181, 4294901760
        %v2674 = vsub.f32 %v2181, %v2673
        %2675 = vmatprep.subr.mxu0 %v2674
        %v2676 = vand.u32 %v2180, 4294901760
        %v2677 = vsub.f32 %v2180, %v2676
        %2678 = vmatpush1.msra.mxu0 %v2677
        %v2679 = vand.u32 %v2185, 4294901760
        %v2680 = vsub.f32 %v2185, %v2679
        %2681 = vmatprep.subr.mxu0 %v2680
        %v2682 = vand.u32 %v2184, 4294901760
        %v2683 = vsub.f32 %v2184, %v2682
        %2684 = vmatpush1.msra.mxu0 %v2683
        %v2685 = vand.u32 %v2189, 4294901760
        %v2686 = vsub.f32 %v2189, %v2685
        %2687 = vmatprep.subr.mxu0 %v2686
        %v2688 = vand.u32 %v2188, 4294901760
        %v2689 = vsub.f32 %v2188, %v2688
        %2690 = vmatpush1.msra.mxu0 %v2689
        %2691 = vmatprep.subr.mxu0 0.0
        %2692 = vmatpush1.msra.mxu0 0.0
        %2693 = vmatprep.subr.mxu0 0.0
        %2694 = vmatpush1.msra.mxu0 0.0
        %2695 = vmatprep.subr.mxu0 0.0
        %2696 = vmatpush1.msra.mxu0 0.0
        %2697 = vmatprep.subr.mxu0 0.0
        %2698 = vmatpush1.msra.mxu0 0.0
        %2699 = vmatprep.subr.mxu0 0.0
        %2700 = vmatpush1.msra.mxu0 0.0
        %2701 = vmatprep.subr.mxu0 0.0
        %2702 = vmatpush1.msra.mxu0 0.0
        %2703 = vmatprep.subr.mxu0 0.0
        %2704 = vmatpush1.msra.mxu0 0.0
        %2705 = vmatprep.subr.mxu0 0.0
        %2706 = vmatpush1.msra.mxu0 0.0
        %2707 = vmatprep.subr.mxu0 0.0
        %2708 = vmatpush1.msra.mxu0 0.0
        %2709 = vmatprep.subr.mxu0 0.0
        %2710 = vmatpush1.msra.mxu0 0.0
        %2711 = vmatprep.subr.mxu0 0.0
        %2712 = vmatpush1.msra.mxu0 0.0
        %2713 = vmatprep.subr.mxu0 0.0
        %2714 = vmatpush1.msra.mxu0 0.0
        %2715 = vmatprep.subr.mxu0 0.0
        %2716 = vmatpush1.msra.mxu0 0.0
        %2717 = vmatprep.subr.mxu0 0.0
        %2718 = vmatpush1.msra.mxu0 0.0
        %2719 = vmatprep.subr.mxu0 0.0
        %2720 = vmatpush1.msra.mxu0 0.0
        %2721 = vmatprep.subr.mxu0 0.0
        %2722 = vmatpush1.msra.mxu0 0.0
        %2723 = vmatprep.subr.mxu0 0.0
        %2724 = vmatpush1.msra.mxu0 0.0
        %2725 = vmatprep.subr.mxu0 0.0
        %2726 = vmatpush1.msra.mxu0 0.0
        %2727 = vmatprep.subr.mxu0 0.0
        %2728 = vmatpush1.msra.mxu0 0.0
        %2729 = vmatprep.subr.mxu0 0.0
        %2730 = vmatpush1.msra.mxu0 0.0
        %2731 = vmatprep.subr.mxu0 0.0
        %2732 = vmatpush1.msra.mxu0 0.0
        %2733 = vmatprep.subr.mxu0 0.0
        %2734 = vmatpush1.msra.mxu0 0.0
        %2735 = vmatprep.subr.mxu0 0.0
        %2736 = vmatpush1.msra.mxu0 0.0
        %2737 = vmatprep.subr.mxu0 0.0
        %2738 = vmatpush1.msra.mxu0 0.0
        %2739 = vmatprep.mubr.f32.mxu0 0.0
        %v2740 = vand.u32 %v2250, 4294901760
        %v2741 = vsub.f32 %v2250, %v2740
        %2742 = vmatmul.mubr.f32.gmra.mrb[0].mxu0 %v2741
        %v2743 = vpop.f32.mrb[0].mxu0
        %v2744 = vadd.f32 %v2590, %v2743
        %v2745 = vpop.f32.mrb[0].mxu0
        %v2746 = vadd.f32 %v2592, %v2745
        %2747 = vmatprep.mubr.f32.mxu0 0.0
        %v2748 = vand.u32 %v2253, 4294901760
        %v2749 = vsub.f32 %v2253, %v2748
        %2750 = vmatmul.mubr.f32.gmra.mrb[0].mxu0 %v2749
        %v2751 = vpop.f32.mrb[0].mxu0
        %v2752 = vadd.f32 %v2597, %v2751
        %v2753 = vpop.f32.mrb[0].mxu0
        %v2754 = vadd.f32 %v2599, %v2753
        %2755 = vmatprep.mubr.f32.mxu0 0.0
        %v2756 = vand.u32 %v2256, 4294901760
        %v2757 = vsub.f32 %v2256, %v2756
        %2758 = vmatmul.mubr.f32.gmra.mrb[0].mxu0 %v2757
        %v2759 = vpop.f32.mrb[0].mxu0
        %v2760 = vadd.f32 %v2604, %v2759
        %v2761 = vpop.f32.mrb[0].mxu0
        %v2762 = vadd.f32 %v2606, %v2761
        %2763 = vmatprep.mubr.f32.mxu0 0.0
        %v2764 = vand.u32 %v2259, 4294901760
        %v2765 = vsub.f32 %v2259, %v2764
        %2766 = vmatmul.mubr.f32.gmra.mrb[0].mxu0 %v2765
        %v2767 = vpop.f32.mrb[0].mxu0
        %v2768 = vadd.f32 %v2611, %v2767
        %v2769 = vpop.f32.mrb[0].mxu0
        %v2770 = vadd.f32 %v2613, %v2769
        %2771 = vmatprep.mubr.f32.mxu0 0.0
        %v2772 = vand.u32 %v2262, 4294901760
        %v2773 = vsub.f32 %v2262, %v2772
        %2774 = vmatmul.mubr.f32.gmra.mrb[0].mxu0 %v2773
        %v2775 = vpop.f32.mrb[0].mxu0
        %v2776 = vadd.f32 %v2618, %v2775
        %v2777 = vpop.f32.mrb[0].mxu0
        %v2778 = vadd.f32 %v2620, %v2777
        %2779 = vmatprep.mubr.f32.mxu0 0.0
        %v2780 = vand.u32 %v2265, 4294901760
        %v2781 = vsub.f32 %v2265, %v2780
        %2782 = vmatmul.mubr.f32.gmra.mrb[0].mxu0 %v2781
        %v2783 = vpop.f32.mrb[0].mxu0
        %v2784 = vadd.f32 %v2625, %v2783
        %v2785 = vpop.f32.mrb[0].mxu0
        %v2786 = vadd.f32 %v2627, %v2785
        %2787 = vmatprep.mubr.f32.mxu0 0.0
        %v2788 = vand.u32 %v2268, 4294901760
        %v2789 = vsub.f32 %v2268, %v2788
        %2790 = vmatmul.mubr.f32.gmra.mrb[0].mxu0 %v2789
        %v2791 = vpop.f32.mrb[0].mxu0
        %v2792 = vadd.f32 %v2632, %v2791
        %v2793 = vpop.f32.mrb[0].mxu0
        %v2794 = vadd.f32 %v2634, %v2793
        %2795 = vmatprep.mubr.f32.mxu0 0.0
        %v2796 = vand.u32 %v2271, 4294901760
        %v2797 = vsub.f32 %v2271, %v2796
        %2798 = vmatmul.mubr.f32.gmra.mrb[0].mxu0 %v2797
        %v2799 = vpop.f32.mrb[0].mxu0
        %v2800 = vadd.f32 %v2639, %v2799
        %v2801 = vpop.f32.mrb[0].mxu0
        %v2802 = vadd.f32 %v2641, %v2801
        %2803 = vdwg.mxu0
        %v2804 = vand.u32 %v2161, 4294901760
        %2805 = vmatprep.subr.mxu0 %v2804
        %v2806 = vand.u32 %v2160, 4294901760
        %2807 = vmatpush1.msra.mxu0 %v2806
        %v2808 = vand.u32 %v2165, 4294901760
        %2809 = vmatprep.subr.mxu0 %v2808
        %v2810 = vand.u32 %v2164, 4294901760
        %2811 = vmatpush1.msra.mxu0 %v2810
        %v2812 = vand.u32 %v2169, 4294901760
        %2813 = vmatprep.subr.mxu0 %v2812
        %v2814 = vand.u32 %v2168, 4294901760
        %2815 = vmatpush1.msra.mxu0 %v2814
        %v2816 = vand.u32 %v2173, 4294901760
        %2817 = vmatprep.subr.mxu0 %v2816
        %v2818 = vand.u32 %v2172, 4294901760
        %2819 = vmatpush1.msra.mxu0 %v2818
        %v2820 = vand.u32 %v2177, 4294901760
        %2821 = vmatprep.subr.mxu0 %v2820
        %v2822 = vand.u32 %v2176, 4294901760
        %2823 = vmatpush1.msra.mxu0 %v2822
        %v2824 = vand.u32 %v2181, 4294901760
        %2825 = vmatprep.subr.mxu0 %v2824
        %v2826 = vand.u32 %v2180, 4294901760
        %2827 = vmatpush1.msra.mxu0 %v2826
        %v2828 = vand.u32 %v2185, 4294901760
        %2829 = vmatprep.subr.mxu0 %v2828
        %v2830 = vand.u32 %v2184, 4294901760
        %2831 = vmatpush1.msra.mxu0 %v2830
        %v2832 = vand.u32 %v2189, 4294901760
        %2833 = vmatprep.subr.mxu0 %v2832
        %v2834 = vand.u32 %v2188, 4294901760
        %2835 = vmatpush1.msra.mxu0 %v2834
        %2836 = vmatprep.subr.mxu0 0.0
        %2837 = vmatpush1.msra.mxu0 0.0
        %2838 = vmatprep.subr.mxu0 0.0
        %2839 = vmatpush1.msra.mxu0 0.0
        %2840 = vmatprep.subr.mxu0 0.0
        %2841 = vmatpush1.msra.mxu0 0.0
        %2842 = vmatprep.subr.mxu0 0.0
        %2843 = vmatpush1.msra.mxu0 0.0
        %2844 = vmatprep.subr.mxu0 0.0
        %2845 = vmatpush1.msra.mxu0 0.0
        %2846 = vmatprep.subr.mxu0 0.0
        %2847 = vmatpush1.msra.mxu0 0.0
        %2848 = vmatprep.subr.mxu0 0.0
        %2849 = vmatpush1.msra.mxu0 0.0
        %2850 = vmatprep.subr.mxu0 0.0
        %2851 = vmatpush1.msra.mxu0 0.0
        %2852 = vmatprep.subr.mxu0 0.0
        %2853 = vmatpush1.msra.mxu0 0.0
        %2854 = vmatprep.subr.mxu0 0.0
        %2855 = vmatpush1.msra.mxu0 0.0
        %2856 = vmatprep.subr.mxu0 0.0
        %2857 = vmatpush1.msra.mxu0 0.0
        %2858 = vmatprep.subr.mxu0 0.0
        %2859 = vmatpush1.msra.mxu0 0.0
        %2860 = vmatprep.subr.mxu0 0.0
        %2861 = vmatpush1.msra.mxu0 0.0
        %2862 = vmatprep.subr.mxu0 0.0
        %2863 = vmatpush1.msra.mxu0 0.0
        %2864 = vmatprep.subr.mxu0 0.0
        %2865 = vmatpush1.msra.mxu0 0.0
        %2866 = vmatprep.subr.mxu0 0.0
        %2867 = vmatpush1.msra.mxu0 0.0
        %2868 = vmatprep.subr.mxu0 0.0
        %2869 = vmatpush1.msra.mxu0 0.0
        %2870 = vmatprep.subr.mxu0 0.0
        %2871 = vmatpush1.msra.mxu0 0.0
        %2872 = vmatprep.subr.mxu0 0.0
        %2873 = vmatpush1.msra.mxu0 0.0
        %2874 = vmatprep.subr.mxu0 0.0
        %2875 = vmatpush1.msra.mxu0 0.0
        %2876 = vmatprep.subr.mxu0 0.0
        %2877 = vmatpush1.msra.mxu0 0.0
        %2878 = vmatprep.subr.mxu0 0.0
        %2879 = vmatpush1.msra.mxu0 0.0
        %2880 = vmatprep.subr.mxu0 0.0
        %2881 = vmatpush1.msra.mxu0 0.0
        %2882 = vmatprep.subr.mxu0 0.0
        %2883 = vmatpush1.msra.mxu0 0.0
        %2884 = vmatprep.mubr.f32.mxu0 0.0
        %v2885 = vand.u32 %v2250, 4294901760
        %v2886 = vsub.f32 %v2250, %v2885
        %v2887 = vand.u32 %v2886, 4294901760
        %2888 = vmatmul.mubr.f32.gmra.mrb[0].mxu0 %v2887
        %v2889 = vpop.f32.mrb[0].mxu0
        %v2890 = vadd.f32 %v2744, %v2889
        %v2891 = vpop.f32.mrb[0].mxu0
        %v2892 = vadd.f32 %v2746, %v2891
        %2893 = vmatprep.mubr.f32.mxu0 0.0
        %v2894 = vand.u32 %v2253, 4294901760
        %v2895 = vsub.f32 %v2253, %v2894
        %v2896 = vand.u32 %v2895, 4294901760
        %2897 = vmatmul.mubr.f32.gmra.mrb[0].mxu0 %v2896
        %v2898 = vpop.f32.mrb[0].mxu0
        %v2899 = vadd.f32 %v2752, %v2898
        %v2900 = vpop.f32.mrb[0].mxu0
        %v2901 = vadd.f32 %v2754, %v2900
        %2902 = vmatprep.mubr.f32.mxu0 0.0
        %v2903 = vand.u32 %v2256, 4294901760
        %v2904 = vsub.f32 %v2256, %v2903
        %v2905 = vand.u32 %v2904, 4294901760
        %2906 = vmatmul.mubr.f32.gmra.mrb[0].mxu0 %v2905
        %v2907 = vpop.f32.mrb[0].mxu0
        %v2908 = vadd.f32 %v2760, %v2907
        %v2909 = vpop.f32.mrb[0].mxu0
        %v2910 = vadd.f32 %v2762, %v2909
        %2911 = vmatprep.mubr.f32.mxu0 0.0
        %v2912 = vand.u32 %v2259, 4294901760
        %v2913 = vsub.f32 %v2259, %v2912
        %v2914 = vand.u32 %v2913, 4294901760
        %2915 = vmatmul.mubr.f32.gmra.mrb[0].mxu0 %v2914
        %v2916 = vpop.f32.mrb[0].mxu0
        %v2917 = vadd.f32 %v2768, %v2916
        %v2918 = vpop.f32.mrb[0].mxu0
        %v2919 = vadd.f32 %v2770, %v2918
        %2920 = vmatprep.mubr.f32.mxu0 0.0
        %v2921 = vand.u32 %v2262, 4294901760
        %v2922 = vsub.f32 %v2262, %v2921
        %v2923 = vand.u32 %v2922, 4294901760
        %2924 = vmatmul.mubr.f32.gmra.mrb[0].mxu0 %v2923
        %v2925 = vpop.f32.mrb[0].mxu0
        %v2926 = vadd.f32 %v2776, %v2925
        %v2927 = vpop.f32.mrb[0].mxu0
        %v2928 = vadd.f32 %v2778, %v2927
        %2929 = vmatprep.mubr.f32.mxu0 0.0
        %v2930 = vand.u32 %v2265, 4294901760
        %v2931 = vsub.f32 %v2265, %v2930
        %v2932 = vand.u32 %v2931, 4294901760
        %2933 = vmatmul.mubr.f32.gmra.mrb[0].mxu0 %v2932
        %v2934 = vpop.f32.mrb[0].mxu0
        %v2935 = vadd.f32 %v2784, %v2934
        %v2936 = vpop.f32.mrb[0].mxu0
        %v2937 = vadd.f32 %v2786, %v2936
        %2938 = vmatprep.mubr.f32.mxu0 0.0
        %v2939 = vand.u32 %v2268, 4294901760
        %v2940 = vsub.f32 %v2268, %v2939
        %v2941 = vand.u32 %v2940, 4294901760
        %2942 = vmatmul.mubr.f32.gmra.mrb[0].mxu0 %v2941
        %v2943 = vpop.f32.mrb[0].mxu0
        %v2944 = vadd.f32 %v2792, %v2943
        %v2945 = vpop.f32.mrb[0].mxu0
        %v2946 = vadd.f32 %v2794, %v2945
        %2947 = vmatprep.mubr.f32.mxu0 0.0
        %v2948 = vand.u32 %v2271, 4294901760
        %v2949 = vsub.f32 %v2271, %v2948
        %v2950 = vand.u32 %v2949, 4294901760
        %2951 = vmatmul.mubr.f32.gmra.mrb[0].mxu0 %v2950
        %v2952 = vpop.f32.mrb[0].mxu0
        %v2953 = vadd.f32 %v2800, %v2952
        %v2954 = vpop.f32.mrb[0].mxu0
        %v2955 = vadd.f32 %v2802, %v2954
        %2956 = vdwg.mxu0
        %v2957 = vand.u32 %v2161, 4294901760
        %v2958 = vsub.f32 %v2161, %v2957
        %v2959 = vand.u32 %v2958, 4294901760
        %2960 = vmatprep.subr.mxu0 %v2959
        %v2961 = vand.u32 %v2160, 4294901760
        %v2962 = vsub.f32 %v2160, %v2961
        %v2963 = vand.u32 %v2962, 4294901760
        %2964 = vmatpush1.msra.mxu0 %v2963
        %v2965 = vand.u32 %v2165, 4294901760
        %v2966 = vsub.f32 %v2165, %v2965
        %v2967 = vand.u32 %v2966, 4294901760
        %2968 = vmatprep.subr.mxu0 %v2967
        %v2969 = vand.u32 %v2164, 4294901760
        %v2970 = vsub.f32 %v2164, %v2969
        %v2971 = vand.u32 %v2970, 4294901760
        %2972 = vmatpush1.msra.mxu0 %v2971
        %v2973 = vand.u32 %v2169, 4294901760
        %v2974 = vsub.f32 %v2169, %v2973
        %v2975 = vand.u32 %v2974, 4294901760
        %2976 = vmatprep.subr.mxu0 %v2975
        %v2977 = vand.u32 %v2168, 4294901760
        %v2978 = vsub.f32 %v2168, %v2977
        %v2979 = vand.u32 %v2978, 4294901760
        %2980 = vmatpush1.msra.mxu0 %v2979
        %v2981 = vand.u32 %v2173, 4294901760
        %v2982 = vsub.f32 %v2173, %v2981
        %v2983 = vand.u32 %v2982, 4294901760
        %2984 = vmatprep.subr.mxu0 %v2983
        %v2985 = vand.u32 %v2172, 4294901760
        %v2986 = vsub.f32 %v2172, %v2985
        %v2987 = vand.u32 %v2986, 4294901760
        %2988 = vmatpush1.msra.mxu0 %v2987
        %v2989 = vand.u32 %v2177, 4294901760
        %v2990 = vsub.f32 %v2177, %v2989
        %v2991 = vand.u32 %v2990, 4294901760
        %2992 = vmatprep.subr.mxu0 %v2991
        %v2993 = vand.u32 %v2176, 4294901760
        %v2994 = vsub.f32 %v2176, %v2993
        %v2995 = vand.u32 %v2994, 4294901760
        %2996 = vmatpush1.msra.mxu0 %v2995
        %v2997 = vand.u32 %v2181, 4294901760
        %v2998 = vsub.f32 %v2181, %v2997
        %v2999 = vand.u32 %v2998, 4294901760
        %3000 = vmatprep.subr.mxu0 %v2999
        %v3001 = vand.u32 %v2180, 4294901760
        %v3002 = vsub.f32 %v2180, %v3001
        %v3003 = vand.u32 %v3002, 4294901760
        %3004 = vmatpush1.msra.mxu0 %v3003
        %v3005 = vand.u32 %v2185, 4294901760
        %v3006 = vsub.f32 %v2185, %v3005
        %v3007 = vand.u32 %v3006, 4294901760
        %3008 = vmatprep.subr.mxu0 %v3007
        %v3009 = vand.u32 %v2184, 4294901760
        %v3010 = vsub.f32 %v2184, %v3009
        %v3011 = vand.u32 %v3010, 4294901760
        %3012 = vmatpush1.msra.mxu0 %v3011
        %v3013 = vand.u32 %v2189, 4294901760
        %v3014 = vsub.f32 %v2189, %v3013
        %v3015 = vand.u32 %v3014, 4294901760
        %3016 = vmatprep.subr.mxu0 %v3015
        %v3017 = vand.u32 %v2188, 4294901760
        %v3018 = vsub.f32 %v2188, %v3017
        %v3019 = vand.u32 %v3018, 4294901760
        %3020 = vmatpush1.msra.mxu0 %v3019
        %3021 = vmatprep.subr.mxu0 0.0
        %3022 = vmatpush1.msra.mxu0 0.0
        %3023 = vmatprep.subr.mxu0 0.0
        %3024 = vmatpush1.msra.mxu0 0.0
        %3025 = vmatprep.subr.mxu0 0.0
        %3026 = vmatpush1.msra.mxu0 0.0
        %3027 = vmatprep.subr.mxu0 0.0
        %3028 = vmatpush1.msra.mxu0 0.0
        %3029 = vmatprep.subr.mxu0 0.0
        %3030 = vmatpush1.msra.mxu0 0.0
        %3031 = vmatprep.subr.mxu0 0.0
        %3032 = vmatpush1.msra.mxu0 0.0
        %3033 = vmatprep.subr.mxu0 0.0
        %3034 = vmatpush1.msra.mxu0 0.0
        %3035 = vmatprep.subr.mxu0 0.0
        %3036 = vmatpush1.msra.mxu0 0.0
        %3037 = vmatprep.subr.mxu0 0.0
        %3038 = vmatpush1.msra.mxu0 0.0
        %3039 = vmatprep.subr.mxu0 0.0
        %3040 = vmatpush1.msra.mxu0 0.0
        %3041 = vmatprep.subr.mxu0 0.0
        %3042 = vmatpush1.msra.mxu0 0.0
        %3043 = vmatprep.subr.mxu0 0.0
        %3044 = vmatpush1.msra.mxu0 0.0
        %3045 = vmatprep.subr.mxu0 0.0
        %3046 = vmatpush1.msra.mxu0 0.0
        %3047 = vmatprep.subr.mxu0 0.0
        %3048 = vmatpush1.msra.mxu0 0.0
        %3049 = vmatprep.subr.mxu0 0.0
        %3050 = vmatpush1.msra.mxu0 0.0
        %3051 = vmatprep.subr.mxu0 0.0
        %3052 = vmatpush1.msra.mxu0 0.0
        %3053 = vmatprep.subr.mxu0 0.0
        %3054 = vmatpush1.msra.mxu0 0.0
        %3055 = vmatprep.subr.mxu0 0.0
        %3056 = vmatpush1.msra.mxu0 0.0
        %3057 = vmatprep.subr.mxu0 0.0
        %3058 = vmatpush1.msra.mxu0 0.0
        %3059 = vmatprep.subr.mxu0 0.0
        %3060 = vmatpush1.msra.mxu0 0.0
        %3061 = vmatprep.subr.mxu0 0.0
        %3062 = vmatpush1.msra.mxu0 0.0
        %3063 = vmatprep.subr.mxu0 0.0
        %3064 = vmatpush1.msra.mxu0 0.0
        %3065 = vmatprep.subr.mxu0 0.0
        %3066 = vmatpush1.msra.mxu0 0.0
        %3067 = vmatprep.subr.mxu0 0.0
        %3068 = vmatpush1.msra.mxu0 0.0
        %3069 = vmatprep.mubr.f32.mxu0 0.0
        %v3070 = vand.u32 %v2250, 4294901760
        %3071 = vmatmul.mubr.f32.gmra.mrb[0].mxu0 %v3070
        %v3072 = vpop.f32.mrb[0].mxu0
        %v3073 = vadd.f32 %v2890, %v3072
        %v3074 = vpop.f32.mrb[0].mxu0
        %v3075 = vadd.f32 %v2892, %v3074
        %3076 = vmatprep.mubr.f32.mxu0 0.0
        %v3077 = vand.u32 %v2253, 4294901760
        %3078 = vmatmul.mubr.f32.gmra.mrb[0].mxu0 %v3077
        %v3079 = vpop.f32.mrb[0].mxu0
        %v3080 = vadd.f32 %v2899, %v3079
        %v3081 = vpop.f32.mrb[0].mxu0
        %v3082 = vadd.f32 %v2901, %v3081
        %3083 = vmatprep.mubr.f32.mxu0 0.0
        %v3084 = vand.u32 %v2256, 4294901760
        %3085 = vmatmul.mubr.f32.gmra.mrb[0].mxu0 %v3084
        %v3086 = vpop.f32.mrb[0].mxu0
        %v3087 = vadd.f32 %v2908, %v3086
        %v3088 = vpop.f32.mrb[0].mxu0
        %v3089 = vadd.f32 %v2910, %v3088
        %3090 = vmatprep.mubr.f32.mxu0 0.0
        %v3091 = vand.u32 %v2259, 4294901760
        %3092 = vmatmul.mubr.f32.gmra.mrb[0].mxu0 %v3091
        %v3093 = vpop.f32.mrb[0].mxu0
        %v3094 = vadd.f32 %v2917, %v3093
        %v3095 = vpop.f32.mrb[0].mxu0
        %v3096 = vadd.f32 %v2919, %v3095
        %3097 = vmatprep.mubr.f32.mxu0 0.0
        %v3098 = vand.u32 %v2262, 4294901760
        %3099 = vmatmul.mubr.f32.gmra.mrb[0].mxu0 %v3098
        %v3100 = vpop.f32.mrb[0].mxu0
        %v3101 = vadd.f32 %v2926, %v3100
        %v3102 = vpop.f32.mrb[0].mxu0
        %v3103 = vadd.f32 %v2928, %v3102
        %3104 = vmatprep.mubr.f32.mxu0 0.0
        %v3105 = vand.u32 %v2265, 4294901760
        %3106 = vmatmul.mubr.f32.gmra.mrb[0].mxu0 %v3105
        %v3107 = vpop.f32.mrb[0].mxu0
        %v3108 = vadd.f32 %v2935, %v3107
        %v3109 = vpop.f32.mrb[0].mxu0
        %v3110 = vadd.f32 %v2937, %v3109
        %3111 = vmatprep.mubr.f32.mxu0 0.0
        %v3112 = vand.u32 %v2268, 4294901760
        %3113 = vmatmul.mubr.f32.gmra.mrb[0].mxu0 %v3112
        %v3114 = vpop.f32.mrb[0].mxu0
        %v3115 = vadd.f32 %v2944, %v3114
        %v3116 = vpop.f32.mrb[0].mxu0
        %v3117 = vadd.f32 %v2946, %v3116
        %3118 = vmatprep.mubr.f32.mxu0 0.0
        %v3119 = vand.u32 %v2271, 4294901760
        %3120 = vmatmul.mubr.f32.gmra.mrb[0].mxu0 %v3119
        %v3121 = vpop.f32.mrb[0].mxu0
        %v3122 = vadd.f32 %v2953, %v3121
        %v3123 = vpop.f32.mrb[0].mxu0
        %v3124 = vadd.f32 %v2955, %v3123
        %3125 = vdwg.mxu0
        %v3126 = vand.u32 %v2161, 4294901760
        %3127 = vmatprep.subr.mxu0 %v3126
        %v3128 = vand.u32 %v2160, 4294901760
        %3129 = vmatpush1.msra.mxu0 %v3128
        %v3130 = vand.u32 %v2165, 4294901760
        %3131 = vmatprep.subr.mxu0 %v3130
        %v3132 = vand.u32 %v2164, 4294901760
        %3133 = vmatpush1.msra.mxu0 %v3132
        %v3134 = vand.u32 %v2169, 4294901760
        %3135 = vmatprep.subr.mxu0 %v3134
        %v3136 = vand.u32 %v2168, 4294901760
        %3137 = vmatpush1.msra.mxu0 %v3136
        %v3138 = vand.u32 %v2173, 4294901760
        %3139 = vmatprep.subr.mxu0 %v3138
        %v3140 = vand.u32 %v2172, 4294901760
        %3141 = vmatpush1.msra.mxu0 %v3140
        %v3142 = vand.u32 %v2177, 4294901760
        %3143 = vmatprep.subr.mxu0 %v3142
        %v3144 = vand.u32 %v2176, 4294901760
        %3145 = vmatpush1.msra.mxu0 %v3144
        %v3146 = vand.u32 %v2181, 4294901760
        %3147 = vmatprep.subr.mxu0 %v3146
        %v3148 = vand.u32 %v2180, 4294901760
        %3149 = vmatpush1.msra.mxu0 %v3148
        %v3150 = vand.u32 %v2185, 4294901760
        %3151 = vmatprep.subr.mxu0 %v3150
        %v3152 = vand.u32 %v2184, 4294901760
        %3153 = vmatpush1.msra.mxu0 %v3152
        %v3154 = vand.u32 %v2189, 4294901760
        %3155 = vmatprep.subr.mxu0 %v3154
        %v3156 = vand.u32 %v2188, 4294901760
        %3157 = vmatpush1.msra.mxu0 %v3156
        %3158 = vmatprep.subr.mxu0 0.0
        %3159 = vmatpush1.msra.mxu0 0.0
        %3160 = vmatprep.subr.mxu0 0.0
        %3161 = vmatpush1.msra.mxu0 0.0
        %3162 = vmatprep.subr.mxu0 0.0
        %3163 = vmatpush1.msra.mxu0 0.0
        %3164 = vmatprep.subr.mxu0 0.0
        %3165 = vmatpush1.msra.mxu0 0.0
        %3166 = vmatprep.subr.mxu0 0.0
        %3167 = vmatpush1.msra.mxu0 0.0
        %3168 = vmatprep.subr.mxu0 0.0
        %3169 = vmatpush1.msra.mxu0 0.0
        %3170 = vmatprep.subr.mxu0 0.0
        %3171 = vmatpush1.msra.mxu0 0.0
        %3172 = vmatprep.subr.mxu0 0.0
        %3173 = vmatpush1.msra.mxu0 0.0
        %3174 = vmatprep.subr.mxu0 0.0
        %3175 = vmatpush1.msra.mxu0 0.0
        %3176 = vmatprep.subr.mxu0 0.0
        %3177 = vmatpush1.msra.mxu0 0.0
        %3178 = vmatprep.subr.mxu0 0.0
        %3179 = vmatpush1.msra.mxu0 0.0
        %3180 = vmatprep.subr.mxu0 0.0
        %3181 = vmatpush1.msra.mxu0 0.0
        %3182 = vmatprep.subr.mxu0 0.0
        %3183 = vmatpush1.msra.mxu0 0.0
        %3184 = vmatprep.subr.mxu0 0.0
        %3185 = vmatpush1.msra.mxu0 0.0
        %3186 = vmatprep.subr.mxu0 0.0
        %3187 = vmatpush1.msra.mxu0 0.0
        %3188 = vmatprep.subr.mxu0 0.0
        %3189 = vmatpush1.msra.mxu0 0.0
        %3190 = vmatprep.subr.mxu0 0.0
        %3191 = vmatpush1.msra.mxu0 0.0
        %3192 = vmatprep.subr.mxu0 0.0
        %3193 = vmatpush1.msra.mxu0 0.0
        %3194 = vmatprep.subr.mxu0 0.0
        %3195 = vmatpush1.msra.mxu0 0.0
        %3196 = vmatprep.subr.mxu0 0.0
        %3197 = vmatpush1.msra.mxu0 0.0
        %3198 = vmatprep.subr.mxu0 0.0
        %3199 = vmatpush1.msra.mxu0 0.0
        %3200 = vmatprep.subr.mxu0 0.0
        %3201 = vmatpush1.msra.mxu0 0.0
        %3202 = vmatprep.subr.mxu0 0.0
        %3203 = vmatpush1.msra.mxu0 0.0
        %3204 = vmatprep.subr.mxu0 0.0
        %3205 = vmatpush1.msra.mxu0 0.0
        %3206 = vmatprep.mubr.f32.mxu0 0.0
        %v3207 = vand.u32 %v2250, 4294901760
        %3208 = vmatmul.mubr.f32.gmra.mrb[0].mxu0 %v3207
        %v3209 = vpop.f32.mrb[0].mxu0
        %v3210 = vadd.f32 %v3073, %v3209
        %v3211 = vpop.f32.mrb[0].mxu0
        %v3212 = vadd.f32 %v3075, %v3211
        %3213 = vmatprep.mubr.f32.mxu0 0.0
        %v3214 = vand.u32 %v2253, 4294901760
        %3215 = vmatmul.mubr.f32.gmra.mrb[0].mxu0 %v3214
        %v3216 = vpop.f32.mrb[0].mxu0
        %v3217 = vadd.f32 %v3080, %v3216
        %v3218 = vpop.f32.mrb[0].mxu0
        %v3219 = vadd.f32 %v3082, %v3218
        %3220 = vmatprep.mubr.f32.mxu0 0.0
        %v3221 = vand.u32 %v2256, 4294901760
        %3222 = vmatmul.mubr.f32.gmra.mrb[0].mxu0 %v3221
        %v3223 = vpop.f32.mrb[0].mxu0
        %v3224 = vadd.f32 %v3087, %v3223
        %v3225 = vpop.f32.mrb[0].mxu0
        %v3226 = vadd.f32 %v3089, %v3225
        %3227 = vmatprep.mubr.f32.mxu0 0.0
        %v3228 = vand.u32 %v2259, 4294901760
        %3229 = vmatmul.mubr.f32.gmra.mrb[0].mxu0 %v3228
        %v3230 = vpop.f32.mrb[0].mxu0
        %v3231 = vadd.f32 %v3094, %v3230
        %v3232 = vpop.f32.mrb[0].mxu0
        %v3233 = vadd.f32 %v3096, %v3232
        %3234 = vmatprep.mubr.f32.mxu0 0.0
        %v3235 = vand.u32 %v2262, 4294901760
        %3236 = vmatmul.mubr.f32.gmra.mrb[0].mxu0 %v3235
        %v3237 = vpop.f32.mrb[0].mxu0
        %v3238 = vadd.f32 %v3101, %v3237
        %v3239 = vpop.f32.mrb[0].mxu0
        %v3240 = vadd.f32 %v3103, %v3239
        %3241 = vmatprep.mubr.f32.mxu0 0.0
        %v3242 = vand.u32 %v2265, 4294901760
        %3243 = vmatmul.mubr.f32.gmra.mrb[0].mxu0 %v3242
        %v3244 = vpop.f32.mrb[0].mxu0
        %v3245 = vadd.f32 %v3108, %v3244
        %v3246 = vpop.f32.mrb[0].mxu0
        %v3247 = vadd.f32 %v3110, %v3246
        %3248 = vmatprep.mubr.f32.mxu0 0.0
        %v3249 = vand.u32 %v2268, 4294901760
        %3250 = vmatmul.mubr.f32.gmra.mrb[0].mxu0 %v3249
        %v3251 = vpop.f32.mrb[0].mxu0
        %v3252 = vadd.f32 %v3115, %v3251
        %v3253 = vpop.f32.mrb[0].mxu0
        %v3254 = vadd.f32 %v3117, %v3253
        %3255 = vmatprep.mubr.f32.mxu0 0.0
        %v3256 = vand.u32 %v2271, 4294901760
        %3257 = vmatmul.mubr.f32.gmra.mrb[0].mxu0 %v3256
        %v3258 = vpop.f32.mrb[0].mxu0
        %v3259 = vadd.f32 %v3122, %v3258
        %v3260 = vpop.f32.mrb[0].mxu0
        %v3261 = vadd.f32 %v3124, %v3260
        %3262 = vdwg.mxu0
        %v3263 = vand.u32 %v2163, 4294901760
        %3264 = vmatprep.subr.mxu0 %v3263
        %v3265 = vand.u32 %v2162, 4294901760
        %3266 = vmatpush1.msra.mxu0 %v3265
        %v3267 = vand.u32 %v2167, 4294901760
        %3268 = vmatprep.subr.mxu0 %v3267
        %v3269 = vand.u32 %v2166, 4294901760
        %3270 = vmatpush1.msra.mxu0 %v3269
        %v3271 = vand.u32 %v2171, 4294901760
        %3272 = vmatprep.subr.mxu0 %v3271
        %v3273 = vand.u32 %v2170, 4294901760
        %3274 = vmatpush1.msra.mxu0 %v3273
        %v3275 = vand.u32 %v2175, 4294901760
        %3276 = vmatprep.subr.mxu0 %v3275
        %v3277 = vand.u32 %v2174, 4294901760
        %3278 = vmatpush1.msra.mxu0 %v3277
        %v3279 = vand.u32 %v2179, 4294901760
        %3280 = vmatprep.subr.mxu0 %v3279
        %v3281 = vand.u32 %v2178, 4294901760
        %3282 = vmatpush1.msra.mxu0 %v3281
        %v3283 = vand.u32 %v2183, 4294901760
        %3284 = vmatprep.subr.mxu0 %v3283
        %v3285 = vand.u32 %v2182, 4294901760
        %3286 = vmatpush1.msra.mxu0 %v3285
        %v3287 = vand.u32 %v2187, 4294901760
        %3288 = vmatprep.subr.mxu0 %v3287
        %v3289 = vand.u32 %v2186, 4294901760
        %3290 = vmatpush1.msra.mxu0 %v3289
        %v3291 = vand.u32 %v2191, 4294901760
        %3292 = vmatprep.subr.mxu0 %v3291
        %v3293 = vand.u32 %v2190, 4294901760
        %3294 = vmatpush1.msra.mxu0 %v3293
        %3295 = vmatprep.subr.mxu0 0.0
        %3296 = vmatpush1.msra.mxu0 0.0
        %3297 = vmatprep.subr.mxu0 0.0
        %3298 = vmatpush1.msra.mxu0 0.0
        %3299 = vmatprep.subr.mxu0 0.0
        %3300 = vmatpush1.msra.mxu0 0.0
        %3301 = vmatprep.subr.mxu0 0.0
        %3302 = vmatpush1.msra.mxu0 0.0
        %3303 = vmatprep.subr.mxu0 0.0
        %3304 = vmatpush1.msra.mxu0 0.0
        %3305 = vmatprep.subr.mxu0 0.0
        %3306 = vmatpush1.msra.mxu0 0.0
        %3307 = vmatprep.subr.mxu0 0.0
        %3308 = vmatpush1.msra.mxu0 0.0
        %3309 = vmatprep.subr.mxu0 0.0
        %3310 = vmatpush1.msra.mxu0 0.0
        %3311 = vmatprep.subr.mxu0 0.0
        %3312 = vmatpush1.msra.mxu0 0.0
        %3313 = vmatprep.subr.mxu0 0.0
        %3314 = vmatpush1.msra.mxu0 0.0
        %3315 = vmatprep.subr.mxu0 0.0
        %3316 = vmatpush1.msra.mxu0 0.0
        %3317 = vmatprep.subr.mxu0 0.0
        %3318 = vmatpush1.msra.mxu0 0.0
        %3319 = vmatprep.subr.mxu0 0.0
        %3320 = vmatpush1.msra.mxu0 0.0
        %3321 = vmatprep.subr.mxu0 0.0
        %3322 = vmatpush1.msra.mxu0 0.0
        %3323 = vmatprep.subr.mxu0 0.0
        %3324 = vmatpush1.msra.mxu0 0.0
        %3325 = vmatprep.subr.mxu0 0.0
        %3326 = vmatpush1.msra.mxu0 0.0
        %3327 = vmatprep.subr.mxu0 0.0
        %3328 = vmatpush1.msra.mxu0 0.0
        %3329 = vmatprep.subr.mxu0 0.0
        %3330 = vmatpush1.msra.mxu0 0.0
        %3331 = vmatprep.subr.mxu0 0.0
        %3332 = vmatpush1.msra.mxu0 0.0
        %3333 = vmatprep.subr.mxu0 0.0
        %3334 = vmatpush1.msra.mxu0 0.0
        %3335 = vmatprep.subr.mxu0 0.0
        %3336 = vmatpush1.msra.mxu0 0.0
        %3337 = vmatprep.subr.mxu0 0.0
        %3338 = vmatpush1.msra.mxu0 0.0
        %3339 = vmatprep.subr.mxu0 0.0
        %3340 = vmatpush1.msra.mxu0 0.0
        %3341 = vmatprep.subr.mxu0 0.0
        %3342 = vmatpush1.msra.mxu0 0.0
        %3343 = vmatprep.mubr.f32.mxu0 0.0
        %v3344 = vand.u32 %v2250, 4294901760
        %v3345 = vsub.f32 %v2250, %v3344
        %v3346 = vand.u32 %v3345, 4294901760
        %v3347 = vsub.f32 %v3345, %v3346
        %v3348 = vand.u32 %v3347, 4294901760
        %3349 = vmatmul.mubr.f32.gmra.mrb[0].mxu0 %v3348
        %v3350 = vpop.f32.mrb[0].mxu0
        %v3351 = vadd.f32 %v2211, %v3350
        %v3352 = vpop.f32.mrb[0].mxu0
        %v3353 = vadd.f32 %v2211, %v3352
        %3354 = vmatprep.mubr.f32.mxu0 0.0
        %v3355 = vand.u32 %v2253, 4294901760
        %v3356 = vsub.f32 %v2253, %v3355
        %v3357 = vand.u32 %v3356, 4294901760
        %v3358 = vsub.f32 %v3356, %v3357
        %v3359 = vand.u32 %v3358, 4294901760
        %3360 = vmatmul.mubr.f32.gmra.mrb[0].mxu0 %v3359
        %v3361 = vpop.f32.mrb[0].mxu0
        %v3362 = vadd.f32 %v2216, %v3361
        %v3363 = vpop.f32.mrb[0].mxu0
        %v3364 = vadd.f32 %v2216, %v3363
        %3365 = vmatprep.mubr.f32.mxu0 0.0
        %v3366 = vand.u32 %v2256, 4294901760
        %v3367 = vsub.f32 %v2256, %v3366
        %v3368 = vand.u32 %v3367, 4294901760
        %v3369 = vsub.f32 %v3367, %v3368
        %v3370 = vand.u32 %v3369, 4294901760
        %3371 = vmatmul.mubr.f32.gmra.mrb[0].mxu0 %v3370
        %v3372 = vpop.f32.mrb[0].mxu0
        %v3373 = vadd.f32 %v2221, %v3372
        %v3374 = vpop.f32.mrb[0].mxu0
        %v3375 = vadd.f32 %v2221, %v3374
        %3376 = vmatprep.mubr.f32.mxu0 0.0
        %v3377 = vand.u32 %v2259, 4294901760
        %v3378 = vsub.f32 %v2259, %v3377
        %v3379 = vand.u32 %v3378, 4294901760
        %v3380 = vsub.f32 %v3378, %v3379
        %v3381 = vand.u32 %v3380, 4294901760
        %3382 = vmatmul.mubr.f32.gmra.mrb[0].mxu0 %v3381
        %v3383 = vpop.f32.mrb[0].mxu0
        %v3384 = vadd.f32 %v2226, %v3383
        %v3385 = vpop.f32.mrb[0].mxu0
        %v3386 = vadd.f32 %v2226, %v3385
        %3387 = vmatprep.mubr.f32.mxu0 0.0
        %v3388 = vand.u32 %v2262, 4294901760
        %v3389 = vsub.f32 %v2262, %v3388
        %v3390 = vand.u32 %v3389, 4294901760
        %v3391 = vsub.f32 %v3389, %v3390
        %v3392 = vand.u32 %v3391, 4294901760
        %3393 = vmatmul.mubr.f32.gmra.mrb[0].mxu0 %v3392
        %v3394 = vpop.f32.mrb[0].mxu0
        %v3395 = vadd.f32 %v2231, %v3394
        %v3396 = vpop.f32.mrb[0].mxu0
        %v3397 = vadd.f32 %v2231, %v3396
        %3398 = vmatprep.mubr.f32.mxu0 0.0
        %v3399 = vand.u32 %v2265, 4294901760
        %v3400 = vsub.f32 %v2265, %v3399
        %v3401 = vand.u32 %v3400, 4294901760
        %v3402 = vsub.f32 %v3400, %v3401
        %v3403 = vand.u32 %v3402, 4294901760
        %3404 = vmatmul.mubr.f32.gmra.mrb[0].mxu0 %v3403
        %v3405 = vpop.f32.mrb[0].mxu0
        %v3406 = vadd.f32 %v2236, %v3405
        %v3407 = vpop.f32.mrb[0].mxu0
        %v3408 = vadd.f32 %v2236, %v3407
        %3409 = vmatprep.mubr.f32.mxu0 0.0
        %v3410 = vand.u32 %v2268, 4294901760
        %v3411 = vsub.f32 %v2268, %v3410
        %v3412 = vand.u32 %v3411, 4294901760
        %v3413 = vsub.f32 %v3411, %v3412
        %v3414 = vand.u32 %v3413, 4294901760
        %3415 = vmatmul.mubr.f32.gmra.mrb[0].mxu0 %v3414
        %v3416 = vpop.f32.mrb[0].mxu0
        %v3417 = vadd.f32 %v2241, %v3416
        %v3418 = vpop.f32.mrb[0].mxu0
        %v3419 = vadd.f32 %v2241, %v3418
        %3420 = vmatprep.mubr.f32.mxu0 0.0
        %v3421 = vand.u32 %v2271, 4294901760
        %v3422 = vsub.f32 %v2271, %v3421
        %v3423 = vand.u32 %v3422, 4294901760
        %v3424 = vsub.f32 %v3422, %v3423
        %v3425 = vand.u32 %v3424, 4294901760
        %3426 = vmatmul.mubr.f32.gmra.mrb[0].mxu0 %v3425
        %v3427 = vpop.f32.mrb[0].mxu0
        %v3428 = vadd.f32 %v2246, %v3427
        %v3429 = vpop.f32.mrb[0].mxu0
        %v3430 = vadd.f32 %v2246, %v3429
        %3431 = vdwg.mxu0
        %v3432 = vand.u32 %v2163, 4294901760
        %v3433 = vsub.f32 %v2163, %v3432
        %v3434 = vand.u32 %v3433, 4294901760
        %v3435 = vsub.f32 %v3433, %v3434
        %v3436 = vand.u32 %v3435, 4294901760
        %3437 = vmatprep.subr.mxu0 %v3436
        %v3438 = vand.u32 %v2162, 4294901760
        %v3439 = vsub.f32 %v2162, %v3438
        %v3440 = vand.u32 %v3439, 4294901760
        %v3441 = vsub.f32 %v3439, %v3440
        %v3442 = vand.u32 %v3441, 4294901760
        %3443 = vmatpush1.msra.mxu0 %v3442
        %v3444 = vand.u32 %v2167, 4294901760
        %v3445 = vsub.f32 %v2167, %v3444
        %v3446 = vand.u32 %v3445, 4294901760
        %v3447 = vsub.f32 %v3445, %v3446
        %v3448 = vand.u32 %v3447, 4294901760
        %3449 = vmatprep.subr.mxu0 %v3448
        %v3450 = vand.u32 %v2166, 4294901760
        %v3451 = vsub.f32 %v2166, %v3450
        %v3452 = vand.u32 %v3451, 4294901760
        %v3453 = vsub.f32 %v3451, %v3452
        %v3454 = vand.u32 %v3453, 4294901760
        %3455 = vmatpush1.msra.mxu0 %v3454
        %v3456 = vand.u32 %v2171, 4294901760
        %v3457 = vsub.f32 %v2171, %v3456
        %v3458 = vand.u32 %v3457, 4294901760
        %v3459 = vsub.f32 %v3457, %v3458
        %v3460 = vand.u32 %v3459, 4294901760
        %3461 = vmatprep.subr.mxu0 %v3460
        %v3462 = vand.u32 %v2170, 4294901760
        %v3463 = vsub.f32 %v2170, %v3462
        %v3464 = vand.u32 %v3463, 4294901760
        %v3465 = vsub.f32 %v3463, %v3464
        %v3466 = vand.u32 %v3465, 4294901760
        %3467 = vmatpush1.msra.mxu0 %v3466
        %v3468 = vand.u32 %v2175, 4294901760
        %v3469 = vsub.f32 %v2175, %v3468
        %v3470 = vand.u32 %v3469, 4294901760
        %v3471 = vsub.f32 %v3469, %v3470
        %v3472 = vand.u32 %v3471, 4294901760
        %3473 = vmatprep.subr.mxu0 %v3472
        %v3474 = vand.u32 %v2174, 4294901760
        %v3475 = vsub.f32 %v2174, %v3474
        %v3476 = vand.u32 %v3475, 4294901760
        %v3477 = vsub.f32 %v3475, %v3476
        %v3478 = vand.u32 %v3477, 4294901760
        %3479 = vmatpush1.msra.mxu0 %v3478
        %v3480 = vand.u32 %v2179, 4294901760
        %v3481 = vsub.f32 %v2179, %v3480
        %v3482 = vand.u32 %v3481, 4294901760
        %v3483 = vsub.f32 %v3481, %v3482
        %v3484 = vand.u32 %v3483, 4294901760
        %3485 = vmatprep.subr.mxu0 %v3484
        %v3486 = vand.u32 %v2178, 4294901760
        %v3487 = vsub.f32 %v2178, %v3486
        %v3488 = vand.u32 %v3487, 4294901760
        %v3489 = vsub.f32 %v3487, %v3488
        %v3490 = vand.u32 %v3489, 4294901760
        %3491 = vmatpush1.msra.mxu0 %v3490
        %v3492 = vand.u32 %v2183, 4294901760
        %v3493 = vsub.f32 %v2183, %v3492
        %v3494 = vand.u32 %v3493, 4294901760
        %v3495 = vsub.f32 %v3493, %v3494
        %v3496 = vand.u32 %v3495, 4294901760
        %3497 = vmatprep.subr.mxu0 %v3496
        %v3498 = vand.u32 %v2182, 4294901760
        %v3499 = vsub.f32 %v2182, %v3498
        %v3500 = vand.u32 %v3499, 4294901760
        %v3501 = vsub.f32 %v3499, %v3500
        %v3502 = vand.u32 %v3501, 4294901760
        %3503 = vmatpush1.msra.mxu0 %v3502
        %v3504 = vand.u32 %v2187, 4294901760
        %v3505 = vsub.f32 %v2187, %v3504
        %v3506 = vand.u32 %v3505, 4294901760
        %v3507 = vsub.f32 %v3505, %v3506
        %v3508 = vand.u32 %v3507, 4294901760
        %3509 = vmatprep.subr.mxu0 %v3508
        %v3510 = vand.u32 %v2186, 4294901760
        %v3511 = vsub.f32 %v2186, %v3510
        %v3512 = vand.u32 %v3511, 4294901760
        %v3513 = vsub.f32 %v3511, %v3512
        %v3514 = vand.u32 %v3513, 4294901760
        %3515 = vmatpush1.msra.mxu0 %v3514
        %v3516 = vand.u32 %v2191, 4294901760
        %v3517 = vsub.f32 %v2191, %v3516
        %v3518 = vand.u32 %v3517, 4294901760
        %v3519 = vsub.f32 %v3517, %v3518
        %v3520 = vand.u32 %v3519, 4294901760
        %3521 = vmatprep.subr.mxu0 %v3520
        %v3522 = vand.u32 %v2190, 4294901760
        %v3523 = vsub.f32 %v2190, %v3522
        %v3524 = vand.u32 %v3523, 4294901760
        %v3525 = vsub.f32 %v3523, %v3524
        %v3526 = vand.u32 %v3525, 4294901760
        %3527 = vmatpush1.msra.mxu0 %v3526
        %3528 = vmatprep.subr.mxu0 0.0
        %3529 = vmatpush1.msra.mxu0 0.0
        %3530 = vmatprep.subr.mxu0 0.0
        %3531 = vmatpush1.msra.mxu0 0.0
        %3532 = vmatprep.subr.mxu0 0.0
        %3533 = vmatpush1.msra.mxu0 0.0
        %3534 = vmatprep.subr.mxu0 0.0
        %3535 = vmatpush1.msra.mxu0 0.0
        %3536 = vmatprep.subr.mxu0 0.0
        %3537 = vmatpush1.msra.mxu0 0.0
        %3538 = vmatprep.subr.mxu0 0.0
        %3539 = vmatpush1.msra.mxu0 0.0
        %3540 = vmatprep.subr.mxu0 0.0
        %3541 = vmatpush1.msra.mxu0 0.0
        %3542 = vmatprep.subr.mxu0 0.0
        %3543 = vmatpush1.msra.mxu0 0.0
        %3544 = vmatprep.subr.mxu0 0.0
        %3545 = vmatpush1.msra.mxu0 0.0
        %3546 = vmatprep.subr.mxu0 0.0
        %3547 = vmatpush1.msra.mxu0 0.0
        %3548 = vmatprep.subr.mxu0 0.0
        %3549 = vmatpush1.msra.mxu0 0.0
        %3550 = vmatprep.subr.mxu0 0.0
        %3551 = vmatpush1.msra.mxu0 0.0
        %3552 = vmatprep.subr.mxu0 0.0
        %3553 = vmatpush1.msra.mxu0 0.0
        %3554 = vmatprep.subr.mxu0 0.0
        %3555 = vmatpush1.msra.mxu0 0.0
        %3556 = vmatprep.subr.mxu0 0.0
        %3557 = vmatpush1.msra.mxu0 0.0
        %3558 = vmatprep.subr.mxu0 0.0
        %3559 = vmatpush1.msra.mxu0 0.0
        %3560 = vmatprep.subr.mxu0 0.0
        %3561 = vmatpush1.msra.mxu0 0.0
        %3562 = vmatprep.subr.mxu0 0.0
        %3563 = vmatpush1.msra.mxu0 0.0
        %3564 = vmatprep.subr.mxu0 0.0
        %3565 = vmatpush1.msra.mxu0 0.0
        %3566 = vmatprep.subr.mxu0 0.0
        %3567 = vmatpush1.msra.mxu0 0.0
        %3568 = vmatprep.subr.mxu0 0.0
        %3569 = vmatpush1.msra.mxu0 0.0
        %3570 = vmatprep.subr.mxu0 0.0
        %3571 = vmatpush1.msra.mxu0 0.0
        %3572 = vmatprep.subr.mxu0 0.0
        %3573 = vmatpush1.msra.mxu0 0.0
        %3574 = vmatprep.subr.mxu0 0.0
        %3575 = vmatpush1.msra.mxu0 0.0
        %3576 = vmatprep.mubr.f32.mxu0 0.0
        %v3577 = vand.u32 %v2250, 4294901760
        %3578 = vmatmul.mubr.f32.gmra.mrb[0].mxu0 %v3577
        %v3579 = vpop.f32.mrb[0].mxu0
        %v3580 = vadd.f32 %v3351, %v3579
        %v3581 = vpop.f32.mrb[0].mxu0
        %v3582 = vadd.f32 %v3353, %v3581
        %3583 = vmatprep.mubr.f32.mxu0 0.0
        %v3584 = vand.u32 %v2253, 4294901760
        %3585 = vmatmul.mubr.f32.gmra.mrb[0].mxu0 %v3584
        %v3586 = vpop.f32.mrb[0].mxu0
        %v3587 = vadd.f32 %v3362, %v3586
        %v3588 = vpop.f32.mrb[0].mxu0
        %v3589 = vadd.f32 %v3364, %v3588
        %3590 = vmatprep.mubr.f32.mxu0 0.0
        %v3591 = vand.u32 %v2256, 4294901760
        %3592 = vmatmul.mubr.f32.gmra.mrb[0].mxu0 %v3591
        %v3593 = vpop.f32.mrb[0].mxu0
        %v3594 = vadd.f32 %v3373, %v3593
        %v3595 = vpop.f32.mrb[0].mxu0
        %v3596 = vadd.f32 %v3375, %v3595
        %3597 = vmatprep.mubr.f32.mxu0 0.0
        %v3598 = vand.u32 %v2259, 4294901760
        %3599 = vmatmul.mubr.f32.gmra.mrb[0].mxu0 %v3598
        %v3600 = vpop.f32.mrb[0].mxu0
        %v3601 = vadd.f32 %v3384, %v3600
        %v3602 = vpop.f32.mrb[0].mxu0
        %v3603 = vadd.f32 %v3386, %v3602
        %3604 = vmatprep.mubr.f32.mxu0 0.0
        %v3605 = vand.u32 %v2262, 4294901760
        %3606 = vmatmul.mubr.f32.gmra.mrb[0].mxu0 %v3605
        %v3607 = vpop.f32.mrb[0].mxu0
        %v3608 = vadd.f32 %v3395, %v3607
        %v3609 = vpop.f32.mrb[0].mxu0
        %v3610 = vadd.f32 %v3397, %v3609
        %3611 = vmatprep.mubr.f32.mxu0 0.0
        %v3612 = vand.u32 %v2265, 4294901760
        %3613 = vmatmul.mubr.f32.gmra.mrb[0].mxu0 %v3612
        %v3614 = vpop.f32.mrb[0].mxu0
        %v3615 = vadd.f32 %v3406, %v3614
        %v3616 = vpop.f32.mrb[0].mxu0
        %v3617 = vadd.f32 %v3408, %v3616
        %3618 = vmatprep.mubr.f32.mxu0 0.0
        %v3619 = vand.u32 %v2268, 4294901760
        %3620 = vmatmul.mubr.f32.gmra.mrb[0].mxu0 %v3619
        %v3621 = vpop.f32.mrb[0].mxu0
        %v3622 = vadd.f32 %v3417, %v3621
        %v3623 = vpop.f32.mrb[0].mxu0
        %v3624 = vadd.f32 %v3419, %v3623
        %3625 = vmatprep.mubr.f32.mxu0 0.0
        %v3626 = vand.u32 %v2271, 4294901760
        %3627 = vmatmul.mubr.f32.gmra.mrb[0].mxu0 %v3626
        %v3628 = vpop.f32.mrb[0].mxu0
        %v3629 = vadd.f32 %v3428, %v3628
        %v3630 = vpop.f32.mrb[0].mxu0
        %v3631 = vadd.f32 %v3430, %v3630
        %3632 = vdwg.mxu0
        %v3633 = vand.u32 %v2163, 4294901760
        %v3634 = vsub.f32 %v2163, %v3633
        %3635 = vmatprep.subr.mxu0 %v3634
        %v3636 = vand.u32 %v2162, 4294901760
        %v3637 = vsub.f32 %v2162, %v3636
        %3638 = vmatpush1.msra.mxu0 %v3637
        %v3639 = vand.u32 %v2167, 4294901760
        %v3640 = vsub.f32 %v2167, %v3639
        %3641 = vmatprep.subr.mxu0 %v3640
        %v3642 = vand.u32 %v2166, 4294901760
        %v3643 = vsub.f32 %v2166, %v3642
        %3644 = vmatpush1.msra.mxu0 %v3643
        %v3645 = vand.u32 %v2171, 4294901760
        %v3646 = vsub.f32 %v2171, %v3645
        %3647 = vmatprep.subr.mxu0 %v3646
        %v3648 = vand.u32 %v2170, 4294901760
        %v3649 = vsub.f32 %v2170, %v3648
        %3650 = vmatpush1.msra.mxu0 %v3649
        %v3651 = vand.u32 %v2175, 4294901760
        %v3652 = vsub.f32 %v2175, %v3651
        %3653 = vmatprep.subr.mxu0 %v3652
        %v3654 = vand.u32 %v2174, 4294901760
        %v3655 = vsub.f32 %v2174, %v3654
        %3656 = vmatpush1.msra.mxu0 %v3655
        %v3657 = vand.u32 %v2179, 4294901760
        %v3658 = vsub.f32 %v2179, %v3657
        %3659 = vmatprep.subr.mxu0 %v3658
        %v3660 = vand.u32 %v2178, 4294901760
        %v3661 = vsub.f32 %v2178, %v3660
        %3662 = vmatpush1.msra.mxu0 %v3661
        %v3663 = vand.u32 %v2183, 4294901760
        %v3664 = vsub.f32 %v2183, %v3663
        %3665 = vmatprep.subr.mxu0 %v3664
        %v3666 = vand.u32 %v2182, 4294901760
        %v3667 = vsub.f32 %v2182, %v3666
        %3668 = vmatpush1.msra.mxu0 %v3667
        %v3669 = vand.u32 %v2187, 4294901760
        %v3670 = vsub.f32 %v2187, %v3669
        %3671 = vmatprep.subr.mxu0 %v3670
        %v3672 = vand.u32 %v2186, 4294901760
        %v3673 = vsub.f32 %v2186, %v3672
        %3674 = vmatpush1.msra.mxu0 %v3673
        %v3675 = vand.u32 %v2191, 4294901760
        %v3676 = vsub.f32 %v2191, %v3675
        %3677 = vmatprep.subr.mxu0 %v3676
        %v3678 = vand.u32 %v2190, 4294901760
        %v3679 = vsub.f32 %v2190, %v3678
        %3680 = vmatpush1.msra.mxu0 %v3679
        %3681 = vmatprep.subr.mxu0 0.0
        %3682 = vmatpush1.msra.mxu0 0.0
        %3683 = vmatprep.subr.mxu0 0.0
        %3684 = vmatpush1.msra.mxu0 0.0
        %3685 = vmatprep.subr.mxu0 0.0
        %3686 = vmatpush1.msra.mxu0 0.0
        %3687 = vmatprep.subr.mxu0 0.0
        %3688 = vmatpush1.msra.mxu0 0.0
        %3689 = vmatprep.subr.mxu0 0.0
        %3690 = vmatpush1.msra.mxu0 0.0
        %3691 = vmatprep.subr.mxu0 0.0
        %3692 = vmatpush1.msra.mxu0 0.0
        %3693 = vmatprep.subr.mxu0 0.0
        %3694 = vmatpush1.msra.mxu0 0.0
        %3695 = vmatprep.subr.mxu0 0.0
        %3696 = vmatpush1.msra.mxu0 0.0
        %3697 = vmatprep.subr.mxu0 0.0
        %3698 = vmatpush1.msra.mxu0 0.0
        %3699 = vmatprep.subr.mxu0 0.0
        %3700 = vmatpush1.msra.mxu0 0.0
        %3701 = vmatprep.subr.mxu0 0.0
        %3702 = vmatpush1.msra.mxu0 0.0
        %3703 = vmatprep.subr.mxu0 0.0
        %3704 = vmatpush1.msra.mxu0 0.0
        %3705 = vmatprep.subr.mxu0 0.0
        %3706 = vmatpush1.msra.mxu0 0.0
        %3707 = vmatprep.subr.mxu0 0.0
        %3708 = vmatpush1.msra.mxu0 0.0
        %3709 = vmatprep.subr.mxu0 0.0
        %3710 = vmatpush1.msra.mxu0 0.0
        %3711 = vmatprep.subr.mxu0 0.0
        %3712 = vmatpush1.msra.mxu0 0.0
        %3713 = vmatprep.subr.mxu0 0.0
        %3714 = vmatpush1.msra.mxu0 0.0
        %3715 = vmatprep.subr.mxu0 0.0
        %3716 = vmatpush1.msra.mxu0 0.0
        %3717 = vmatprep.subr.mxu0 0.0
        %3718 = vmatpush1.msra.mxu0 0.0
        %3719 = vmatprep.subr.mxu0 0.0
        %3720 = vmatpush1.msra.mxu0 0.0
        %3721 = vmatprep.subr.mxu0 0.0
        %3722 = vmatpush1.msra.mxu0 0.0
        %3723 = vmatprep.subr.mxu0 0.0
        %3724 = vmatpush1.msra.mxu0 0.0
        %3725 = vmatprep.subr.mxu0 0.0
        %3726 = vmatpush1.msra.mxu0 0.0
        %3727 = vmatprep.subr.mxu0 0.0
        %3728 = vmatpush1.msra.mxu0 0.0
        %3729 = vmatprep.mubr.f32.mxu0 0.0
        %v3730 = vand.u32 %v2250, 4294901760
        %v3731 = vsub.f32 %v2250, %v3730
        %3732 = vmatmul.mubr.f32.gmra.mrb[0].mxu0 %v3731
        %v3733 = vpop.f32.mrb[0].mxu0
        %v3734 = vadd.f32 %v3580, %v3733
        %v3735 = vpop.f32.mrb[0].mxu0
        %v3736 = vadd.f32 %v3582, %v3735
        %3737 = vmatprep.mubr.f32.mxu0 0.0
        %v3738 = vand.u32 %v2253, 4294901760
        %v3739 = vsub.f32 %v2253, %v3738
        %3740 = vmatmul.mubr.f32.gmra.mrb[0].mxu0 %v3739
        %v3741 = vpop.f32.mrb[0].mxu0
        %v3742 = vadd.f32 %v3587, %v3741
        %v3743 = vpop.f32.mrb[0].mxu0
        %v3744 = vadd.f32 %v3589, %v3743
        %3745 = vmatprep.mubr.f32.mxu0 0.0
        %v3746 = vand.u32 %v2256, 4294901760
        %v3747 = vsub.f32 %v2256, %v3746
        %3748 = vmatmul.mubr.f32.gmra.mrb[0].mxu0 %v3747
        %v3749 = vpop.f32.mrb[0].mxu0
        %v3750 = vadd.f32 %v3594, %v3749
        %v3751 = vpop.f32.mrb[0].mxu0
        %v3752 = vadd.f32 %v3596, %v3751
        %3753 = vmatprep.mubr.f32.mxu0 0.0
        %v3754 = vand.u32 %v2259, 4294901760
        %v3755 = vsub.f32 %v2259, %v3754
        %3756 = vmatmul.mubr.f32.gmra.mrb[0].mxu0 %v3755
        %v3757 = vpop.f32.mrb[0].mxu0
        %v3758 = vadd.f32 %v3601, %v3757
        %v3759 = vpop.f32.mrb[0].mxu0
        %v3760 = vadd.f32 %v3603, %v3759
        %3761 = vmatprep.mubr.f32.mxu0 0.0
        %v3762 = vand.u32 %v2262, 4294901760
        %v3763 = vsub.f32 %v2262, %v3762
        %3764 = vmatmul.mubr.f32.gmra.mrb[0].mxu0 %v3763
        %v3765 = vpop.f32.mrb[0].mxu0
        %v3766 = vadd.f32 %v3608, %v3765
        %v3767 = vpop.f32.mrb[0].mxu0
        %v3768 = vadd.f32 %v3610, %v3767
        %3769 = vmatprep.mubr.f32.mxu0 0.0
        %v3770 = vand.u32 %v2265, 4294901760
        %v3771 = vsub.f32 %v2265, %v3770
        %3772 = vmatmul.mubr.f32.gmra.mrb[0].mxu0 %v3771
        %v3773 = vpop.f32.mrb[0].mxu0
        %v3774 = vadd.f32 %v3615, %v3773
        %v3775 = vpop.f32.mrb[0].mxu0
        %v3776 = vadd.f32 %v3617, %v3775
        %3777 = vmatprep.mubr.f32.mxu0 0.0
        %v3778 = vand.u32 %v2268, 4294901760
        %v3779 = vsub.f32 %v2268, %v3778
        %3780 = vmatmul.mubr.f32.gmra.mrb[0].mxu0 %v3779
        %v3781 = vpop.f32.mrb[0].mxu0
        %v3782 = vadd.f32 %v3622, %v3781
        %v3783 = vpop.f32.mrb[0].mxu0
        %v3784 = vadd.f32 %v3624, %v3783
        %3785 = vmatprep.mubr.f32.mxu0 0.0
        %v3786 = vand.u32 %v2271, 4294901760
        %v3787 = vsub.f32 %v2271, %v3786
        %3788 = vmatmul.mubr.f32.gmra.mrb[0].mxu0 %v3787
        %v3789 = vpop.f32.mrb[0].mxu0
        %v3790 = vadd.f32 %v3629, %v3789
        %v3791 = vpop.f32.mrb[0].mxu0
        %v3792 = vadd.f32 %v3631, %v3791
        %3793 = vdwg.mxu0
        %v3794 = vand.u32 %v2163, 4294901760
        %3795 = vmatprep.subr.mxu0 %v3794
        %v3796 = vand.u32 %v2162, 4294901760
        %3797 = vmatpush1.msra.mxu0 %v3796
        %v3798 = vand.u32 %v2167, 4294901760
        %3799 = vmatprep.subr.mxu0 %v3798
        %v3800 = vand.u32 %v2166, 4294901760
        %3801 = vmatpush1.msra.mxu0 %v3800
        %v3802 = vand.u32 %v2171, 4294901760
        %3803 = vmatprep.subr.mxu0 %v3802
        %v3804 = vand.u32 %v2170, 4294901760
        %3805 = vmatpush1.msra.mxu0 %v3804
        %v3806 = vand.u32 %v2175, 4294901760
        %3807 = vmatprep.subr.mxu0 %v3806
        %v3808 = vand.u32 %v2174, 4294901760
        %3809 = vmatpush1.msra.mxu0 %v3808
        %v3810 = vand.u32 %v2179, 4294901760
        %3811 = vmatprep.subr.mxu0 %v3810
        %v3812 = vand.u32 %v2178, 4294901760
        %3813 = vmatpush1.msra.mxu0 %v3812
        %v3814 = vand.u32 %v2183, 4294901760
        %3815 = vmatprep.subr.mxu0 %v3814
        %v3816 = vand.u32 %v2182, 4294901760
        %3817 = vmatpush1.msra.mxu0 %v3816
        %v3818 = vand.u32 %v2187, 4294901760
        %3819 = vmatprep.subr.mxu0 %v3818
        %v3820 = vand.u32 %v2186, 4294901760
        %3821 = vmatpush1.msra.mxu0 %v3820
        %v3822 = vand.u32 %v2191, 4294901760
        %3823 = vmatprep.subr.mxu0 %v3822
        %v3824 = vand.u32 %v2190, 4294901760
        %3825 = vmatpush1.msra.mxu0 %v3824
        %3826 = vmatprep.subr.mxu0 0.0
        %3827 = vmatpush1.msra.mxu0 0.0
        %3828 = vmatprep.subr.mxu0 0.0
        %3829 = vmatpush1.msra.mxu0 0.0
        %3830 = vmatprep.subr.mxu0 0.0
        %3831 = vmatpush1.msra.mxu0 0.0
        %3832 = vmatprep.subr.mxu0 0.0
        %3833 = vmatpush1.msra.mxu0 0.0
        %3834 = vmatprep.subr.mxu0 0.0
        %3835 = vmatpush1.msra.mxu0 0.0
        %3836 = vmatprep.subr.mxu0 0.0
        %3837 = vmatpush1.msra.mxu0 0.0
        %3838 = vmatprep.subr.mxu0 0.0
        %3839 = vmatpush1.msra.mxu0 0.0
        %3840 = vmatprep.subr.mxu0 0.0
        %3841 = vmatpush1.msra.mxu0 0.0
        %3842 = vmatprep.subr.mxu0 0.0
        %3843 = vmatpush1.msra.mxu0 0.0
        %3844 = vmatprep.subr.mxu0 0.0
        %3845 = vmatpush1.msra.mxu0 0.0
        %3846 = vmatprep.subr.mxu0 0.0
        %3847 = vmatpush1.msra.mxu0 0.0
        %3848 = vmatprep.subr.mxu0 0.0
        %3849 = vmatpush1.msra.mxu0 0.0
        %3850 = vmatprep.subr.mxu0 0.0
        %3851 = vmatpush1.msra.mxu0 0.0
        %3852 = vmatprep.subr.mxu0 0.0
        %3853 = vmatpush1.msra.mxu0 0.0
        %3854 = vmatprep.subr.mxu0 0.0
        %3855 = vmatpush1.msra.mxu0 0.0
        %3856 = vmatprep.subr.mxu0 0.0
        %3857 = vmatpush1.msra.mxu0 0.0
        %3858 = vmatprep.subr.mxu0 0.0
        %3859 = vmatpush1.msra.mxu0 0.0
        %3860 = vmatprep.subr.mxu0 0.0
        %3861 = vmatpush1.msra.mxu0 0.0
        %3862 = vmatprep.subr.mxu0 0.0
        %3863 = vmatpush1.msra.mxu0 0.0
        %3864 = vmatprep.subr.mxu0 0.0
        %3865 = vmatpush1.msra.mxu0 0.0
        %3866 = vmatprep.subr.mxu0 0.0
        %3867 = vmatpush1.msra.mxu0 0.0
        %3868 = vmatprep.subr.mxu0 0.0
        %3869 = vmatpush1.msra.mxu0 0.0
        %3870 = vmatprep.subr.mxu0 0.0
        %3871 = vmatpush1.msra.mxu0 0.0
        %3872 = vmatprep.subr.mxu0 0.0
        %3873 = vmatpush1.msra.mxu0 0.0
        %3874 = vmatprep.mubr.f32.mxu0 0.0
        %v3875 = vand.u32 %v2250, 4294901760
        %v3876 = vsub.f32 %v2250, %v3875
        %v3877 = vand.u32 %v3876, 4294901760
        %3878 = vmatmul.mubr.f32.gmra.mrb[0].mxu0 %v3877
        %v3879 = vpop.f32.mrb[0].mxu0
        %v3880 = vadd.f32 %v3734, %v3879
        %v3881 = vpop.f32.mrb[0].mxu0
        %v3882 = vadd.f32 %v3736, %v3881
        %3883 = vmatprep.mubr.f32.mxu0 0.0
        %v3884 = vand.u32 %v2253, 4294901760
        %v3885 = vsub.f32 %v2253, %v3884
        %v3886 = vand.u32 %v3885, 4294901760
        %3887 = vmatmul.mubr.f32.gmra.mrb[0].mxu0 %v3886
        %v3888 = vpop.f32.mrb[0].mxu0
        %v3889 = vadd.f32 %v3742, %v3888
        %v3890 = vpop.f32.mrb[0].mxu0
        %v3891 = vadd.f32 %v3744, %v3890
        %3892 = vmatprep.mubr.f32.mxu0 0.0
        %v3893 = vand.u32 %v2256, 4294901760
        %v3894 = vsub.f32 %v2256, %v3893
        %v3895 = vand.u32 %v3894, 4294901760
        %3896 = vmatmul.mubr.f32.gmra.mrb[0].mxu0 %v3895
        %v3897 = vpop.f32.mrb[0].mxu0
        %v3898 = vadd.f32 %v3750, %v3897
        %v3899 = vpop.f32.mrb[0].mxu0
        %v3900 = vadd.f32 %v3752, %v3899
        %3901 = vmatprep.mubr.f32.mxu0 0.0
        %v3902 = vand.u32 %v2259, 4294901760
        %v3903 = vsub.f32 %v2259, %v3902
        %v3904 = vand.u32 %v3903, 4294901760
        %3905 = vmatmul.mubr.f32.gmra.mrb[0].mxu0 %v3904
        %v3906 = vpop.f32.mrb[0].mxu0
        %v3907 = vadd.f32 %v3758, %v3906
        %v3908 = vpop.f32.mrb[0].mxu0
        %v3909 = vadd.f32 %v3760, %v3908
        %3910 = vmatprep.mubr.f32.mxu0 0.0
        %v3911 = vand.u32 %v2262, 4294901760
        %v3912 = vsub.f32 %v2262, %v3911
        %v3913 = vand.u32 %v3912, 4294901760
        %3914 = vmatmul.mubr.f32.gmra.mrb[0].mxu0 %v3913
        %v3915 = vpop.f32.mrb[0].mxu0
        %v3916 = vadd.f32 %v3766, %v3915
        %v3917 = vpop.f32.mrb[0].mxu0
        %v3918 = vadd.f32 %v3768, %v3917
        %3919 = vmatprep.mubr.f32.mxu0 0.0
        %v3920 = vand.u32 %v2265, 4294901760
        %v3921 = vsub.f32 %v2265, %v3920
        %v3922 = vand.u32 %v3921, 4294901760
        %3923 = vmatmul.mubr.f32.gmra.mrb[0].mxu0 %v3922
        %v3924 = vpop.f32.mrb[0].mxu0
        %v3925 = vadd.f32 %v3774, %v3924
        %v3926 = vpop.f32.mrb[0].mxu0
        %v3927 = vadd.f32 %v3776, %v3926
        %3928 = vmatprep.mubr.f32.mxu0 0.0
        %v3929 = vand.u32 %v2268, 4294901760
        %v3930 = vsub.f32 %v2268, %v3929
        %v3931 = vand.u32 %v3930, 4294901760
        %3932 = vmatmul.mubr.f32.gmra.mrb[0].mxu0 %v3931
        %v3933 = vpop.f32.mrb[0].mxu0
        %v3934 = vadd.f32 %v3782, %v3933
        %v3935 = vpop.f32.mrb[0].mxu0
        %v3936 = vadd.f32 %v3784, %v3935
        %3937 = vmatprep.mubr.f32.mxu0 0.0
        %v3938 = vand.u32 %v2271, 4294901760
        %v3939 = vsub.f32 %v2271, %v3938
        %v3940 = vand.u32 %v3939, 4294901760
        %3941 = vmatmul.mubr.f32.gmra.mrb[0].mxu0 %v3940
        %v3942 = vpop.f32.mrb[0].mxu0
        %v3943 = vadd.f32 %v3790, %v3942
        %v3944 = vpop.f32.mrb[0].mxu0
        %v3945 = vadd.f32 %v3792, %v3944
        %3946 = vdwg.mxu0
        %v3947 = vand.u32 %v2163, 4294901760
        %v3948 = vsub.f32 %v2163, %v3947
        %v3949 = vand.u32 %v3948, 4294901760
        %3950 = vmatprep.subr.mxu0 %v3949
        %v3951 = vand.u32 %v2162, 4294901760
        %v3952 = vsub.f32 %v2162, %v3951
        %v3953 = vand.u32 %v3952, 4294901760
        %3954 = vmatpush1.msra.mxu0 %v3953
        %v3955 = vand.u32 %v2167, 4294901760
        %v3956 = vsub.f32 %v2167, %v3955
        %v3957 = vand.u32 %v3956, 4294901760
        %3958 = vmatprep.subr.mxu0 %v3957
        %v3959 = vand.u32 %v2166, 4294901760
        %v3960 = vsub.f32 %v2166, %v3959
        %v3961 = vand.u32 %v3960, 4294901760
        %3962 = vmatpush1.msra.mxu0 %v3961
        %v3963 = vand.u32 %v2171, 4294901760
        %v3964 = vsub.f32 %v2171, %v3963
        %v3965 = vand.u32 %v3964, 4294901760
        %3966 = vmatprep.subr.mxu0 %v3965
        %v3967 = vand.u32 %v2170, 4294901760
        %v3968 = vsub.f32 %v2170, %v3967
        %v3969 = vand.u32 %v3968, 4294901760
        %3970 = vmatpush1.msra.mxu0 %v3969
        %v3971 = vand.u32 %v2175, 4294901760
        %v3972 = vsub.f32 %v2175, %v3971
        %v3973 = vand.u32 %v3972, 4294901760
        %3974 = vmatprep.subr.mxu0 %v3973
        %v3975 = vand.u32 %v2174, 4294901760
        %v3976 = vsub.f32 %v2174, %v3975
        %v3977 = vand.u32 %v3976, 4294901760
        %3978 = vmatpush1.msra.mxu0 %v3977
        %v3979 = vand.u32 %v2179, 4294901760
        %v3980 = vsub.f32 %v2179, %v3979
        %v3981 = vand.u32 %v3980, 4294901760
        %3982 = vmatprep.subr.mxu0 %v3981
        %v3983 = vand.u32 %v2178, 4294901760
        %v3984 = vsub.f32 %v2178, %v3983
        %v3985 = vand.u32 %v3984, 4294901760
        %3986 = vmatpush1.msra.mxu0 %v3985
        %v3987 = vand.u32 %v2183, 4294901760
        %v3988 = vsub.f32 %v2183, %v3987
        %v3989 = vand.u32 %v3988, 4294901760
        %3990 = vmatprep.subr.mxu0 %v3989
        %v3991 = vand.u32 %v2182, 4294901760
        %v3992 = vsub.f32 %v2182, %v3991
        %v3993 = vand.u32 %v3992, 4294901760
        %3994 = vmatpush1.msra.mxu0 %v3993
        %v3995 = vand.u32 %v2187, 4294901760
        %v3996 = vsub.f32 %v2187, %v3995
        %v3997 = vand.u32 %v3996, 4294901760
        %3998 = vmatprep.subr.mxu0 %v3997
        %v3999 = vand.u32 %v2186, 4294901760
        %v4000 = vsub.f32 %v2186, %v3999
        %v4001 = vand.u32 %v4000, 4294901760
        %4002 = vmatpush1.msra.mxu0 %v4001
        %v4003 = vand.u32 %v2191, 4294901760
        %v4004 = vsub.f32 %v2191, %v4003
        %v4005 = vand.u32 %v4004, 4294901760
        %4006 = vmatprep.subr.mxu0 %v4005
        %v4007 = vand.u32 %v2190, 4294901760
        %v4008 = vsub.f32 %v2190, %v4007
        %v4009 = vand.u32 %v4008, 4294901760
        %4010 = vmatpush1.msra.mxu0 %v4009
        %4011 = vmatprep.subr.mxu0 0.0
        %4012 = vmatpush1.msra.mxu0 0.0
        %4013 = vmatprep.subr.mxu0 0.0
        %4014 = vmatpush1.msra.mxu0 0.0
        %4015 = vmatprep.subr.mxu0 0.0
        %4016 = vmatpush1.msra.mxu0 0.0
        %4017 = vmatprep.subr.mxu0 0.0
        %4018 = vmatpush1.msra.mxu0 0.0
        %4019 = vmatprep.subr.mxu0 0.0
        %4020 = vmatpush1.msra.mxu0 0.0
        %4021 = vmatprep.subr.mxu0 0.0
        %4022 = vmatpush1.msra.mxu0 0.0
        %4023 = vmatprep.subr.mxu0 0.0
        %4024 = vmatpush1.msra.mxu0 0.0
        %4025 = vmatprep.subr.mxu0 0.0
        %4026 = vmatpush1.msra.mxu0 0.0
        %4027 = vmatprep.subr.mxu0 0.0
        %4028 = vmatpush1.msra.mxu0 0.0
        %4029 = vmatprep.subr.mxu0 0.0
        %4030 = vmatpush1.msra.mxu0 0.0
        %4031 = vmatprep.subr.mxu0 0.0
        %4032 = vmatpush1.msra.mxu0 0.0
        %4033 = vmatprep.subr.mxu0 0.0
        %4034 = vmatpush1.msra.mxu0 0.0
        %4035 = vmatprep.subr.mxu0 0.0
        %4036 = vmatpush1.msra.mxu0 0.0
        %4037 = vmatprep.subr.mxu0 0.0
        %4038 = vmatpush1.msra.mxu0 0.0
        %4039 = vmatprep.subr.mxu0 0.0
        %4040 = vmatpush1.msra.mxu0 0.0
        %4041 = vmatprep.subr.mxu0 0.0
        %4042 = vmatpush1.msra.mxu0 0.0
        %4043 = vmatprep.subr.mxu0 0.0
        %4044 = vmatpush1.msra.mxu0 0.0
        %4045 = vmatprep.subr.mxu0 0.0
        %4046 = vmatpush1.msra.mxu0 0.0
        %4047 = vmatprep.subr.mxu0 0.0
        %4048 = vmatpush1.msra.mxu0 0.0
        %4049 = vmatprep.subr.mxu0 0.0
        %4050 = vmatpush1.msra.mxu0 0.0
        %4051 = vmatprep.subr.mxu0 0.0
        %4052 = vmatpush1.msra.mxu0 0.0
        %4053 = vmatprep.subr.mxu0 0.0
        %4054 = vmatpush1.msra.mxu0 0.0
        %4055 = vmatprep.subr.mxu0 0.0
        %4056 = vmatpush1.msra.mxu0 0.0
        %4057 = vmatprep.subr.mxu0 0.0
        %4058 = vmatpush1.msra.mxu0 0.0
        %4059 = vmatprep.mubr.f32.mxu0 0.0
        %v4060 = vand.u32 %v2250, 4294901760
        %4061 = vmatmul.mubr.f32.gmra.mrb[0].mxu0 %v4060
        %v4062 = vpop.f32.mrb[0].mxu0
        %v4063 = vadd.f32 %v3880, %v4062
        %v4064 = vpop.f32.mrb[0].mxu0
        %v4065 = vadd.f32 %v3882, %v4064
        %4066 = vmatprep.mubr.f32.mxu0 0.0
        %v4067 = vand.u32 %v2253, 4294901760
        %4068 = vmatmul.mubr.f32.gmra.mrb[0].mxu0 %v4067
        %v4069 = vpop.f32.mrb[0].mxu0
        %v4070 = vadd.f32 %v3889, %v4069
        %v4071 = vpop.f32.mrb[0].mxu0
        %v4072 = vadd.f32 %v3891, %v4071
        %4073 = vmatprep.mubr.f32.mxu0 0.0
        %v4074 = vand.u32 %v2256, 4294901760
        %4075 = vmatmul.mubr.f32.gmra.mrb[0].mxu0 %v4074
        %v4076 = vpop.f32.mrb[0].mxu0
        %v4077 = vadd.f32 %v3898, %v4076
        %v4078 = vpop.f32.mrb[0].mxu0
        %v4079 = vadd.f32 %v3900, %v4078
        %4080 = vmatprep.mubr.f32.mxu0 0.0
        %v4081 = vand.u32 %v2259, 4294901760
        %4082 = vmatmul.mubr.f32.gmra.mrb[0].mxu0 %v4081
        %v4083 = vpop.f32.mrb[0].mxu0
        %v4084 = vadd.f32 %v3907, %v4083
        %v4085 = vpop.f32.mrb[0].mxu0
        %v4086 = vadd.f32 %v3909, %v4085
        %4087 = vmatprep.mubr.f32.mxu0 0.0
        %v4088 = vand.u32 %v2262, 4294901760
        %4089 = vmatmul.mubr.f32.gmra.mrb[0].mxu0 %v4088
        %v4090 = vpop.f32.mrb[0].mxu0
        %v4091 = vadd.f32 %v3916, %v4090
        %v4092 = vpop.f32.mrb[0].mxu0
        %v4093 = vadd.f32 %v3918, %v4092
        %4094 = vmatprep.mubr.f32.mxu0 0.0
        %v4095 = vand.u32 %v2265, 4294901760
        %4096 = vmatmul.mubr.f32.gmra.mrb[0].mxu0 %v4095
        %v4097 = vpop.f32.mrb[0].mxu0
        %v4098 = vadd.f32 %v3925, %v4097
        %v4099 = vpop.f32.mrb[0].mxu0
        %v4100 = vadd.f32 %v3927, %v4099
        %4101 = vmatprep.mubr.f32.mxu0 0.0
        %v4102 = vand.u32 %v2268, 4294901760
        %4103 = vmatmul.mubr.f32.gmra.mrb[0].mxu0 %v4102
        %v4104 = vpop.f32.mrb[0].mxu0
        %v4105 = vadd.f32 %v3934, %v4104
        %v4106 = vpop.f32.mrb[0].mxu0
        %v4107 = vadd.f32 %v3936, %v4106
        %4108 = vmatprep.mubr.f32.mxu0 0.0
        %v4109 = vand.u32 %v2271, 4294901760
        %4110 = vmatmul.mubr.f32.gmra.mrb[0].mxu0 %v4109
        %v4111 = vpop.f32.mrb[0].mxu0
        %v4112 = vadd.f32 %v3943, %v4111
        %v4113 = vpop.f32.mrb[0].mxu0
        %v4114 = vadd.f32 %v3945, %v4113
        %4115 = vdwg.mxu0
        %v4116 = vand.u32 %v2163, 4294901760
        %4117 = vmatprep.subr.mxu0 %v4116
        %v4118 = vand.u32 %v2162, 4294901760
        %4119 = vmatpush1.msra.mxu0 %v4118
        %v4120 = vand.u32 %v2167, 4294901760
        %4121 = vmatprep.subr.mxu0 %v4120
        %v4122 = vand.u32 %v2166, 4294901760
        %4123 = vmatpush1.msra.mxu0 %v4122
        %v4124 = vand.u32 %v2171, 4294901760
        %4125 = vmatprep.subr.mxu0 %v4124
        %v4126 = vand.u32 %v2170, 4294901760
        %4127 = vmatpush1.msra.mxu0 %v4126
        %v4128 = vand.u32 %v2175, 4294901760
        %4129 = vmatprep.subr.mxu0 %v4128
        %v4130 = vand.u32 %v2174, 4294901760
        %4131 = vmatpush1.msra.mxu0 %v4130
        %v4132 = vand.u32 %v2179, 4294901760
        %4133 = vmatprep.subr.mxu0 %v4132
        %v4134 = vand.u32 %v2178, 4294901760
        %4135 = vmatpush1.msra.mxu0 %v4134
        %v4136 = vand.u32 %v2183, 4294901760
        %4137 = vmatprep.subr.mxu0 %v4136
        %v4138 = vand.u32 %v2182, 4294901760
        %4139 = vmatpush1.msra.mxu0 %v4138
        %v4140 = vand.u32 %v2187, 4294901760
        %4141 = vmatprep.subr.mxu0 %v4140
        %v4142 = vand.u32 %v2186, 4294901760
        %4143 = vmatpush1.msra.mxu0 %v4142
        %v4144 = vand.u32 %v2191, 4294901760
        %4145 = vmatprep.subr.mxu0 %v4144
        %v4146 = vand.u32 %v2190, 4294901760
        %4147 = vmatpush1.msra.mxu0 %v4146
        %4148 = vmatprep.subr.mxu0 0.0
        %4149 = vmatpush1.msra.mxu0 0.0
        %4150 = vmatprep.subr.mxu0 0.0
        %4151 = vmatpush1.msra.mxu0 0.0
        %4152 = vmatprep.subr.mxu0 0.0
        %4153 = vmatpush1.msra.mxu0 0.0
        %4154 = vmatprep.subr.mxu0 0.0
        %4155 = vmatpush1.msra.mxu0 0.0
        %4156 = vmatprep.subr.mxu0 0.0
        %4157 = vmatpush1.msra.mxu0 0.0
        %4158 = vmatprep.subr.mxu0 0.0
        %4159 = vmatpush1.msra.mxu0 0.0
        %4160 = vmatprep.subr.mxu0 0.0
        %4161 = vmatpush1.msra.mxu0 0.0
        %4162 = vmatprep.subr.mxu0 0.0
        %4163 = vmatpush1.msra.mxu0 0.0
        %4164 = vmatprep.subr.mxu0 0.0
        %4165 = vmatpush1.msra.mxu0 0.0
        %4166 = vmatprep.subr.mxu0 0.0
        %4167 = vmatpush1.msra.mxu0 0.0
        %4168 = vmatprep.subr.mxu0 0.0
        %4169 = vmatpush1.msra.mxu0 0.0
        %4170 = vmatprep.subr.mxu0 0.0
        %4171 = vmatpush1.msra.mxu0 0.0
        %4172 = vmatprep.subr.mxu0 0.0
        %4173 = vmatpush1.msra.mxu0 0.0
        %4174 = vmatprep.subr.mxu0 0.0
        %4175 = vmatpush1.msra.mxu0 0.0
        %4176 = vmatprep.subr.mxu0 0.0
        %4177 = vmatpush1.msra.mxu0 0.0
        %4178 = vmatprep.subr.mxu0 0.0
        %4179 = vmatpush1.msra.mxu0 0.0
        %4180 = vmatprep.subr.mxu0 0.0
        %4181 = vmatpush1.msra.mxu0 0.0
        %4182 = vmatprep.subr.mxu0 0.0
        %4183 = vmatpush1.msra.mxu0 0.0
        %4184 = vmatprep.subr.mxu0 0.0
        %4185 = vmatpush1.msra.mxu0 0.0
        %4186 = vmatprep.subr.mxu0 0.0
        %4187 = vmatpush1.msra.mxu0 0.0
        %4188 = vmatprep.subr.mxu0 0.0
        %4189 = vmatpush1.msra.mxu0 0.0
        %4190 = vmatprep.subr.mxu0 0.0
        %4191 = vmatpush1.msra.mxu0 0.0
        %4192 = vmatprep.subr.mxu0 0.0
        %4193 = vmatpush1.msra.mxu0 0.0
        %4194 = vmatprep.subr.mxu0 0.0
        %4195 = vmatpush1.msra.mxu0 0.0
        %4196 = vmatprep.mubr.f32.mxu0 0.0
        %v4197 = vand.u32 %v2250, 4294901760
        %4198 = vmatmul.mubr.f32.gmra.mrb[0].mxu0 %v4197
        %v4199 = vpop.f32.mrb[0].mxu0
        %v4200 = vadd.f32 %v4063, %v4199
        %v4201 = vpop.f32.mrb[0].mxu0
        %v4202 = vadd.f32 %v4065, %v4201
        %4203 = vmatprep.mubr.f32.mxu0 0.0
        %v4204 = vand.u32 %v2253, 4294901760
        %4205 = vmatmul.mubr.f32.gmra.mrb[0].mxu0 %v4204
        %v4206 = vpop.f32.mrb[0].mxu0
        %v4207 = vadd.f32 %v4070, %v4206
        %v4208 = vpop.f32.mrb[0].mxu0
        %v4209 = vadd.f32 %v4072, %v4208
        %4210 = vmatprep.mubr.f32.mxu0 0.0
        %v4211 = vand.u32 %v2256, 4294901760
        %4212 = vmatmul.mubr.f32.gmra.mrb[0].mxu0 %v4211
        %v4213 = vpop.f32.mrb[0].mxu0
        %v4214 = vadd.f32 %v4077, %v4213
        %v4215 = vpop.f32.mrb[0].mxu0
        %v4216 = vadd.f32 %v4079, %v4215
        %4217 = vmatprep.mubr.f32.mxu0 0.0
        %v4218 = vand.u32 %v2259, 4294901760
        %4219 = vmatmul.mubr.f32.gmra.mrb[0].mxu0 %v4218
        %v4220 = vpop.f32.mrb[0].mxu0
        %v4221 = vadd.f32 %v4084, %v4220
        %v4222 = vpop.f32.mrb[0].mxu0
        %v4223 = vadd.f32 %v4086, %v4222
        %4224 = vmatprep.mubr.f32.mxu0 0.0
        %v4225 = vand.u32 %v2262, 4294901760
        %4226 = vmatmul.mubr.f32.gmra.mrb[0].mxu0 %v4225
        %v4227 = vpop.f32.mrb[0].mxu0
        %v4228 = vadd.f32 %v4091, %v4227
        %v4229 = vpop.f32.mrb[0].mxu0
        %v4230 = vadd.f32 %v4093, %v4229
        %4231 = vmatprep.mubr.f32.mxu0 0.0
        %v4232 = vand.u32 %v2265, 4294901760
        %4233 = vmatmul.mubr.f32.gmra.mrb[0].mxu0 %v4232
        %v4234 = vpop.f32.mrb[0].mxu0
        %v4235 = vadd.f32 %v4098, %v4234
        %v4236 = vpop.f32.mrb[0].mxu0
        %v4237 = vadd.f32 %v4100, %v4236
        %4238 = vmatprep.mubr.f32.mxu0 0.0
        %v4239 = vand.u32 %v2268, 4294901760
        %4240 = vmatmul.mubr.f32.gmra.mrb[0].mxu0 %v4239
        %v4241 = vpop.f32.mrb[0].mxu0
        %v4242 = vadd.f32 %v4105, %v4241
        %v4243 = vpop.f32.mrb[0].mxu0
        %v4244 = vadd.f32 %v4107, %v4243
        %4245 = vmatprep.mubr.f32.mxu0 0.0
        %v4246 = vand.u32 %v2271, 4294901760
        %4247 = vmatmul.mubr.f32.gmra.mrb[0].mxu0 %v4246
        %v4248 = vpop.f32.mrb[0].mxu0
        %v4249 = vadd.f32 %v4112, %v4248
        %v4250 = vpop.f32.mrb[0].mxu0
        %v4251 = vadd.f32 %v4114, %v4250
        %4252 = vdwg.mxu0
        %v4253 = vtanh.pop %v3210
        %v4254 = vtanh.pop %v3212
        %v4255 = vtanh.pop %v4200
        %v4256 = vtanh.pop %v4202
        %v4257 = vtanh.pop %v3217
        %v4258 = vtanh.pop %v3219
        %v4259 = vtanh.pop %v4207
        %v4260 = vtanh.pop %v4209
        %v4261 = vtanh.pop %v3224
        %v4262 = vtanh.pop %v3226
        %v4263 = vtanh.pop %v4214
        %v4264 = vtanh.pop %v4216
        %v4265 = vtanh.pop %v3231
        %v4266 = vtanh.pop %v3233
        %v4267 = vtanh.pop %v4221
        %v4268 = vtanh.pop %v4223
        %v4269 = vtanh.pop %v3238
        %v4270 = vtanh.pop %v3240
        %v4271 = vtanh.pop %v4228
        %v4272 = vtanh.pop %v4230
        %v4273 = vtanh.pop %v3245
        %v4274 = vtanh.pop %v3247
        %v4275 = vtanh.pop %v4235
        %v4276 = vtanh.pop %v4237
        %v4277 = vtanh.pop %v3252
        %v4278 = vtanh.pop %v3254
        %v4279 = vtanh.pop %v4242
        %v4280 = vtanh.pop %v4244
        %v4281 = vtanh.pop %v3259
        %v4282 = vtanh.pop %v3261
        %v4283 = vtanh.pop %v4249
        %v4284 = vtanh.pop %v4251
        %v4285 = vld [vmem:[%s6] sm:$0xff]
        %v4286 = vld [vmem:[%s6 + $0x8] sm:$0xff]
        %v4287 = vld [vmem:[%s6 + $0x10] sm:$0xff]
        %v4288 = vld [vmem:[%s6 + $0x18] sm:$0xff]
        %v4289 = vld [vmem:[%s6 + $0x20] sm:$0xff]
        %v4290 = vld [vmem:[%s6 + $0x28] sm:$0xff]
        %v4291 = vld [vmem:[%s6 + $0x30] sm:$0xff]
        %v4292 = vld [vmem:[%s6 + $0x38] sm:$0xff]
        %v4293 = vld [vmem:[%s7] sm:$0xff]
        %v4294 = vld [vmem:[%s7 + $0x8] sm:$0xff]
        %v4295 = vld [vmem:[%s7 + $0x10] sm:$0xff]
        %v4296 = vld [vmem:[%s7 + $0x18] sm:$0xff]
        %v4297 = vld [vmem:[%s7 + $0x20] sm:$0xff]
        %v4298 = vld [vmem:[%s7 + $0x28] sm:$0xff]
        %v4299 = vld [vmem:[%s7 + $0x30] sm:$0xff]
        %v4300 = vld [vmem:[%s7 + $0x38] sm:$0xff]
        %4302 = vset.pattern.permute.xlu0 0
        %4303 = vperm.xlu0 %4302, %v4293
        %v4304 = vpop.permute.xlu0 %4303
        %4307 = vset.pattern.permute.xlu0 0
        %4308 = vperm.xlu0 %4307, %v4294
        %v4309 = vpop.permute.xlu0 %4308
        %4312 = vset.pattern.permute.xlu0 0
        %4313 = vperm.xlu0 %4312, %v4295
        %v4314 = vpop.permute.xlu0 %4313
        %4317 = vset.pattern.permute.xlu0 0
        %4318 = vperm.xlu0 %4317, %v4296
        %v4319 = vpop.permute.xlu0 %4318
        %4322 = vset.pattern.permute.xlu0 0
        %4323 = vperm.xlu0 %4322, %v4297
        %v4324 = vpop.permute.xlu0 %4323
        %4327 = vset.pattern.permute.xlu0 0
        %4328 = vperm.xlu0 %4327, %v4298
        %v4329 = vpop.permute.xlu0 %4328
        %4332 = vset.pattern.permute.xlu0 0
        %4333 = vperm.xlu0 %4332, %v4299
        %v4334 = vpop.permute.xlu0 %4333
        %4337 = vset.pattern.permute.xlu0 0
        %4338 = vperm.xlu0 %4337, %v4300
        %v4339 = vpop.permute.xlu0 %4338
        %v4342 = vsel %vm2248, %v4285, 0
        %v4345 = vsel %vm2248, %v4286, 0
        %v4348 = vsel %vm2248, %v4287, 0
        %v4351 = vsel %vm2248, %v4288, 0
        %v4354 = vsel %vm2248, %v4289, 0
        %v4357 = vsel %vm2248, %v4290, 0
        %v4360 = vsel %vm2248, %v4291, 0
        %v4363 = vsel %vm2248, %v4292, 0
        %v4365 = vand.u32 %v4254, 4294901760
        %4366 = vmatprep.subr.mxu0 %v4365
        %v4367 = vand.u32 %v4253, 4294901760
        %4368 = vmatpush1.msra.mxu0 %v4367
        %v4369 = vand.u32 %v4258, 4294901760
        %4370 = vmatprep.subr.mxu0 %v4369
        %v4371 = vand.u32 %v4257, 4294901760
        %4372 = vmatpush1.msra.mxu0 %v4371
        %v4373 = vand.u32 %v4262, 4294901760
        %4374 = vmatprep.subr.mxu0 %v4373
        %v4375 = vand.u32 %v4261, 4294901760
        %4376 = vmatpush1.msra.mxu0 %v4375
        %v4377 = vand.u32 %v4266, 4294901760
        %4378 = vmatprep.subr.mxu0 %v4377
        %v4379 = vand.u32 %v4265, 4294901760
        %4380 = vmatpush1.msra.mxu0 %v4379
        %v4381 = vand.u32 %v4270, 4294901760
        %4382 = vmatprep.subr.mxu0 %v4381
        %v4383 = vand.u32 %v4269, 4294901760
        %4384 = vmatpush1.msra.mxu0 %v4383
        %v4385 = vand.u32 %v4274, 4294901760
        %4386 = vmatprep.subr.mxu0 %v4385
        %v4387 = vand.u32 %v4273, 4294901760
        %4388 = vmatpush1.msra.mxu0 %v4387
        %v4389 = vand.u32 %v4278, 4294901760
        %4390 = vmatprep.subr.mxu0 %v4389
        %v4391 = vand.u32 %v4277, 4294901760
        %4392 = vmatpush1.msra.mxu0 %v4391
        %v4393 = vand.u32 %v4282, 4294901760
        %4394 = vmatprep.subr.mxu0 %v4393
        %v4395 = vand.u32 %v4281, 4294901760
        %4396 = vmatpush1.msra.mxu0 %v4395
        %4397 = vmatprep.subr.mxu0 0.0
        %4398 = vmatpush1.msra.mxu0 0.0
        %4399 = vmatprep.subr.mxu0 0.0
        %4400 = vmatpush1.msra.mxu0 0.0
        %4401 = vmatprep.subr.mxu0 0.0
        %4402 = vmatpush1.msra.mxu0 0.0
        %4403 = vmatprep.subr.mxu0 0.0
        %4404 = vmatpush1.msra.mxu0 0.0
        %4405 = vmatprep.subr.mxu0 0.0
        %4406 = vmatpush1.msra.mxu0 0.0
        %4407 = vmatprep.subr.mxu0 0.0
        %4408 = vmatpush1.msra.mxu0 0.0
        %4409 = vmatprep.subr.mxu0 0.0
        %4410 = vmatpush1.msra.mxu0 0.0
        %4411 = vmatprep.subr.mxu0 0.0
        %4412 = vmatpush1.msra.mxu0 0.0
        %4413 = vmatprep.subr.mxu0 0.0
        %4414 = vmatpush1.msra.mxu0 0.0
        %4415 = vmatprep.subr.mxu0 0.0
        %4416 = vmatpush1.msra.mxu0 0.0
        %4417 = vmatprep.subr.mxu0 0.0
        %4418 = vmatpush1.msra.mxu0 0.0
        %4419 = vmatprep.subr.mxu0 0.0
        %4420 = vmatpush1.msra.mxu0 0.0
        %4421 = vmatprep.subr.mxu0 0.0
        %4422 = vmatpush1.msra.mxu0 0.0
        %4423 = vmatprep.subr.mxu0 0.0
        %4424 = vmatpush1.msra.mxu0 0.0
        %4425 = vmatprep.subr.mxu0 0.0
        %4426 = vmatpush1.msra.mxu0 0.0
        %4427 = vmatprep.subr.mxu0 0.0
        %4428 = vmatpush1.msra.mxu0 0.0
        %4429 = vmatprep.subr.mxu0 0.0
        %4430 = vmatpush1.msra.mxu0 0.0
        %4431 = vmatprep.subr.mxu0 0.0
        %4432 = vmatpush1.msra.mxu0 0.0
        %4433 = vmatprep.subr.mxu0 0.0
        %4434 = vmatpush1.msra.mxu0 0.0
        %4435 = vmatprep.subr.mxu0 0.0
        %4436 = vmatpush1.msra.mxu0 0.0
        %4437 = vmatprep.subr.mxu0 0.0
        %4438 = vmatpush1.msra.mxu0 0.0
        %4439 = vmatprep.subr.mxu0 0.0
        %4440 = vmatpush1.msra.mxu0 0.0
        %4441 = vmatprep.subr.mxu0 0.0
        %4442 = vmatpush1.msra.mxu0 0.0
        %4443 = vmatprep.subr.mxu0 0.0
        %4444 = vmatpush1.msra.mxu0 0.0
        %4445 = vmatprep.mubr.f32.mxu0 0.0
        %v4446 = vand.u32 %v4342, 4294901760
        %v4447 = vsub.f32 %v4342, %v4446
        %v4448 = vand.u32 %v4447, 4294901760
        %v4449 = vsub.f32 %v4447, %v4448
        %v4450 = vand.u32 %v4449, 4294901760
        %4451 = vmatmul.mubr.f32.gmra.mrb[0].mxu0 %v4450
        %v4452 = vpop.f32.mrb[0].mxu0
        %v4453 = vadd.f32 %v4304, %v4452
        %v4454 = vpop.f32.mrb[0].mxu0
        %v4455 = vadd.f32 %v4304, %v4454
        %4456 = vmatprep.mubr.f32.mxu0 0.0
        %v4457 = vand.u32 %v4345, 4294901760
        %v4458 = vsub.f32 %v4345, %v4457
        %v4459 = vand.u32 %v4458, 4294901760
        %v4460 = vsub.f32 %v4458, %v4459
        %v4461 = vand.u32 %v4460, 4294901760
        %4462 = vmatmul.mubr.f32.gmra.mrb[0].mxu0 %v4461
        %v4463 = vpop.f32.mrb[0].mxu0
        %v4464 = vadd.f32 %v4309, %v4463
        %v4465 = vpop.f32.mrb[0].mxu0
        %v4466 = vadd.f32 %v4309, %v4465
        %4467 = vmatprep.mubr.f32.mxu0 0.0
        %v4468 = vand.u32 %v4348, 4294901760
        %v4469 = vsub.f32 %v4348, %v4468
        %v4470 = vand.u32 %v4469, 4294901760
        %v4471 = vsub.f32 %v4469, %v4470
        %v4472 = vand.u32 %v4471, 4294901760
        %4473 = vmatmul.mubr.f32.gmra.mrb[0].mxu0 %v4472
        %v4474 = vpop.f32.mrb[0].mxu0
        %v4475 = vadd.f32 %v4314, %v4474
        %v4476 = vpop.f32.mrb[0].mxu0
        %v4477 = vadd.f32 %v4314, %v4476
        %4478 = vmatprep.mubr.f32.mxu0 0.0
        %v4479 = vand.u32 %v4351, 4294901760
        %v4480 = vsub.f32 %v4351, %v4479
        %v4481 = vand.u32 %v4480, 4294901760
        %v4482 = vsub.f32 %v4480, %v4481
        %v4483 = vand.u32 %v4482, 4294901760
        %4484 = vmatmul.mubr.f32.gmra.mrb[0].mxu0 %v4483
        %v4485 = vpop.f32.mrb[0].mxu0
        %v4486 = vadd.f32 %v4319, %v4485
        %v4487 = vpop.f32.mrb[0].mxu0
        %v4488 = vadd.f32 %v4319, %v4487
        %4489 = vmatprep.mubr.f32.mxu0 0.0
        %v4490 = vand.u32 %v4354, 4294901760
        %v4491 = vsub.f32 %v4354, %v4490
        %v4492 = vand.u32 %v4491, 4294901760
        %v4493 = vsub.f32 %v4491, %v4492
        %v4494 = vand.u32 %v4493, 4294901760
        %4495 = vmatmul.mubr.f32.gmra.mrb[0].mxu0 %v4494
        %v4496 = vpop.f32.mrb[0].mxu0
        %v4497 = vadd.f32 %v4324, %v4496
        %v4498 = vpop.f32.mrb[0].mxu0
        %v4499 = vadd.f32 %v4324, %v4498
        %4500 = vmatprep.mubr.f32.mxu0 0.0
        %v4501 = vand.u32 %v4357, 4294901760
        %v4502 = vsub.f32 %v4357, %v4501
        %v4503 = vand.u32 %v4502, 4294901760
        %v4504 = vsub.f32 %v4502, %v4503
        %v4505 = vand.u32 %v4504, 4294901760
        %4506 = vmatmul.mubr.f32.gmra.mrb[0].mxu0 %v4505
        %v4507 = vpop.f32.mrb[0].mxu0
        %v4508 = vadd.f32 %v4329, %v4507
        %v4509 = vpop.f32.mrb[0].mxu0
        %v4510 = vadd.f32 %v4329, %v4509
        %4511 = vmatprep.mubr.f32.mxu0 0.0
        %v4512 = vand.u32 %v4360, 4294901760
        %v4513 = vsub.f32 %v4360, %v4512
        %v4514 = vand.u32 %v4513, 4294901760
        %v4515 = vsub.f32 %v4513, %v4514
        %v4516 = vand.u32 %v4515, 4294901760
        %4517 = vmatmul.mubr.f32.gmra.mrb[0].mxu0 %v4516
        %v4518 = vpop.f32.mrb[0].mxu0
        %v4519 = vadd.f32 %v4334, %v4518
        %v4520 = vpop.f32.mrb[0].mxu0
        %v4521 = vadd.f32 %v4334, %v4520
        %4522 = vmatprep.mubr.f32.mxu0 0.0
        %v4523 = vand.u32 %v4363, 4294901760
        %v4524 = vsub.f32 %v4363, %v4523
        %v4525 = vand.u32 %v4524, 4294901760
        %v4526 = vsub.f32 %v4524, %v4525
        %v4527 = vand.u32 %v4526, 4294901760
        %4528 = vmatmul.mubr.f32.gmra.mrb[0].mxu0 %v4527
        %v4529 = vpop.f32.mrb[0].mxu0
        %v4530 = vadd.f32 %v4339, %v4529
        %v4531 = vpop.f32.mrb[0].mxu0
        %v4532 = vadd.f32 %v4339, %v4531
        %4533 = vdwg.mxu0
        %v4534 = vand.u32 %v4254, 4294901760
        %v4535 = vsub.f32 %v4254, %v4534
        %v4536 = vand.u32 %v4535, 4294901760
        %v4537 = vsub.f32 %v4535, %v4536
        %v4538 = vand.u32 %v4537, 4294901760
        %4539 = vmatprep.subr.mxu0 %v4538
        %v4540 = vand.u32 %v4253, 4294901760
        %v4541 = vsub.f32 %v4253, %v4540
        %v4542 = vand.u32 %v4541, 4294901760
        %v4543 = vsub.f32 %v4541, %v4542
        %v4544 = vand.u32 %v4543, 4294901760
        %4545 = vmatpush1.msra.mxu0 %v4544
        %v4546 = vand.u32 %v4258, 4294901760
        %v4547 = vsub.f32 %v4258, %v4546
        %v4548 = vand.u32 %v4547, 4294901760
        %v4549 = vsub.f32 %v4547, %v4548
        %v4550 = vand.u32 %v4549, 4294901760
        %4551 = vmatprep.subr.mxu0 %v4550
        %v4552 = vand.u32 %v4257, 4294901760
        %v4553 = vsub.f32 %v4257, %v4552
        %v4554 = vand.u32 %v4553, 4294901760
        %v4555 = vsub.f32 %v4553, %v4554
        %v4556 = vand.u32 %v4555, 4294901760
        %4557 = vmatpush1.msra.mxu0 %v4556
        %v4558 = vand.u32 %v4262, 4294901760
        %v4559 = vsub.f32 %v4262, %v4558
        %v4560 = vand.u32 %v4559, 4294901760
        %v4561 = vsub.f32 %v4559, %v4560
        %v4562 = vand.u32 %v4561, 4294901760
        %4563 = vmatprep.subr.mxu0 %v4562
        %v4564 = vand.u32 %v4261, 4294901760
        %v4565 = vsub.f32 %v4261, %v4564
        %v4566 = vand.u32 %v4565, 4294901760
        %v4567 = vsub.f32 %v4565, %v4566
        %v4568 = vand.u32 %v4567, 4294901760
        %4569 = vmatpush1.msra.mxu0 %v4568
        %v4570 = vand.u32 %v4266, 4294901760
        %v4571 = vsub.f32 %v4266, %v4570
        %v4572 = vand.u32 %v4571, 4294901760
        %v4573 = vsub.f32 %v4571, %v4572
        %v4574 = vand.u32 %v4573, 4294901760
        %4575 = vmatprep.subr.mxu0 %v4574
        %v4576 = vand.u32 %v4265, 4294901760
        %v4577 = vsub.f32 %v4265, %v4576
        %v4578 = vand.u32 %v4577, 4294901760
        %v4579 = vsub.f32 %v4577, %v4578
        %v4580 = vand.u32 %v4579, 4294901760
        %4581 = vmatpush1.msra.mxu0 %v4580
        %v4582 = vand.u32 %v4270, 4294901760
        %v4583 = vsub.f32 %v4270, %v4582
        %v4584 = vand.u32 %v4583, 4294901760
        %v4585 = vsub.f32 %v4583, %v4584
        %v4586 = vand.u32 %v4585, 4294901760
        %4587 = vmatprep.subr.mxu0 %v4586
        %v4588 = vand.u32 %v4269, 4294901760
        %v4589 = vsub.f32 %v4269, %v4588
        %v4590 = vand.u32 %v4589, 4294901760
        %v4591 = vsub.f32 %v4589, %v4590
        %v4592 = vand.u32 %v4591, 4294901760
        %4593 = vmatpush1.msra.mxu0 %v4592
        %v4594 = vand.u32 %v4274, 4294901760
        %v4595 = vsub.f32 %v4274, %v4594
        %v4596 = vand.u32 %v4595, 4294901760
        %v4597 = vsub.f32 %v4595, %v4596
        %v4598 = vand.u32 %v4597, 4294901760
        %4599 = vmatprep.subr.mxu0 %v4598
        %v4600 = vand.u32 %v4273, 4294901760
        %v4601 = vsub.f32 %v4273, %v4600
        %v4602 = vand.u32 %v4601, 4294901760
        %v4603 = vsub.f32 %v4601, %v4602
        %v4604 = vand.u32 %v4603, 4294901760
        %4605 = vmatpush1.msra.mxu0 %v4604
        %v4606 = vand.u32 %v4278, 4294901760
        %v4607 = vsub.f32 %v4278, %v4606
        %v4608 = vand.u32 %v4607, 4294901760
        %v4609 = vsub.f32 %v4607, %v4608
        %v4610 = vand.u32 %v4609, 4294901760
        %4611 = vmatprep.subr.mxu0 %v4610
        %v4612 = vand.u32 %v4277, 4294901760
        %v4613 = vsub.f32 %v4277, %v4612
        %v4614 = vand.u32 %v4613, 4294901760
        %v4615 = vsub.f32 %v4613, %v4614
        %v4616 = vand.u32 %v4615, 4294901760
        %4617 = vmatpush1.msra.mxu0 %v4616
        %v4618 = vand.u32 %v4282, 4294901760
        %v4619 = vsub.f32 %v4282, %v4618
        %v4620 = vand.u32 %v4619, 4294901760
        %v4621 = vsub.f32 %v4619, %v4620
        %v4622 = vand.u32 %v4621, 4294901760
        %4623 = vmatprep.subr.mxu0 %v4622
        %v4624 = vand.u32 %v4281, 4294901760
        %v4625 = vsub.f32 %v4281, %v4624
        %v4626 = vand.u32 %v4625, 4294901760
        %v4627 = vsub.f32 %v4625, %v4626
        %v4628 = vand.u32 %v4627, 4294901760
        %4629 = vmatpush1.msra.mxu0 %v4628
        %4630 = vmatprep.subr.mxu0 0.0
        %4631 = vmatpush1.msra.mxu0 0.0
        %4632 = vmatprep.subr.mxu0 0.0
        %4633 = vmatpush1.msra.mxu0 0.0
        %4634 = vmatprep.subr.mxu0 0.0
        %4635 = vmatpush1.msra.mxu0 0.0
        %4636 = vmatprep.subr.mxu0 0.0
        %4637 = vmatpush1.msra.mxu0 0.0
        %4638 = vmatprep.subr.mxu0 0.0
        %4639 = vmatpush1.msra.mxu0 0.0
        %4640 = vmatprep.subr.mxu0 0.0
        %4641 = vmatpush1.msra.mxu0 0.0
        %4642 = vmatprep.subr.mxu0 0.0
        %4643 = vmatpush1.msra.mxu0 0.0
        %4644 = vmatprep.subr.mxu0 0.0
        %4645 = vmatpush1.msra.mxu0 0.0
        %4646 = vmatprep.subr.mxu0 0.0
        %4647 = vmatpush1.msra.mxu0 0.0
        %4648 = vmatprep.subr.mxu0 0.0
        %4649 = vmatpush1.msra.mxu0 0.0
        %4650 = vmatprep.subr.mxu0 0.0
        %4651 = vmatpush1.msra.mxu0 0.0
        %4652 = vmatprep.subr.mxu0 0.0
        %4653 = vmatpush1.msra.mxu0 0.0
        %4654 = vmatprep.subr.mxu0 0.0
        %4655 = vmatpush1.msra.mxu0 0.0
        %4656 = vmatprep.subr.mxu0 0.0
        %4657 = vmatpush1.msra.mxu0 0.0
        %4658 = vmatprep.subr.mxu0 0.0
        %4659 = vmatpush1.msra.mxu0 0.0
        %4660 = vmatprep.subr.mxu0 0.0
        %4661 = vmatpush1.msra.mxu0 0.0
        %4662 = vmatprep.subr.mxu0 0.0
        %4663 = vmatpush1.msra.mxu0 0.0
        %4664 = vmatprep.subr.mxu0 0.0
        %4665 = vmatpush1.msra.mxu0 0.0
        %4666 = vmatprep.subr.mxu0 0.0
        %4667 = vmatpush1.msra.mxu0 0.0
        %4668 = vmatprep.subr.mxu0 0.0
        %4669 = vmatpush1.msra.mxu0 0.0
        %4670 = vmatprep.subr.mxu0 0.0
        %4671 = vmatpush1.msra.mxu0 0.0
        %4672 = vmatprep.subr.mxu0 0.0
        %4673 = vmatpush1.msra.mxu0 0.0
        %4674 = vmatprep.subr.mxu0 0.0
        %4675 = vmatpush1.msra.mxu0 0.0
        %4676 = vmatprep.subr.mxu0 0.0
        %4677 = vmatpush1.msra.mxu0 0.0
        %4678 = vmatprep.mubr.f32.mxu0 0.0
        %v4679 = vand.u32 %v4342, 4294901760
        %4680 = vmatmul.mubr.f32.gmra.mrb[0].mxu0 %v4679
        %v4681 = vpop.f32.mrb[0].mxu0
        %v4682 = vadd.f32 %v4453, %v4681
        %v4683 = vpop.f32.mrb[0].mxu0
        %v4684 = vadd.f32 %v4455, %v4683
        %4685 = vmatprep.mubr.f32.mxu0 0.0
        %v4686 = vand.u32 %v4345, 4294901760
        %4687 = vmatmul.mubr.f32.gmra.mrb[0].mxu0 %v4686
        %v4688 = vpop.f32.mrb[0].mxu0
        %v4689 = vadd.f32 %v4464, %v4688
        %v4690 = vpop.f32.mrb[0].mxu0
        %v4691 = vadd.f32 %v4466, %v4690
        %4692 = vmatprep.mubr.f32.mxu0 0.0
        %v4693 = vand.u32 %v4348, 4294901760
        %4694 = vmatmul.mubr.f32.gmra.mrb[0].mxu0 %v4693
        %v4695 = vpop.f32.mrb[0].mxu0
        %v4696 = vadd.f32 %v4475, %v4695
        %v4697 = vpop.f32.mrb[0].mxu0
        %v4698 = vadd.f32 %v4477, %v4697
        %4699 = vmatprep.mubr.f32.mxu0 0.0
        %v4700 = vand.u32 %v4351, 4294901760
        %4701 = vmatmul.mubr.f32.gmra.mrb[0].mxu0 %v4700
        %v4702 = vpop.f32.mrb[0].mxu0
        %v4703 = vadd.f32 %v4486, %v4702
        %v4704 = vpop.f32.mrb[0].mxu0
        %v4705 = vadd.f32 %v4488, %v4704
        %4706 = vmatprep.mubr.f32.mxu0 0.0
        %v4707 = vand.u32 %v4354, 4294901760
        %4708 = vmatmul.mubr.f32.gmra.mrb[0].mxu0 %v4707
        %v4709 = vpop.f32.mrb[0].mxu0
        %v4710 = vadd.f32 %v4497, %v4709
        %v4711 = vpop.f32.mrb[0].mxu0
        %v4712 = vadd.f32 %v4499, %v4711
        %4713 = vmatprep.mubr.f32.mxu0 0.0
        %v4714 = vand.u32 %v4357, 4294901760
        %4715 = vmatmul.mubr.f32.gmra.mrb[0].mxu0 %v4714
        %v4716 = vpop.f32.mrb[0].mxu0
        %v4717 = vadd.f32 %v4508, %v4716
        %v4718 = vpop.f32.mrb[0].mxu0
        %v4719 = vadd.f32 %v4510, %v4718
        %4720 = vmatprep.mubr.f32.mxu0 0.0
        %v4721 = vand.u32 %v4360, 4294901760
        %4722 = vmatmul.mubr.f32.gmra.mrb[0].mxu0 %v4721
        %v4723 = vpop.f32.mrb[0].mxu0
        %v4724 = vadd.f32 %v4519, %v4723
        %v4725 = vpop.f32.mrb[0].mxu0
        %v4726 = vadd.f32 %v4521, %v4725
        %4727 = vmatprep.mubr.f32.mxu0 0.0
        %v4728 = vand.u32 %v4363, 4294901760
        %4729 = vmatmul.mubr.f32.gmra.mrb[0].mxu0 %v4728
        %v4730 = vpop.f32.mrb[0].mxu0
        %v4731 = vadd.f32 %v4530, %v4730
        %v4732 = vpop.f32.mrb[0].mxu0
        %v4733 = vadd.f32 %v4532, %v4732
        %4734 = vdwg.mxu0
        %v4735 = vand.u32 %v4254, 4294901760
        %v4736 = vsub.f32 %v4254, %v4735
        %4737 = vmatprep.subr.mxu0 %v4736
        %v4738 = vand.u32 %v4253, 4294901760
        %v4739 = vsub.f32 %v4253, %v4738
        %4740 = vmatpush1.msra.mxu0 %v4739
        %v4741 = vand.u32 %v4258, 4294901760
        %v4742 = vsub.f32 %v4258, %v4741
        %4743 = vmatprep.subr.mxu0 %v4742
        %v4744 = vand.u32 %v4257, 4294901760
        %v4745 = vsub.f32 %v4257, %v4744
        %4746 = vmatpush1.msra.mxu0 %v4745
        %v4747 = vand.u32 %v4262, 4294901760
        %v4748 = vsub.f32 %v4262, %v4747
        %4749 = vmatprep.subr.mxu0 %v4748
        %v4750 = vand.u32 %v4261, 4294901760
        %v4751 = vsub.f32 %v4261, %v4750
        %4752 = vmatpush1.msra.mxu0 %v4751
        %v4753 = vand.u32 %v4266, 4294901760
        %v4754 = vsub.f32 %v4266, %v4753
        %4755 = vmatprep.subr.mxu0 %v4754
        %v4756 = vand.u32 %v4265, 4294901760
        %v4757 = vsub.f32 %v4265, %v4756
        %4758 = vmatpush1.msra.mxu0 %v4757
        %v4759 = vand.u32 %v4270, 4294901760
        %v4760 = vsub.f32 %v4270, %v4759
        %4761 = vmatprep.subr.mxu0 %v4760
        %v4762 = vand.u32 %v4269, 4294901760
        %v4763 = vsub.f32 %v4269, %v4762
        %4764 = vmatpush1.msra.mxu0 %v4763
        %v4765 = vand.u32 %v4274, 4294901760
        %v4766 = vsub.f32 %v4274, %v4765
        %4767 = vmatprep.subr.mxu0 %v4766
        %v4768 = vand.u32 %v4273, 4294901760
        %v4769 = vsub.f32 %v4273, %v4768
        %4770 = vmatpush1.msra.mxu0 %v4769
        %v4771 = vand.u32 %v4278, 4294901760
        %v4772 = vsub.f32 %v4278, %v4771
        %4773 = vmatprep.subr.mxu0 %v4772
        %v4774 = vand.u32 %v4277, 4294901760
        %v4775 = vsub.f32 %v4277, %v4774
        %4776 = vmatpush1.msra.mxu0 %v4775
        %v4777 = vand.u32 %v4282, 4294901760
        %v4778 = vsub.f32 %v4282, %v4777
        %4779 = vmatprep.subr.mxu0 %v4778
        %v4780 = vand.u32 %v4281, 4294901760
        %v4781 = vsub.f32 %v4281, %v4780
        %4782 = vmatpush1.msra.mxu0 %v4781
        %4783 = vmatprep.subr.mxu0 0.0
        %4784 = vmatpush1.msra.mxu0 0.0
        %4785 = vmatprep.subr.mxu0 0.0
        %4786 = vmatpush1.msra.mxu0 0.0
        %4787 = vmatprep.subr.mxu0 0.0
        %4788 = vmatpush1.msra.mxu0 0.0
        %4789 = vmatprep.subr.mxu0 0.0
        %4790 = vmatpush1.msra.mxu0 0.0
        %4791 = vmatprep.subr.mxu0 0.0
        %4792 = vmatpush1.msra.mxu0 0.0
        %4793 = vmatprep.subr.mxu0 0.0
        %4794 = vmatpush1.msra.mxu0 0.0
        %4795 = vmatprep.subr.mxu0 0.0
        %4796 = vmatpush1.msra.mxu0 0.0
        %4797 = vmatprep.subr.mxu0 0.0
        %4798 = vmatpush1.msra.mxu0 0.0
        %4799 = vmatprep.subr.mxu0 0.0
        %4800 = vmatpush1.msra.mxu0 0.0
        %4801 = vmatprep.subr.mxu0 0.0
        %4802 = vmatpush1.msra.mxu0 0.0
        %4803 = vmatprep.subr.mxu0 0.0
        %4804 = vmatpush1.msra.mxu0 0.0
        %4805 = vmatprep.subr.mxu0 0.0
        %4806 = vmatpush1.msra.mxu0 0.0
        %4807 = vmatprep.subr.mxu0 0.0
        %4808 = vmatpush1.msra.mxu0 0.0
        %4809 = vmatprep.subr.mxu0 0.0
        %4810 = vmatpush1.msra.mxu0 0.0
        %4811 = vmatprep.subr.mxu0 0.0
        %4812 = vmatpush1.msra.mxu0 0.0
        %4813 = vmatprep.subr.mxu0 0.0
        %4814 = vmatpush1.msra.mxu0 0.0
        %4815 = vmatprep.subr.mxu0 0.0
        %4816 = vmatpush1.msra.mxu0 0.0
        %4817 = vmatprep.subr.mxu0 0.0
        %4818 = vmatpush1.msra.mxu0 0.0
        %4819 = vmatprep.subr.mxu0 0.0
        %4820 = vmatpush1.msra.mxu0 0.0
        %4821 = vmatprep.subr.mxu0 0.0
        %4822 = vmatpush1.msra.mxu0 0.0
        %4823 = vmatprep.subr.mxu0 0.0
        %4824 = vmatpush1.msra.mxu0 0.0
        %4825 = vmatprep.subr.mxu0 0.0
        %4826 = vmatpush1.msra.mxu0 0.0
        %4827 = vmatprep.subr.mxu0 0.0
        %4828 = vmatpush1.msra.mxu0 0.0
        %4829 = vmatprep.subr.mxu0 0.0
        %4830 = vmatpush1.msra.mxu0 0.0
        %4831 = vmatprep.mubr.f32.mxu0 0.0
        %v4832 = vand.u32 %v4342, 4294901760
        %v4833 = vsub.f32 %v4342, %v4832
        %4834 = vmatmul.mubr.f32.gmra.mrb[0].mxu0 %v4833
        %v4835 = vpop.f32.mrb[0].mxu0
        %v4836 = vadd.f32 %v4682, %v4835
        %v4837 = vpop.f32.mrb[0].mxu0
        %v4838 = vadd.f32 %v4684, %v4837
        %4839 = vmatprep.mubr.f32.mxu0 0.0
        %v4840 = vand.u32 %v4345, 4294901760
        %v4841 = vsub.f32 %v4345, %v4840
        %4842 = vmatmul.mubr.f32.gmra.mrb[0].mxu0 %v4841
        %v4843 = vpop.f32.mrb[0].mxu0
        %v4844 = vadd.f32 %v4689, %v4843
        %v4845 = vpop.f32.mrb[0].mxu0
        %v4846 = vadd.f32 %v4691, %v4845
        %4847 = vmatprep.mubr.f32.mxu0 0.0
        %v4848 = vand.u32 %v4348, 4294901760
        %v4849 = vsub.f32 %v4348, %v4848
        %4850 = vmatmul.mubr.f32.gmra.mrb[0].mxu0 %v4849
        %v4851 = vpop.f32.mrb[0].mxu0
        %v4852 = vadd.f32 %v4696, %v4851
        %v4853 = vpop.f32.mrb[0].mxu0
        %v4854 = vadd.f32 %v4698, %v4853
        %4855 = vmatprep.mubr.f32.mxu0 0.0
        %v4856 = vand.u32 %v4351, 4294901760
        %v4857 = vsub.f32 %v4351, %v4856
        %4858 = vmatmul.mubr.f32.gmra.mrb[0].mxu0 %v4857
        %v4859 = vpop.f32.mrb[0].mxu0
        %v4860 = vadd.f32 %v4703, %v4859
        %v4861 = vpop.f32.mrb[0].mxu0
        %v4862 = vadd.f32 %v4705, %v4861
        %4863 = vmatprep.mubr.f32.mxu0 0.0
        %v4864 = vand.u32 %v4354, 4294901760
        %v4865 = vsub.f32 %v4354, %v4864
        %4866 = vmatmul.mubr.f32.gmra.mrb[0].mxu0 %v4865
        %v4867 = vpop.f32.mrb[0].mxu0
        %v4868 = vadd.f32 %v4710, %v4867
        %v4869 = vpop.f32.mrb[0].mxu0
        %v4870 = vadd.f32 %v4712, %v4869
        %4871 = vmatprep.mubr.f32.mxu0 0.0
        %v4872 = vand.u32 %v4357, 4294901760
        %v4873 = vsub.f32 %v4357, %v4872
        %4874 = vmatmul.mubr.f32.gmra.mrb[0].mxu0 %v4873
        %v4875 = vpop.f32.mrb[0].mxu0
        %v4876 = vadd.f32 %v4717, %v4875
        %v4877 = vpop.f32.mrb[0].mxu0
        %v4878 = vadd.f32 %v4719, %v4877
        %4879 = vmatprep.mubr.f32.mxu0 0.0
        %v4880 = vand.u32 %v4360, 4294901760
        %v4881 = vsub.f32 %v4360, %v4880
        %4882 = vmatmul.mubr.f32.gmra.mrb[0].mxu0 %v4881
        %v4883 = vpop.f32.mrb[0].mxu0
        %v4884 = vadd.f32 %v4724, %v4883
        %v4885 = vpop.f32.mrb[0].mxu0
        %v4886 = vadd.f32 %v4726, %v4885
        %4887 = vmatprep.mubr.f32.mxu0 0.0
        %v4888 = vand.u32 %v4363, 4294901760
        %v4889 = vsub.f32 %v4363, %v4888
        %4890 = vmatmul.mubr.f32.gmra.mrb[0].mxu0 %v4889
        %v4891 = vpop.f32.mrb[0].mxu0
        %v4892 = vadd.f32 %v4731, %v4891
        %v4893 = vpop.f32.mrb[0].mxu0
        %v4894 = vadd.f32 %v4733, %v4893
        %4895 = vdwg.mxu0
        %v4896 = vand.u32 %v4254, 4294901760
        %4897 = vmatprep.subr.mxu0 %v4896
        %v4898 = vand.u32 %v4253, 4294901760
        %4899 = vmatpush1.msra.mxu0 %v4898
        %v4900 = vand.u32 %v4258, 4294901760
        %4901 = vmatprep.subr.mxu0 %v4900
        %v4902 = vand.u32 %v4257, 4294901760
        %4903 = vmatpush1.msra.mxu0 %v4902
        %v4904 = vand.u32 %v4262, 4294901760
        %4905 = vmatprep.subr.mxu0 %v4904
        %v4906 = vand.u32 %v4261, 4294901760
        %4907 = vmatpush1.msra.mxu0 %v4906
        %v4908 = vand.u32 %v4266, 4294901760
        %4909 = vmatprep.subr.mxu0 %v4908
        %v4910 = vand.u32 %v4265, 4294901760
        %4911 = vmatpush1.msra.mxu0 %v4910
        %v4912 = vand.u32 %v4270, 4294901760
        %4913 = vmatprep.subr.mxu0 %v4912
        %v4914 = vand.u32 %v4269, 4294901760
        %4915 = vmatpush1.msra.mxu0 %v4914
        %v4916 = vand.u32 %v4274, 4294901760
        %4917 = vmatprep.subr.mxu0 %v4916
        %v4918 = vand.u32 %v4273, 4294901760
        %4919 = vmatpush1.msra.mxu0 %v4918
        %v4920 = vand.u32 %v4278, 4294901760
        %4921 = vmatprep.subr.mxu0 %v4920
        %v4922 = vand.u32 %v4277, 4294901760
        %4923 = vmatpush1.msra.mxu0 %v4922
        %v4924 = vand.u32 %v4282, 4294901760
        %4925 = vmatprep.subr.mxu0 %v4924
        %v4926 = vand.u32 %v4281, 4294901760
        %4927 = vmatpush1.msra.mxu0 %v4926
        %4928 = vmatprep.subr.mxu0 0.0
        %4929 = vmatpush1.msra.mxu0 0.0
        %4930 = vmatprep.subr.mxu0 0.0
        %4931 = vmatpush1.msra.mxu0 0.0
        %4932 = vmatprep.subr.mxu0 0.0
        %4933 = vmatpush1.msra.mxu0 0.0
        %4934 = vmatprep.subr.mxu0 0.0
        %4935 = vmatpush1.msra.mxu0 0.0
        %4936 = vmatprep.subr.mxu0 0.0
        %4937 = vmatpush1.msra.mxu0 0.0
        %4938 = vmatprep.subr.mxu0 0.0
        %4939 = vmatpush1.msra.mxu0 0.0
        %4940 = vmatprep.subr.mxu0 0.0
        %4941 = vmatpush1.msra.mxu0 0.0
        %4942 = vmatprep.subr.mxu0 0.0
        %4943 = vmatpush1.msra.mxu0 0.0
        %4944 = vmatprep.subr.mxu0 0.0
        %4945 = vmatpush1.msra.mxu0 0.0
        %4946 = vmatprep.subr.mxu0 0.0
        %4947 = vmatpush1.msra.mxu0 0.0
        %4948 = vmatprep.subr.mxu0 0.0
        %4949 = vmatpush1.msra.mxu0 0.0
        %4950 = vmatprep.subr.mxu0 0.0
        %4951 = vmatpush1.msra.mxu0 0.0
        %4952 = vmatprep.subr.mxu0 0.0
        %4953 = vmatpush1.msra.mxu0 0.0
        %4954 = vmatprep.subr.mxu0 0.0
        %4955 = vmatpush1.msra.mxu0 0.0
        %4956 = vmatprep.subr.mxu0 0.0
        %4957 = vmatpush1.msra.mxu0 0.0
        %4958 = vmatprep.subr.mxu0 0.0
        %4959 = vmatpush1.msra.mxu0 0.0
        %4960 = vmatprep.subr.mxu0 0.0
        %4961 = vmatpush1.msra.mxu0 0.0
        %4962 = vmatprep.subr.mxu0 0.0
        %4963 = vmatpush1.msra.mxu0 0.0
        %4964 = vmatprep.subr.mxu0 0.0
        %4965 = vmatpush1.msra.mxu0 0.0
        %4966 = vmatprep.subr.mxu0 0.0
        %4967 = vmatpush1.msra.mxu0 0.0
        %4968 = vmatprep.subr.mxu0 0.0
        %4969 = vmatpush1.msra.mxu0 0.0
        %4970 = vmatprep.subr.mxu0 0.0
        %4971 = vmatpush1.msra.mxu0 0.0
        %4972 = vmatprep.subr.mxu0 0.0
        %4973 = vmatpush1.msra.mxu0 0.0
        %4974 = vmatprep.subr.mxu0 0.0
        %4975 = vmatpush1.msra.mxu0 0.0
        %4976 = vmatprep.mubr.f32.mxu0 0.0
        %v4977 = vand.u32 %v4342, 4294901760
        %v4978 = vsub.f32 %v4342, %v4977
        %v4979 = vand.u32 %v4978, 4294901760
        %4980 = vmatmul.mubr.f32.gmra.mrb[0].mxu0 %v4979
        %v4981 = vpop.f32.mrb[0].mxu0
        %v4982 = vadd.f32 %v4836, %v4981
        %v4983 = vpop.f32.mrb[0].mxu0
        %v4984 = vadd.f32 %v4838, %v4983
        %4985 = vmatprep.mubr.f32.mxu0 0.0
        %v4986 = vand.u32 %v4345, 4294901760
        %v4987 = vsub.f32 %v4345, %v4986
        %v4988 = vand.u32 %v4987, 4294901760
        %4989 = vmatmul.mubr.f32.gmra.mrb[0].mxu0 %v4988
        %v4990 = vpop.f32.mrb[0].mxu0
        %v4991 = vadd.f32 %v4844, %v4990
        %v4992 = vpop.f32.mrb[0].mxu0
        %v4993 = vadd.f32 %v4846, %v4992
        %4994 = vmatprep.mubr.f32.mxu0 0.0
        %v4995 = vand.u32 %v4348, 4294901760
        %v4996 = vsub.f32 %v4348, %v4995
        %v4997 = vand.u32 %v4996, 4294901760
        %4998 = vmatmul.mubr.f32.gmra.mrb[0].mxu0 %v4997
        %v4999 = vpop.f32.mrb[0].mxu0
        %v5000 = vadd.f32 %v4852, %v4999
        %v5001 = vpop.f32.mrb[0].mxu0
        %v5002 = vadd.f32 %v4854, %v5001
        %5003 = vmatprep.mubr.f32.mxu0 0.0
        %v5004 = vand.u32 %v4351, 4294901760
        %v5005 = vsub.f32 %v4351, %v5004
        %v5006 = vand.u32 %v5005, 4294901760
        %5007 = vmatmul.mubr.f32.gmra.mrb[0].mxu0 %v5006
        %v5008 = vpop.f32.mrb[0].mxu0
        %v5009 = vadd.f32 %v4860, %v5008
        %v5010 = vpop.f32.mrb[0].mxu0
        %v5011 = vadd.f32 %v4862, %v5010
        %5012 = vmatprep.mubr.f32.mxu0 0.0
        %v5013 = vand.u32 %v4354, 4294901760
        %v5014 = vsub.f32 %v4354, %v5013
        %v5015 = vand.u32 %v5014, 4294901760
        %5016 = vmatmul.mubr.f32.gmra.mrb[0].mxu0 %v5015
        %v5017 = vpop.f32.mrb[0].mxu0
        %v5018 = vadd.f32 %v4868, %v5017
        %v5019 = vpop.f32.mrb[0].mxu0
        %v5020 = vadd.f32 %v4870, %v5019
        %5021 = vmatprep.mubr.f32.mxu0 0.0
        %v5022 = vand.u32 %v4357, 4294901760
        %v5023 = vsub.f32 %v4357, %v5022
        %v5024 = vand.u32 %v5023, 4294901760
        %5025 = vmatmul.mubr.f32.gmra.mrb[0].mxu0 %v5024
        %v5026 = vpop.f32.mrb[0].mxu0
        %v5027 = vadd.f32 %v4876, %v5026
        %v5028 = vpop.f32.mrb[0].mxu0
        %v5029 = vadd.f32 %v4878, %v5028
        %5030 = vmatprep.mubr.f32.mxu0 0.0
        %v5031 = vand.u32 %v4360, 4294901760
        %v5032 = vsub.f32 %v4360, %v5031
        %v5033 = vand.u32 %v5032, 4294901760
        %5034 = vmatmul.mubr.f32.gmra.mrb[0].mxu0 %v5033
        %v5035 = vpop.f32.mrb[0].mxu0
        %v5036 = vadd.f32 %v4884, %v5035
        %v5037 = vpop.f32.mrb[0].mxu0
        %v5038 = vadd.f32 %v4886, %v5037
        %5039 = vmatprep.mubr.f32.mxu0 0.0
        %v5040 = vand.u32 %v4363, 4294901760
        %v5041 = vsub.f32 %v4363, %v5040
        %v5042 = vand.u32 %v5041, 4294901760
        %5043 = vmatmul.mubr.f32.gmra.mrb[0].mxu0 %v5042
        %v5044 = vpop.f32.mrb[0].mxu0
        %v5045 = vadd.f32 %v4892, %v5044
        %v5046 = vpop.f32.mrb[0].mxu0
        %v5047 = vadd.f32 %v4894, %v5046
        %5048 = vdwg.mxu0
        %v5049 = vand.u32 %v4254, 4294901760
        %v5050 = vsub.f32 %v4254, %v5049
        %v5051 = vand.u32 %v5050, 4294901760
        %5052 = vmatprep.subr.mxu0 %v5051
        %v5053 = vand.u32 %v4253, 4294901760
        %v5054 = vsub.f32 %v4253, %v5053
        %v5055 = vand.u32 %v5054, 4294901760
        %5056 = vmatpush1.msra.mxu0 %v5055
        %v5057 = vand.u32 %v4258, 4294901760
        %v5058 = vsub.f32 %v4258, %v5057
        %v5059 = vand.u32 %v5058, 4294901760
        %5060 = vmatprep.subr.mxu0 %v5059
        %v5061 = vand.u32 %v4257, 4294901760
        %v5062 = vsub.f32 %v4257, %v5061
        %v5063 = vand.u32 %v5062, 4294901760
        %5064 = vmatpush1.msra.mxu0 %v5063
        %v5065 = vand.u32 %v4262, 4294901760
        %v5066 = vsub.f32 %v4262, %v5065
        %v5067 = vand.u32 %v5066, 4294901760
        %5068 = vmatprep.subr.mxu0 %v5067
        %v5069 = vand.u32 %v4261, 4294901760
        %v5070 = vsub.f32 %v4261, %v5069
        %v5071 = vand.u32 %v5070, 4294901760
        %5072 = vmatpush1.msra.mxu0 %v5071
        %v5073 = vand.u32 %v4266, 4294901760
        %v5074 = vsub.f32 %v4266, %v5073
        %v5075 = vand.u32 %v5074, 4294901760
        %5076 = vmatprep.subr.mxu0 %v5075
        %v5077 = vand.u32 %v4265, 4294901760
        %v5078 = vsub.f32 %v4265, %v5077
        %v5079 = vand.u32 %v5078, 4294901760
        %5080 = vmatpush1.msra.mxu0 %v5079
        %v5081 = vand.u32 %v4270, 4294901760
        %v5082 = vsub.f32 %v4270, %v5081
        %v5083 = vand.u32 %v5082, 4294901760
        %5084 = vmatprep.subr.mxu0 %v5083
        %v5085 = vand.u32 %v4269, 4294901760
        %v5086 = vsub.f32 %v4269, %v5085
        %v5087 = vand.u32 %v5086, 4294901760
        %5088 = vmatpush1.msra.mxu0 %v5087
        %v5089 = vand.u32 %v4274, 4294901760
        %v5090 = vsub.f32 %v4274, %v5089
        %v5091 = vand.u32 %v5090, 4294901760
        %5092 = vmatprep.subr.mxu0 %v5091
        %v5093 = vand.u32 %v4273, 4294901760
        %v5094 = vsub.f32 %v4273, %v5093
        %v5095 = vand.u32 %v5094, 4294901760
        %5096 = vmatpush1.msra.mxu0 %v5095
        %v5097 = vand.u32 %v4278, 4294901760
        %v5098 = vsub.f32 %v4278, %v5097
        %v5099 = vand.u32 %v5098, 4294901760
        %5100 = vmatprep.subr.mxu0 %v5099
        %v5101 = vand.u32 %v4277, 4294901760
        %v5102 = vsub.f32 %v4277, %v5101
        %v5103 = vand.u32 %v5102, 4294901760
        %5104 = vmatpush1.msra.mxu0 %v5103
        %v5105 = vand.u32 %v4282, 4294901760
        %v5106 = vsub.f32 %v4282, %v5105
        %v5107 = vand.u32 %v5106, 4294901760
        %5108 = vmatprep.subr.mxu0 %v5107
        %v5109 = vand.u32 %v4281, 4294901760
        %v5110 = vsub.f32 %v4281, %v5109
        %v5111 = vand.u32 %v5110, 4294901760
        %5112 = vmatpush1.msra.mxu0 %v5111
        %5113 = vmatprep.subr.mxu0 0.0
        %5114 = vmatpush1.msra.mxu0 0.0
        %5115 = vmatprep.subr.mxu0 0.0
        %5116 = vmatpush1.msra.mxu0 0.0
        %5117 = vmatprep.subr.mxu0 0.0
        %5118 = vmatpush1.msra.mxu0 0.0
        %5119 = vmatprep.subr.mxu0 0.0
        %5120 = vmatpush1.msra.mxu0 0.0
        %5121 = vmatprep.subr.mxu0 0.0
        %5122 = vmatpush1.msra.mxu0 0.0
        %5123 = vmatprep.subr.mxu0 0.0
        %5124 = vmatpush1.msra.mxu0 0.0
        %5125 = vmatprep.subr.mxu0 0.0
        %5126 = vmatpush1.msra.mxu0 0.0
        %5127 = vmatprep.subr.mxu0 0.0
        %5128 = vmatpush1.msra.mxu0 0.0
        %5129 = vmatprep.subr.mxu0 0.0
        %5130 = vmatpush1.msra.mxu0 0.0
        %5131 = vmatprep.subr.mxu0 0.0
        %5132 = vmatpush1.msra.mxu0 0.0
        %5133 = vmatprep.subr.mxu0 0.0
        %5134 = vmatpush1.msra.mxu0 0.0
        %5135 = vmatprep.subr.mxu0 0.0
        %5136 = vmatpush1.msra.mxu0 0.0
        %5137 = vmatprep.subr.mxu0 0.0
        %5138 = vmatpush1.msra.mxu0 0.0
        %5139 = vmatprep.subr.mxu0 0.0
        %5140 = vmatpush1.msra.mxu0 0.0
        %5141 = vmatprep.subr.mxu0 0.0
        %5142 = vmatpush1.msra.mxu0 0.0
        %5143 = vmatprep.subr.mxu0 0.0
        %5144 = vmatpush1.msra.mxu0 0.0
        %5145 = vmatprep.subr.mxu0 0.0
        %5146 = vmatpush1.msra.mxu0 0.0
        %5147 = vmatprep.subr.mxu0 0.0
        %5148 = vmatpush1.msra.mxu0 0.0
        %5149 = vmatprep.subr.mxu0 0.0
        %5150 = vmatpush1.msra.mxu0 0.0
        %5151 = vmatprep.subr.mxu0 0.0
        %5152 = vmatpush1.msra.mxu0 0.0
        %5153 = vmatprep.subr.mxu0 0.0
        %5154 = vmatpush1.msra.mxu0 0.0
        %5155 = vmatprep.subr.mxu0 0.0
        %5156 = vmatpush1.msra.mxu0 0.0
        %5157 = vmatprep.subr.mxu0 0.0
        %5158 = vmatpush1.msra.mxu0 0.0
        %5159 = vmatprep.subr.mxu0 0.0
        %5160 = vmatpush1.msra.mxu0 0.0
        %5161 = vmatprep.mubr.f32.mxu0 0.0
        %v5162 = vand.u32 %v4342, 4294901760
        %5163 = vmatmul.mubr.f32.gmra.mrb[0].mxu0 %v5162
        %v5164 = vpop.f32.mrb[0].mxu0
        %v5165 = vadd.f32 %v4982, %v5164
        %v5166 = vpop.f32.mrb[0].mxu0
        %v5167 = vadd.f32 %v4984, %v5166
        %5168 = vmatprep.mubr.f32.mxu0 0.0
        %v5169 = vand.u32 %v4345, 4294901760
        %5170 = vmatmul.mubr.f32.gmra.mrb[0].mxu0 %v5169
        %v5171 = vpop.f32.mrb[0].mxu0
        %v5172 = vadd.f32 %v4991, %v5171
        %v5173 = vpop.f32.mrb[0].mxu0
        %v5174 = vadd.f32 %v4993, %v5173
        %5175 = vmatprep.mubr.f32.mxu0 0.0
        %v5176 = vand.u32 %v4348, 4294901760
        %5177 = vmatmul.mubr.f32.gmra.mrb[0].mxu0 %v5176
        %v5178 = vpop.f32.mrb[0].mxu0
        %v5179 = vadd.f32 %v5000, %v5178
        %v5180 = vpop.f32.mrb[0].mxu0
        %v5181 = vadd.f32 %v5002, %v5180
        %5182 = vmatprep.mubr.f32.mxu0 0.0
        %v5183 = vand.u32 %v4351, 4294901760
        %5184 = vmatmul.mubr.f32.gmra.mrb[0].mxu0 %v5183
        %v5185 = vpop.f32.mrb[0].mxu0
        %v5186 = vadd.f32 %v5009, %v5185
        %v5187 = vpop.f32.mrb[0].mxu0
        %v5188 = vadd.f32 %v5011, %v5187
        %5189 = vmatprep.mubr.f32.mxu0 0.0
        %v5190 = vand.u32 %v4354, 4294901760
        %5191 = vmatmul.mubr.f32.gmra.mrb[0].mxu0 %v5190
        %v5192 = vpop.f32.mrb[0].mxu0
        %v5193 = vadd.f32 %v5018, %v5192
        %v5194 = vpop.f32.mrb[0].mxu0
        %v5195 = vadd.f32 %v5020, %v5194
        %5196 = vmatprep.mubr.f32.mxu0 0.0
        %v5197 = vand.u32 %v4357, 4294901760
        %5198 = vmatmul.mubr.f32.gmra.mrb[0].mxu0 %v5197
        %v5199 = vpop.f32.mrb[0].mxu0
        %v5200 = vadd.f32 %v5027, %v5199
        %v5201 = vpop.f32.mrb[0].mxu0
        %v5202 = vadd.f32 %v5029, %v5201
        %5203 = vmatprep.mubr.f32.mxu0 0.0
        %v5204 = vand.u32 %v4360, 4294901760
        %5205 = vmatmul.mubr.f32.gmra.mrb[0].mxu0 %v5204
        %v5206 = vpop.f32.mrb[0].mxu0
        %v5207 = vadd.f32 %v5036, %v5206
        %v5208 = vpop.f32.mrb[0].mxu0
        %v5209 = vadd.f32 %v5038, %v5208
        %5210 = vmatprep.mubr.f32.mxu0 0.0
        %v5211 = vand.u32 %v4363, 4294901760
        %5212 = vmatmul.mubr.f32.gmra.mrb[0].mxu0 %v5211
        %v5213 = vpop.f32.mrb[0].mxu0
        %v5214 = vadd.f32 %v5045, %v5213
        %v5215 = vpop.f32.mrb[0].mxu0
        %v5216 = vadd.f32 %v5047, %v5215
        %5217 = vdwg.mxu0
        %v5218 = vand.u32 %v4254, 4294901760
        %5219 = vmatprep.subr.mxu0 %v5218
        %v5220 = vand.u32 %v4253, 4294901760
        %5221 = vmatpush1.msra.mxu0 %v5220
        %v5222 = vand.u32 %v4258, 4294901760
        %5223 = vmatprep.subr.mxu0 %v5222
        %v5224 = vand.u32 %v4257, 4294901760
        %5225 = vmatpush1.msra.mxu0 %v5224
        %v5226 = vand.u32 %v4262, 4294901760
        %5227 = vmatprep.subr.mxu0 %v5226
        %v5228 = vand.u32 %v4261, 4294901760
        %5229 = vmatpush1.msra.mxu0 %v5228
        %v5230 = vand.u32 %v4266, 4294901760
        %5231 = vmatprep.subr.mxu0 %v5230
        %v5232 = vand.u32 %v4265, 4294901760
        %5233 = vmatpush1.msra.mxu0 %v5232
        %v5234 = vand.u32 %v4270, 4294901760
        %5235 = vmatprep.subr.mxu0 %v5234
        %v5236 = vand.u32 %v4269, 4294901760
        %5237 = vmatpush1.msra.mxu0 %v5236
        %v5238 = vand.u32 %v4274, 4294901760
        %5239 = vmatprep.subr.mxu0 %v5238
        %v5240 = vand.u32 %v4273, 4294901760
        %5241 = vmatpush1.msra.mxu0 %v5240
        %v5242 = vand.u32 %v4278, 4294901760
        %5243 = vmatprep.subr.mxu0 %v5242
        %v5244 = vand.u32 %v4277, 4294901760
        %5245 = vmatpush1.msra.mxu0 %v5244
        %v5246 = vand.u32 %v4282, 4294901760
        %5247 = vmatprep.subr.mxu0 %v5246
        %v5248 = vand.u32 %v4281, 4294901760
        %5249 = vmatpush1.msra.mxu0 %v5248
        %5250 = vmatprep.subr.mxu0 0.0
        %5251 = vmatpush1.msra.mxu0 0.0
        %5252 = vmatprep.subr.mxu0 0.0
        %5253 = vmatpush1.msra.mxu0 0.0
        %5254 = vmatprep.subr.mxu0 0.0
        %5255 = vmatpush1.msra.mxu0 0.0
        %5256 = vmatprep.subr.mxu0 0.0
        %5257 = vmatpush1.msra.mxu0 0.0
        %5258 = vmatprep.subr.mxu0 0.0
        %5259 = vmatpush1.msra.mxu0 0.0
        %5260 = vmatprep.subr.mxu0 0.0
        %5261 = vmatpush1.msra.mxu0 0.0
        %5262 = vmatprep.subr.mxu0 0.0
        %5263 = vmatpush1.msra.mxu0 0.0
        %5264 = vmatprep.subr.mxu0 0.0
        %5265 = vmatpush1.msra.mxu0 0.0
        %5266 = vmatprep.subr.mxu0 0.0
        %5267 = vmatpush1.msra.mxu0 0.0
        %5268 = vmatprep.subr.mxu0 0.0
        %5269 = vmatpush1.msra.mxu0 0.0
        %5270 = vmatprep.subr.mxu0 0.0
        %5271 = vmatpush1.msra.mxu0 0.0
        %5272 = vmatprep.subr.mxu0 0.0
        %5273 = vmatpush1.msra.mxu0 0.0
        %5274 = vmatprep.subr.mxu0 0.0
        %5275 = vmatpush1.msra.mxu0 0.0
        %5276 = vmatprep.subr.mxu0 0.0
        %5277 = vmatpush1.msra.mxu0 0.0
        %5278 = vmatprep.subr.mxu0 0.0
        %5279 = vmatpush1.msra.mxu0 0.0
        %5280 = vmatprep.subr.mxu0 0.0
        %5281 = vmatpush1.msra.mxu0 0.0
        %5282 = vmatprep.subr.mxu0 0.0
        %5283 = vmatpush1.msra.mxu0 0.0
        %5284 = vmatprep.subr.mxu0 0.0
        %5285 = vmatpush1.msra.mxu0 0.0
        %5286 = vmatprep.subr.mxu0 0.0
        %5287 = vmatpush1.msra.mxu0 0.0
        %5288 = vmatprep.subr.mxu0 0.0
        %5289 = vmatpush1.msra.mxu0 0.0
        %5290 = vmatprep.subr.mxu0 0.0
        %5291 = vmatpush1.msra.mxu0 0.0
        %5292 = vmatprep.subr.mxu0 0.0
        %5293 = vmatpush1.msra.mxu0 0.0
        %5294 = vmatprep.subr.mxu0 0.0
        %5295 = vmatpush1.msra.mxu0 0.0
        %5296 = vmatprep.subr.mxu0 0.0
        %5297 = vmatpush1.msra.mxu0 0.0
        %5298 = vmatprep.mubr.f32.mxu0 0.0
        %v5299 = vand.u32 %v4342, 4294901760
        %5300 = vmatmul.mubr.f32.gmra.mrb[0].mxu0 %v5299
        %v5301 = vpop.f32.mrb[0].mxu0
        %v5302 = vadd.f32 %v5165, %v5301
        %v5303 = vpop.f32.mrb[0].mxu0
        %v5304 = vadd.f32 %v5167, %v5303
        %5305 = vmatprep.mubr.f32.mxu0 0.0
        %v5306 = vand.u32 %v4345, 4294901760
        %5307 = vmatmul.mubr.f32.gmra.mrb[0].mxu0 %v5306
        %v5308 = vpop.f32.mrb[0].mxu0
        %v5309 = vadd.f32 %v5172, %v5308
        %v5310 = vpop.f32.mrb[0].mxu0
        %v5311 = vadd.f32 %v5174, %v5310
        %5312 = vmatprep.mubr.f32.mxu0 0.0
        %v5313 = vand.u32 %v4348, 4294901760
        %5314 = vmatmul.mubr.f32.gmra.mrb[0].mxu0 %v5313
        %v5315 = vpop.f32.mrb[0].mxu0
        %v5316 = vadd.f32 %v5179, %v5315
        %v5317 = vpop.f32.mrb[0].mxu0
        %v5318 = vadd.f32 %v5181, %v5317
        %5319 = vmatprep.mubr.f32.mxu0 0.0
        %v5320 = vand.u32 %v4351, 4294901760
        %5321 = vmatmul.mubr.f32.gmra.mrb[0].mxu0 %v5320
        %v5322 = vpop.f32.mrb[0].mxu0
        %v5323 = vadd.f32 %v5186, %v5322
        %v5324 = vpop.f32.mrb[0].mxu0
        %v5325 = vadd.f32 %v5188, %v5324
        %5326 = vmatprep.mubr.f32.mxu0 0.0
        %v5327 = vand.u32 %v4354, 4294901760
        %5328 = vmatmul.mubr.f32.gmra.mrb[0].mxu0 %v5327
        %v5329 = vpop.f32.mrb[0].mxu0
        %v5330 = vadd.f32 %v5193, %v5329
        %v5331 = vpop.f32.mrb[0].mxu0
        %v5332 = vadd.f32 %v5195, %v5331
        %5333 = vmatprep.mubr.f32.mxu0 0.0
        %v5334 = vand.u32 %v4357, 4294901760
        %5335 = vmatmul.mubr.f32.gmra.mrb[0].mxu0 %v5334
        %v5336 = vpop.f32.mrb[0].mxu0
        %v5337 = vadd.f32 %v5200, %v5336
        %v5338 = vpop.f32.mrb[0].mxu0
        %v5339 = vadd.f32 %v5202, %v5338
        %5340 = vmatprep.mubr.f32.mxu0 0.0
        %v5341 = vand.u32 %v4360, 4294901760
        %5342 = vmatmul.mubr.f32.gmra.mrb[0].mxu0 %v5341
        %v5343 = vpop.f32.mrb[0].mxu0
        %v5344 = vadd.f32 %v5207, %v5343
        %v5345 = vpop.f32.mrb[0].mxu0
        %v5346 = vadd.f32 %v5209, %v5345
        %5347 = vmatprep.mubr.f32.mxu0 0.0
        %v5348 = vand.u32 %v4363, 4294901760
        %5349 = vmatmul.mubr.f32.gmra.mrb[0].mxu0 %v5348
        %v5350 = vpop.f32.mrb[0].mxu0
        %v5351 = vadd.f32 %v5214, %v5350
        %v5352 = vpop.f32.mrb[0].mxu0
        %v5353 = vadd.f32 %v5216, %v5352
        %5354 = vdwg.mxu0
        %v5355 = vand.u32 %v4256, 4294901760
        %5356 = vmatprep.subr.mxu0 %v5355
        %v5357 = vand.u32 %v4255, 4294901760
        %5358 = vmatpush1.msra.mxu0 %v5357
        %v5359 = vand.u32 %v4260, 4294901760
        %5360 = vmatprep.subr.mxu0 %v5359
        %v5361 = vand.u32 %v4259, 4294901760
        %5362 = vmatpush1.msra.mxu0 %v5361
        %v5363 = vand.u32 %v4264, 4294901760
        %5364 = vmatprep.subr.mxu0 %v5363
        %v5365 = vand.u32 %v4263, 4294901760
        %5366 = vmatpush1.msra.mxu0 %v5365
        %v5367 = vand.u32 %v4268, 4294901760
        %5368 = vmatprep.subr.mxu0 %v5367
        %v5369 = vand.u32 %v4267, 4294901760
        %5370 = vmatpush1.msra.mxu0 %v5369
        %v5371 = vand.u32 %v4272, 4294901760
        %5372 = vmatprep.subr.mxu0 %v5371
        %v5373 = vand.u32 %v4271, 4294901760
        %5374 = vmatpush1.msra.mxu0 %v5373
        %v5375 = vand.u32 %v4276, 4294901760
        %5376 = vmatprep.subr.mxu0 %v5375
        %v5377 = vand.u32 %v4275, 4294901760
        %5378 = vmatpush1.msra.mxu0 %v5377
        %v5379 = vand.u32 %v4280, 4294901760
        %5380 = vmatprep.subr.mxu0 %v5379
        %v5381 = vand.u32 %v4279, 4294901760
        %5382 = vmatpush1.msra.mxu0 %v5381
        %v5383 = vand.u32 %v4284, 4294901760
        %5384 = vmatprep.subr.mxu0 %v5383
        %v5385 = vand.u32 %v4283, 4294901760
        %5386 = vmatpush1.msra.mxu0 %v5385
        %5387 = vmatprep.subr.mxu0 0.0
        %5388 = vmatpush1.msra.mxu0 0.0
        %5389 = vmatprep.subr.mxu0 0.0
        %5390 = vmatpush1.msra.mxu0 0.0
        %5391 = vmatprep.subr.mxu0 0.0
        %5392 = vmatpush1.msra.mxu0 0.0
        %5393 = vmatprep.subr.mxu0 0.0
        %5394 = vmatpush1.msra.mxu0 0.0
        %5395 = vmatprep.subr.mxu0 0.0
        %5396 = vmatpush1.msra.mxu0 0.0
        %5397 = vmatprep.subr.mxu0 0.0
        %5398 = vmatpush1.msra.mxu0 0.0
        %5399 = vmatprep.subr.mxu0 0.0
        %5400 = vmatpush1.msra.mxu0 0.0
        %5401 = vmatprep.subr.mxu0 0.0
        %5402 = vmatpush1.msra.mxu0 0.0
        %5403 = vmatprep.subr.mxu0 0.0
        %5404 = vmatpush1.msra.mxu0 0.0
        %5405 = vmatprep.subr.mxu0 0.0
        %5406 = vmatpush1.msra.mxu0 0.0
        %5407 = vmatprep.subr.mxu0 0.0
        %5408 = vmatpush1.msra.mxu0 0.0
        %5409 = vmatprep.subr.mxu0 0.0
        %5410 = vmatpush1.msra.mxu0 0.0
        %5411 = vmatprep.subr.mxu0 0.0
        %5412 = vmatpush1.msra.mxu0 0.0
        %5413 = vmatprep.subr.mxu0 0.0
        %5414 = vmatpush1.msra.mxu0 0.0
        %5415 = vmatprep.subr.mxu0 0.0
        %5416 = vmatpush1.msra.mxu0 0.0
        %5417 = vmatprep.subr.mxu0 0.0
        %5418 = vmatpush1.msra.mxu0 0.0
        %5419 = vmatprep.subr.mxu0 0.0
        %5420 = vmatpush1.msra.mxu0 0.0
        %5421 = vmatprep.subr.mxu0 0.0
        %5422 = vmatpush1.msra.mxu0 0.0
        %5423 = vmatprep.subr.mxu0 0.0
        %5424 = vmatpush1.msra.mxu0 0.0
        %5425 = vmatprep.subr.mxu0 0.0
        %5426 = vmatpush1.msra.mxu0 0.0
        %5427 = vmatprep.subr.mxu0 0.0
        %5428 = vmatpush1.msra.mxu0 0.0
        %5429 = vmatprep.subr.mxu0 0.0
        %5430 = vmatpush1.msra.mxu0 0.0
        %5431 = vmatprep.subr.mxu0 0.0
        %5432 = vmatpush1.msra.mxu0 0.0
        %5433 = vmatprep.subr.mxu0 0.0
        %5434 = vmatpush1.msra.mxu0 0.0
        %5435 = vmatprep.mubr.f32.mxu0 0.0
        %v5436 = vand.u32 %v4342, 4294901760
        %v5437 = vsub.f32 %v4342, %v5436
        %v5438 = vand.u32 %v5437, 4294901760
        %v5439 = vsub.f32 %v5437, %v5438
        %v5440 = vand.u32 %v5439, 4294901760
        %5441 = vmatmul.mubr.f32.gmra.mrb[0].mxu0 %v5440
        %v5442 = vpop.f32.mrb[0].mxu0
        %v5443 = vadd.f32 %v4304, %v5442
        %v5444 = vpop.f32.mrb[0].mxu0
        %v5445 = vadd.f32 %v4304, %v5444
        %5446 = vmatprep.mubr.f32.mxu0 0.0
        %v5447 = vand.u32 %v4345, 4294901760
        %v5448 = vsub.f32 %v4345, %v5447
        %v5449 = vand.u32 %v5448, 4294901760
        %v5450 = vsub.f32 %v5448, %v5449
        %v5451 = vand.u32 %v5450, 4294901760
        %5452 = vmatmul.mubr.f32.gmra.mrb[0].mxu0 %v5451
        %v5453 = vpop.f32.mrb[0].mxu0
        %v5454 = vadd.f32 %v4309, %v5453
        %v5455 = vpop.f32.mrb[0].mxu0
        %v5456 = vadd.f32 %v4309, %v5455
        %5457 = vmatprep.mubr.f32.mxu0 0.0
        %v5458 = vand.u32 %v4348, 4294901760
        %v5459 = vsub.f32 %v4348, %v5458
        %v5460 = vand.u32 %v5459, 4294901760
        %v5461 = vsub.f32 %v5459, %v5460
        %v5462 = vand.u32 %v5461, 4294901760
        %5463 = vmatmul.mubr.f32.gmra.mrb[0].mxu0 %v5462
        %v5464 = vpop.f32.mrb[0].mxu0
        %v5465 = vadd.f32 %v4314, %v5464
        %v5466 = vpop.f32.mrb[0].mxu0
        %v5467 = vadd.f32 %v4314, %v5466
        %5468 = vmatprep.mubr.f32.mxu0 0.0
        %v5469 = vand.u32 %v4351, 4294901760
        %v5470 = vsub.f32 %v4351, %v5469
        %v5471 = vand.u32 %v5470, 4294901760
        %v5472 = vsub.f32 %v5470, %v5471
        %v5473 = vand.u32 %v5472, 4294901760
        %5474 = vmatmul.mubr.f32.gmra.mrb[0].mxu0 %v5473
        %v5475 = vpop.f32.mrb[0].mxu0
        %v5476 = vadd.f32 %v4319, %v5475
        %v5477 = vpop.f32.mrb[0].mxu0
        %v5478 = vadd.f32 %v4319, %v5477
        %5479 = vmatprep.mubr.f32.mxu0 0.0
        %v5480 = vand.u32 %v4354, 4294901760
        %v5481 = vsub.f32 %v4354, %v5480
        %v5482 = vand.u32 %v5481, 4294901760
        %v5483 = vsub.f32 %v5481, %v5482
        %v5484 = vand.u32 %v5483, 4294901760
        %5485 = vmatmul.mubr.f32.gmra.mrb[0].mxu0 %v5484
        %v5486 = vpop.f32.mrb[0].mxu0
        %v5487 = vadd.f32 %v4324, %v5486
        %v5488 = vpop.f32.mrb[0].mxu0
        %v5489 = vadd.f32 %v4324, %v5488
        %5490 = vmatprep.mubr.f32.mxu0 0.0
        %v5491 = vand.u32 %v4357, 4294901760
        %v5492 = vsub.f32 %v4357, %v5491
        %v5493 = vand.u32 %v5492, 4294901760
        %v5494 = vsub.f32 %v5492, %v5493
        %v5495 = vand.u32 %v5494, 4294901760
        %5496 = vmatmul.mubr.f32.gmra.mrb[0].mxu0 %v5495
        %v5497 = vpop.f32.mrb[0].mxu0
        %v5498 = vadd.f32 %v4329, %v5497
        %v5499 = vpop.f32.mrb[0].mxu0
        %v5500 = vadd.f32 %v4329, %v5499
        %5501 = vmatprep.mubr.f32.mxu0 0.0
        %v5502 = vand.u32 %v4360, 4294901760
        %v5503 = vsub.f32 %v4360, %v5502
        %v5504 = vand.u32 %v5503, 4294901760
        %v5505 = vsub.f32 %v5503, %v5504
        %v5506 = vand.u32 %v5505, 4294901760
        %5507 = vmatmul.mubr.f32.gmra.mrb[0].mxu0 %v5506
        %v5508 = vpop.f32.mrb[0].mxu0
        %v5509 = vadd.f32 %v4334, %v5508
        %v5510 = vpop.f32.mrb[0].mxu0
        %v5511 = vadd.f32 %v4334, %v5510
        %5512 = vmatprep.mubr.f32.mxu0 0.0
        %v5513 = vand.u32 %v4363, 4294901760
        %v5514 = vsub.f32 %v4363, %v5513
        %v5515 = vand.u32 %v5514, 4294901760
        %v5516 = vsub.f32 %v5514, %v5515
        %v5517 = vand.u32 %v5516, 4294901760
        %5518 = vmatmul.mubr.f32.gmra.mrb[0].mxu0 %v5517
        %v5519 = vpop.f32.mrb[0].mxu0
        %v5520 = vadd.f32 %v4339, %v5519
        %v5521 = vpop.f32.mrb[0].mxu0
        %v5522 = vadd.f32 %v4339, %v5521
        %5523 = vdwg.mxu0
        %v5524 = vand.u32 %v4256, 4294901760
        %v5525 = vsub.f32 %v4256, %v5524
        %v5526 = vand.u32 %v5525, 4294901760
        %v5527 = vsub.f32 %v5525, %v5526
        %v5528 = vand.u32 %v5527, 4294901760
        %5529 = vmatprep.subr.mxu0 %v5528
        %v5530 = vand.u32 %v4255, 4294901760
        %v5531 = vsub.f32 %v4255, %v5530
        %v5532 = vand.u32 %v5531, 4294901760
        %v5533 = vsub.f32 %v5531, %v5532
        %v5534 = vand.u32 %v5533, 4294901760
        %5535 = vmatpush1.msra.mxu0 %v5534
        %v5536 = vand.u32 %v4260, 4294901760
        %v5537 = vsub.f32 %v4260, %v5536
        %v5538 = vand.u32 %v5537, 4294901760
        %v5539 = vsub.f32 %v5537, %v5538
        %v5540 = vand.u32 %v5539, 4294901760
        %5541 = vmatprep.subr.mxu0 %v5540
        %v5542 = vand.u32 %v4259, 4294901760
        %v5543 = vsub.f32 %v4259, %v5542
        %v5544 = vand.u32 %v5543, 4294901760
        %v5545 = vsub.f32 %v5543, %v5544
        %v5546 = vand.u32 %v5545, 4294901760
        %5547 = vmatpush1.msra.mxu0 %v5546
        %v5548 = vand.u32 %v4264, 4294901760
        %v5549 = vsub.f32 %v4264, %v5548
        %v5550 = vand.u32 %v5549, 4294901760
        %v5551 = vsub.f32 %v5549, %v5550
        %v5552 = vand.u32 %v5551, 4294901760
        %5553 = vmatprep.subr.mxu0 %v5552
        %v5554 = vand.u32 %v4263, 4294901760
        %v5555 = vsub.f32 %v4263, %v5554
        %v5556 = vand.u32 %v5555, 4294901760
        %v5557 = vsub.f32 %v5555, %v5556
        %v5558 = vand.u32 %v5557, 4294901760
        %5559 = vmatpush1.msra.mxu0 %v5558
        %v5560 = vand.u32 %v4268, 4294901760
        %v5561 = vsub.f32 %v4268, %v5560
        %v5562 = vand.u32 %v5561, 4294901760
        %v5563 = vsub.f32 %v5561, %v5562
        %v5564 = vand.u32 %v5563, 4294901760
        %5565 = vmatprep.subr.mxu0 %v5564
        %v5566 = vand.u32 %v4267, 4294901760
        %v5567 = vsub.f32 %v4267, %v5566
        %v5568 = vand.u32 %v5567, 4294901760
        %v5569 = vsub.f32 %v5567, %v5568
        %v5570 = vand.u32 %v5569, 4294901760
        %5571 = vmatpush1.msra.mxu0 %v5570
        %v5572 = vand.u32 %v4272, 4294901760
        %v5573 = vsub.f32 %v4272, %v5572
        %v5574 = vand.u32 %v5573, 4294901760
        %v5575 = vsub.f32 %v5573, %v5574
        %v5576 = vand.u32 %v5575, 4294901760
        %5577 = vmatprep.subr.mxu0 %v5576
        %v5578 = vand.u32 %v4271, 4294901760
        %v5579 = vsub.f32 %v4271, %v5578
        %v5580 = vand.u32 %v5579, 4294901760
        %v5581 = vsub.f32 %v5579, %v5580
        %v5582 = vand.u32 %v5581, 4294901760
        %5583 = vmatpush1.msra.mxu0 %v5582
        %v5584 = vand.u32 %v4276, 4294901760
        %v5585 = vsub.f32 %v4276, %v5584
        %v5586 = vand.u32 %v5585, 4294901760
        %v5587 = vsub.f32 %v5585, %v5586
        %v5588 = vand.u32 %v5587, 4294901760
        %5589 = vmatprep.subr.mxu0 %v5588
        %v5590 = vand.u32 %v4275, 4294901760
        %v5591 = vsub.f32 %v4275, %v5590
        %v5592 = vand.u32 %v5591, 4294901760
        %v5593 = vsub.f32 %v5591, %v5592
        %v5594 = vand.u32 %v5593, 4294901760
        %5595 = vmatpush1.msra.mxu0 %v5594
        %v5596 = vand.u32 %v4280, 4294901760
        %v5597 = vsub.f32 %v4280, %v5596
        %v5598 = vand.u32 %v5597, 4294901760
        %v5599 = vsub.f32 %v5597, %v5598
        %v5600 = vand.u32 %v5599, 4294901760
        %5601 = vmatprep.subr.mxu0 %v5600
        %v5602 = vand.u32 %v4279, 4294901760
        %v5603 = vsub.f32 %v4279, %v5602
        %v5604 = vand.u32 %v5603, 4294901760
        %v5605 = vsub.f32 %v5603, %v5604
        %v5606 = vand.u32 %v5605, 4294901760
        %5607 = vmatpush1.msra.mxu0 %v5606
        %v5608 = vand.u32 %v4284, 4294901760
        %v5609 = vsub.f32 %v4284, %v5608
        %v5610 = vand.u32 %v5609, 4294901760
        %v5611 = vsub.f32 %v5609, %v5610
        %v5612 = vand.u32 %v5611, 4294901760
        %5613 = vmatprep.subr.mxu0 %v5612
        %v5614 = vand.u32 %v4283, 4294901760
        %v5615 = vsub.f32 %v4283, %v5614
        %v5616 = vand.u32 %v5615, 4294901760
        %v5617 = vsub.f32 %v5615, %v5616
        %v5618 = vand.u32 %v5617, 4294901760
        %5619 = vmatpush1.msra.mxu0 %v5618
        %5620 = vmatprep.subr.mxu0 0.0
        %5621 = vmatpush1.msra.mxu0 0.0
        %5622 = vmatprep.subr.mxu0 0.0
        %5623 = vmatpush1.msra.mxu0 0.0
        %5624 = vmatprep.subr.mxu0 0.0
        %5625 = vmatpush1.msra.mxu0 0.0
        %5626 = vmatprep.subr.mxu0 0.0
        %5627 = vmatpush1.msra.mxu0 0.0
        %5628 = vmatprep.subr.mxu0 0.0
        %5629 = vmatpush1.msra.mxu0 0.0
        %5630 = vmatprep.subr.mxu0 0.0
        %5631 = vmatpush1.msra.mxu0 0.0
        %5632 = vmatprep.subr.mxu0 0.0
        %5633 = vmatpush1.msra.mxu0 0.0
        %5634 = vmatprep.subr.mxu0 0.0
        %5635 = vmatpush1.msra.mxu0 0.0
        %5636 = vmatprep.subr.mxu0 0.0
        %5637 = vmatpush1.msra.mxu0 0.0
        %5638 = vmatprep.subr.mxu0 0.0
        %5639 = vmatpush1.msra.mxu0 0.0
        %5640 = vmatprep.subr.mxu0 0.0
        %5641 = vmatpush1.msra.mxu0 0.0
        %5642 = vmatprep.subr.mxu0 0.0
        %5643 = vmatpush1.msra.mxu0 0.0
        %5644 = vmatprep.subr.mxu0 0.0
        %5645 = vmatpush1.msra.mxu0 0.0
        %5646 = vmatprep.subr.mxu0 0.0
        %5647 = vmatpush1.msra.mxu0 0.0
        %5648 = vmatprep.subr.mxu0 0.0
        %5649 = vmatpush1.msra.mxu0 0.0
        %5650 = vmatprep.subr.mxu0 0.0
        %5651 = vmatpush1.msra.mxu0 0.0
        %5652 = vmatprep.subr.mxu0 0.0
        %5653 = vmatpush1.msra.mxu0 0.0
        %5654 = vmatprep.subr.mxu0 0.0
        %5655 = vmatpush1.msra.mxu0 0.0
        %5656 = vmatprep.subr.mxu0 0.0
        %5657 = vmatpush1.msra.mxu0 0.0
        %5658 = vmatprep.subr.mxu0 0.0
        %5659 = vmatpush1.msra.mxu0 0.0
        %5660 = vmatprep.subr.mxu0 0.0
        %5661 = vmatpush1.msra.mxu0 0.0
        %5662 = vmatprep.subr.mxu0 0.0
        %5663 = vmatpush1.msra.mxu0 0.0
        %5664 = vmatprep.subr.mxu0 0.0
        %5665 = vmatpush1.msra.mxu0 0.0
        %5666 = vmatprep.subr.mxu0 0.0
        %5667 = vmatpush1.msra.mxu0 0.0
        %5668 = vmatprep.mubr.f32.mxu0 0.0
        %v5669 = vand.u32 %v4342, 4294901760
        %5670 = vmatmul.mubr.f32.gmra.mrb[0].mxu0 %v5669
        %v5671 = vpop.f32.mrb[0].mxu0
        %v5672 = vadd.f32 %v5443, %v5671
        %v5673 = vpop.f32.mrb[0].mxu0
        %v5674 = vadd.f32 %v5445, %v5673
        %5675 = vmatprep.mubr.f32.mxu0 0.0
        %v5676 = vand.u32 %v4345, 4294901760
        %5677 = vmatmul.mubr.f32.gmra.mrb[0].mxu0 %v5676
        %v5678 = vpop.f32.mrb[0].mxu0
        %v5679 = vadd.f32 %v5454, %v5678
        %v5680 = vpop.f32.mrb[0].mxu0
        %v5681 = vadd.f32 %v5456, %v5680
        %5682 = vmatprep.mubr.f32.mxu0 0.0
        %v5683 = vand.u32 %v4348, 4294901760
        %5684 = vmatmul.mubr.f32.gmra.mrb[0].mxu0 %v5683
        %v5685 = vpop.f32.mrb[0].mxu0
        %v5686 = vadd.f32 %v5465, %v5685
        %v5687 = vpop.f32.mrb[0].mxu0
        %v5688 = vadd.f32 %v5467, %v5687
        %5689 = vmatprep.mubr.f32.mxu0 0.0
        %v5690 = vand.u32 %v4351, 4294901760
        %5691 = vmatmul.mubr.f32.gmra.mrb[0].mxu0 %v5690
        %v5692 = vpop.f32.mrb[0].mxu0
        %v5693 = vadd.f32 %v5476, %v5692
        %v5694 = vpop.f32.mrb[0].mxu0
        %v5695 = vadd.f32 %v5478, %v5694
        %5696 = vmatprep.mubr.f32.mxu0 0.0
        %v5697 = vand.u32 %v4354, 4294901760
        %5698 = vmatmul.mubr.f32.gmra.mrb[0].mxu0 %v5697
        %v5699 = vpop.f32.mrb[0].mxu0
        %v5700 = vadd.f32 %v5487, %v5699
        %v5701 = vpop.f32.mrb[0].mxu0
        %v5702 = vadd.f32 %v5489, %v5701
        %5703 = vmatprep.mubr.f32.mxu0 0.0
        %v5704 = vand.u32 %v4357, 4294901760
        %5705 = vmatmul.mubr.f32.gmra.mrb[0].mxu0 %v5704
        %v5706 = vpop.f32.mrb[0].mxu0
        %v5707 = vadd.f32 %v5498, %v5706
        %v5708 = vpop.f32.mrb[0].mxu0
        %v5709 = vadd.f32 %v5500, %v5708
        %5710 = vmatprep.mubr.f32.mxu0 0.0
        %v5711 = vand.u32 %v4360, 4294901760
        %5712 = vmatmul.mubr.f32.gmra.mrb[0].mxu0 %v5711
        %v5713 = vpop.f32.mrb[0].mxu0
        %v5714 = vadd.f32 %v5509, %v5713
        %v5715 = vpop.f32.mrb[0].mxu0
        %v5716 = vadd.f32 %v5511, %v5715
        %5717 = vmatprep.mubr.f32.mxu0 0.0
        %v5718 = vand.u32 %v4363, 4294901760
        %5719 = vmatmul.mubr.f32.gmra.mrb[0].mxu0 %v5718
        %v5720 = vpop.f32.mrb[0].mxu0
        %v5721 = vadd.f32 %v5520, %v5720
        %v5722 = vpop.f32.mrb[0].mxu0
        %v5723 = vadd.f32 %v5522, %v5722
        %5724 = vdwg.mxu0
        %v5725 = vand.u32 %v4256, 4294901760
        %v5726 = vsub.f32 %v4256, %v5725
        %5727 = vmatprep.subr.mxu0 %v5726
        %v5728 = vand.u32 %v4255, 4294901760
        %v5729 = vsub.f32 %v4255, %v5728
        %5730 = vmatpush1.msra.mxu0 %v5729
        %v5731 = vand.u32 %v4260, 4294901760
        %v5732 = vsub.f32 %v4260, %v5731
        %5733 = vmatprep.subr.mxu0 %v5732
        %v5734 = vand.u32 %v4259, 4294901760
        %v5735 = vsub.f32 %v4259, %v5734
        %5736 = vmatpush1.msra.mxu0 %v5735
        %v5737 = vand.u32 %v4264, 4294901760
        %v5738 = vsub.f32 %v4264, %v5737
        %5739 = vmatprep.subr.mxu0 %v5738
        %v5740 = vand.u32 %v4263, 4294901760
        %v5741 = vsub.f32 %v4263, %v5740
        %5742 = vmatpush1.msra.mxu0 %v5741
        %v5743 = vand.u32 %v4268, 4294901760
        %v5744 = vsub.f32 %v4268, %v5743
        %5745 = vmatprep.subr.mxu0 %v5744
        %v5746 = vand.u32 %v4267, 4294901760
        %v5747 = vsub.f32 %v4267, %v5746
        %5748 = vmatpush1.msra.mxu0 %v5747
        %v5749 = vand.u32 %v4272, 4294901760
        %v5750 = vsub.f32 %v4272, %v5749
        %5751 = vmatprep.subr.mxu0 %v5750
        %v5752 = vand.u32 %v4271, 4294901760
        %v5753 = vsub.f32 %v4271, %v5752
        %5754 = vmatpush1.msra.mxu0 %v5753
        %v5755 = vand.u32 %v4276, 4294901760
        %v5756 = vsub.f32 %v4276, %v5755
        %5757 = vmatprep.subr.mxu0 %v5756
        %v5758 = vand.u32 %v4275, 4294901760
        %v5759 = vsub.f32 %v4275, %v5758
        %5760 = vmatpush1.msra.mxu0 %v5759
        %v5761 = vand.u32 %v4280, 4294901760
        %v5762 = vsub.f32 %v4280, %v5761
        %5763 = vmatprep.subr.mxu0 %v5762
        %v5764 = vand.u32 %v4279, 4294901760
        %v5765 = vsub.f32 %v4279, %v5764
        %5766 = vmatpush1.msra.mxu0 %v5765
        %v5767 = vand.u32 %v4284, 4294901760
        %v5768 = vsub.f32 %v4284, %v5767
        %5769 = vmatprep.subr.mxu0 %v5768
        %v5770 = vand.u32 %v4283, 4294901760
        %v5771 = vsub.f32 %v4283, %v5770
        %5772 = vmatpush1.msra.mxu0 %v5771
        %5773 = vmatprep.subr.mxu0 0.0
        %5774 = vmatpush1.msra.mxu0 0.0
        %5775 = vmatprep.subr.mxu0 0.0
        %5776 = vmatpush1.msra.mxu0 0.0
        %5777 = vmatprep.subr.mxu0 0.0
        %5778 = vmatpush1.msra.mxu0 0.0
        %5779 = vmatprep.subr.mxu0 0.0
        %5780 = vmatpush1.msra.mxu0 0.0
        %5781 = vmatprep.subr.mxu0 0.0
        %5782 = vmatpush1.msra.mxu0 0.0
        %5783 = vmatprep.subr.mxu0 0.0
        %5784 = vmatpush1.msra.mxu0 0.0
        %5785 = vmatprep.subr.mxu0 0.0
        %5786 = vmatpush1.msra.mxu0 0.0
        %5787 = vmatprep.subr.mxu0 0.0
        %5788 = vmatpush1.msra.mxu0 0.0
        %5789 = vmatprep.subr.mxu0 0.0
        %5790 = vmatpush1.msra.mxu0 0.0
        %5791 = vmatprep.subr.mxu0 0.0
        %5792 = vmatpush1.msra.mxu0 0.0
        %5793 = vmatprep.subr.mxu0 0.0
        %5794 = vmatpush1.msra.mxu0 0.0
        %5795 = vmatprep.subr.mxu0 0.0
        %5796 = vmatpush1.msra.mxu0 0.0
        %5797 = vmatprep.subr.mxu0 0.0
        %5798 = vmatpush1.msra.mxu0 0.0
        %5799 = vmatprep.subr.mxu0 0.0
        %5800 = vmatpush1.msra.mxu0 0.0
        %5801 = vmatprep.subr.mxu0 0.0
        %5802 = vmatpush1.msra.mxu0 0.0
        %5803 = vmatprep.subr.mxu0 0.0
        %5804 = vmatpush1.msra.mxu0 0.0
        %5805 = vmatprep.subr.mxu0 0.0
        %5806 = vmatpush1.msra.mxu0 0.0
        %5807 = vmatprep.subr.mxu0 0.0
        %5808 = vmatpush1.msra.mxu0 0.0
        %5809 = vmatprep.subr.mxu0 0.0
        %5810 = vmatpush1.msra.mxu0 0.0
        %5811 = vmatprep.subr.mxu0 0.0
        %5812 = vmatpush1.msra.mxu0 0.0
        %5813 = vmatprep.subr.mxu0 0.0
        %5814 = vmatpush1.msra.mxu0 0.0
        %5815 = vmatprep.subr.mxu0 0.0
        %5816 = vmatpush1.msra.mxu0 0.0
        %5817 = vmatprep.subr.mxu0 0.0
        %5818 = vmatpush1.msra.mxu0 0.0
        %5819 = vmatprep.subr.mxu0 0.0
        %5820 = vmatpush1.msra.mxu0 0.0
        %5821 = vmatprep.mubr.f32.mxu0 0.0
        %v5822 = vand.u32 %v4342, 4294901760
        %v5823 = vsub.f32 %v4342, %v5822
        %5824 = vmatmul.mubr.f32.gmra.mrb[0].mxu0 %v5823
        %v5825 = vpop.f32.mrb[0].mxu0
        %v5826 = vadd.f32 %v5672, %v5825
        %v5827 = vpop.f32.mrb[0].mxu0
        %v5828 = vadd.f32 %v5674, %v5827
        %5829 = vmatprep.mubr.f32.mxu0 0.0
        %v5830 = vand.u32 %v4345, 4294901760
        %v5831 = vsub.f32 %v4345, %v5830
        %5832 = vmatmul.mubr.f32.gmra.mrb[0].mxu0 %v5831
        %v5833 = vpop.f32.mrb[0].mxu0
        %v5834 = vadd.f32 %v5679, %v5833
        %v5835 = vpop.f32.mrb[0].mxu0
        %v5836 = vadd.f32 %v5681, %v5835
        %5837 = vmatprep.mubr.f32.mxu0 0.0
        %v5838 = vand.u32 %v4348, 4294901760
        %v5839 = vsub.f32 %v4348, %v5838
        %5840 = vmatmul.mubr.f32.gmra.mrb[0].mxu0 %v5839
        %v5841 = vpop.f32.mrb[0].mxu0
        %v5842 = vadd.f32 %v5686, %v5841
        %v5843 = vpop.f32.mrb[0].mxu0
        %v5844 = vadd.f32 %v5688, %v5843
        %5845 = vmatprep.mubr.f32.mxu0 0.0
        %v5846 = vand.u32 %v4351, 4294901760
        %v5847 = vsub.f32 %v4351, %v5846
        %5848 = vmatmul.mubr.f32.gmra.mrb[0].mxu0 %v5847
        %v5849 = vpop.f32.mrb[0].mxu0
        %v5850 = vadd.f32 %v5693, %v5849
        %v5851 = vpop.f32.mrb[0].mxu0
        %v5852 = vadd.f32 %v5695, %v5851
        %5853 = vmatprep.mubr.f32.mxu0 0.0
        %v5854 = vand.u32 %v4354, 4294901760
        %v5855 = vsub.f32 %v4354, %v5854
        %5856 = vmatmul.mubr.f32.gmra.mrb[0].mxu0 %v5855
        %v5857 = vpop.f32.mrb[0].mxu0
        %v5858 = vadd.f32 %v5700, %v5857
        %v5859 = vpop.f32.mrb[0].mxu0
        %v5860 = vadd.f32 %v5702, %v5859
        %5861 = vmatprep.mubr.f32.mxu0 0.0
        %v5862 = vand.u32 %v4357, 4294901760
        %v5863 = vsub.f32 %v4357, %v5862
        %5864 = vmatmul.mubr.f32.gmra.mrb[0].mxu0 %v5863
        %v5865 = vpop.f32.mrb[0].mxu0
        %v5866 = vadd.f32 %v5707, %v5865
        %v5867 = vpop.f32.mrb[0].mxu0
        %v5868 = vadd.f32 %v5709, %v5867
        %5869 = vmatprep.mubr.f32.mxu0 0.0
        %v5870 = vand.u32 %v4360, 4294901760
        %v5871 = vsub.f32 %v4360, %v5870
        %5872 = vmatmul.mubr.f32.gmra.mrb[0].mxu0 %v5871
        %v5873 = vpop.f32.mrb[0].mxu0
        %v5874 = vadd.f32 %v5714, %v5873
        %v5875 = vpop.f32.mrb[0].mxu0
        %v5876 = vadd.f32 %v5716, %v5875
        %5877 = vmatprep.mubr.f32.mxu0 0.0
        %v5878 = vand.u32 %v4363, 4294901760
        %v5879 = vsub.f32 %v4363, %v5878
        %5880 = vmatmul.mubr.f32.gmra.mrb[0].mxu0 %v5879
        %v5881 = vpop.f32.mrb[0].mxu0
        %v5882 = vadd.f32 %v5721, %v5881
        %v5883 = vpop.f32.mrb[0].mxu0
        %v5884 = vadd.f32 %v5723, %v5883
        %5885 = vdwg.mxu0
        %v5886 = vand.u32 %v4256, 4294901760
        %5887 = vmatprep.subr.mxu0 %v5886
        %v5888 = vand.u32 %v4255, 4294901760
        %5889 = vmatpush1.msra.mxu0 %v5888
        %v5890 = vand.u32 %v4260, 4294901760
        %5891 = vmatprep.subr.mxu0 %v5890
        %v5892 = vand.u32 %v4259, 4294901760
        %5893 = vmatpush1.msra.mxu0 %v5892
        %v5894 = vand.u32 %v4264, 4294901760
        %5895 = vmatprep.subr.mxu0 %v5894
        %v5896 = vand.u32 %v4263, 4294901760
        %5897 = vmatpush1.msra.mxu0 %v5896
        %v5898 = vand.u32 %v4268, 4294901760
        %5899 = vmatprep.subr.mxu0 %v5898
        %v5900 = vand.u32 %v4267, 4294901760
        %5901 = vmatpush1.msra.mxu0 %v5900
        %v5902 = vand.u32 %v4272, 4294901760
        %5903 = vmatprep.subr.mxu0 %v5902
        %v5904 = vand.u32 %v4271, 4294901760
        %5905 = vmatpush1.msra.mxu0 %v5904
        %v5906 = vand.u32 %v4276, 4294901760
        %5907 = vmatprep.subr.mxu0 %v5906
        %v5908 = vand.u32 %v4275, 4294901760
        %5909 = vmatpush1.msra.mxu0 %v5908
        %v5910 = vand.u32 %v4280, 4294901760
        %5911 = vmatprep.subr.mxu0 %v5910
        %v5912 = vand.u32 %v4279, 4294901760
        %5913 = vmatpush1.msra.mxu0 %v5912
        %v5914 = vand.u32 %v4284, 4294901760
        %5915 = vmatprep.subr.mxu0 %v5914
        %v5916 = vand.u32 %v4283, 4294901760
        %5917 = vmatpush1.msra.mxu0 %v5916
        %5918 = vmatprep.subr.mxu0 0.0
        %5919 = vmatpush1.msra.mxu0 0.0
        %5920 = vmatprep.subr.mxu0 0.0
        %5921 = vmatpush1.msra.mxu0 0.0
        %5922 = vmatprep.subr.mxu0 0.0
        %5923 = vmatpush1.msra.mxu0 0.0
        %5924 = vmatprep.subr.mxu0 0.0
        %5925 = vmatpush1.msra.mxu0 0.0
        %5926 = vmatprep.subr.mxu0 0.0
        %5927 = vmatpush1.msra.mxu0 0.0
        %5928 = vmatprep.subr.mxu0 0.0
        %5929 = vmatpush1.msra.mxu0 0.0
        %5930 = vmatprep.subr.mxu0 0.0
        %5931 = vmatpush1.msra.mxu0 0.0
        %5932 = vmatprep.subr.mxu0 0.0
        %5933 = vmatpush1.msra.mxu0 0.0
        %5934 = vmatprep.subr.mxu0 0.0
        %5935 = vmatpush1.msra.mxu0 0.0
        %5936 = vmatprep.subr.mxu0 0.0
        %5937 = vmatpush1.msra.mxu0 0.0
        %5938 = vmatprep.subr.mxu0 0.0
        %5939 = vmatpush1.msra.mxu0 0.0
        %5940 = vmatprep.subr.mxu0 0.0
        %5941 = vmatpush1.msra.mxu0 0.0
        %5942 = vmatprep.subr.mxu0 0.0
        %5943 = vmatpush1.msra.mxu0 0.0
        %5944 = vmatprep.subr.mxu0 0.0
        %5945 = vmatpush1.msra.mxu0 0.0
        %5946 = vmatprep.subr.mxu0 0.0
        %5947 = vmatpush1.msra.mxu0 0.0
        %5948 = vmatprep.subr.mxu0 0.0
        %5949 = vmatpush1.msra.mxu0 0.0
        %5950 = vmatprep.subr.mxu0 0.0
        %5951 = vmatpush1.msra.mxu0 0.0
        %5952 = vmatprep.subr.mxu0 0.0
        %5953 = vmatpush1.msra.mxu0 0.0
        %5954 = vmatprep.subr.mxu0 0.0
        %5955 = vmatpush1.msra.mxu0 0.0
        %5956 = vmatprep.subr.mxu0 0.0
        %5957 = vmatpush1.msra.mxu0 0.0
        %5958 = vmatprep.subr.mxu0 0.0
        %5959 = vmatpush1.msra.mxu0 0.0
        %5960 = vmatprep.subr.mxu0 0.0
        %5961 = vmatpush1.msra.mxu0 0.0
        %5962 = vmatprep.subr.mxu0 0.0
        %5963 = vmatpush1.msra.mxu0 0.0
        %5964 = vmatprep.subr.mxu0 0.0
        %5965 = vmatpush1.msra.mxu0 0.0
        %5966 = vmatprep.mubr.f32.mxu0 0.0
        %v5967 = vand.u32 %v4342, 4294901760
        %v5968 = vsub.f32 %v4342, %v5967
        %v5969 = vand.u32 %v5968, 4294901760
        %5970 = vmatmul.mubr.f32.gmra.mrb[0].mxu0 %v5969
        %v5971 = vpop.f32.mrb[0].mxu0
        %v5972 = vadd.f32 %v5826, %v5971
        %v5973 = vpop.f32.mrb[0].mxu0
        %v5974 = vadd.f32 %v5828, %v5973
        %5975 = vmatprep.mubr.f32.mxu0 0.0
        %v5976 = vand.u32 %v4345, 4294901760
        %v5977 = vsub.f32 %v4345, %v5976
        %v5978 = vand.u32 %v5977, 4294901760
        %5979 = vmatmul.mubr.f32.gmra.mrb[0].mxu0 %v5978
        %v5980 = vpop.f32.mrb[0].mxu0
        %v5981 = vadd.f32 %v5834, %v5980
        %v5982 = vpop.f32.mrb[0].mxu0
        %v5983 = vadd.f32 %v5836, %v5982
        %5984 = vmatprep.mubr.f32.mxu0 0.0
        %v5985 = vand.u32 %v4348, 4294901760
        %v5986 = vsub.f32 %v4348, %v5985
        %v5987 = vand.u32 %v5986, 4294901760
        %5988 = vmatmul.mubr.f32.gmra.mrb[0].mxu0 %v5987
        %v5989 = vpop.f32.mrb[0].mxu0
        %v5990 = vadd.f32 %v5842, %v5989
        %v5991 = vpop.f32.mrb[0].mxu0
        %v5992 = vadd.f32 %v5844, %v5991
        %5993 = vmatprep.mubr.f32.mxu0 0.0
        %v5994 = vand.u32 %v4351, 4294901760
        %v5995 = vsub.f32 %v4351, %v5994
        %v5996 = vand.u32 %v5995, 4294901760
        %5997 = vmatmul.mubr.f32.gmra.mrb[0].mxu0 %v5996
        %v5998 = vpop.f32.mrb[0].mxu0
        %v5999 = vadd.f32 %v5850, %v5998
        %v6000 = vpop.f32.mrb[0].mxu0
        %v6001 = vadd.f32 %v5852, %v6000
        %6002 = vmatprep.mubr.f32.mxu0 0.0
        %v6003 = vand.u32 %v4354, 4294901760
        %v6004 = vsub.f32 %v4354, %v6003
        %v6005 = vand.u32 %v6004, 4294901760
        %6006 = vmatmul.mubr.f32.gmra.mrb[0].mxu0 %v6005
        %v6007 = vpop.f32.mrb[0].mxu0
        %v6008 = vadd.f32 %v5858, %v6007
        %v6009 = vpop.f32.mrb[0].mxu0
        %v6010 = vadd.f32 %v5860, %v6009
        %6011 = vmatprep.mubr.f32.mxu0 0.0
        %v6012 = vand.u32 %v4357, 4294901760
        %v6013 = vsub.f32 %v4357, %v6012
        %v6014 = vand.u32 %v6013, 4294901760
        %6015 = vmatmul.mubr.f32.gmra.mrb[0].mxu0 %v6014
        %v6016 = vpop.f32.mrb[0].mxu0
        %v6017 = vadd.f32 %v5866, %v6016
        %v6018 = vpop.f32.mrb[0].mxu0
        %v6019 = vadd.f32 %v5868, %v6018
        %6020 = vmatprep.mubr.f32.mxu0 0.0
        %v6021 = vand.u32 %v4360, 4294901760
        %v6022 = vsub.f32 %v4360, %v6021
        %v6023 = vand.u32 %v6022, 4294901760
        %6024 = vmatmul.mubr.f32.gmra.mrb[0].mxu0 %v6023
        %v6025 = vpop.f32.mrb[0].mxu0
        %v6026 = vadd.f32 %v5874, %v6025
        %v6027 = vpop.f32.mrb[0].mxu0
        %v6028 = vadd.f32 %v5876, %v6027
        %6029 = vmatprep.mubr.f32.mxu0 0.0
        %v6030 = vand.u32 %v4363, 4294901760
        %v6031 = vsub.f32 %v4363, %v6030
        %v6032 = vand.u32 %v6031, 4294901760
        %6033 = vmatmul.mubr.f32.gmra.mrb[0].mxu0 %v6032
        %v6034 = vpop.f32.mrb[0].mxu0
        %v6035 = vadd.f32 %v5882, %v6034
        %v6036 = vpop.f32.mrb[0].mxu0
        %v6037 = vadd.f32 %v5884, %v6036
        %6038 = vdwg.mxu0
        %v6039 = vand.u32 %v4256, 4294901760
        %v6040 = vsub.f32 %v4256, %v6039
        %v6041 = vand.u32 %v6040, 4294901760
        %6042 = vmatprep.subr.mxu0 %v6041
        %v6043 = vand.u32 %v4255, 4294901760
        %v6044 = vsub.f32 %v4255, %v6043
        %v6045 = vand.u32 %v6044, 4294901760
        %6046 = vmatpush1.msra.mxu0 %v6045
        %v6047 = vand.u32 %v4260, 4294901760
        %v6048 = vsub.f32 %v4260, %v6047
        %v6049 = vand.u32 %v6048, 4294901760
        %6050 = vmatprep.subr.mxu0 %v6049
        %v6051 = vand.u32 %v4259, 4294901760
        %v6052 = vsub.f32 %v4259, %v6051
        %v6053 = vand.u32 %v6052, 4294901760
        %6054 = vmatpush1.msra.mxu0 %v6053
        %v6055 = vand.u32 %v4264, 4294901760
        %v6056 = vsub.f32 %v4264, %v6055
        %v6057 = vand.u32 %v6056, 4294901760
        %6058 = vmatprep.subr.mxu0 %v6057
        %v6059 = vand.u32 %v4263, 4294901760
        %v6060 = vsub.f32 %v4263, %v6059
        %v6061 = vand.u32 %v6060, 4294901760
        %6062 = vmatpush1.msra.mxu0 %v6061
        %v6063 = vand.u32 %v4268, 4294901760
        %v6064 = vsub.f32 %v4268, %v6063
        %v6065 = vand.u32 %v6064, 4294901760
        %6066 = vmatprep.subr.mxu0 %v6065
        %v6067 = vand.u32 %v4267, 4294901760
        %v6068 = vsub.f32 %v4267, %v6067
        %v6069 = vand.u32 %v6068, 4294901760
        %6070 = vmatpush1.msra.mxu0 %v6069
        %v6071 = vand.u32 %v4272, 4294901760
        %v6072 = vsub.f32 %v4272, %v6071
        %v6073 = vand.u32 %v6072, 4294901760
        %6074 = vmatprep.subr.mxu0 %v6073
        %v6075 = vand.u32 %v4271, 4294901760
        %v6076 = vsub.f32 %v4271, %v6075
        %v6077 = vand.u32 %v6076, 4294901760
        %6078 = vmatpush1.msra.mxu0 %v6077
        %v6079 = vand.u32 %v4276, 4294901760
        %v6080 = vsub.f32 %v4276, %v6079
        %v6081 = vand.u32 %v6080, 4294901760
        %6082 = vmatprep.subr.mxu0 %v6081
        %v6083 = vand.u32 %v4275, 4294901760
        %v6084 = vsub.f32 %v4275, %v6083
        %v6085 = vand.u32 %v6084, 4294901760
        %6086 = vmatpush1.msra.mxu0 %v6085
        %v6087 = vand.u32 %v4280, 4294901760
        %v6088 = vsub.f32 %v4280, %v6087
        %v6089 = vand.u32 %v6088, 4294901760
        %6090 = vmatprep.subr.mxu0 %v6089
        %v6091 = vand.u32 %v4279, 4294901760
        %v6092 = vsub.f32 %v4279, %v6091
        %v6093 = vand.u32 %v6092, 4294901760
        %6094 = vmatpush1.msra.mxu0 %v6093
        %v6095 = vand.u32 %v4284, 4294901760
        %v6096 = vsub.f32 %v4284, %v6095
        %v6097 = vand.u32 %v6096, 4294901760
        %6098 = vmatprep.subr.mxu0 %v6097
        %v6099 = vand.u32 %v4283, 4294901760
        %v6100 = vsub.f32 %v4283, %v6099
        %v6101 = vand.u32 %v6100, 4294901760
        %6102 = vmatpush1.msra.mxu0 %v6101
        %6103 = vmatprep.subr.mxu0 0.0
        %6104 = vmatpush1.msra.mxu0 0.0
        %6105 = vmatprep.subr.mxu0 0.0
        %6106 = vmatpush1.msra.mxu0 0.0
        %6107 = vmatprep.subr.mxu0 0.0
        %6108 = vmatpush1.msra.mxu0 0.0
        %6109 = vmatprep.subr.mxu0 0.0
        %6110 = vmatpush1.msra.mxu0 0.0
        %6111 = vmatprep.subr.mxu0 0.0
        %6112 = vmatpush1.msra.mxu0 0.0
        %6113 = vmatprep.subr.mxu0 0.0
        %6114 = vmatpush1.msra.mxu0 0.0
        %6115 = vmatprep.subr.mxu0 0.0
        %6116 = vmatpush1.msra.mxu0 0.0
        %6117 = vmatprep.subr.mxu0 0.0
        %6118 = vmatpush1.msra.mxu0 0.0
        %6119 = vmatprep.subr.mxu0 0.0
        %6120 = vmatpush1.msra.mxu0 0.0
        %6121 = vmatprep.subr.mxu0 0.0
        %6122 = vmatpush1.msra.mxu0 0.0
        %6123 = vmatprep.subr.mxu0 0.0
        %6124 = vmatpush1.msra.mxu0 0.0
        %6125 = vmatprep.subr.mxu0 0.0
        %6126 = vmatpush1.msra.mxu0 0.0
        %6127 = vmatprep.subr.mxu0 0.0
        %6128 = vmatpush1.msra.mxu0 0.0
        %6129 = vmatprep.subr.mxu0 0.0
        %6130 = vmatpush1.msra.mxu0 0.0
        %6131 = vmatprep.subr.mxu0 0.0
        %6132 = vmatpush1.msra.mxu0 0.0
        %6133 = vmatprep.subr.mxu0 0.0
        %6134 = vmatpush1.msra.mxu0 0.0
        %6135 = vmatprep.subr.mxu0 0.0
        %6136 = vmatpush1.msra.mxu0 0.0
        %6137 = vmatprep.subr.mxu0 0.0
        %6138 = vmatpush1.msra.mxu0 0.0
        %6139 = vmatprep.subr.mxu0 0.0
        %6140 = vmatpush1.msra.mxu0 0.0
        %6141 = vmatprep.subr.mxu0 0.0
        %6142 = vmatpush1.msra.mxu0 0.0
        %6143 = vmatprep.subr.mxu0 0.0
        %6144 = vmatpush1.msra.mxu0 0.0
        %6145 = vmatprep.subr.mxu0 0.0
        %6146 = vmatpush1.msra.mxu0 0.0
        %6147 = vmatprep.subr.mxu0 0.0
        %6148 = vmatpush1.msra.mxu0 0.0
        %6149 = vmatprep.subr.mxu0 0.0
        %6150 = vmatpush1.msra.mxu0 0.0
        %6151 = vmatprep.mubr.f32.mxu0 0.0
        %v6152 = vand.u32 %v4342, 4294901760
        %6153 = vmatmul.mubr.f32.gmra.mrb[0].mxu0 %v6152
        %v6154 = vpop.f32.mrb[0].mxu0
        %v6155 = vadd.f32 %v5972, %v6154
        %v6156 = vpop.f32.mrb[0].mxu0
        %v6157 = vadd.f32 %v5974, %v6156
        %6158 = vmatprep.mubr.f32.mxu0 0.0
        %v6159 = vand.u32 %v4345, 4294901760
        %6160 = vmatmul.mubr.f32.gmra.mrb[0].mxu0 %v6159
        %v6161 = vpop.f32.mrb[0].mxu0
        %v6162 = vadd.f32 %v5981, %v6161
        %v6163 = vpop.f32.mrb[0].mxu0
        %v6164 = vadd.f32 %v5983, %v6163
        %6165 = vmatprep.mubr.f32.mxu0 0.0
        %v6166 = vand.u32 %v4348, 4294901760
        %6167 = vmatmul.mubr.f32.gmra.mrb[0].mxu0 %v6166
        %v6168 = vpop.f32.mrb[0].mxu0
        %v6169 = vadd.f32 %v5990, %v6168
        %v6170 = vpop.f32.mrb[0].mxu0
        %v6171 = vadd.f32 %v5992, %v6170
        %6172 = vmatprep.mubr.f32.mxu0 0.0
        %v6173 = vand.u32 %v4351, 4294901760
        %6174 = vmatmul.mubr.f32.gmra.mrb[0].mxu0 %v6173
        %v6175 = vpop.f32.mrb[0].mxu0
        %v6176 = vadd.f32 %v5999, %v6175
        %v6177 = vpop.f32.mrb[0].mxu0
        %v6178 = vadd.f32 %v6001, %v6177
        %6179 = vmatprep.mubr.f32.mxu0 0.0
        %v6180 = vand.u32 %v4354, 4294901760
        %6181 = vmatmul.mubr.f32.gmra.mrb[0].mxu0 %v6180
        %v6182 = vpop.f32.mrb[0].mxu0
        %v6183 = vadd.f32 %v6008, %v6182
        %v6184 = vpop.f32.mrb[0].mxu0
        %v6185 = vadd.f32 %v6010, %v6184
        %6186 = vmatprep.mubr.f32.mxu0 0.0
        %v6187 = vand.u32 %v4357, 4294901760
        %6188 = vmatmul.mubr.f32.gmra.mrb[0].mxu0 %v6187
        %v6189 = vpop.f32.mrb[0].mxu0
        %v6190 = vadd.f32 %v6017, %v6189
        %v6191 = vpop.f32.mrb[0].mxu0
        %v6192 = vadd.f32 %v6019, %v6191
        %6193 = vmatprep.mubr.f32.mxu0 0.0
        %v6194 = vand.u32 %v4360, 4294901760
        %6195 = vmatmul.mubr.f32.gmra.mrb[0].mxu0 %v6194
        %v6196 = vpop.f32.mrb[0].mxu0
        %v6197 = vadd.f32 %v6026, %v6196
        %v6198 = vpop.f32.mrb[0].mxu0
        %v6199 = vadd.f32 %v6028, %v6198
        %6200 = vmatprep.mubr.f32.mxu0 0.0
        %v6201 = vand.u32 %v4363, 4294901760
        %6202 = vmatmul.mubr.f32.gmra.mrb[0].mxu0 %v6201
        %v6203 = vpop.f32.mrb[0].mxu0
        %v6204 = vadd.f32 %v6035, %v6203
        %v6205 = vpop.f32.mrb[0].mxu0
        %v6206 = vadd.f32 %v6037, %v6205
        %6207 = vdwg.mxu0
        %v6208 = vand.u32 %v4256, 4294901760
        %6209 = vmatprep.subr.mxu0 %v6208
        %v6210 = vand.u32 %v4255, 4294901760
        %6211 = vmatpush1.msra.mxu0 %v6210
        %v6212 = vand.u32 %v4260, 4294901760
        %6213 = vmatprep.subr.mxu0 %v6212
        %v6214 = vand.u32 %v4259, 4294901760
        %6215 = vmatpush1.msra.mxu0 %v6214
        %v6216 = vand.u32 %v4264, 4294901760
        %6217 = vmatprep.subr.mxu0 %v6216
        %v6218 = vand.u32 %v4263, 4294901760
        %6219 = vmatpush1.msra.mxu0 %v6218
        %v6220 = vand.u32 %v4268, 4294901760
        %6221 = vmatprep.subr.mxu0 %v6220
        %v6222 = vand.u32 %v4267, 4294901760
        %6223 = vmatpush1.msra.mxu0 %v6222
        %v6224 = vand.u32 %v4272, 4294901760
        %6225 = vmatprep.subr.mxu0 %v6224
        %v6226 = vand.u32 %v4271, 4294901760
        %6227 = vmatpush1.msra.mxu0 %v6226
        %v6228 = vand.u32 %v4276, 4294901760
        %6229 = vmatprep.subr.mxu0 %v6228
        %v6230 = vand.u32 %v4275, 4294901760
        %6231 = vmatpush1.msra.mxu0 %v6230
        %v6232 = vand.u32 %v4280, 4294901760
        %6233 = vmatprep.subr.mxu0 %v6232
        %v6234 = vand.u32 %v4279, 4294901760
        %6235 = vmatpush1.msra.mxu0 %v6234
        %v6236 = vand.u32 %v4284, 4294901760
        %6237 = vmatprep.subr.mxu0 %v6236
        %v6238 = vand.u32 %v4283, 4294901760
        %6239 = vmatpush1.msra.mxu0 %v6238
        %6240 = vmatprep.subr.mxu0 0.0
        %6241 = vmatpush1.msra.mxu0 0.0
        %6242 = vmatprep.subr.mxu0 0.0
        %6243 = vmatpush1.msra.mxu0 0.0
        %6244 = vmatprep.subr.mxu0 0.0
        %6245 = vmatpush1.msra.mxu0 0.0
        %6246 = vmatprep.subr.mxu0 0.0
        %6247 = vmatpush1.msra.mxu0 0.0
        %6248 = vmatprep.subr.mxu0 0.0
        %6249 = vmatpush1.msra.mxu0 0.0
        %6250 = vmatprep.subr.mxu0 0.0
        %6251 = vmatpush1.msra.mxu0 0.0
        %6252 = vmatprep.subr.mxu0 0.0
        %6253 = vmatpush1.msra.mxu0 0.0
        %6254 = vmatprep.subr.mxu0 0.0
        %6255 = vmatpush1.msra.mxu0 0.0
        %6256 = vmatprep.subr.mxu0 0.0
        %6257 = vmatpush1.msra.mxu0 0.0
        %6258 = vmatprep.subr.mxu0 0.0
        %6259 = vmatpush1.msra.mxu0 0.0
        %6260 = vmatprep.subr.mxu0 0.0
        %6261 = vmatpush1.msra.mxu0 0.0
        %6262 = vmatprep.subr.mxu0 0.0
        %6263 = vmatpush1.msra.mxu0 0.0
        %6264 = vmatprep.subr.mxu0 0.0
        %6265 = vmatpush1.msra.mxu0 0.0
        %6266 = vmatprep.subr.mxu0 0.0
        %6267 = vmatpush1.msra.mxu0 0.0
        %6268 = vmatprep.subr.mxu0 0.0
        %6269 = vmatpush1.msra.mxu0 0.0
        %6270 = vmatprep.subr.mxu0 0.0
        %6271 = vmatpush1.msra.mxu0 0.0
        %6272 = vmatprep.subr.mxu0 0.0
        %6273 = vmatpush1.msra.mxu0 0.0
        %6274 = vmatprep.subr.mxu0 0.0
        %6275 = vmatpush1.msra.mxu0 0.0
        %6276 = vmatprep.subr.mxu0 0.0
        %6277 = vmatpush1.msra.mxu0 0.0
        %6278 = vmatprep.subr.mxu0 0.0
        %6279 = vmatpush1.msra.mxu0 0.0
        %6280 = vmatprep.subr.mxu0 0.0
        %6281 = vmatpush1.msra.mxu0 0.0
        %6282 = vmatprep.subr.mxu0 0.0
        %6283 = vmatpush1.msra.mxu0 0.0
        %6284 = vmatprep.subr.mxu0 0.0
        %6285 = vmatpush1.msra.mxu0 0.0
        %6286 = vmatprep.subr.mxu0 0.0
        %6287 = vmatpush1.msra.mxu0 0.0
        %6288 = vmatprep.mubr.f32.mxu0 0.0
        %v6289 = vand.u32 %v4342, 4294901760
        %6290 = vmatmul.mubr.f32.gmra.mrb[0].mxu0 %v6289
        %v6291 = vpop.f32.mrb[0].mxu0
        %v6292 = vadd.f32 %v6155, %v6291
        %v6293 = vpop.f32.mrb[0].mxu0
        %v6294 = vadd.f32 %v6157, %v6293
        %6295 = vmatprep.mubr.f32.mxu0 0.0
        %v6296 = vand.u32 %v4345, 4294901760
        %6297 = vmatmul.mubr.f32.gmra.mrb[0].mxu0 %v6296
        %v6298 = vpop.f32.mrb[0].mxu0
        %v6299 = vadd.f32 %v6162, %v6298
        %v6300 = vpop.f32.mrb[0].mxu0
        %v6301 = vadd.f32 %v6164, %v6300
        %6302 = vmatprep.mubr.f32.mxu0 0.0
        %v6303 = vand.u32 %v4348, 4294901760
        %6304 = vmatmul.mubr.f32.gmra.mrb[0].mxu0 %v6303
        %v6305 = vpop.f32.mrb[0].mxu0
        %v6306 = vadd.f32 %v6169, %v6305
        %v6307 = vpop.f32.mrb[0].mxu0
        %v6308 = vadd.f32 %v6171, %v6307
        %6309 = vmatprep.mubr.f32.mxu0 0.0
        %v6310 = vand.u32 %v4351, 4294901760
        %6311 = vmatmul.mubr.f32.gmra.mrb[0].mxu0 %v6310
        %v6312 = vpop.f32.mrb[0].mxu0
        %v6313 = vadd.f32 %v6176, %v6312
        %v6314 = vpop.f32.mrb[0].mxu0
        %v6315 = vadd.f32 %v6178, %v6314
        %6316 = vmatprep.mubr.f32.mxu0 0.0
        %v6317 = vand.u32 %v4354, 4294901760
        %6318 = vmatmul.mubr.f32.gmra.mrb[0].mxu0 %v6317
        %v6319 = vpop.f32.mrb[0].mxu0
        %v6320 = vadd.f32 %v6183, %v6319
        %v6321 = vpop.f32.mrb[0].mxu0
        %v6322 = vadd.f32 %v6185, %v6321
        %6323 = vmatprep.mubr.f32.mxu0 0.0
        %v6324 = vand.u32 %v4357, 4294901760
        %6325 = vmatmul.mubr.f32.gmra.mrb[0].mxu0 %v6324
        %v6326 = vpop.f32.mrb[0].mxu0
        %v6327 = vadd.f32 %v6190, %v6326
        %v6328 = vpop.f32.mrb[0].mxu0
        %v6329 = vadd.f32 %v6192, %v6328
        %6330 = vmatprep.mubr.f32.mxu0 0.0
        %v6331 = vand.u32 %v4360, 4294901760
        %6332 = vmatmul.mubr.f32.gmra.mrb[0].mxu0 %v6331
        %v6333 = vpop.f32.mrb[0].mxu0
        %v6334 = vadd.f32 %v6197, %v6333
        %v6335 = vpop.f32.mrb[0].mxu0
        %v6336 = vadd.f32 %v6199, %v6335
        %6337 = vmatprep.mubr.f32.mxu0 0.0
        %v6338 = vand.u32 %v4363, 4294901760
        %6339 = vmatmul.mubr.f32.gmra.mrb[0].mxu0 %v6338
        %v6340 = vpop.f32.mrb[0].mxu0
        %v6341 = vadd.f32 %v6204, %v6340
        %v6342 = vpop.f32.mrb[0].mxu0
        %v6343 = vadd.f32 %v6206, %v6342
        %6344 = vdwg.mxu0
        %v6345 = vtanh.pop %v5302
        %v6346 = vtanh.pop %v5304
        %v6347 = vtanh.pop %v6292
        %v6348 = vtanh.pop %v6294
        %v6349 = vtanh.pop %v5309
        %v6350 = vtanh.pop %v5311
        %v6351 = vtanh.pop %v6299
        %v6352 = vtanh.pop %v6301
        %v6353 = vtanh.pop %v5316
        %v6354 = vtanh.pop %v5318
        %v6355 = vtanh.pop %v6306
        %v6356 = vtanh.pop %v6308
        %v6357 = vtanh.pop %v5323
        %v6358 = vtanh.pop %v5325
        %v6359 = vtanh.pop %v6313
        %v6360 = vtanh.pop %v6315
        %v6361 = vtanh.pop %v5330
        %v6362 = vtanh.pop %v5332
        %v6363 = vtanh.pop %v6320
        %v6364 = vtanh.pop %v6322
        %v6365 = vtanh.pop %v5337
        %v6366 = vtanh.pop %v5339
        %v6367 = vtanh.pop %v6327
        %v6368 = vtanh.pop %v6329
        %v6369 = vtanh.pop %v5344
        %v6370 = vtanh.pop %v5346
        %v6371 = vtanh.pop %v6334
        %v6372 = vtanh.pop %v6336
        %v6373 = vtanh.pop %v5351
        %v6374 = vtanh.pop %v5353
        %v6375 = vtanh.pop %v6341
        %v6376 = vtanh.pop %v6343
        %v6377 = vld [vmem:[%s8] sm:$0xff]
        %v6378 = vld [vmem:[%s8 + $0x8] sm:$0xff]
        %v6379 = vld [vmem:[%s8 + $0x10] sm:$0xff]
        %v6380 = vld [vmem:[%s8 + $0x18] sm:$0xff]
        %v6381 = vld [vmem:[%s8 + $0x20] sm:$0xff]
        %v6382 = vld [vmem:[%s8 + $0x28] sm:$0xff]
        %v6383 = vld [vmem:[%s8 + $0x30] sm:$0xff]
        %v6384 = vld [vmem:[%s8 + $0x38] sm:$0xff]
        %v6385 = vld [vmem:[%s9] sm:$0xff]
        %v6386 = vld [vmem:[%s9 + $0x8] sm:$0xff]
        %v6387 = vld [vmem:[%s9 + $0x10] sm:$0xff]
        %v6388 = vld [vmem:[%s9 + $0x18] sm:$0xff]
        %v6389 = vld [vmem:[%s9 + $0x20] sm:$0xff]
        %v6390 = vld [vmem:[%s9 + $0x28] sm:$0xff]
        %v6391 = vld [vmem:[%s9 + $0x30] sm:$0xff]
        %v6392 = vld [vmem:[%s9 + $0x38] sm:$0xff]
        %6394 = vset.pattern.permute.xlu0 0
        %6395 = vperm.xlu0 %6394, %v6385
        %v6396 = vpop.permute.xlu0 %6395
        %6399 = vset.pattern.permute.xlu0 0
        %6400 = vperm.xlu0 %6399, %v6386
        %v6401 = vpop.permute.xlu0 %6400
        %6404 = vset.pattern.permute.xlu0 0
        %6405 = vperm.xlu0 %6404, %v6387
        %v6406 = vpop.permute.xlu0 %6405
        %6409 = vset.pattern.permute.xlu0 0
        %6410 = vperm.xlu0 %6409, %v6388
        %v6411 = vpop.permute.xlu0 %6410
        %6414 = vset.pattern.permute.xlu0 0
        %6415 = vperm.xlu0 %6414, %v6389
        %v6416 = vpop.permute.xlu0 %6415
        %6419 = vset.pattern.permute.xlu0 0
        %6420 = vperm.xlu0 %6419, %v6390
        %v6421 = vpop.permute.xlu0 %6420
        %6424 = vset.pattern.permute.xlu0 0
        %6425 = vperm.xlu0 %6424, %v6391
        %v6426 = vpop.permute.xlu0 %6425
        %6429 = vset.pattern.permute.xlu0 0
        %6430 = vperm.xlu0 %6429, %v6392
        %v6431 = vpop.permute.xlu0 %6430
        %v6434 = vsel %vm2248, %v6377, 0
        %v6437 = vsel %vm2248, %v6378, 0
        %v6440 = vsel %vm2248, %v6379, 0
        %v6443 = vsel %vm2248, %v6380, 0
        %v6446 = vsel %vm2248, %v6381, 0
        %v6449 = vsel %vm2248, %v6382, 0
        %v6452 = vsel %vm2248, %v6383, 0
        %v6455 = vsel %vm2248, %v6384, 0
        %v6457 = vand.u32 %v6346, 4294901760
        %6458 = vmatprep.subr.mxu0 %v6457
        %v6459 = vand.u32 %v6345, 4294901760
        %6460 = vmatpush1.msra.mxu0 %v6459
        %v6461 = vand.u32 %v6350, 4294901760
        %6462 = vmatprep.subr.mxu0 %v6461
        %v6463 = vand.u32 %v6349, 4294901760
        %6464 = vmatpush1.msra.mxu0 %v6463
        %v6465 = vand.u32 %v6354, 4294901760
        %6466 = vmatprep.subr.mxu0 %v6465
        %v6467 = vand.u32 %v6353, 4294901760
        %6468 = vmatpush1.msra.mxu0 %v6467
        %v6469 = vand.u32 %v6358, 4294901760
        %6470 = vmatprep.subr.mxu0 %v6469
        %v6471 = vand.u32 %v6357, 4294901760
        %6472 = vmatpush1.msra.mxu0 %v6471
        %v6473 = vand.u32 %v6362, 4294901760
        %6474 = vmatprep.subr.mxu0 %v6473
        %v6475 = vand.u32 %v6361, 4294901760
        %6476 = vmatpush1.msra.mxu0 %v6475
        %v6477 = vand.u32 %v6366, 4294901760
        %6478 = vmatprep.subr.mxu0 %v6477
        %v6479 = vand.u32 %v6365, 4294901760
        %6480 = vmatpush1.msra.mxu0 %v6479
        %v6481 = vand.u32 %v6370, 4294901760
        %6482 = vmatprep.subr.mxu0 %v6481
        %v6483 = vand.u32 %v6369, 4294901760
        %6484 = vmatpush1.msra.mxu0 %v6483
        %v6485 = vand.u32 %v6374, 4294901760
        %6486 = vmatprep.subr.mxu0 %v6485
        %v6487 = vand.u32 %v6373, 4294901760
        %6488 = vmatpush1.msra.mxu0 %v6487
        %6489 = vmatprep.subr.mxu0 0.0
        %6490 = vmatpush1.msra.mxu0 0.0
        %6491 = vmatprep.subr.mxu0 0.0
        %6492 = vmatpush1.msra.mxu0 0.0
        %6493 = vmatprep.subr.mxu0 0.0
        %6494 = vmatpush1.msra.mxu0 0.0
        %6495 = vmatprep.subr.mxu0 0.0
        %6496 = vmatpush1.msra.mxu0 0.0
        %6497 = vmatprep.subr.mxu0 0.0
        %6498 = vmatpush1.msra.mxu0 0.0
        %6499 = vmatprep.subr.mxu0 0.0
        %6500 = vmatpush1.msra.mxu0 0.0
        %6501 = vmatprep.subr.mxu0 0.0
        %6502 = vmatpush1.msra.mxu0 0.0
        %6503 = vmatprep.subr.mxu0 0.0
        %6504 = vmatpush1.msra.mxu0 0.0
        %6505 = vmatprep.subr.mxu0 0.0
        %6506 = vmatpush1.msra.mxu0 0.0
        %6507 = vmatprep.subr.mxu0 0.0
        %6508 = vmatpush1.msra.mxu0 0.0
        %6509 = vmatprep.subr.mxu0 0.0
        %6510 = vmatpush1.msra.mxu0 0.0
        %6511 = vmatprep.subr.mxu0 0.0
        %6512 = vmatpush1.msra.mxu0 0.0
        %6513 = vmatprep.subr.mxu0 0.0
        %6514 = vmatpush1.msra.mxu0 0.0
        %6515 = vmatprep.subr.mxu0 0.0
        %6516 = vmatpush1.msra.mxu0 0.0
        %6517 = vmatprep.subr.mxu0 0.0
        %6518 = vmatpush1.msra.mxu0 0.0
        %6519 = vmatprep.subr.mxu0 0.0
        %6520 = vmatpush1.msra.mxu0 0.0
        %6521 = vmatprep.subr.mxu0 0.0
        %6522 = vmatpush1.msra.mxu0 0.0
        %6523 = vmatprep.subr.mxu0 0.0
        %6524 = vmatpush1.msra.mxu0 0.0
        %6525 = vmatprep.subr.mxu0 0.0
        %6526 = vmatpush1.msra.mxu0 0.0
        %6527 = vmatprep.subr.mxu0 0.0
        %6528 = vmatpush1.msra.mxu0 0.0
        %6529 = vmatprep.subr.mxu0 0.0
        %6530 = vmatpush1.msra.mxu0 0.0
        %6531 = vmatprep.subr.mxu0 0.0
        %6532 = vmatpush1.msra.mxu0 0.0
        %6533 = vmatprep.subr.mxu0 0.0
        %6534 = vmatpush1.msra.mxu0 0.0
        %6535 = vmatprep.subr.mxu0 0.0
        %6536 = vmatpush1.msra.mxu0 0.0
        %6537 = vmatprep.mubr.f32.mxu0 0.0
        %v6538 = vand.u32 %v6434, 4294901760
        %v6539 = vsub.f32 %v6434, %v6538
        %v6540 = vand.u32 %v6539, 4294901760
        %v6541 = vsub.f32 %v6539, %v6540
        %v6542 = vand.u32 %v6541, 4294901760
        %6543 = vmatmul.mubr.f32.gmra.mrb[0].mxu0 %v6542
        %v6544 = vpop.f32.mrb[0].mxu0
        %v6545 = vadd.f32 %v6396, %v6544
        %v6546 = vpop.f32.mrb[0].mxu0
        %v6547 = vadd.f32 %v6396, %v6546
        %6548 = vmatprep.mubr.f32.mxu0 0.0
        %v6549 = vand.u32 %v6437, 4294901760
        %v6550 = vsub.f32 %v6437, %v6549
        %v6551 = vand.u32 %v6550, 4294901760
        %v6552 = vsub.f32 %v6550, %v6551
        %v6553 = vand.u32 %v6552, 4294901760
        %6554 = vmatmul.mubr.f32.gmra.mrb[0].mxu0 %v6553
        %v6555 = vpop.f32.mrb[0].mxu0
        %v6556 = vadd.f32 %v6401, %v6555
        %v6557 = vpop.f32.mrb[0].mxu0
        %v6558 = vadd.f32 %v6401, %v6557
        %6559 = vmatprep.mubr.f32.mxu0 0.0
        %v6560 = vand.u32 %v6440, 4294901760
        %v6561 = vsub.f32 %v6440, %v6560
        %v6562 = vand.u32 %v6561, 4294901760
        %v6563 = vsub.f32 %v6561, %v6562
        %v6564 = vand.u32 %v6563, 4294901760
        %6565 = vmatmul.mubr.f32.gmra.mrb[0].mxu0 %v6564
        %v6566 = vpop.f32.mrb[0].mxu0
        %v6567 = vadd.f32 %v6406, %v6566
        %v6568 = vpop.f32.mrb[0].mxu0
        %v6569 = vadd.f32 %v6406, %v6568
        %6570 = vmatprep.mubr.f32.mxu0 0.0
        %v6571 = vand.u32 %v6443, 4294901760
        %v6572 = vsub.f32 %v6443, %v6571
        %v6573 = vand.u32 %v6572, 4294901760
        %v6574 = vsub.f32 %v6572, %v6573
        %v6575 = vand.u32 %v6574, 4294901760
        %6576 = vmatmul.mubr.f32.gmra.mrb[0].mxu0 %v6575
        %v6577 = vpop.f32.mrb[0].mxu0
        %v6578 = vadd.f32 %v6411, %v6577
        %v6579 = vpop.f32.mrb[0].mxu0
        %v6580 = vadd.f32 %v6411, %v6579
        %6581 = vmatprep.mubr.f32.mxu0 0.0
        %v6582 = vand.u32 %v6446, 4294901760
        %v6583 = vsub.f32 %v6446, %v6582
        %v6584 = vand.u32 %v6583, 4294901760
        %v6585 = vsub.f32 %v6583, %v6584
        %v6586 = vand.u32 %v6585, 4294901760
        %6587 = vmatmul.mubr.f32.gmra.mrb[0].mxu0 %v6586
        %v6588 = vpop.f32.mrb[0].mxu0
        %v6589 = vadd.f32 %v6416, %v6588
        %v6590 = vpop.f32.mrb[0].mxu0
        %v6591 = vadd.f32 %v6416, %v6590
        %6592 = vmatprep.mubr.f32.mxu0 0.0
        %v6593 = vand.u32 %v6449, 4294901760
        %v6594 = vsub.f32 %v6449, %v6593
        %v6595 = vand.u32 %v6594, 4294901760
        %v6596 = vsub.f32 %v6594, %v6595
        %v6597 = vand.u32 %v6596, 4294901760
        %6598 = vmatmul.mubr.f32.gmra.mrb[0].mxu0 %v6597
        %v6599 = vpop.f32.mrb[0].mxu0
        %v6600 = vadd.f32 %v6421, %v6599
        %v6601 = vpop.f32.mrb[0].mxu0
        %v6602 = vadd.f32 %v6421, %v6601
        %6603 = vmatprep.mubr.f32.mxu0 0.0
        %v6604 = vand.u32 %v6452, 4294901760
        %v6605 = vsub.f32 %v6452, %v6604
        %v6606 = vand.u32 %v6605, 4294901760
        %v6607 = vsub.f32 %v6605, %v6606
        %v6608 = vand.u32 %v6607, 4294901760
        %6609 = vmatmul.mubr.f32.gmra.mrb[0].mxu0 %v6608
        %v6610 = vpop.f32.mrb[0].mxu0
        %v6611 = vadd.f32 %v6426, %v6610
        %v6612 = vpop.f32.mrb[0].mxu0
        %v6613 = vadd.f32 %v6426, %v6612
        %6614 = vmatprep.mubr.f32.mxu0 0.0
        %v6615 = vand.u32 %v6455, 4294901760
        %v6616 = vsub.f32 %v6455, %v6615
        %v6617 = vand.u32 %v6616, 4294901760
        %v6618 = vsub.f32 %v6616, %v6617
        %v6619 = vand.u32 %v6618, 4294901760
        %6620 = vmatmul.mubr.f32.gmra.mrb[0].mxu0 %v6619
        %v6621 = vpop.f32.mrb[0].mxu0
        %v6622 = vadd.f32 %v6431, %v6621
        %v6623 = vpop.f32.mrb[0].mxu0
        %v6624 = vadd.f32 %v6431, %v6623
        %6625 = vdwg.mxu0
        %v6626 = vand.u32 %v6346, 4294901760
        %v6627 = vsub.f32 %v6346, %v6626
        %v6628 = vand.u32 %v6627, 4294901760
        %v6629 = vsub.f32 %v6627, %v6628
        %v6630 = vand.u32 %v6629, 4294901760
        %6631 = vmatprep.subr.mxu0 %v6630
        %v6632 = vand.u32 %v6345, 4294901760
        %v6633 = vsub.f32 %v6345, %v6632
        %v6634 = vand.u32 %v6633, 4294901760
        %v6635 = vsub.f32 %v6633, %v6634
        %v6636 = vand.u32 %v6635, 4294901760
        %6637 = vmatpush1.msra.mxu0 %v6636
        %v6638 = vand.u32 %v6350, 4294901760
        %v6639 = vsub.f32 %v6350, %v6638
        %v6640 = vand.u32 %v6639, 4294901760
        %v6641 = vsub.f32 %v6639, %v6640
        %v6642 = vand.u32 %v6641, 4294901760
        %6643 = vmatprep.subr.mxu0 %v6642
        %v6644 = vand.u32 %v6349, 4294901760
        %v6645 = vsub.f32 %v6349, %v6644
        %v6646 = vand.u32 %v6645, 4294901760
        %v6647 = vsub.f32 %v6645, %v6646
        %v6648 = vand.u32 %v6647, 4294901760
        %6649 = vmatpush1.msra.mxu0 %v6648
        %v6650 = vand.u32 %v6354, 4294901760
        %v6651 = vsub.f32 %v6354, %v6650
        %v6652 = vand.u32 %v6651, 4294901760
        %v6653 = vsub.f32 %v6651, %v6652
        %v6654 = vand.u32 %v6653, 4294901760
        %6655 = vmatprep.subr.mxu0 %v6654
        %v6656 = vand.u32 %v6353, 4294901760
        %v6657 = vsub.f32 %v6353, %v6656
        %v6658 = vand.u32 %v6657, 4294901760
        %v6659 = vsub.f32 %v6657, %v6658
        %v6660 = vand.u32 %v6659, 4294901760
        %6661 = vmatpush1.msra.mxu0 %v6660
        %v6662 = vand.u32 %v6358, 4294901760
        %v6663 = vsub.f32 %v6358, %v6662
        %v6664 = vand.u32 %v6663, 4294901760
        %v6665 = vsub.f32 %v6663, %v6664
        %v6666 = vand.u32 %v6665, 4294901760
        %6667 = vmatprep.subr.mxu0 %v6666
        %v6668 = vand.u32 %v6357, 4294901760
        %v6669 = vsub.f32 %v6357, %v6668
        %v6670 = vand.u32 %v6669, 4294901760
        %v6671 = vsub.f32 %v6669, %v6670
        %v6672 = vand.u32 %v6671, 4294901760
        %6673 = vmatpush1.msra.mxu0 %v6672
        %v6674 = vand.u32 %v6362, 4294901760
        %v6675 = vsub.f32 %v6362, %v6674
        %v6676 = vand.u32 %v6675, 4294901760
        %v6677 = vsub.f32 %v6675, %v6676
        %v6678 = vand.u32 %v6677, 4294901760
        %6679 = vmatprep.subr.mxu0 %v6678
        %v6680 = vand.u32 %v6361, 4294901760
        %v6681 = vsub.f32 %v6361, %v6680
        %v6682 = vand.u32 %v6681, 4294901760
        %v6683 = vsub.f32 %v6681, %v6682
        %v6684 = vand.u32 %v6683, 4294901760
        %6685 = vmatpush1.msra.mxu0 %v6684
        %v6686 = vand.u32 %v6366, 4294901760
        %v6687 = vsub.f32 %v6366, %v6686
        %v6688 = vand.u32 %v6687, 4294901760
        %v6689 = vsub.f32 %v6687, %v6688
        %v6690 = vand.u32 %v6689, 4294901760
        %6691 = vmatprep.subr.mxu0 %v6690
        %v6692 = vand.u32 %v6365, 4294901760
        %v6693 = vsub.f32 %v6365, %v6692
        %v6694 = vand.u32 %v6693, 4294901760
        %v6695 = vsub.f32 %v6693, %v6694
        %v6696 = vand.u32 %v6695, 4294901760
        %6697 = vmatpush1.msra.mxu0 %v6696
        %v6698 = vand.u32 %v6370, 4294901760
        %v6699 = vsub.f32 %v6370, %v6698
        %v6700 = vand.u32 %v6699, 4294901760
        %v6701 = vsub.f32 %v6699, %v6700
        %v6702 = vand.u32 %v6701, 4294901760
        %6703 = vmatprep.subr.mxu0 %v6702
        %v6704 = vand.u32 %v6369, 4294901760
        %v6705 = vsub.f32 %v6369, %v6704
        %v6706 = vand.u32 %v6705, 4294901760
        %v6707 = vsub.f32 %v6705, %v6706
        %v6708 = vand.u32 %v6707, 4294901760
        %6709 = vmatpush1.msra.mxu0 %v6708
        %v6710 = vand.u32 %v6374, 4294901760
        %v6711 = vsub.f32 %v6374, %v6710
        %v6712 = vand.u32 %v6711, 4294901760
        %v6713 = vsub.f32 %v6711, %v6712
        %v6714 = vand.u32 %v6713, 4294901760
        %6715 = vmatprep.subr.mxu0 %v6714
        %v6716 = vand.u32 %v6373, 4294901760
        %v6717 = vsub.f32 %v6373, %v6716
        %v6718 = vand.u32 %v6717, 4294901760
        %v6719 = vsub.f32 %v6717, %v6718
        %v6720 = vand.u32 %v6719, 4294901760
        %6721 = vmatpush1.msra.mxu0 %v6720
        %6722 = vmatprep.subr.mxu0 0.0
        %6723 = vmatpush1.msra.mxu0 0.0
        %6724 = vmatprep.subr.mxu0 0.0
        %6725 = vmatpush1.msra.mxu0 0.0
        %6726 = vmatprep.subr.mxu0 0.0
        %6727 = vmatpush1.msra.mxu0 0.0
        %6728 = vmatprep.subr.mxu0 0.0
        %6729 = vmatpush1.msra.mxu0 0.0
        %6730 = vmatprep.subr.mxu0 0.0
        %6731 = vmatpush1.msra.mxu0 0.0
        %6732 = vmatprep.subr.mxu0 0.0
        %6733 = vmatpush1.msra.mxu0 0.0
        %6734 = vmatprep.subr.mxu0 0.0
        %6735 = vmatpush1.msra.mxu0 0.0
        %6736 = vmatprep.subr.mxu0 0.0
        %6737 = vmatpush1.msra.mxu0 0.0
        %6738 = vmatprep.subr.mxu0 0.0
        %6739 = vmatpush1.msra.mxu0 0.0
        %6740 = vmatprep.subr.mxu0 0.0
        %6741 = vmatpush1.msra.mxu0 0.0
        %6742 = vmatprep.subr.mxu0 0.0
        %6743 = vmatpush1.msra.mxu0 0.0
        %6744 = vmatprep.subr.mxu0 0.0
        %6745 = vmatpush1.msra.mxu0 0.0
        %6746 = vmatprep.subr.mxu0 0.0
        %6747 = vmatpush1.msra.mxu0 0.0
        %6748 = vmatprep.subr.mxu0 0.0
        %6749 = vmatpush1.msra.mxu0 0.0
        %6750 = vmatprep.subr.mxu0 0.0
        %6751 = vmatpush1.msra.mxu0 0.0
        %6752 = vmatprep.subr.mxu0 0.0
        %6753 = vmatpush1.msra.mxu0 0.0
        %6754 = vmatprep.subr.mxu0 0.0
        %6755 = vmatpush1.msra.mxu0 0.0
        %6756 = vmatprep.subr.mxu0 0.0
        %6757 = vmatpush1.msra.mxu0 0.0
        %6758 = vmatprep.subr.mxu0 0.0
        %6759 = vmatpush1.msra.mxu0 0.0
        %6760 = vmatprep.subr.mxu0 0.0
        %6761 = vmatpush1.msra.mxu0 0.0
        %6762 = vmatprep.subr.mxu0 0.0
        %6763 = vmatpush1.msra.mxu0 0.0
        %6764 = vmatprep.subr.mxu0 0.0
        %6765 = vmatpush1.msra.mxu0 0.0
        %6766 = vmatprep.subr.mxu0 0.0
        %6767 = vmatpush1.msra.mxu0 0.0
        %6768 = vmatprep.subr.mxu0 0.0
        %6769 = vmatpush1.msra.mxu0 0.0
        %6770 = vmatprep.mubr.f32.mxu0 0.0
        %v6771 = vand.u32 %v6434, 4294901760
        %6772 = vmatmul.mubr.f32.gmra.mrb[0].mxu0 %v6771
        %v6773 = vpop.f32.mrb[0].mxu0
        %v6774 = vadd.f32 %v6545, %v6773
        %v6775 = vpop.f32.mrb[0].mxu0
        %v6776 = vadd.f32 %v6547, %v6775
        %6777 = vmatprep.mubr.f32.mxu0 0.0
        %v6778 = vand.u32 %v6437, 4294901760
        %6779 = vmatmul.mubr.f32.gmra.mrb[0].mxu0 %v6778
        %v6780 = vpop.f32.mrb[0].mxu0
        %v6781 = vadd.f32 %v6556, %v6780
        %v6782 = vpop.f32.mrb[0].mxu0
        %v6783 = vadd.f32 %v6558, %v6782
        %6784 = vmatprep.mubr.f32.mxu0 0.0
        %v6785 = vand.u32 %v6440, 4294901760
        %6786 = vmatmul.mubr.f32.gmra.mrb[0].mxu0 %v6785
        %v6787 = vpop.f32.mrb[0].mxu0
        %v6788 = vadd.f32 %v6567, %v6787
        %v6789 = vpop.f32.mrb[0].mxu0
        %v6790 = vadd.f32 %v6569, %v6789
        %6791 = vmatprep.mubr.f32.mxu0 0.0
        %v6792 = vand.u32 %v6443, 4294901760
        %6793 = vmatmul.mubr.f32.gmra.mrb[0].mxu0 %v6792
        %v6794 = vpop.f32.mrb[0].mxu0
        %v6795 = vadd.f32 %v6578, %v6794
        %v6796 = vpop.f32.mrb[0].mxu0
        %v6797 = vadd.f32 %v6580, %v6796
        %6798 = vmatprep.mubr.f32.mxu0 0.0
        %v6799 = vand.u32 %v6446, 4294901760
        %6800 = vmatmul.mubr.f32.gmra.mrb[0].mxu0 %v6799
        %v6801 = vpop.f32.mrb[0].mxu0
        %v6802 = vadd.f32 %v6589, %v6801
        %v6803 = vpop.f32.mrb[0].mxu0
        %v6804 = vadd.f32 %v6591, %v6803
        %6805 = vmatprep.mubr.f32.mxu0 0.0
        %v6806 = vand.u32 %v6449, 4294901760
        %6807 = vmatmul.mubr.f32.gmra.mrb[0].mxu0 %v6806
        %v6808 = vpop.f32.mrb[0].mxu0
        %v6809 = vadd.f32 %v6600, %v6808
        %v6810 = vpop.f32.mrb[0].mxu0
        %v6811 = vadd.f32 %v6602, %v6810
        %6812 = vmatprep.mubr.f32.mxu0 0.0
        %v6813 = vand.u32 %v6452, 4294901760
        %6814 = vmatmul.mubr.f32.gmra.mrb[0].mxu0 %v6813
        %v6815 = vpop.f32.mrb[0].mxu0
        %v6816 = vadd.f32 %v6611, %v6815
        %v6817 = vpop.f32.mrb[0].mxu0
        %v6818 = vadd.f32 %v6613, %v6817
        %6819 = vmatprep.mubr.f32.mxu0 0.0
        %v6820 = vand.u32 %v6455, 4294901760
        %6821 = vmatmul.mubr.f32.gmra.mrb[0].mxu0 %v6820
        %v6822 = vpop.f32.mrb[0].mxu0
        %v6823 = vadd.f32 %v6622, %v6822
        %v6824 = vpop.f32.mrb[0].mxu0
        %v6825 = vadd.f32 %v6624, %v6824
        %6826 = vdwg.mxu0
        %v6827 = vand.u32 %v6346, 4294901760
        %v6828 = vsub.f32 %v6346, %v6827
        %6829 = vmatprep.subr.mxu0 %v6828
        %v6830 = vand.u32 %v6345, 4294901760
        %v6831 = vsub.f32 %v6345, %v6830
        %6832 = vmatpush1.msra.mxu0 %v6831
        %v6833 = vand.u32 %v6350, 4294901760
        %v6834 = vsub.f32 %v6350, %v6833
        %6835 = vmatprep.subr.mxu0 %v6834
        %v6836 = vand.u32 %v6349, 4294901760
        %v6837 = vsub.f32 %v6349, %v6836
        %6838 = vmatpush1.msra.mxu0 %v6837
        %v6839 = vand.u32 %v6354, 4294901760
        %v6840 = vsub.f32 %v6354, %v6839
        %6841 = vmatprep.subr.mxu0 %v6840
        %v6842 = vand.u32 %v6353, 4294901760
        %v6843 = vsub.f32 %v6353, %v6842
        %6844 = vmatpush1.msra.mxu0 %v6843
        %v6845 = vand.u32 %v6358, 4294901760
        %v6846 = vsub.f32 %v6358, %v6845
        %6847 = vmatprep.subr.mxu0 %v6846
        %v6848 = vand.u32 %v6357, 4294901760
        %v6849 = vsub.f32 %v6357, %v6848
        %6850 = vmatpush1.msra.mxu0 %v6849
        %v6851 = vand.u32 %v6362, 4294901760
        %v6852 = vsub.f32 %v6362, %v6851
        %6853 = vmatprep.subr.mxu0 %v6852
        %v6854 = vand.u32 %v6361, 4294901760
        %v6855 = vsub.f32 %v6361, %v6854
        %6856 = vmatpush1.msra.mxu0 %v6855
        %v6857 = vand.u32 %v6366, 4294901760
        %v6858 = vsub.f32 %v6366, %v6857
        %6859 = vmatprep.subr.mxu0 %v6858
        %v6860 = vand.u32 %v6365, 4294901760
        %v6861 = vsub.f32 %v6365, %v6860
        %6862 = vmatpush1.msra.mxu0 %v6861
        %v6863 = vand.u32 %v6370, 4294901760
        %v6864 = vsub.f32 %v6370, %v6863
        %6865 = vmatprep.subr.mxu0 %v6864
        %v6866 = vand.u32 %v6369, 4294901760
        %v6867 = vsub.f32 %v6369, %v6866
        %6868 = vmatpush1.msra.mxu0 %v6867
        %v6869 = vand.u32 %v6374, 4294901760
        %v6870 = vsub.f32 %v6374, %v6869
        %6871 = vmatprep.subr.mxu0 %v6870
        %v6872 = vand.u32 %v6373, 4294901760
        %v6873 = vsub.f32 %v6373, %v6872
        %6874 = vmatpush1.msra.mxu0 %v6873
        %6875 = vmatprep.subr.mxu0 0.0
        %6876 = vmatpush1.msra.mxu0 0.0
        %6877 = vmatprep.subr.mxu0 0.0
        %6878 = vmatpush1.msra.mxu0 0.0
        %6879 = vmatprep.subr.mxu0 0.0
        %6880 = vmatpush1.msra.mxu0 0.0
        %6881 = vmatprep.subr.mxu0 0.0
        %6882 = vmatpush1.msra.mxu0 0.0
        %6883 = vmatprep.subr.mxu0 0.0
        %6884 = vmatpush1.msra.mxu0 0.0
        %6885 = vmatprep.subr.mxu0 0.0
        %6886 = vmatpush1.msra.mxu0 0.0
        %6887 = vmatprep.subr.mxu0 0.0
        %6888 = vmatpush1.msra.mxu0 0.0
        %6889 = vmatprep.subr.mxu0 0.0
        %6890 = vmatpush1.msra.mxu0 0.0
        %6891 = vmatprep.subr.mxu0 0.0
        %6892 = vmatpush1.msra.mxu0 0.0
        %6893 = vmatprep.subr.mxu0 0.0
        %6894 = vmatpush1.msra.mxu0 0.0
        %6895 = vmatprep.subr.mxu0 0.0
        %6896 = vmatpush1.msra.mxu0 0.0
        %6897 = vmatprep.subr.mxu0 0.0
        %6898 = vmatpush1.msra.mxu0 0.0
        %6899 = vmatprep.subr.mxu0 0.0
        %6900 = vmatpush1.msra.mxu0 0.0
        %6901 = vmatprep.subr.mxu0 0.0
        %6902 = vmatpush1.msra.mxu0 0.0
        %6903 = vmatprep.subr.mxu0 0.0
        %6904 = vmatpush1.msra.mxu0 0.0
        %6905 = vmatprep.subr.mxu0 0.0
        %6906 = vmatpush1.msra.mxu0 0.0
        %6907 = vmatprep.subr.mxu0 0.0
        %6908 = vmatpush1.msra.mxu0 0.0
        %6909 = vmatprep.subr.mxu0 0.0
        %6910 = vmatpush1.msra.mxu0 0.0
        %6911 = vmatprep.subr.mxu0 0.0
        %6912 = vmatpush1.msra.mxu0 0.0
        %6913 = vmatprep.subr.mxu0 0.0
        %6914 = vmatpush1.msra.mxu0 0.0
        %6915 = vmatprep.subr.mxu0 0.0
        %6916 = vmatpush1.msra.mxu0 0.0
        %6917 = vmatprep.subr.mxu0 0.0
        %6918 = vmatpush1.msra.mxu0 0.0
        %6919 = vmatprep.subr.mxu0 0.0
        %6920 = vmatpush1.msra.mxu0 0.0
        %6921 = vmatprep.subr.mxu0 0.0
        %6922 = vmatpush1.msra.mxu0 0.0
        %6923 = vmatprep.mubr.f32.mxu0 0.0
        %v6924 = vand.u32 %v6434, 4294901760
        %v6925 = vsub.f32 %v6434, %v6924
        %6926 = vmatmul.mubr.f32.gmra.mrb[0].mxu0 %v6925
        %v6927 = vpop.f32.mrb[0].mxu0
        %v6928 = vadd.f32 %v6774, %v6927
        %v6929 = vpop.f32.mrb[0].mxu0
        %v6930 = vadd.f32 %v6776, %v6929
        %6931 = vmatprep.mubr.f32.mxu0 0.0
        %v6932 = vand.u32 %v6437, 4294901760
        %v6933 = vsub.f32 %v6437, %v6932
        %6934 = vmatmul.mubr.f32.gmra.mrb[0].mxu0 %v6933
        %v6935 = vpop.f32.mrb[0].mxu0
        %v6936 = vadd.f32 %v6781, %v6935
        %v6937 = vpop.f32.mrb[0].mxu0
        %v6938 = vadd.f32 %v6783, %v6937
        %6939 = vmatprep.mubr.f32.mxu0 0.0
        %v6940 = vand.u32 %v6440, 4294901760
        %v6941 = vsub.f32 %v6440, %v6940
        %6942 = vmatmul.mubr.f32.gmra.mrb[0].mxu0 %v6941
        %v6943 = vpop.f32.mrb[0].mxu0
        %v6944 = vadd.f32 %v6788, %v6943
        %v6945 = vpop.f32.mrb[0].mxu0
        %v6946 = vadd.f32 %v6790, %v6945
        %6947 = vmatprep.mubr.f32.mxu0 0.0
        %v6948 = vand.u32 %v6443, 4294901760
        %v6949 = vsub.f32 %v6443, %v6948
        %6950 = vmatmul.mubr.f32.gmra.mrb[0].mxu0 %v6949
        %v6951 = vpop.f32.mrb[0].mxu0
        %v6952 = vadd.f32 %v6795, %v6951
        %v6953 = vpop.f32.mrb[0].mxu0
        %v6954 = vadd.f32 %v6797, %v6953
        %6955 = vmatprep.mubr.f32.mxu0 0.0
        %v6956 = vand.u32 %v6446, 4294901760
        %v6957 = vsub.f32 %v6446, %v6956
        %6958 = vmatmul.mubr.f32.gmra.mrb[0].mxu0 %v6957
        %v6959 = vpop.f32.mrb[0].mxu0
        %v6960 = vadd.f32 %v6802, %v6959
        %v6961 = vpop.f32.mrb[0].mxu0
        %v6962 = vadd.f32 %v6804, %v6961
        %6963 = vmatprep.mubr.f32.mxu0 0.0
        %v6964 = vand.u32 %v6449, 4294901760
        %v6965 = vsub.f32 %v6449, %v6964
        %6966 = vmatmul.mubr.f32.gmra.mrb[0].mxu0 %v6965
        %v6967 = vpop.f32.mrb[0].mxu0
        %v6968 = vadd.f32 %v6809, %v6967
        %v6969 = vpop.f32.mrb[0].mxu0
        %v6970 = vadd.f32 %v6811, %v6969
        %6971 = vmatprep.mubr.f32.mxu0 0.0
        %v6972 = vand.u32 %v6452, 4294901760
        %v6973 = vsub.f32 %v6452, %v6972
        %6974 = vmatmul.mubr.f32.gmra.mrb[0].mxu0 %v6973
        %v6975 = vpop.f32.mrb[0].mxu0
        %v6976 = vadd.f32 %v6816, %v6975
        %v6977 = vpop.f32.mrb[0].mxu0
        %v6978 = vadd.f32 %v6818, %v6977
        %6979 = vmatprep.mubr.f32.mxu0 0.0
        %v6980 = vand.u32 %v6455, 4294901760
        %v6981 = vsub.f32 %v6455, %v6980
        %6982 = vmatmul.mubr.f32.gmra.mrb[0].mxu0 %v6981
        %v6983 = vpop.f32.mrb[0].mxu0
        %v6984 = vadd.f32 %v6823, %v6983
        %v6985 = vpop.f32.mrb[0].mxu0
        %v6986 = vadd.f32 %v6825, %v6985
        %6987 = vdwg.mxu0
        %v6988 = vand.u32 %v6346, 4294901760
        %6989 = vmatprep.subr.mxu0 %v6988
        %v6990 = vand.u32 %v6345, 4294901760
        %6991 = vmatpush1.msra.mxu0 %v6990
        %v6992 = vand.u32 %v6350, 4294901760
        %6993 = vmatprep.subr.mxu0 %v6992
        %v6994 = vand.u32 %v6349, 4294901760
        %6995 = vmatpush1.msra.mxu0 %v6994
        %v6996 = vand.u32 %v6354, 4294901760
        %6997 = vmatprep.subr.mxu0 %v6996
        %v6998 = vand.u32 %v6353, 4294901760
        %6999 = vmatpush1.msra.mxu0 %v6998
        %v7000 = vand.u32 %v6358, 4294901760
        %7001 = vmatprep.subr.mxu0 %v7000
        %v7002 = vand.u32 %v6357, 4294901760
        %7003 = vmatpush1.msra.mxu0 %v7002
        %v7004 = vand.u32 %v6362, 4294901760
        %7005 = vmatprep.subr.mxu0 %v7004
        %v7006 = vand.u32 %v6361, 4294901760
        %7007 = vmatpush1.msra.mxu0 %v7006
        %v7008 = vand.u32 %v6366, 4294901760
        %7009 = vmatprep.subr.mxu0 %v7008
        %v7010 = vand.u32 %v6365, 4294901760
        %7011 = vmatpush1.msra.mxu0 %v7010
        %v7012 = vand.u32 %v6370, 4294901760
        %7013 = vmatprep.subr.mxu0 %v7012
        %v7014 = vand.u32 %v6369, 4294901760
        %7015 = vmatpush1.msra.mxu0 %v7014
        %v7016 = vand.u32 %v6374, 4294901760
        %7017 = vmatprep.subr.mxu0 %v7016
        %v7018 = vand.u32 %v6373, 4294901760
        %7019 = vmatpush1.msra.mxu0 %v7018
        %7020 = vmatprep.subr.mxu0 0.0
        %7021 = vmatpush1.msra.mxu0 0.0
        %7022 = vmatprep.subr.mxu0 0.0
        %7023 = vmatpush1.msra.mxu0 0.0
        %7024 = vmatprep.subr.mxu0 0.0
        %7025 = vmatpush1.msra.mxu0 0.0
        %7026 = vmatprep.subr.mxu0 0.0
        %7027 = vmatpush1.msra.mxu0 0.0
        %7028 = vmatprep.subr.mxu0 0.0
        %7029 = vmatpush1.msra.mxu0 0.0
        %7030 = vmatprep.subr.mxu0 0.0
        %7031 = vmatpush1.msra.mxu0 0.0
        %7032 = vmatprep.subr.mxu0 0.0
        %7033 = vmatpush1.msra.mxu0 0.0
        %7034 = vmatprep.subr.mxu0 0.0
        %7035 = vmatpush1.msra.mxu0 0.0
        %7036 = vmatprep.subr.mxu0 0.0
        %7037 = vmatpush1.msra.mxu0 0.0
        %7038 = vmatprep.subr.mxu0 0.0
        %7039 = vmatpush1.msra.mxu0 0.0
        %7040 = vmatprep.subr.mxu0 0.0
        %7041 = vmatpush1.msra.mxu0 0.0
        %7042 = vmatprep.subr.mxu0 0.0
        %7043 = vmatpush1.msra.mxu0 0.0
        %7044 = vmatprep.subr.mxu0 0.0
        %7045 = vmatpush1.msra.mxu0 0.0
        %7046 = vmatprep.subr.mxu0 0.0
        %7047 = vmatpush1.msra.mxu0 0.0
        %7048 = vmatprep.subr.mxu0 0.0
        %7049 = vmatpush1.msra.mxu0 0.0
        %7050 = vmatprep.subr.mxu0 0.0
        %7051 = vmatpush1.msra.mxu0 0.0
        %7052 = vmatprep.subr.mxu0 0.0
        %7053 = vmatpush1.msra.mxu0 0.0
        %7054 = vmatprep.subr.mxu0 0.0
        %7055 = vmatpush1.msra.mxu0 0.0
        %7056 = vmatprep.subr.mxu0 0.0
        %7057 = vmatpush1.msra.mxu0 0.0
        %7058 = vmatprep.subr.mxu0 0.0
        %7059 = vmatpush1.msra.mxu0 0.0
        %7060 = vmatprep.subr.mxu0 0.0
        %7061 = vmatpush1.msra.mxu0 0.0
        %7062 = vmatprep.subr.mxu0 0.0
        %7063 = vmatpush1.msra.mxu0 0.0
        %7064 = vmatprep.subr.mxu0 0.0
        %7065 = vmatpush1.msra.mxu0 0.0
        %7066 = vmatprep.subr.mxu0 0.0
        %7067 = vmatpush1.msra.mxu0 0.0
        %7068 = vmatprep.mubr.f32.mxu0 0.0
        %v7069 = vand.u32 %v6434, 4294901760
        %v7070 = vsub.f32 %v6434, %v7069
        %v7071 = vand.u32 %v7070, 4294901760
        %7072 = vmatmul.mubr.f32.gmra.mrb[0].mxu0 %v7071
        %v7073 = vpop.f32.mrb[0].mxu0
        %v7074 = vadd.f32 %v6928, %v7073
        %v7075 = vpop.f32.mrb[0].mxu0
        %v7076 = vadd.f32 %v6930, %v7075
        %7077 = vmatprep.mubr.f32.mxu0 0.0
        %v7078 = vand.u32 %v6437, 4294901760
        %v7079 = vsub.f32 %v6437, %v7078
        %v7080 = vand.u32 %v7079, 4294901760
        %7081 = vmatmul.mubr.f32.gmra.mrb[0].mxu0 %v7080
        %v7082 = vpop.f32.mrb[0].mxu0
        %v7083 = vadd.f32 %v6936, %v7082
        %v7084 = vpop.f32.mrb[0].mxu0
        %v7085 = vadd.f32 %v6938, %v7084
        %7086 = vmatprep.mubr.f32.mxu0 0.0
        %v7087 = vand.u32 %v6440, 4294901760
        %v7088 = vsub.f32 %v6440, %v7087
        %v7089 = vand.u32 %v7088, 4294901760
        %7090 = vmatmul.mubr.f32.gmra.mrb[0].mxu0 %v7089
        %v7091 = vpop.f32.mrb[0].mxu0
        %v7092 = vadd.f32 %v6944, %v7091
        %v7093 = vpop.f32.mrb[0].mxu0
        %v7094 = vadd.f32 %v6946, %v7093
        %7095 = vmatprep.mubr.f32.mxu0 0.0
        %v7096 = vand.u32 %v6443, 4294901760
        %v7097 = vsub.f32 %v6443, %v7096
        %v7098 = vand.u32 %v7097, 4294901760
        %7099 = vmatmul.mubr.f32.gmra.mrb[0].mxu0 %v7098
        %v7100 = vpop.f32.mrb[0].mxu0
        %v7101 = vadd.f32 %v6952, %v7100
        %v7102 = vpop.f32.mrb[0].mxu0
        %v7103 = vadd.f32 %v6954, %v7102
        %7104 = vmatprep.mubr.f32.mxu0 0.0
        %v7105 = vand.u32 %v6446, 4294901760
        %v7106 = vsub.f32 %v6446, %v7105
        %v7107 = vand.u32 %v7106, 4294901760
        %7108 = vmatmul.mubr.f32.gmra.mrb[0].mxu0 %v7107
        %v7109 = vpop.f32.mrb[0].mxu0
        %v7110 = vadd.f32 %v6960, %v7109
        %v7111 = vpop.f32.mrb[0].mxu0
        %v7112 = vadd.f32 %v6962, %v7111
        %7113 = vmatprep.mubr.f32.mxu0 0.0
        %v7114 = vand.u32 %v6449, 4294901760
        %v7115 = vsub.f32 %v6449, %v7114
        %v7116 = vand.u32 %v7115, 4294901760
        %7117 = vmatmul.mubr.f32.gmra.mrb[0].mxu0 %v7116
        %v7118 = vpop.f32.mrb[0].mxu0
        %v7119 = vadd.f32 %v6968, %v7118
        %v7120 = vpop.f32.mrb[0].mxu0
        %v7121 = vadd.f32 %v6970, %v7120
        %7122 = vmatprep.mubr.f32.mxu0 0.0
        %v7123 = vand.u32 %v6452, 4294901760
        %v7124 = vsub.f32 %v6452, %v7123
        %v7125 = vand.u32 %v7124, 4294901760
        %7126 = vmatmul.mubr.f32.gmra.mrb[0].mxu0 %v7125
        %v7127 = vpop.f32.mrb[0].mxu0
        %v7128 = vadd.f32 %v6976, %v7127
        %v7129 = vpop.f32.mrb[0].mxu0
        %v7130 = vadd.f32 %v6978, %v7129
        %7131 = vmatprep.mubr.f32.mxu0 0.0
        %v7132 = vand.u32 %v6455, 4294901760
        %v7133 = vsub.f32 %v6455, %v7132
        %v7134 = vand.u32 %v7133, 4294901760
        %7135 = vmatmul.mubr.f32.gmra.mrb[0].mxu0 %v7134
        %v7136 = vpop.f32.mrb[0].mxu0
        %v7137 = vadd.f32 %v6984, %v7136
        %v7138 = vpop.f32.mrb[0].mxu0
        %v7139 = vadd.f32 %v6986, %v7138
        %7140 = vdwg.mxu0
        %v7141 = vand.u32 %v6346, 4294901760
        %v7142 = vsub.f32 %v6346, %v7141
        %v7143 = vand.u32 %v7142, 4294901760
        %7144 = vmatprep.subr.mxu0 %v7143
        %v7145 = vand.u32 %v6345, 4294901760
        %v7146 = vsub.f32 %v6345, %v7145
        %v7147 = vand.u32 %v7146, 4294901760
        %7148 = vmatpush1.msra.mxu0 %v7147
        %v7149 = vand.u32 %v6350, 4294901760
        %v7150 = vsub.f32 %v6350, %v7149
        %v7151 = vand.u32 %v7150, 4294901760
        %7152 = vmatprep.subr.mxu0 %v7151
        %v7153 = vand.u32 %v6349, 4294901760
        %v7154 = vsub.f32 %v6349, %v7153
        %v7155 = vand.u32 %v7154, 4294901760
        %7156 = vmatpush1.msra.mxu0 %v7155
        %v7157 = vand.u32 %v6354, 4294901760
        %v7158 = vsub.f32 %v6354, %v7157
        %v7159 = vand.u32 %v7158, 4294901760
        %7160 = vmatprep.subr.mxu0 %v7159
        %v7161 = vand.u32 %v6353, 4294901760
        %v7162 = vsub.f32 %v6353, %v7161
        %v7163 = vand.u32 %v7162, 4294901760
        %7164 = vmatpush1.msra.mxu0 %v7163
        %v7165 = vand.u32 %v6358, 4294901760
        %v7166 = vsub.f32 %v6358, %v7165
        %v7167 = vand.u32 %v7166, 4294901760
        %7168 = vmatprep.subr.mxu0 %v7167
        %v7169 = vand.u32 %v6357, 4294901760
        %v7170 = vsub.f32 %v6357, %v7169
        %v7171 = vand.u32 %v7170, 4294901760
        %7172 = vmatpush1.msra.mxu0 %v7171
        %v7173 = vand.u32 %v6362, 4294901760
        %v7174 = vsub.f32 %v6362, %v7173
        %v7175 = vand.u32 %v7174, 4294901760
        %7176 = vmatprep.subr.mxu0 %v7175
        %v7177 = vand.u32 %v6361, 4294901760
        %v7178 = vsub.f32 %v6361, %v7177
        %v7179 = vand.u32 %v7178, 4294901760
        %7180 = vmatpush1.msra.mxu0 %v7179
        %v7181 = vand.u32 %v6366, 4294901760
        %v7182 = vsub.f32 %v6366, %v7181
        %v7183 = vand.u32 %v7182, 4294901760
        %7184 = vmatprep.subr.mxu0 %v7183
        %v7185 = vand.u32 %v6365, 4294901760
        %v7186 = vsub.f32 %v6365, %v7185
        %v7187 = vand.u32 %v7186, 4294901760
        %7188 = vmatpush1.msra.mxu0 %v7187
        %v7189 = vand.u32 %v6370, 4294901760
        %v7190 = vsub.f32 %v6370, %v7189
        %v7191 = vand.u32 %v7190, 4294901760
        %7192 = vmatprep.subr.mxu0 %v7191
        %v7193 = vand.u32 %v6369, 4294901760
        %v7194 = vsub.f32 %v6369, %v7193
        %v7195 = vand.u32 %v7194, 4294901760
        %7196 = vmatpush1.msra.mxu0 %v7195
        %v7197 = vand.u32 %v6374, 4294901760
        %v7198 = vsub.f32 %v6374, %v7197
        %v7199 = vand.u32 %v7198, 4294901760
        %7200 = vmatprep.subr.mxu0 %v7199
        %v7201 = vand.u32 %v6373, 4294901760
        %v7202 = vsub.f32 %v6373, %v7201
        %v7203 = vand.u32 %v7202, 4294901760
        %7204 = vmatpush1.msra.mxu0 %v7203
        %7205 = vmatprep.subr.mxu0 0.0
        %7206 = vmatpush1.msra.mxu0 0.0
        %7207 = vmatprep.subr.mxu0 0.0
        %7208 = vmatpush1.msra.mxu0 0.0
        %7209 = vmatprep.subr.mxu0 0.0
        %7210 = vmatpush1.msra.mxu0 0.0
        %7211 = vmatprep.subr.mxu0 0.0
        %7212 = vmatpush1.msra.mxu0 0.0
        %7213 = vmatprep.subr.mxu0 0.0
        %7214 = vmatpush1.msra.mxu0 0.0
        %7215 = vmatprep.subr.mxu0 0.0
        %7216 = vmatpush1.msra.mxu0 0.0
        %7217 = vmatprep.subr.mxu0 0.0
        %7218 = vmatpush1.msra.mxu0 0.0
        %7219 = vmatprep.subr.mxu0 0.0
        %7220 = vmatpush1.msra.mxu0 0.0
        %7221 = vmatprep.subr.mxu0 0.0
        %7222 = vmatpush1.msra.mxu0 0.0
        %7223 = vmatprep.subr.mxu0 0.0
        %7224 = vmatpush1.msra.mxu0 0.0
        %7225 = vmatprep.subr.mxu0 0.0
        %7226 = vmatpush1.msra.mxu0 0.0
        %7227 = vmatprep.subr.mxu0 0.0
        %7228 = vmatpush1.msra.mxu0 0.0
        %7229 = vmatprep.subr.mxu0 0.0
        %7230 = vmatpush1.msra.mxu0 0.0
        %7231 = vmatprep.subr.mxu0 0.0
        %7232 = vmatpush1.msra.mxu0 0.0
        %7233 = vmatprep.subr.mxu0 0.0
        %7234 = vmatpush1.msra.mxu0 0.0
        %7235 = vmatprep.subr.mxu0 0.0
        %7236 = vmatpush1.msra.mxu0 0.0
        %7237 = vmatprep.subr.mxu0 0.0
        %7238 = vmatpush1.msra.mxu0 0.0
        %7239 = vmatprep.subr.mxu0 0.0
        %7240 = vmatpush1.msra.mxu0 0.0
        %7241 = vmatprep.subr.mxu0 0.0
        %7242 = vmatpush1.msra.mxu0 0.0
        %7243 = vmatprep.subr.mxu0 0.0
        %7244 = vmatpush1.msra.mxu0 0.0
        %7245 = vmatprep.subr.mxu0 0.0
        %7246 = vmatpush1.msra.mxu0 0.0
        %7247 = vmatprep.subr.mxu0 0.0
        %7248 = vmatpush1.msra.mxu0 0.0
        %7249 = vmatprep.subr.mxu0 0.0
        %7250 = vmatpush1.msra.mxu0 0.0
        %7251 = vmatprep.subr.mxu0 0.0
        %7252 = vmatpush1.msra.mxu0 0.0
        %7253 = vmatprep.mubr.f32.mxu0 0.0
        %v7254 = vand.u32 %v6434, 4294901760
        %7255 = vmatmul.mubr.f32.gmra.mrb[0].mxu0 %v7254
        %v7256 = vpop.f32.mrb[0].mxu0
        %v7257 = vadd.f32 %v7074, %v7256
        %v7258 = vpop.f32.mrb[0].mxu0
        %v7259 = vadd.f32 %v7076, %v7258
        %7260 = vmatprep.mubr.f32.mxu0 0.0
        %v7261 = vand.u32 %v6437, 4294901760
        %7262 = vmatmul.mubr.f32.gmra.mrb[0].mxu0 %v7261
        %v7263 = vpop.f32.mrb[0].mxu0
        %v7264 = vadd.f32 %v7083, %v7263
        %v7265 = vpop.f32.mrb[0].mxu0
        %v7266 = vadd.f32 %v7085, %v7265
        %7267 = vmatprep.mubr.f32.mxu0 0.0
        %v7268 = vand.u32 %v6440, 4294901760
        %7269 = vmatmul.mubr.f32.gmra.mrb[0].mxu0 %v7268
        %v7270 = vpop.f32.mrb[0].mxu0
        %v7271 = vadd.f32 %v7092, %v7270
        %v7272 = vpop.f32.mrb[0].mxu0
        %v7273 = vadd.f32 %v7094, %v7272
        %7274 = vmatprep.mubr.f32.mxu0 0.0
        %v7275 = vand.u32 %v6443, 4294901760
        %7276 = vmatmul.mubr.f32.gmra.mrb[0].mxu0 %v7275
        %v7277 = vpop.f32.mrb[0].mxu0
        %v7278 = vadd.f32 %v7101, %v7277
        %v7279 = vpop.f32.mrb[0].mxu0
        %v7280 = vadd.f32 %v7103, %v7279
        %7281 = vmatprep.mubr.f32.mxu0 0.0
        %v7282 = vand.u32 %v6446, 4294901760
        %7283 = vmatmul.mubr.f32.gmra.mrb[0].mxu0 %v7282
        %v7284 = vpop.f32.mrb[0].mxu0
        %v7285 = vadd.f32 %v7110, %v7284
        %v7286 = vpop.f32.mrb[0].mxu0
        %v7287 = vadd.f32 %v7112, %v7286
        %7288 = vmatprep.mubr.f32.mxu0 0.0
        %v7289 = vand.u32 %v6449, 4294901760
        %7290 = vmatmul.mubr.f32.gmra.mrb[0].mxu0 %v7289
        %v7291 = vpop.f32.mrb[0].mxu0
        %v7292 = vadd.f32 %v7119, %v7291
        %v7293 = vpop.f32.mrb[0].mxu0
        %v7294 = vadd.f32 %v7121, %v7293
        %7295 = vmatprep.mubr.f32.mxu0 0.0
        %v7296 = vand.u32 %v6452, 4294901760
        %7297 = vmatmul.mubr.f32.gmra.mrb[0].mxu0 %v7296
        %v7298 = vpop.f32.mrb[0].mxu0
        %v7299 = vadd.f32 %v7128, %v7298
        %v7300 = vpop.f32.mrb[0].mxu0
        %v7301 = vadd.f32 %v7130, %v7300
        %7302 = vmatprep.mubr.f32.mxu0 0.0
        %v7303 = vand.u32 %v6455, 4294901760
        %7304 = vmatmul.mubr.f32.gmra.mrb[0].mxu0 %v7303
        %v7305 = vpop.f32.mrb[0].mxu0
        %v7306 = vadd.f32 %v7137, %v7305
        %v7307 = vpop.f32.mrb[0].mxu0
        %v7308 = vadd.f32 %v7139, %v7307
        %7309 = vdwg.mxu0
        %v7310 = vand.u32 %v6346, 4294901760
        %7311 = vmatprep.subr.mxu0 %v7310
        %v7312 = vand.u32 %v6345, 4294901760
        %7313 = vmatpush1.msra.mxu0 %v7312
        %v7314 = vand.u32 %v6350, 4294901760
        %7315 = vmatprep.subr.mxu0 %v7314
        %v7316 = vand.u32 %v6349, 4294901760
        %7317 = vmatpush1.msra.mxu0 %v7316
        %v7318 = vand.u32 %v6354, 4294901760
        %7319 = vmatprep.subr.mxu0 %v7318
        %v7320 = vand.u32 %v6353, 4294901760
        %7321 = vmatpush1.msra.mxu0 %v7320
        %v7322 = vand.u32 %v6358, 4294901760
        %7323 = vmatprep.subr.mxu0 %v7322
        %v7324 = vand.u32 %v6357, 4294901760
        %7325 = vmatpush1.msra.mxu0 %v7324
        %v7326 = vand.u32 %v6362, 4294901760
        %7327 = vmatprep.subr.mxu0 %v7326
        %v7328 = vand.u32 %v6361, 4294901760
        %7329 = vmatpush1.msra.mxu0 %v7328
        %v7330 = vand.u32 %v6366, 4294901760
        %7331 = vmatprep.subr.mxu0 %v7330
        %v7332 = vand.u32 %v6365, 4294901760
        %7333 = vmatpush1.msra.mxu0 %v7332
        %v7334 = vand.u32 %v6370, 4294901760
        %7335 = vmatprep.subr.mxu0 %v7334
        %v7336 = vand.u32 %v6369, 4294901760
        %7337 = vmatpush1.msra.mxu0 %v7336
        %v7338 = vand.u32 %v6374, 4294901760
        %7339 = vmatprep.subr.mxu0 %v7338
        %v7340 = vand.u32 %v6373, 4294901760
        %7341 = vmatpush1.msra.mxu0 %v7340
        %7342 = vmatprep.subr.mxu0 0.0
        %7343 = vmatpush1.msra.mxu0 0.0
        %7344 = vmatprep.subr.mxu0 0.0
        %7345 = vmatpush1.msra.mxu0 0.0
        %7346 = vmatprep.subr.mxu0 0.0
        %7347 = vmatpush1.msra.mxu0 0.0
        %7348 = vmatprep.subr.mxu0 0.0
        %7349 = vmatpush1.msra.mxu0 0.0
        %7350 = vmatprep.subr.mxu0 0.0
        %7351 = vmatpush1.msra.mxu0 0.0
        %7352 = vmatprep.subr.mxu0 0.0
        %7353 = vmatpush1.msra.mxu0 0.0
        %7354 = vmatprep.subr.mxu0 0.0
        %7355 = vmatpush1.msra.mxu0 0.0
        %7356 = vmatprep.subr.mxu0 0.0
        %7357 = vmatpush1.msra.mxu0 0.0
        %7358 = vmatprep.subr.mxu0 0.0
        %7359 = vmatpush1.msra.mxu0 0.0
        %7360 = vmatprep.subr.mxu0 0.0
        %7361 = vmatpush1.msra.mxu0 0.0
        %7362 = vmatprep.subr.mxu0 0.0
        %7363 = vmatpush1.msra.mxu0 0.0
        %7364 = vmatprep.subr.mxu0 0.0
        %7365 = vmatpush1.msra.mxu0 0.0
        %7366 = vmatprep.subr.mxu0 0.0
        %7367 = vmatpush1.msra.mxu0 0.0
        %7368 = vmatprep.subr.mxu0 0.0
        %7369 = vmatpush1.msra.mxu0 0.0
        %7370 = vmatprep.subr.mxu0 0.0
        %7371 = vmatpush1.msra.mxu0 0.0
        %7372 = vmatprep.subr.mxu0 0.0
        %7373 = vmatpush1.msra.mxu0 0.0
        %7374 = vmatprep.subr.mxu0 0.0
        %7375 = vmatpush1.msra.mxu0 0.0
        %7376 = vmatprep.subr.mxu0 0.0
        %7377 = vmatpush1.msra.mxu0 0.0
        %7378 = vmatprep.subr.mxu0 0.0
        %7379 = vmatpush1.msra.mxu0 0.0
        %7380 = vmatprep.subr.mxu0 0.0
        %7381 = vmatpush1.msra.mxu0 0.0
        %7382 = vmatprep.subr.mxu0 0.0
        %7383 = vmatpush1.msra.mxu0 0.0
        %7384 = vmatprep.subr.mxu0 0.0
        %7385 = vmatpush1.msra.mxu0 0.0
        %7386 = vmatprep.subr.mxu0 0.0
        %7387 = vmatpush1.msra.mxu0 0.0
        %7388 = vmatprep.subr.mxu0 0.0
        %7389 = vmatpush1.msra.mxu0 0.0
        %7390 = vmatprep.mubr.f32.mxu0 0.0
        %v7391 = vand.u32 %v6434, 4294901760
        %7392 = vmatmul.mubr.f32.gmra.mrb[0].mxu0 %v7391
        %v7393 = vpop.f32.mrb[0].mxu0
        %v7394 = vadd.f32 %v7257, %v7393
        %v7395 = vpop.f32.mrb[0].mxu0
        %v7396 = vadd.f32 %v7259, %v7395
        %7397 = vmatprep.mubr.f32.mxu0 0.0
        %v7398 = vand.u32 %v6437, 4294901760
        %7399 = vmatmul.mubr.f32.gmra.mrb[0].mxu0 %v7398
        %v7400 = vpop.f32.mrb[0].mxu0
        %v7401 = vadd.f32 %v7264, %v7400
        %v7402 = vpop.f32.mrb[0].mxu0
        %v7403 = vadd.f32 %v7266, %v7402
        %7404 = vmatprep.mubr.f32.mxu0 0.0
        %v7405 = vand.u32 %v6440, 4294901760
        %7406 = vmatmul.mubr.f32.gmra.mrb[0].mxu0 %v7405
        %v7407 = vpop.f32.mrb[0].mxu0
        %v7408 = vadd.f32 %v7271, %v7407
        %v7409 = vpop.f32.mrb[0].mxu0
        %v7410 = vadd.f32 %v7273, %v7409
        %7411 = vmatprep.mubr.f32.mxu0 0.0
        %v7412 = vand.u32 %v6443, 4294901760
        %7413 = vmatmul.mubr.f32.gmra.mrb[0].mxu0 %v7412
        %v7414 = vpop.f32.mrb[0].mxu0
        %v7415 = vadd.f32 %v7278, %v7414
        %v7416 = vpop.f32.mrb[0].mxu0
        %v7417 = vadd.f32 %v7280, %v7416
        %7418 = vmatprep.mubr.f32.mxu0 0.0
        %v7419 = vand.u32 %v6446, 4294901760
        %7420 = vmatmul.mubr.f32.gmra.mrb[0].mxu0 %v7419
        %v7421 = vpop.f32.mrb[0].mxu0
        %v7422 = vadd.f32 %v7285, %v7421
        %v7423 = vpop.f32.mrb[0].mxu0
        %v7424 = vadd.f32 %v7287, %v7423
        %7425 = vmatprep.mubr.f32.mxu0 0.0
        %v7426 = vand.u32 %v6449, 4294901760
        %7427 = vmatmul.mubr.f32.gmra.mrb[0].mxu0 %v7426
        %v7428 = vpop.f32.mrb[0].mxu0
        %v7429 = vadd.f32 %v7292, %v7428
        %v7430 = vpop.f32.mrb[0].mxu0
        %v7431 = vadd.f32 %v7294, %v7430
        %7432 = vmatprep.mubr.f32.mxu0 0.0
        %v7433 = vand.u32 %v6452, 4294901760
        %7434 = vmatmul.mubr.f32.gmra.mrb[0].mxu0 %v7433
        %v7435 = vpop.f32.mrb[0].mxu0
        %v7436 = vadd.f32 %v7299, %v7435
        %v7437 = vpop.f32.mrb[0].mxu0
        %v7438 = vadd.f32 %v7301, %v7437
        %7439 = vmatprep.mubr.f32.mxu0 0.0
        %v7440 = vand.u32 %v6455, 4294901760
        %7441 = vmatmul.mubr.f32.gmra.mrb[0].mxu0 %v7440
        %v7442 = vpop.f32.mrb[0].mxu0
        %v7443 = vadd.f32 %v7306, %v7442
        %v7444 = vpop.f32.mrb[0].mxu0
        %v7445 = vadd.f32 %v7308, %v7444
        %7446 = vdwg.mxu0
        %v7447 = vand.u32 %v6348, 4294901760
        %7448 = vmatprep.subr.mxu0 %v7447
        %v7449 = vand.u32 %v6347, 4294901760
        %7450 = vmatpush1.msra.mxu0 %v7449
        %v7451 = vand.u32 %v6352, 4294901760
        %7452 = vmatprep.subr.mxu0 %v7451
        %v7453 = vand.u32 %v6351, 4294901760
        %7454 = vmatpush1.msra.mxu0 %v7453
        %v7455 = vand.u32 %v6356, 4294901760
        %7456 = vmatprep.subr.mxu0 %v7455
        %v7457 = vand.u32 %v6355, 4294901760
        %7458 = vmatpush1.msra.mxu0 %v7457
        %v7459 = vand.u32 %v6360, 4294901760
        %7460 = vmatprep.subr.mxu0 %v7459
        %v7461 = vand.u32 %v6359, 4294901760
        %7462 = vmatpush1.msra.mxu0 %v7461
        %v7463 = vand.u32 %v6364, 4294901760
        %7464 = vmatprep.subr.mxu0 %v7463
        %v7465 = vand.u32 %v6363, 4294901760
        %7466 = vmatpush1.msra.mxu0 %v7465
        %v7467 = vand.u32 %v6368, 4294901760
        %7468 = vmatprep.subr.mxu0 %v7467
        %v7469 = vand.u32 %v6367, 4294901760
        %7470 = vmatpush1.msra.mxu0 %v7469
        %v7471 = vand.u32 %v6372, 4294901760
        %7472 = vmatprep.subr.mxu0 %v7471
        %v7473 = vand.u32 %v6371, 4294901760
        %7474 = vmatpush1.msra.mxu0 %v7473
        %v7475 = vand.u32 %v6376, 4294901760
        %7476 = vmatprep.subr.mxu0 %v7475
        %v7477 = vand.u32 %v6375, 4294901760
        %7478 = vmatpush1.msra.mxu0 %v7477
        %7479 = vmatprep.subr.mxu0 0.0
        %7480 = vmatpush1.msra.mxu0 0.0
        %7481 = vmatprep.subr.mxu0 0.0
        %7482 = vmatpush1.msra.mxu0 0.0
        %7483 = vmatprep.subr.mxu0 0.0
        %7484 = vmatpush1.msra.mxu0 0.0
        %7485 = vmatprep.subr.mxu0 0.0
        %7486 = vmatpush1.msra.mxu0 0.0
        %7487 = vmatprep.subr.mxu0 0.0
        %7488 = vmatpush1.msra.mxu0 0.0
        %7489 = vmatprep.subr.mxu0 0.0
        %7490 = vmatpush1.msra.mxu0 0.0
        %7491 = vmatprep.subr.mxu0 0.0
        %7492 = vmatpush1.msra.mxu0 0.0
        %7493 = vmatprep.subr.mxu0 0.0
        %7494 = vmatpush1.msra.mxu0 0.0
        %7495 = vmatprep.subr.mxu0 0.0
        %7496 = vmatpush1.msra.mxu0 0.0
        %7497 = vmatprep.subr.mxu0 0.0
        %7498 = vmatpush1.msra.mxu0 0.0
        %7499 = vmatprep.subr.mxu0 0.0
        %7500 = vmatpush1.msra.mxu0 0.0
        %7501 = vmatprep.subr.mxu0 0.0
        %7502 = vmatpush1.msra.mxu0 0.0
        %7503 = vmatprep.subr.mxu0 0.0
        %7504 = vmatpush1.msra.mxu0 0.0
        %7505 = vmatprep.subr.mxu0 0.0
        %7506 = vmatpush1.msra.mxu0 0.0
        %7507 = vmatprep.subr.mxu0 0.0
        %7508 = vmatpush1.msra.mxu0 0.0
        %7509 = vmatprep.subr.mxu0 0.0
        %7510 = vmatpush1.msra.mxu0 0.0
        %7511 = vmatprep.subr.mxu0 0.0
        %7512 = vmatpush1.msra.mxu0 0.0
        %7513 = vmatprep.subr.mxu0 0.0
        %7514 = vmatpush1.msra.mxu0 0.0
        %7515 = vmatprep.subr.mxu0 0.0
        %7516 = vmatpush1.msra.mxu0 0.0
        %7517 = vmatprep.subr.mxu0 0.0
        %7518 = vmatpush1.msra.mxu0 0.0
        %7519 = vmatprep.subr.mxu0 0.0
        %7520 = vmatpush1.msra.mxu0 0.0
        %7521 = vmatprep.subr.mxu0 0.0
        %7522 = vmatpush1.msra.mxu0 0.0
        %7523 = vmatprep.subr.mxu0 0.0
        %7524 = vmatpush1.msra.mxu0 0.0
        %7525 = vmatprep.subr.mxu0 0.0
        %7526 = vmatpush1.msra.mxu0 0.0
        %7527 = vmatprep.mubr.f32.mxu0 0.0
        %v7528 = vand.u32 %v6434, 4294901760
        %v7529 = vsub.f32 %v6434, %v7528
        %v7530 = vand.u32 %v7529, 4294901760
        %v7531 = vsub.f32 %v7529, %v7530
        %v7532 = vand.u32 %v7531, 4294901760
        %7533 = vmatmul.mubr.f32.gmra.mrb[0].mxu0 %v7532
        %v7534 = vpop.f32.mrb[0].mxu0
        %v7535 = vadd.f32 %v6396, %v7534
        %v7536 = vpop.f32.mrb[0].mxu0
        %v7537 = vadd.f32 %v6396, %v7536
        %7538 = vmatprep.mubr.f32.mxu0 0.0
        %v7539 = vand.u32 %v6437, 4294901760
        %v7540 = vsub.f32 %v6437, %v7539
        %v7541 = vand.u32 %v7540, 4294901760
        %v7542 = vsub.f32 %v7540, %v7541
        %v7543 = vand.u32 %v7542, 4294901760
        %7544 = vmatmul.mubr.f32.gmra.mrb[0].mxu0 %v7543
        %v7545 = vpop.f32.mrb[0].mxu0
        %v7546 = vadd.f32 %v6401, %v7545
        %v7547 = vpop.f32.mrb[0].mxu0
        %v7548 = vadd.f32 %v6401, %v7547
        %7549 = vmatprep.mubr.f32.mxu0 0.0
        %v7550 = vand.u32 %v6440, 4294901760
        %v7551 = vsub.f32 %v6440, %v7550
        %v7552 = vand.u32 %v7551, 4294901760
        %v7553 = vsub.f32 %v7551, %v7552
        %v7554 = vand.u32 %v7553, 4294901760
        %7555 = vmatmul.mubr.f32.gmra.mrb[0].mxu0 %v7554
        %v7556 = vpop.f32.mrb[0].mxu0
        %v7557 = vadd.f32 %v6406, %v7556
        %v7558 = vpop.f32.mrb[0].mxu0
        %v7559 = vadd.f32 %v6406, %v7558
        %7560 = vmatprep.mubr.f32.mxu0 0.0
        %v7561 = vand.u32 %v6443, 4294901760
        %v7562 = vsub.f32 %v6443, %v7561
        %v7563 = vand.u32 %v7562, 4294901760
        %v7564 = vsub.f32 %v7562, %v7563
        %v7565 = vand.u32 %v7564, 4294901760
        %7566 = vmatmul.mubr.f32.gmra.mrb[0].mxu0 %v7565
        %v7567 = vpop.f32.mrb[0].mxu0
        %v7568 = vadd.f32 %v6411, %v7567
        %v7569 = vpop.f32.mrb[0].mxu0
        %v7570 = vadd.f32 %v6411, %v7569
        %7571 = vmatprep.mubr.f32.mxu0 0.0
        %v7572 = vand.u32 %v6446, 4294901760
        %v7573 = vsub.f32 %v6446, %v7572
        %v7574 = vand.u32 %v7573, 4294901760
        %v7575 = vsub.f32 %v7573, %v7574
        %v7576 = vand.u32 %v7575, 4294901760
        %7577 = vmatmul.mubr.f32.gmra.mrb[0].mxu0 %v7576
        %v7578 = vpop.f32.mrb[0].mxu0
        %v7579 = vadd.f32 %v6416, %v7578
        %v7580 = vpop.f32.mrb[0].mxu0
        %v7581 = vadd.f32 %v6416, %v7580
        %7582 = vmatprep.mubr.f32.mxu0 0.0
        %v7583 = vand.u32 %v6449, 4294901760
        %v7584 = vsub.f32 %v6449, %v7583
        %v7585 = vand.u32 %v7584, 4294901760
        %v7586 = vsub.f32 %v7584, %v7585
        %v7587 = vand.u32 %v7586, 4294901760
        %7588 = vmatmul.mubr.f32.gmra.mrb[0].mxu0 %v7587
        %v7589 = vpop.f32.mrb[0].mxu0
        %v7590 = vadd.f32 %v6421, %v7589
        %v7591 = vpop.f32.mrb[0].mxu0
        %v7592 = vadd.f32 %v6421, %v7591
        %7593 = vmatprep.mubr.f32.mxu0 0.0
        %v7594 = vand.u32 %v6452, 4294901760
        %v7595 = vsub.f32 %v6452, %v7594
        %v7596 = vand.u32 %v7595, 4294901760
        %v7597 = vsub.f32 %v7595, %v7596
        %v7598 = vand.u32 %v7597, 4294901760
        %7599 = vmatmul.mubr.f32.gmra.mrb[0].mxu0 %v7598
        %v7600 = vpop.f32.mrb[0].mxu0
        %v7601 = vadd.f32 %v6426, %v7600
        %v7602 = vpop.f32.mrb[0].mxu0
        %v7603 = vadd.f32 %v6426, %v7602
        %7604 = vmatprep.mubr.f32.mxu0 0.0
        %v7605 = vand.u32 %v6455, 4294901760
        %v7606 = vsub.f32 %v6455, %v7605
        %v7607 = vand.u32 %v7606, 4294901760
        %v7608 = vsub.f32 %v7606, %v7607
        %v7609 = vand.u32 %v7608, 4294901760
        %7610 = vmatmul.mubr.f32.gmra.mrb[0].mxu0 %v7609
        %v7611 = vpop.f32.mrb[0].mxu0
        %v7612 = vadd.f32 %v6431, %v7611
        %v7613 = vpop.f32.mrb[0].mxu0
        %v7614 = vadd.f32 %v6431, %v7613
        %7615 = vdwg.mxu0
        %v7616 = vand.u32 %v6348, 4294901760
        %v7617 = vsub.f32 %v6348, %v7616
        %v7618 = vand.u32 %v7617, 4294901760
        %v7619 = vsub.f32 %v7617, %v7618
        %v7620 = vand.u32 %v7619, 4294901760
        %7621 = vmatprep.subr.mxu0 %v7620
        %v7622 = vand.u32 %v6347, 4294901760
        %v7623 = vsub.f32 %v6347, %v7622
        %v7624 = vand.u32 %v7623, 4294901760
        %v7625 = vsub.f32 %v7623, %v7624
        %v7626 = vand.u32 %v7625, 4294901760
        %7627 = vmatpush1.msra.mxu0 %v7626
        %v7628 = vand.u32 %v6352, 4294901760
        %v7629 = vsub.f32 %v6352, %v7628
        %v7630 = vand.u32 %v7629, 4294901760
        %v7631 = vsub.f32 %v7629, %v7630
        %v7632 = vand.u32 %v7631, 4294901760
        %7633 = vmatprep.subr.mxu0 %v7632
        %v7634 = vand.u32 %v6351, 4294901760
        %v7635 = vsub.f32 %v6351, %v7634
        %v7636 = vand.u32 %v7635, 4294901760
        %v7637 = vsub.f32 %v7635, %v7636
        %v7638 = vand.u32 %v7637, 4294901760
        %7639 = vmatpush1.msra.mxu0 %v7638
        %v7640 = vand.u32 %v6356, 4294901760
        %v7641 = vsub.f32 %v6356, %v7640
        %v7642 = vand.u32 %v7641, 4294901760
        %v7643 = vsub.f32 %v7641, %v7642
        %v7644 = vand.u32 %v7643, 4294901760
        %7645 = vmatprep.subr.mxu0 %v7644
        %v7646 = vand.u32 %v6355, 4294901760
        %v7647 = vsub.f32 %v6355, %v7646
        %v7648 = vand.u32 %v7647, 4294901760
        %v7649 = vsub.f32 %v7647, %v7648
        %v7650 = vand.u32 %v7649, 4294901760
        %7651 = vmatpush1.msra.mxu0 %v7650
        %v7652 = vand.u32 %v6360, 4294901760
        %v7653 = vsub.f32 %v6360, %v7652
        %v7654 = vand.u32 %v7653, 4294901760
        %v7655 = vsub.f32 %v7653, %v7654
        %v7656 = vand.u32 %v7655, 4294901760
        %7657 = vmatprep.subr.mxu0 %v7656
        %v7658 = vand.u32 %v6359, 4294901760
        %v7659 = vsub.f32 %v6359, %v7658
        %v7660 = vand.u32 %v7659, 4294901760
        %v7661 = vsub.f32 %v7659, %v7660
        %v7662 = vand.u32 %v7661, 4294901760
        %7663 = vmatpush1.msra.mxu0 %v7662
        %v7664 = vand.u32 %v6364, 4294901760
        %v7665 = vsub.f32 %v6364, %v7664
        %v7666 = vand.u32 %v7665, 4294901760
        %v7667 = vsub.f32 %v7665, %v7666
        %v7668 = vand.u32 %v7667, 4294901760
        %7669 = vmatprep.subr.mxu0 %v7668
        %v7670 = vand.u32 %v6363, 4294901760
        %v7671 = vsub.f32 %v6363, %v7670
        %v7672 = vand.u32 %v7671, 4294901760
        %v7673 = vsub.f32 %v7671, %v7672
        %v7674 = vand.u32 %v7673, 4294901760
        %7675 = vmatpush1.msra.mxu0 %v7674
        %v7676 = vand.u32 %v6368, 4294901760
        %v7677 = vsub.f32 %v6368, %v7676
        %v7678 = vand.u32 %v7677, 4294901760
        %v7679 = vsub.f32 %v7677, %v7678
        %v7680 = vand.u32 %v7679, 4294901760
        %7681 = vmatprep.subr.mxu0 %v7680
        %v7682 = vand.u32 %v6367, 4294901760
        %v7683 = vsub.f32 %v6367, %v7682
        %v7684 = vand.u32 %v7683, 4294901760
        %v7685 = vsub.f32 %v7683, %v7684
        %v7686 = vand.u32 %v7685, 4294901760
        %7687 = vmatpush1.msra.mxu0 %v7686
        %v7688 = vand.u32 %v6372, 4294901760
        %v7689 = vsub.f32 %v6372, %v7688
        %v7690 = vand.u32 %v7689, 4294901760
        %v7691 = vsub.f32 %v7689, %v7690
        %v7692 = vand.u32 %v7691, 4294901760
        %7693 = vmatprep.subr.mxu0 %v7692
        %v7694 = vand.u32 %v6371, 4294901760
        %v7695 = vsub.f32 %v6371, %v7694
        %v7696 = vand.u32 %v7695, 4294901760
        %v7697 = vsub.f32 %v7695, %v7696
        %v7698 = vand.u32 %v7697, 4294901760
        %7699 = vmatpush1.msra.mxu0 %v7698
        %v7700 = vand.u32 %v6376, 4294901760
        %v7701 = vsub.f32 %v6376, %v7700
        %v7702 = vand.u32 %v7701, 4294901760
        %v7703 = vsub.f32 %v7701, %v7702
        %v7704 = vand.u32 %v7703, 4294901760
        %7705 = vmatprep.subr.mxu0 %v7704
        %v7706 = vand.u32 %v6375, 4294901760
        %v7707 = vsub.f32 %v6375, %v7706
        %v7708 = vand.u32 %v7707, 4294901760
        %v7709 = vsub.f32 %v7707, %v7708
        %v7710 = vand.u32 %v7709, 4294901760
        %7711 = vmatpush1.msra.mxu0 %v7710
        %7712 = vmatprep.subr.mxu0 0.0
        %7713 = vmatpush1.msra.mxu0 0.0
        %7714 = vmatprep.subr.mxu0 0.0
        %7715 = vmatpush1.msra.mxu0 0.0
        %7716 = vmatprep.subr.mxu0 0.0
        %7717 = vmatpush1.msra.mxu0 0.0
        %7718 = vmatprep.subr.mxu0 0.0
        %7719 = vmatpush1.msra.mxu0 0.0
        %7720 = vmatprep.subr.mxu0 0.0
        %7721 = vmatpush1.msra.mxu0 0.0
        %7722 = vmatprep.subr.mxu0 0.0
        %7723 = vmatpush1.msra.mxu0 0.0
        %7724 = vmatprep.subr.mxu0 0.0
        %7725 = vmatpush1.msra.mxu0 0.0
        %7726 = vmatprep.subr.mxu0 0.0
        %7727 = vmatpush1.msra.mxu0 0.0
        %7728 = vmatprep.subr.mxu0 0.0
        %7729 = vmatpush1.msra.mxu0 0.0
        %7730 = vmatprep.subr.mxu0 0.0
        %7731 = vmatpush1.msra.mxu0 0.0
        %7732 = vmatprep.subr.mxu0 0.0
        %7733 = vmatpush1.msra.mxu0 0.0
        %7734 = vmatprep.subr.mxu0 0.0
        %7735 = vmatpush1.msra.mxu0 0.0
        %7736 = vmatprep.subr.mxu0 0.0
        %7737 = vmatpush1.msra.mxu0 0.0
        %7738 = vmatprep.subr.mxu0 0.0
        %7739 = vmatpush1.msra.mxu0 0.0
        %7740 = vmatprep.subr.mxu0 0.0
        %7741 = vmatpush1.msra.mxu0 0.0
        %7742 = vmatprep.subr.mxu0 0.0
        %7743 = vmatpush1.msra.mxu0 0.0
        %7744 = vmatprep.subr.mxu0 0.0
        %7745 = vmatpush1.msra.mxu0 0.0
        %7746 = vmatprep.subr.mxu0 0.0
        %7747 = vmatpush1.msra.mxu0 0.0
        %7748 = vmatprep.subr.mxu0 0.0
        %7749 = vmatpush1.msra.mxu0 0.0
        %7750 = vmatprep.subr.mxu0 0.0
        %7751 = vmatpush1.msra.mxu0 0.0
        %7752 = vmatprep.subr.mxu0 0.0
        %7753 = vmatpush1.msra.mxu0 0.0
        %7754 = vmatprep.subr.mxu0 0.0
        %7755 = vmatpush1.msra.mxu0 0.0
        %7756 = vmatprep.subr.mxu0 0.0
        %7757 = vmatpush1.msra.mxu0 0.0
        %7758 = vmatprep.subr.mxu0 0.0
        %7759 = vmatpush1.msra.mxu0 0.0
        %7760 = vmatprep.mubr.f32.mxu0 0.0
        %v7761 = vand.u32 %v6434, 4294901760
        %7762 = vmatmul.mubr.f32.gmra.mrb[0].mxu0 %v7761
        %v7763 = vpop.f32.mrb[0].mxu0
        %v7764 = vadd.f32 %v7535, %v7763
        %v7765 = vpop.f32.mrb[0].mxu0
        %v7766 = vadd.f32 %v7537, %v7765
        %7767 = vmatprep.mubr.f32.mxu0 0.0
        %v7768 = vand.u32 %v6437, 4294901760
        %7769 = vmatmul.mubr.f32.gmra.mrb[0].mxu0 %v7768
        %v7770 = vpop.f32.mrb[0].mxu0
        %v7771 = vadd.f32 %v7546, %v7770
        %v7772 = vpop.f32.mrb[0].mxu0
        %v7773 = vadd.f32 %v7548, %v7772
        %7774 = vmatprep.mubr.f32.mxu0 0.0
        %v7775 = vand.u32 %v6440, 4294901760
        %7776 = vmatmul.mubr.f32.gmra.mrb[0].mxu0 %v7775
        %v7777 = vpop.f32.mrb[0].mxu0
        %v7778 = vadd.f32 %v7557, %v7777
        %v7779 = vpop.f32.mrb[0].mxu0
        %v7780 = vadd.f32 %v7559, %v7779
        %7781 = vmatprep.mubr.f32.mxu0 0.0
        %v7782 = vand.u32 %v6443, 4294901760
        %7783 = vmatmul.mubr.f32.gmra.mrb[0].mxu0 %v7782
        %v7784 = vpop.f32.mrb[0].mxu0
        %v7785 = vadd.f32 %v7568, %v7784
        %v7786 = vpop.f32.mrb[0].mxu0
        %v7787 = vadd.f32 %v7570, %v7786
        %7788 = vmatprep.mubr.f32.mxu0 0.0
        %v7789 = vand.u32 %v6446, 4294901760
        %7790 = vmatmul.mubr.f32.gmra.mrb[0].mxu0 %v7789
        %v7791 = vpop.f32.mrb[0].mxu0
        %v7792 = vadd.f32 %v7579, %v7791
        %v7793 = vpop.f32.mrb[0].mxu0
        %v7794 = vadd.f32 %v7581, %v7793
        %7795 = vmatprep.mubr.f32.mxu0 0.0
        %v7796 = vand.u32 %v6449, 4294901760
        %7797 = vmatmul.mubr.f32.gmra.mrb[0].mxu0 %v7796
        %v7798 = vpop.f32.mrb[0].mxu0
        %v7799 = vadd.f32 %v7590, %v7798
        %v7800 = vpop.f32.mrb[0].mxu0
        %v7801 = vadd.f32 %v7592, %v7800
        %7802 = vmatprep.mubr.f32.mxu0 0.0
        %v7803 = vand.u32 %v6452, 4294901760
        %7804 = vmatmul.mubr.f32.gmra.mrb[0].mxu0 %v7803
        %v7805 = vpop.f32.mrb[0].mxu0
        %v7806 = vadd.f32 %v7601, %v7805
        %v7807 = vpop.f32.mrb[0].mxu0
        %v7808 = vadd.f32 %v7603, %v7807
        %7809 = vmatprep.mubr.f32.mxu0 0.0
        %v7810 = vand.u32 %v6455, 4294901760
        %7811 = vmatmul.mubr.f32.gmra.mrb[0].mxu0 %v7810
        %v7812 = vpop.f32.mrb[0].mxu0
        %v7813 = vadd.f32 %v7612, %v7812
        %v7814 = vpop.f32.mrb[0].mxu0
        %v7815 = vadd.f32 %v7614, %v7814
        %7816 = vdwg.mxu0
        %v7817 = vand.u32 %v6348, 4294901760
        %v7818 = vsub.f32 %v6348, %v7817
        %7819 = vmatprep.subr.mxu0 %v7818
        %v7820 = vand.u32 %v6347, 4294901760
        %v7821 = vsub.f32 %v6347, %v7820
        %7822 = vmatpush1.msra.mxu0 %v7821
        %v7823 = vand.u32 %v6352, 4294901760
        %v7824 = vsub.f32 %v6352, %v7823
        %7825 = vmatprep.subr.mxu0 %v7824
        %v7826 = vand.u32 %v6351, 4294901760
        %v7827 = vsub.f32 %v6351, %v7826
        %7828 = vmatpush1.msra.mxu0 %v7827
        %v7829 = vand.u32 %v6356, 4294901760
        %v7830 = vsub.f32 %v6356, %v7829
        %7831 = vmatprep.subr.mxu0 %v7830
        %v7832 = vand.u32 %v6355, 4294901760
        %v7833 = vsub.f32 %v6355, %v7832
        %7834 = vmatpush1.msra.mxu0 %v7833
        %v7835 = vand.u32 %v6360, 4294901760
        %v7836 = vsub.f32 %v6360, %v7835
        %7837 = vmatprep.subr.mxu0 %v7836
        %v7838 = vand.u32 %v6359, 4294901760
        %v7839 = vsub.f32 %v6359, %v7838
        %7840 = vmatpush1.msra.mxu0 %v7839
        %v7841 = vand.u32 %v6364, 4294901760
        %v7842 = vsub.f32 %v6364, %v7841
        %7843 = vmatprep.subr.mxu0 %v7842
        %v7844 = vand.u32 %v6363, 4294901760
        %v7845 = vsub.f32 %v6363, %v7844
        %7846 = vmatpush1.msra.mxu0 %v7845
        %v7847 = vand.u32 %v6368, 4294901760
        %v7848 = vsub.f32 %v6368, %v7847
        %7849 = vmatprep.subr.mxu0 %v7848
        %v7850 = vand.u32 %v6367, 4294901760
        %v7851 = vsub.f32 %v6367, %v7850
        %7852 = vmatpush1.msra.mxu0 %v7851
        %v7853 = vand.u32 %v6372, 4294901760
        %v7854 = vsub.f32 %v6372, %v7853
        %7855 = vmatprep.subr.mxu0 %v7854
        %v7856 = vand.u32 %v6371, 4294901760
        %v7857 = vsub.f32 %v6371, %v7856
        %7858 = vmatpush1.msra.mxu0 %v7857
        %v7859 = vand.u32 %v6376, 4294901760
        %v7860 = vsub.f32 %v6376, %v7859
        %7861 = vmatprep.subr.mxu0 %v7860
        %v7862 = vand.u32 %v6375, 4294901760
        %v7863 = vsub.f32 %v6375, %v7862
        %7864 = vmatpush1.msra.mxu0 %v7863
        %7865 = vmatprep.subr.mxu0 0.0
        %7866 = vmatpush1.msra.mxu0 0.0
        %7867 = vmatprep.subr.mxu0 0.0
        %7868 = vmatpush1.msra.mxu0 0.0
        %7869 = vmatprep.subr.mxu0 0.0
        %7870 = vmatpush1.msra.mxu0 0.0
        %7871 = vmatprep.subr.mxu0 0.0
        %7872 = vmatpush1.msra.mxu0 0.0
        %7873 = vmatprep.subr.mxu0 0.0
        %7874 = vmatpush1.msra.mxu0 0.0
        %7875 = vmatprep.subr.mxu0 0.0
        %7876 = vmatpush1.msra.mxu0 0.0
        %7877 = vmatprep.subr.mxu0 0.0
        %7878 = vmatpush1.msra.mxu0 0.0
        %7879 = vmatprep.subr.mxu0 0.0
        %7880 = vmatpush1.msra.mxu0 0.0
        %7881 = vmatprep.subr.mxu0 0.0
        %7882 = vmatpush1.msra.mxu0 0.0
        %7883 = vmatprep.subr.mxu0 0.0
        %7884 = vmatpush1.msra.mxu0 0.0
        %7885 = vmatprep.subr.mxu0 0.0
        %7886 = vmatpush1.msra.mxu0 0.0
        %7887 = vmatprep.subr.mxu0 0.0
        %7888 = vmatpush1.msra.mxu0 0.0
        %7889 = vmatprep.subr.mxu0 0.0
        %7890 = vmatpush1.msra.mxu0 0.0
        %7891 = vmatprep.subr.mxu0 0.0
        %7892 = vmatpush1.msra.mxu0 0.0
        %7893 = vmatprep.subr.mxu0 0.0
        %7894 = vmatpush1.msra.mxu0 0.0
        %7895 = vmatprep.subr.mxu0 0.0
        %7896 = vmatpush1.msra.mxu0 0.0
        %7897 = vmatprep.subr.mxu0 0.0
        %7898 = vmatpush1.msra.mxu0 0.0
        %7899 = vmatprep.subr.mxu0 0.0
        %7900 = vmatpush1.msra.mxu0 0.0
        %7901 = vmatprep.subr.mxu0 0.0
        %7902 = vmatpush1.msra.mxu0 0.0
        %7903 = vmatprep.subr.mxu0 0.0
        %7904 = vmatpush1.msra.mxu0 0.0
        %7905 = vmatprep.subr.mxu0 0.0
        %7906 = vmatpush1.msra.mxu0 0.0
        %7907 = vmatprep.subr.mxu0 0.0
        %7908 = vmatpush1.msra.mxu0 0.0
        %7909 = vmatprep.subr.mxu0 0.0
        %7910 = vmatpush1.msra.mxu0 0.0
        %7911 = vmatprep.subr.mxu0 0.0
        %7912 = vmatpush1.msra.mxu0 0.0
        %7913 = vmatprep.mubr.f32.mxu0 0.0
        %v7914 = vand.u32 %v6434, 4294901760
        %v7915 = vsub.f32 %v6434, %v7914
        %7916 = vmatmul.mubr.f32.gmra.mrb[0].mxu0 %v7915
        %v7917 = vpop.f32.mrb[0].mxu0
        %v7918 = vadd.f32 %v7764, %v7917
        %v7919 = vpop.f32.mrb[0].mxu0
        %v7920 = vadd.f32 %v7766, %v7919
        %7921 = vmatprep.mubr.f32.mxu0 0.0
        %v7922 = vand.u32 %v6437, 4294901760
        %v7923 = vsub.f32 %v6437, %v7922
        %7924 = vmatmul.mubr.f32.gmra.mrb[0].mxu0 %v7923
        %v7925 = vpop.f32.mrb[0].mxu0
        %v7926 = vadd.f32 %v7771, %v7925
        %v7927 = vpop.f32.mrb[0].mxu0
        %v7928 = vadd.f32 %v7773, %v7927
        %7929 = vmatprep.mubr.f32.mxu0 0.0
        %v7930 = vand.u32 %v6440, 4294901760
        %v7931 = vsub.f32 %v6440, %v7930
        %7932 = vmatmul.mubr.f32.gmra.mrb[0].mxu0 %v7931
        %v7933 = vpop.f32.mrb[0].mxu0
        %v7934 = vadd.f32 %v7778, %v7933
        %v7935 = vpop.f32.mrb[0].mxu0
        %v7936 = vadd.f32 %v7780, %v7935
        %7937 = vmatprep.mubr.f32.mxu0 0.0
        %v7938 = vand.u32 %v6443, 4294901760
        %v7939 = vsub.f32 %v6443, %v7938
        %7940 = vmatmul.mubr.f32.gmra.mrb[0].mxu0 %v7939
        %v7941 = vpop.f32.mrb[0].mxu0
        %v7942 = vadd.f32 %v7785, %v7941
        %v7943 = vpop.f32.mrb[0].mxu0
        %v7944 = vadd.f32 %v7787, %v7943
        %7945 = vmatprep.mubr.f32.mxu0 0.0
        %v7946 = vand.u32 %v6446, 4294901760
        %v7947 = vsub.f32 %v6446, %v7946
        %7948 = vmatmul.mubr.f32.gmra.mrb[0].mxu0 %v7947
        %v7949 = vpop.f32.mrb[0].mxu0
        %v7950 = vadd.f32 %v7792, %v7949
        %v7951 = vpop.f32.mrb[0].mxu0
        %v7952 = vadd.f32 %v7794, %v7951
        %7953 = vmatprep.mubr.f32.mxu0 0.0
        %v7954 = vand.u32 %v6449, 4294901760
        %v7955 = vsub.f32 %v6449, %v7954
        %7956 = vmatmul.mubr.f32.gmra.mrb[0].mxu0 %v7955
        %v7957 = vpop.f32.mrb[0].mxu0
        %v7958 = vadd.f32 %v7799, %v7957
        %v7959 = vpop.f32.mrb[0].mxu0
        %v7960 = vadd.f32 %v7801, %v7959
        %7961 = vmatprep.mubr.f32.mxu0 0.0
        %v7962 = vand.u32 %v6452, 4294901760
        %v7963 = vsub.f32 %v6452, %v7962
        %7964 = vmatmul.mubr.f32.gmra.mrb[0].mxu0 %v7963
        %v7965 = vpop.f32.mrb[0].mxu0
        %v7966 = vadd.f32 %v7806, %v7965
        %v7967 = vpop.f32.mrb[0].mxu0
        %v7968 = vadd.f32 %v7808, %v7967
        %7969 = vmatprep.mubr.f32.mxu0 0.0
        %v7970 = vand.u32 %v6455, 4294901760
        %v7971 = vsub.f32 %v6455, %v7970
        %7972 = vmatmul.mubr.f32.gmra.mrb[0].mxu0 %v7971
        %v7973 = vpop.f32.mrb[0].mxu0
        %v7974 = vadd.f32 %v7813, %v7973
        %v7975 = vpop.f32.mrb[0].mxu0
        %v7976 = vadd.f32 %v7815, %v7975
        %7977 = vdwg.mxu0
        %v7978 = vand.u32 %v6348, 4294901760
        %7979 = vmatprep.subr.mxu0 %v7978
        %v7980 = vand.u32 %v6347, 4294901760
        %7981 = vmatpush1.msra.mxu0 %v7980
        %v7982 = vand.u32 %v6352, 4294901760
        %7983 = vmatprep.subr.mxu0 %v7982
        %v7984 = vand.u32 %v6351, 4294901760
        %7985 = vmatpush1.msra.mxu0 %v7984
        %v7986 = vand.u32 %v6356, 4294901760
        %7987 = vmatprep.subr.mxu0 %v7986
        %v7988 = vand.u32 %v6355, 4294901760
        %7989 = vmatpush1.msra.mxu0 %v7988
        %v7990 = vand.u32 %v6360, 4294901760
        %7991 = vmatprep.subr.mxu0 %v7990
        %v7992 = vand.u32 %v6359, 4294901760
        %7993 = vmatpush1.msra.mxu0 %v7992
        %v7994 = vand.u32 %v6364, 4294901760
        %7995 = vmatprep.subr.mxu0 %v7994
        %v7996 = vand.u32 %v6363, 4294901760
        %7997 = vmatpush1.msra.mxu0 %v7996
        %v7998 = vand.u32 %v6368, 4294901760
        %7999 = vmatprep.subr.mxu0 %v7998
        %v8000 = vand.u32 %v6367, 4294901760
        %8001 = vmatpush1.msra.mxu0 %v8000
        %v8002 = vand.u32 %v6372, 4294901760
        %8003 = vmatprep.subr.mxu0 %v8002
        %v8004 = vand.u32 %v6371, 4294901760
        %8005 = vmatpush1.msra.mxu0 %v8004
        %v8006 = vand.u32 %v6376, 4294901760
        %8007 = vmatprep.subr.mxu0 %v8006
        %v8008 = vand.u32 %v6375, 4294901760
        %8009 = vmatpush1.msra.mxu0 %v8008
        %8010 = vmatprep.subr.mxu0 0.0
        %8011 = vmatpush1.msra.mxu0 0.0
        %8012 = vmatprep.subr.mxu0 0.0
        %8013 = vmatpush1.msra.mxu0 0.0
        %8014 = vmatprep.subr.mxu0 0.0
        %8015 = vmatpush1.msra.mxu0 0.0
        %8016 = vmatprep.subr.mxu0 0.0
        %8017 = vmatpush1.msra.mxu0 0.0
        %8018 = vmatprep.subr.mxu0 0.0
        %8019 = vmatpush1.msra.mxu0 0.0
        %8020 = vmatprep.subr.mxu0 0.0
        %8021 = vmatpush1.msra.mxu0 0.0
        %8022 = vmatprep.subr.mxu0 0.0
        %8023 = vmatpush1.msra.mxu0 0.0
        %8024 = vmatprep.subr.mxu0 0.0
        %8025 = vmatpush1.msra.mxu0 0.0
        %8026 = vmatprep.subr.mxu0 0.0
        %8027 = vmatpush1.msra.mxu0 0.0
        %8028 = vmatprep.subr.mxu0 0.0
        %8029 = vmatpush1.msra.mxu0 0.0
        %8030 = vmatprep.subr.mxu0 0.0
        %8031 = vmatpush1.msra.mxu0 0.0
        %8032 = vmatprep.subr.mxu0 0.0
        %8033 = vmatpush1.msra.mxu0 0.0
        %8034 = vmatprep.subr.mxu0 0.0
        %8035 = vmatpush1.msra.mxu0 0.0
        %8036 = vmatprep.subr.mxu0 0.0
        %8037 = vmatpush1.msra.mxu0 0.0
        %8038 = vmatprep.subr.mxu0 0.0
        %8039 = vmatpush1.msra.mxu0 0.0
        %8040 = vmatprep.subr.mxu0 0.0
        %8041 = vmatpush1.msra.mxu0 0.0
        %8042 = vmatprep.subr.mxu0 0.0
        %8043 = vmatpush1.msra.mxu0 0.0
        %8044 = vmatprep.subr.mxu0 0.0
        %8045 = vmatpush1.msra.mxu0 0.0
        %8046 = vmatprep.subr.mxu0 0.0
        %8047 = vmatpush1.msra.mxu0 0.0
        %8048 = vmatprep.subr.mxu0 0.0
        %8049 = vmatpush1.msra.mxu0 0.0
        %8050 = vmatprep.subr.mxu0 0.0
        %8051 = vmatpush1.msra.mxu0 0.0
        %8052 = vmatprep.subr.mxu0 0.0
        %8053 = vmatpush1.msra.mxu0 0.0
        %8054 = vmatprep.subr.mxu0 0.0
        %8055 = vmatpush1.msra.mxu0 0.0
        %8056 = vmatprep.subr.mxu0 0.0
        %8057 = vmatpush1.msra.mxu0 0.0
        %8058 = vmatprep.mubr.f32.mxu0 0.0
        %v8059 = vand.u32 %v6434, 4294901760
        %v8060 = vsub.f32 %v6434, %v8059
        %v8061 = vand.u32 %v8060, 4294901760
        %8062 = vmatmul.mubr.f32.gmra.mrb[0].mxu0 %v8061
        %v8063 = vpop.f32.mrb[0].mxu0
        %v8064 = vadd.f32 %v7918, %v8063
        %v8065 = vpop.f32.mrb[0].mxu0
        %v8066 = vadd.f32 %v7920, %v8065
        %8067 = vmatprep.mubr.f32.mxu0 0.0
        %v8068 = vand.u32 %v6437, 4294901760
        %v8069 = vsub.f32 %v6437, %v8068
        %v8070 = vand.u32 %v8069, 4294901760
        %8071 = vmatmul.mubr.f32.gmra.mrb[0].mxu0 %v8070
        %v8072 = vpop.f32.mrb[0].mxu0
        %v8073 = vadd.f32 %v7926, %v8072
        %v8074 = vpop.f32.mrb[0].mxu0
        %v8075 = vadd.f32 %v7928, %v8074
        %8076 = vmatprep.mubr.f32.mxu0 0.0
        %v8077 = vand.u32 %v6440, 4294901760
        %v8078 = vsub.f32 %v6440, %v8077
        %v8079 = vand.u32 %v8078, 4294901760
        %8080 = vmatmul.mubr.f32.gmra.mrb[0].mxu0 %v8079
        %v8081 = vpop.f32.mrb[0].mxu0
        %v8082 = vadd.f32 %v7934, %v8081
        %v8083 = vpop.f32.mrb[0].mxu0
        %v8084 = vadd.f32 %v7936, %v8083
        %8085 = vmatprep.mubr.f32.mxu0 0.0
        %v8086 = vand.u32 %v6443, 4294901760
        %v8087 = vsub.f32 %v6443, %v8086
        %v8088 = vand.u32 %v8087, 4294901760
        %8089 = vmatmul.mubr.f32.gmra.mrb[0].mxu0 %v8088
        %v8090 = vpop.f32.mrb[0].mxu0
        %v8091 = vadd.f32 %v7942, %v8090
        %v8092 = vpop.f32.mrb[0].mxu0
        %v8093 = vadd.f32 %v7944, %v8092
        %8094 = vmatprep.mubr.f32.mxu0 0.0
        %v8095 = vand.u32 %v6446, 4294901760
        %v8096 = vsub.f32 %v6446, %v8095
        %v8097 = vand.u32 %v8096, 4294901760
        %8098 = vmatmul.mubr.f32.gmra.mrb[0].mxu0 %v8097
        %v8099 = vpop.f32.mrb[0].mxu0
        %v8100 = vadd.f32 %v7950, %v8099
        %v8101 = vpop.f32.mrb[0].mxu0
        %v8102 = vadd.f32 %v7952, %v8101
        %8103 = vmatprep.mubr.f32.mxu0 0.0
        %v8104 = vand.u32 %v6449, 4294901760
        %v8105 = vsub.f32 %v6449, %v8104
        %v8106 = vand.u32 %v8105, 4294901760
        %8107 = vmatmul.mubr.f32.gmra.mrb[0].mxu0 %v8106
        %v8108 = vpop.f32.mrb[0].mxu0
        %v8109 = vadd.f32 %v7958, %v8108
        %v8110 = vpop.f32.mrb[0].mxu0
        %v8111 = vadd.f32 %v7960, %v8110
        %8112 = vmatprep.mubr.f32.mxu0 0.0
        %v8113 = vand.u32 %v6452, 4294901760
        %v8114 = vsub.f32 %v6452, %v8113
        %v8115 = vand.u32 %v8114, 4294901760
        %8116 = vmatmul.mubr.f32.gmra.mrb[0].mxu0 %v8115
        %v8117 = vpop.f32.mrb[0].mxu0
        %v8118 = vadd.f32 %v7966, %v8117
        %v8119 = vpop.f32.mrb[0].mxu0
        %v8120 = vadd.f32 %v7968, %v8119
        %8121 = vmatprep.mubr.f32.mxu0 0.0
        %v8122 = vand.u32 %v6455, 4294901760
        %v8123 = vsub.f32 %v6455, %v8122
        %v8124 = vand.u32 %v8123, 4294901760
        %8125 = vmatmul.mubr.f32.gmra.mrb[0].mxu0 %v8124
        %v8126 = vpop.f32.mrb[0].mxu0
        %v8127 = vadd.f32 %v7974, %v8126
        %v8128 = vpop.f32.mrb[0].mxu0
        %v8129 = vadd.f32 %v7976, %v8128
        %8130 = vdwg.mxu0
        %v8131 = vand.u32 %v6348, 4294901760
        %v8132 = vsub.f32 %v6348, %v8131
        %v8133 = vand.u32 %v8132, 4294901760
        %8134 = vmatprep.subr.mxu0 %v8133
        %v8135 = vand.u32 %v6347, 4294901760
        %v8136 = vsub.f32 %v6347, %v8135
        %v8137 = vand.u32 %v8136, 4294901760
        %8138 = vmatpush1.msra.mxu0 %v8137
        %v8139 = vand.u32 %v6352, 4294901760
        %v8140 = vsub.f32 %v6352, %v8139
        %v8141 = vand.u32 %v8140, 4294901760
        %8142 = vmatprep.subr.mxu0 %v8141
        %v8143 = vand.u32 %v6351, 4294901760
        %v8144 = vsub.f32 %v6351, %v8143
        %v8145 = vand.u32 %v8144, 4294901760
        %8146 = vmatpush1.msra.mxu0 %v8145
        %v8147 = vand.u32 %v6356, 4294901760
        %v8148 = vsub.f32 %v6356, %v8147
        %v8149 = vand.u32 %v8148, 4294901760
        %8150 = vmatprep.subr.mxu0 %v8149
        %v8151 = vand.u32 %v6355, 4294901760
        %v8152 = vsub.f32 %v6355, %v8151
        %v8153 = vand.u32 %v8152, 4294901760
        %8154 = vmatpush1.msra.mxu0 %v8153
        %v8155 = vand.u32 %v6360, 4294901760
        %v8156 = vsub.f32 %v6360, %v8155
        %v8157 = vand.u32 %v8156, 4294901760
        %8158 = vmatprep.subr.mxu0 %v8157
        %v8159 = vand.u32 %v6359, 4294901760
        %v8160 = vsub.f32 %v6359, %v8159
        %v8161 = vand.u32 %v8160, 4294901760
        %8162 = vmatpush1.msra.mxu0 %v8161
        %v8163 = vand.u32 %v6364, 4294901760
        %v8164 = vsub.f32 %v6364, %v8163
        %v8165 = vand.u32 %v8164, 4294901760
        %8166 = vmatprep.subr.mxu0 %v8165
        %v8167 = vand.u32 %v6363, 4294901760
        %v8168 = vsub.f32 %v6363, %v8167
        %v8169 = vand.u32 %v8168, 4294901760
        %8170 = vmatpush1.msra.mxu0 %v8169
        %v8171 = vand.u32 %v6368, 4294901760
        %v8172 = vsub.f32 %v6368, %v8171
        %v8173 = vand.u32 %v8172, 4294901760
        %8174 = vmatprep.subr.mxu0 %v8173
        %v8175 = vand.u32 %v6367, 4294901760
        %v8176 = vsub.f32 %v6367, %v8175
        %v8177 = vand.u32 %v8176, 4294901760
        %8178 = vmatpush1.msra.mxu0 %v8177
        %v8179 = vand.u32 %v6372, 4294901760
        %v8180 = vsub.f32 %v6372, %v8179
        %v8181 = vand.u32 %v8180, 4294901760
        %8182 = vmatprep.subr.mxu0 %v8181
        %v8183 = vand.u32 %v6371, 4294901760
        %v8184 = vsub.f32 %v6371, %v8183
        %v8185 = vand.u32 %v8184, 4294901760
        %8186 = vmatpush1.msra.mxu0 %v8185
        %v8187 = vand.u32 %v6376, 4294901760
        %v8188 = vsub.f32 %v6376, %v8187
        %v8189 = vand.u32 %v8188, 4294901760
        %8190 = vmatprep.subr.mxu0 %v8189
        %v8191 = vand.u32 %v6375, 4294901760
        %v8192 = vsub.f32 %v6375, %v8191
        %v8193 = vand.u32 %v8192, 4294901760
        %8194 = vmatpush1.msra.mxu0 %v8193
        %8195 = vmatprep.subr.mxu0 0.0
        %8196 = vmatpush1.msra.mxu0 0.0
        %8197 = vmatprep.subr.mxu0 0.0
        %8198 = vmatpush1.msra.mxu0 0.0
        %8199 = vmatprep.subr.mxu0 0.0
        %8200 = vmatpush1.msra.mxu0 0.0
        %8201 = vmatprep.subr.mxu0 0.0
        %8202 = vmatpush1.msra.mxu0 0.0
        %8203 = vmatprep.subr.mxu0 0.0
        %8204 = vmatpush1.msra.mxu0 0.0
        %8205 = vmatprep.subr.mxu0 0.0
        %8206 = vmatpush1.msra.mxu0 0.0
        %8207 = vmatprep.subr.mxu0 0.0
        %8208 = vmatpush1.msra.mxu0 0.0
        %8209 = vmatprep.subr.mxu0 0.0
        %8210 = vmatpush1.msra.mxu0 0.0
        %8211 = vmatprep.subr.mxu0 0.0
        %8212 = vmatpush1.msra.mxu0 0.0
        %8213 = vmatprep.subr.mxu0 0.0
        %8214 = vmatpush1.msra.mxu0 0.0
        %8215 = vmatprep.subr.mxu0 0.0
        %8216 = vmatpush1.msra.mxu0 0.0
        %8217 = vmatprep.subr.mxu0 0.0
        %8218 = vmatpush1.msra.mxu0 0.0
        %8219 = vmatprep.subr.mxu0 0.0
        %8220 = vmatpush1.msra.mxu0 0.0
        %8221 = vmatprep.subr.mxu0 0.0
        %8222 = vmatpush1.msra.mxu0 0.0
        %8223 = vmatprep.subr.mxu0 0.0
        %8224 = vmatpush1.msra.mxu0 0.0
        %8225 = vmatprep.subr.mxu0 0.0
        %8226 = vmatpush1.msra.mxu0 0.0
        %8227 = vmatprep.subr.mxu0 0.0
        %8228 = vmatpush1.msra.mxu0 0.0
        %8229 = vmatprep.subr.mxu0 0.0
        %8230 = vmatpush1.msra.mxu0 0.0
        %8231 = vmatprep.subr.mxu0 0.0
        %8232 = vmatpush1.msra.mxu0 0.0
        %8233 = vmatprep.subr.mxu0 0.0
        %8234 = vmatpush1.msra.mxu0 0.0
        %8235 = vmatprep.subr.mxu0 0.0
        %8236 = vmatpush1.msra.mxu0 0.0
        %8237 = vmatprep.subr.mxu0 0.0
        %8238 = vmatpush1.msra.mxu0 0.0
        %8239 = vmatprep.subr.mxu0 0.0
        %8240 = vmatpush1.msra.mxu0 0.0
        %8241 = vmatprep.subr.mxu0 0.0
        %8242 = vmatpush1.msra.mxu0 0.0
        %8243 = vmatprep.mubr.f32.mxu0 0.0
        %v8244 = vand.u32 %v6434, 4294901760
        %8245 = vmatmul.mubr.f32.gmra.mrb[0].mxu0 %v8244
        %v8246 = vpop.f32.mrb[0].mxu0
        %v8247 = vadd.f32 %v8064, %v8246
        %v8248 = vpop.f32.mrb[0].mxu0
        %v8249 = vadd.f32 %v8066, %v8248
        %8250 = vmatprep.mubr.f32.mxu0 0.0
        %v8251 = vand.u32 %v6437, 4294901760
        %8252 = vmatmul.mubr.f32.gmra.mrb[0].mxu0 %v8251
        %v8253 = vpop.f32.mrb[0].mxu0
        %v8254 = vadd.f32 %v8073, %v8253
        %v8255 = vpop.f32.mrb[0].mxu0
        %v8256 = vadd.f32 %v8075, %v8255
        %8257 = vmatprep.mubr.f32.mxu0 0.0
        %v8258 = vand.u32 %v6440, 4294901760
        %8259 = vmatmul.mubr.f32.gmra.mrb[0].mxu0 %v8258
        %v8260 = vpop.f32.mrb[0].mxu0
        %v8261 = vadd.f32 %v8082, %v8260
        %v8262 = vpop.f32.mrb[0].mxu0
        %v8263 = vadd.f32 %v8084, %v8262
        %8264 = vmatprep.mubr.f32.mxu0 0.0
        %v8265 = vand.u32 %v6443, 4294901760
        %8266 = vmatmul.mubr.f32.gmra.mrb[0].mxu0 %v8265
        %v8267 = vpop.f32.mrb[0].mxu0
        %v8268 = vadd.f32 %v8091, %v8267
        %v8269 = vpop.f32.mrb[0].mxu0
        %v8270 = vadd.f32 %v8093, %v8269
        %8271 = vmatprep.mubr.f32.mxu0 0.0
        %v8272 = vand.u32 %v6446, 4294901760
        %8273 = vmatmul.mubr.f32.gmra.mrb[0].mxu0 %v8272
        %v8274 = vpop.f32.mrb[0].mxu0
        %v8275 = vadd.f32 %v8100, %v8274
        %v8276 = vpop.f32.mrb[0].mxu0
        %v8277 = vadd.f32 %v8102, %v8276
        %8278 = vmatprep.mubr.f32.mxu0 0.0
        %v8279 = vand.u32 %v6449, 4294901760
        %8280 = vmatmul.mubr.f32.gmra.mrb[0].mxu0 %v8279
        %v8281 = vpop.f32.mrb[0].mxu0
        %v8282 = vadd.f32 %v8109, %v8281
        %v8283 = vpop.f32.mrb[0].mxu0
        %v8284 = vadd.f32 %v8111, %v8283
        %8285 = vmatprep.mubr.f32.mxu0 0.0
        %v8286 = vand.u32 %v6452, 4294901760
        %8287 = vmatmul.mubr.f32.gmra.mrb[0].mxu0 %v8286
        %v8288 = vpop.f32.mrb[0].mxu0
        %v8289 = vadd.f32 %v8118, %v8288
        %v8290 = vpop.f32.mrb[0].mxu0
        %v8291 = vadd.f32 %v8120, %v8290
        %8292 = vmatprep.mubr.f32.mxu0 0.0
        %v8293 = vand.u32 %v6455, 4294901760
        %8294 = vmatmul.mubr.f32.gmra.mrb[0].mxu0 %v8293
        %v8295 = vpop.f32.mrb[0].mxu0
        %v8296 = vadd.f32 %v8127, %v8295
        %v8297 = vpop.f32.mrb[0].mxu0
        %v8298 = vadd.f32 %v8129, %v8297
        %8299 = vdwg.mxu0
        %v8300 = vand.u32 %v6348, 4294901760
        %8301 = vmatprep.subr.mxu0 %v8300
        %v8302 = vand.u32 %v6347, 4294901760
        %8303 = vmatpush1.msra.mxu0 %v8302
        %v8304 = vand.u32 %v6352, 4294901760
        %8305 = vmatprep.subr.mxu0 %v8304
        %v8306 = vand.u32 %v6351, 4294901760
        %8307 = vmatpush1.msra.mxu0 %v8306
        %v8308 = vand.u32 %v6356, 4294901760
        %8309 = vmatprep.subr.mxu0 %v8308
        %v8310 = vand.u32 %v6355, 4294901760
        %8311 = vmatpush1.msra.mxu0 %v8310
        %v8312 = vand.u32 %v6360, 4294901760
        %8313 = vmatprep.subr.mxu0 %v8312
        %v8314 = vand.u32 %v6359, 4294901760
        %8315 = vmatpush1.msra.mxu0 %v8314
        %v8316 = vand.u32 %v6364, 4294901760
        %8317 = vmatprep.subr.mxu0 %v8316
        %v8318 = vand.u32 %v6363, 4294901760
        %8319 = vmatpush1.msra.mxu0 %v8318
        %v8320 = vand.u32 %v6368, 4294901760
        %8321 = vmatprep.subr.mxu0 %v8320
        %v8322 = vand.u32 %v6367, 4294901760
        %8323 = vmatpush1.msra.mxu0 %v8322
        %v8324 = vand.u32 %v6372, 4294901760
        %8325 = vmatprep.subr.mxu0 %v8324
        %v8326 = vand.u32 %v6371, 4294901760
        %8327 = vmatpush1.msra.mxu0 %v8326
        %v8328 = vand.u32 %v6376, 4294901760
        %8329 = vmatprep.subr.mxu0 %v8328
        %v8330 = vand.u32 %v6375, 4294901760
        %8331 = vmatpush1.msra.mxu0 %v8330
        %8332 = vmatprep.subr.mxu0 0.0
        %8333 = vmatpush1.msra.mxu0 0.0
        %8334 = vmatprep.subr.mxu0 0.0
        %8335 = vmatpush1.msra.mxu0 0.0
        %8336 = vmatprep.subr.mxu0 0.0
        %8337 = vmatpush1.msra.mxu0 0.0
        %8338 = vmatprep.subr.mxu0 0.0
        %8339 = vmatpush1.msra.mxu0 0.0
        %8340 = vmatprep.subr.mxu0 0.0
        %8341 = vmatpush1.msra.mxu0 0.0
        %8342 = vmatprep.subr.mxu0 0.0
        %8343 = vmatpush1.msra.mxu0 0.0
        %8344 = vmatprep.subr.mxu0 0.0
        %8345 = vmatpush1.msra.mxu0 0.0
        %8346 = vmatprep.subr.mxu0 0.0
        %8347 = vmatpush1.msra.mxu0 0.0
        %8348 = vmatprep.subr.mxu0 0.0
        %8349 = vmatpush1.msra.mxu0 0.0
        %8350 = vmatprep.subr.mxu0 0.0
        %8351 = vmatpush1.msra.mxu0 0.0
        %8352 = vmatprep.subr.mxu0 0.0
        %8353 = vmatpush1.msra.mxu0 0.0
        %8354 = vmatprep.subr.mxu0 0.0
        %8355 = vmatpush1.msra.mxu0 0.0
        %8356 = vmatprep.subr.mxu0 0.0
        %8357 = vmatpush1.msra.mxu0 0.0
        %8358 = vmatprep.subr.mxu0 0.0
        %8359 = vmatpush1.msra.mxu0 0.0
        %8360 = vmatprep.subr.mxu0 0.0
        %8361 = vmatpush1.msra.mxu0 0.0
        %8362 = vmatprep.subr.mxu0 0.0
        %8363 = vmatpush1.msra.mxu0 0.0
        %8364 = vmatprep.subr.mxu0 0.0
        %8365 = vmatpush1.msra.mxu0 0.0
        %8366 = vmatprep.subr.mxu0 0.0
        %8367 = vmatpush1.msra.mxu0 0.0
        %8368 = vmatprep.subr.mxu0 0.0
        %8369 = vmatpush1.msra.mxu0 0.0
        %8370 = vmatprep.subr.mxu0 0.0
        %8371 = vmatpush1.msra.mxu0 0.0
        %8372 = vmatprep.subr.mxu0 0.0
        %8373 = vmatpush1.msra.mxu0 0.0
        %8374 = vmatprep.subr.mxu0 0.0
        %8375 = vmatpush1.msra.mxu0 0.0
        %8376 = vmatprep.subr.mxu0 0.0
        %8377 = vmatpush1.msra.mxu0 0.0
        %8378 = vmatprep.subr.mxu0 0.0
        %8379 = vmatpush1.msra.mxu0 0.0
        %8380 = vmatprep.mubr.f32.mxu0 0.0
        %v8381 = vand.u32 %v6434, 4294901760
        %8382 = vmatmul.mubr.f32.gmra.mrb[0].mxu0 %v8381
        %v8383 = vpop.f32.mrb[0].mxu0
        %v8384 = vadd.f32 %v8247, %v8383
        %v8385 = vpop.f32.mrb[0].mxu0
        %v8386 = vadd.f32 %v8249, %v8385
        %8387 = vmatprep.mubr.f32.mxu0 0.0
        %v8388 = vand.u32 %v6437, 4294901760
        %8389 = vmatmul.mubr.f32.gmra.mrb[0].mxu0 %v8388
        %v8390 = vpop.f32.mrb[0].mxu0
        %v8391 = vadd.f32 %v8254, %v8390
        %v8392 = vpop.f32.mrb[0].mxu0
        %v8393 = vadd.f32 %v8256, %v8392
        %8394 = vmatprep.mubr.f32.mxu0 0.0
        %v8395 = vand.u32 %v6440, 4294901760
        %8396 = vmatmul.mubr.f32.gmra.mrb[0].mxu0 %v8395
        %v8397 = vpop.f32.mrb[0].mxu0
        %v8398 = vadd.f32 %v8261, %v8397
        %v8399 = vpop.f32.mrb[0].mxu0
        %v8400 = vadd.f32 %v8263, %v8399
        %8401 = vmatprep.mubr.f32.mxu0 0.0
        %v8402 = vand.u32 %v6443, 4294901760
        %8403 = vmatmul.mubr.f32.gmra.mrb[0].mxu0 %v8402
        %v8404 = vpop.f32.mrb[0].mxu0
        %v8405 = vadd.f32 %v8268, %v8404
        %v8406 = vpop.f32.mrb[0].mxu0
        %v8407 = vadd.f32 %v8270, %v8406
        %8408 = vmatprep.mubr.f32.mxu0 0.0
        %v8409 = vand.u32 %v6446, 4294901760
        %8410 = vmatmul.mubr.f32.gmra.mrb[0].mxu0 %v8409
        %v8411 = vpop.f32.mrb[0].mxu0
        %v8412 = vadd.f32 %v8275, %v8411
        %v8413 = vpop.f32.mrb[0].mxu0
        %v8414 = vadd.f32 %v8277, %v8413
        %8415 = vmatprep.mubr.f32.mxu0 0.0
        %v8416 = vand.u32 %v6449, 4294901760
        %8417 = vmatmul.mubr.f32.gmra.mrb[0].mxu0 %v8416
        %v8418 = vpop.f32.mrb[0].mxu0
        %v8419 = vadd.f32 %v8282, %v8418
        %v8420 = vpop.f32.mrb[0].mxu0
        %v8421 = vadd.f32 %v8284, %v8420
        %8422 = vmatprep.mubr.f32.mxu0 0.0
        %v8423 = vand.u32 %v6452, 4294901760
        %8424 = vmatmul.mubr.f32.gmra.mrb[0].mxu0 %v8423
        %v8425 = vpop.f32.mrb[0].mxu0
        %v8426 = vadd.f32 %v8289, %v8425
        %v8427 = vpop.f32.mrb[0].mxu0
        %v8428 = vadd.f32 %v8291, %v8427
        %8429 = vmatprep.mubr.f32.mxu0 0.0
        %v8430 = vand.u32 %v6455, 4294901760
        %8431 = vmatmul.mubr.f32.gmra.mrb[0].mxu0 %v8430
        %v8432 = vpop.f32.mrb[0].mxu0
        %v8433 = vadd.f32 %v8296, %v8432
        %v8434 = vpop.f32.mrb[0].mxu0
        %v8435 = vadd.f32 %v8298, %v8434
        %8436 = vdwg.mxu0
        %v8437 = vtanh.pop %v7394
        %v8438 = vtanh.pop %v7396
        %v8439 = vtanh.pop %v8384
        %v8440 = vtanh.pop %v8386
        %v8441 = vtanh.pop %v7401
        %v8442 = vtanh.pop %v7403
        %v8443 = vtanh.pop %v8391
        %v8444 = vtanh.pop %v8393
        %v8445 = vtanh.pop %v7408
        %v8446 = vtanh.pop %v7410
        %v8447 = vtanh.pop %v8398
        %v8448 = vtanh.pop %v8400
        %v8449 = vtanh.pop %v7415
        %v8450 = vtanh.pop %v7417
        %v8451 = vtanh.pop %v8405
        %v8452 = vtanh.pop %v8407
        %v8453 = vtanh.pop %v7422
        %v8454 = vtanh.pop %v7424
        %v8455 = vtanh.pop %v8412
        %v8456 = vtanh.pop %v8414
        %v8457 = vtanh.pop %v7429
        %v8458 = vtanh.pop %v7431
        %v8459 = vtanh.pop %v8419
        %v8460 = vtanh.pop %v8421
        %v8461 = vtanh.pop %v7436
        %v8462 = vtanh.pop %v7438
        %v8463 = vtanh.pop %v8426
        %v8464 = vtanh.pop %v8428
        %v8465 = vtanh.pop %v7443
        %v8466 = vtanh.pop %v7445
        %v8467 = vtanh.pop %v8433
        %v8468 = vtanh.pop %v8435
        %v8469 = vtanh.pop %v8437
        %v8470 = vtanh.pop %v8438
        %v8471 = vtanh.pop %v8439
        %v8472 = vtanh.pop %v8440
        %v8473 = vtanh.pop %v8441
        %v8474 = vtanh.pop %v8442
        %v8475 = vtanh.pop %v8443
        %v8476 = vtanh.pop %v8444
        %v8477 = vtanh.pop %v8445
        %v8478 = vtanh.pop %v8446
        %v8479 = vtanh.pop %v8447
        %v8480 = vtanh.pop %v8448
        %v8481 = vtanh.pop %v8449
        %v8482 = vtanh.pop %v8450
        %v8483 = vtanh.pop %v8451
        %v8484 = vtanh.pop %v8452
        %v8485 = vtanh.pop %v8453
        %v8486 = vtanh.pop %v8454
        %v8487 = vtanh.pop %v8455
        %v8488 = vtanh.pop %v8456
        %v8489 = vtanh.pop %v8457
        %v8490 = vtanh.pop %v8458
        %v8491 = vtanh.pop %v8459
        %v8492 = vtanh.pop %v8460
        %v8493 = vtanh.pop %v8461
        %v8494 = vtanh.pop %v8462
        %v8495 = vtanh.pop %v8463
        %v8496 = vtanh.pop %v8464
        %v8497 = vtanh.pop %v8465
        %v8498 = vtanh.pop %v8466
        %v8499 = vtanh.pop %v8467
        %v8500 = vtanh.pop %v8468
        %v8501 = vld [vmem:[%s10] sm:$0x3]
        %v8502 = vld [vmem:[%s11] sm:$0x3]
        %8504 = vset.pattern.permute.xlu0 0
        %8505 = vperm.xlu0 %8504, %v8502
        %v8506 = vpop.permute.xlu0 %8505
        %v8509 = vsel %vm2248, %v8501, 0
        %v8511 = vand.u32 %v8470, 4294901760
        %8512 = vmatprep.subr.mxu0 %v8511
        %v8513 = vand.u32 %v8469, 4294901760
        %8514 = vmatpush1.msra.mxu0 %v8513
        %v8515 = vand.u32 %v8474, 4294901760
        %8516 = vmatprep.subr.mxu0 %v8515
        %v8517 = vand.u32 %v8473, 4294901760
        %8518 = vmatpush1.msra.mxu0 %v8517
        %v8519 = vand.u32 %v8478, 4294901760
        %8520 = vmatprep.subr.mxu0 %v8519
        %v8521 = vand.u32 %v8477, 4294901760
        %8522 = vmatpush1.msra.mxu0 %v8521
        %v8523 = vand.u32 %v8482, 4294901760
        %8524 = vmatprep.subr.mxu0 %v8523
        %v8525 = vand.u32 %v8481, 4294901760
        %8526 = vmatpush1.msra.mxu0 %v8525
        %v8527 = vand.u32 %v8486, 4294901760
        %8528 = vmatprep.subr.mxu0 %v8527
        %v8529 = vand.u32 %v8485, 4294901760
        %8530 = vmatpush1.msra.mxu0 %v8529
        %v8531 = vand.u32 %v8490, 4294901760
        %8532 = vmatprep.subr.mxu0 %v8531
        %v8533 = vand.u32 %v8489, 4294901760
        %8534 = vmatpush1.msra.mxu0 %v8533
        %v8535 = vand.u32 %v8494, 4294901760
        %8536 = vmatprep.subr.mxu0 %v8535
        %v8537 = vand.u32 %v8493, 4294901760
        %8538 = vmatpush1.msra.mxu0 %v8537
        %v8539 = vand.u32 %v8498, 4294901760
        %8540 = vmatprep.subr.mxu0 %v8539
        %v8541 = vand.u32 %v8497, 4294901760
        %8542 = vmatpush1.msra.mxu0 %v8541
        %8543 = vmatprep.subr.mxu0 0.0
        %8544 = vmatpush1.msra.mxu0 0.0
        %8545 = vmatprep.subr.mxu0 0.0
        %8546 = vmatpush1.msra.mxu0 0.0
        %8547 = vmatprep.subr.mxu0 0.0
        %8548 = vmatpush1.msra.mxu0 0.0
        %8549 = vmatprep.subr.mxu0 0.0
        %8550 = vmatpush1.msra.mxu0 0.0
        %8551 = vmatprep.subr.mxu0 0.0
        %8552 = vmatpush1.msra.mxu0 0.0
        %8553 = vmatprep.subr.mxu0 0.0
        %8554 = vmatpush1.msra.mxu0 0.0
        %8555 = vmatprep.subr.mxu0 0.0
        %8556 = vmatpush1.msra.mxu0 0.0
        %8557 = vmatprep.subr.mxu0 0.0
        %8558 = vmatpush1.msra.mxu0 0.0
        %8559 = vmatprep.subr.mxu0 0.0
        %8560 = vmatpush1.msra.mxu0 0.0
        %8561 = vmatprep.subr.mxu0 0.0
        %8562 = vmatpush1.msra.mxu0 0.0
        %8563 = vmatprep.subr.mxu0 0.0
        %8564 = vmatpush1.msra.mxu0 0.0
        %8565 = vmatprep.subr.mxu0 0.0
        %8566 = vmatpush1.msra.mxu0 0.0
        %8567 = vmatprep.subr.mxu0 0.0
        %8568 = vmatpush1.msra.mxu0 0.0
        %8569 = vmatprep.subr.mxu0 0.0
        %8570 = vmatpush1.msra.mxu0 0.0
        %8571 = vmatprep.subr.mxu0 0.0
        %8572 = vmatpush1.msra.mxu0 0.0
        %8573 = vmatprep.subr.mxu0 0.0
        %8574 = vmatpush1.msra.mxu0 0.0
        %8575 = vmatprep.subr.mxu0 0.0
        %8576 = vmatpush1.msra.mxu0 0.0
        %8577 = vmatprep.subr.mxu0 0.0
        %8578 = vmatpush1.msra.mxu0 0.0
        %8579 = vmatprep.subr.mxu0 0.0
        %8580 = vmatpush1.msra.mxu0 0.0
        %8581 = vmatprep.subr.mxu0 0.0
        %8582 = vmatpush1.msra.mxu0 0.0
        %8583 = vmatprep.subr.mxu0 0.0
        %8584 = vmatpush1.msra.mxu0 0.0
        %8585 = vmatprep.subr.mxu0 0.0
        %8586 = vmatpush1.msra.mxu0 0.0
        %8587 = vmatprep.subr.mxu0 0.0
        %8588 = vmatpush1.msra.mxu0 0.0
        %8589 = vmatprep.subr.mxu0 0.0
        %8590 = vmatpush1.msra.mxu0 0.0
        %8591 = vmatprep.mubr.f32.mxu0 0.0
        %v8592 = vand.u32 %v8509, 4294901760
        %v8593 = vsub.f32 %v8509, %v8592
        %v8594 = vand.u32 %v8593, 4294901760
        %v8595 = vsub.f32 %v8593, %v8594
        %v8596 = vand.u32 %v8595, 4294901760
        %8597 = vmatmul.mubr.f32.gmra.mrb[0].mxu0 %v8596
        %v8598 = vpop.f32.mrb[0].mxu0
        %v8599 = vadd.f32 %v8506, %v8598
        %v8600 = vpop.f32.mrb[0].mxu0
        %v8601 = vadd.f32 %v8506, %v8600
        %8602 = vdwg.mxu0
        %v8603 = vand.u32 %v8470, 4294901760
        %v8604 = vsub.f32 %v8470, %v8603
        %v8605 = vand.u32 %v8604, 4294901760
        %v8606 = vsub.f32 %v8604, %v8605
        %v8607 = vand.u32 %v8606, 4294901760
        %8608 = vmatprep.subr.mxu0 %v8607
        %v8609 = vand.u32 %v8469, 4294901760
        %v8610 = vsub.f32 %v8469, %v8609
        %v8611 = vand.u32 %v8610, 4294901760
        %v8612 = vsub.f32 %v8610, %v8611
        %v8613 = vand.u32 %v8612, 4294901760
        %8614 = vmatpush1.msra.mxu0 %v8613
        %v8615 = vand.u32 %v8474, 4294901760
        %v8616 = vsub.f32 %v8474, %v8615
        %v8617 = vand.u32 %v8616, 4294901760
        %v8618 = vsub.f32 %v8616, %v8617
        %v8619 = vand.u32 %v8618, 4294901760
        %8620 = vmatprep.subr.mxu0 %v8619
        %v8621 = vand.u32 %v8473, 4294901760
        %v8622 = vsub.f32 %v8473, %v8621
        %v8623 = vand.u32 %v8622, 4294901760
        %v8624 = vsub.f32 %v8622, %v8623
        %v8625 = vand.u32 %v8624, 4294901760
        %8626 = vmatpush1.msra.mxu0 %v8625
        %v8627 = vand.u32 %v8478, 4294901760
        %v8628 = vsub.f32 %v8478, %v8627
        %v8629 = vand.u32 %v8628, 4294901760
        %v8630 = vsub.f32 %v8628, %v8629
        %v8631 = vand.u32 %v8630, 4294901760
        %8632 = vmatprep.subr.mxu0 %v8631
        %v8633 = vand.u32 %v8477, 4294901760
        %v8634 = vsub.f32 %v8477, %v8633
        %v8635 = vand.u32 %v8634, 4294901760
        %v8636 = vsub.f32 %v8634, %v8635
        %v8637 = vand.u32 %v8636, 4294901760
        %8638 = vmatpush1.msra.mxu0 %v8637
        %v8639 = vand.u32 %v8482, 4294901760
        %v8640 = vsub.f32 %v8482, %v8639
        %v8641 = vand.u32 %v8640, 4294901760
        %v8642 = vsub.f32 %v8640, %v8641
        %v8643 = vand.u32 %v8642, 4294901760
        %8644 = vmatprep.subr.mxu0 %v8643
        %v8645 = vand.u32 %v8481, 4294901760
        %v8646 = vsub.f32 %v8481, %v8645
        %v8647 = vand.u32 %v8646, 4294901760
        %v8648 = vsub.f32 %v8646, %v8647
        %v8649 = vand.u32 %v8648, 4294901760
        %8650 = vmatpush1.msra.mxu0 %v8649
        %v8651 = vand.u32 %v8486, 4294901760
        %v8652 = vsub.f32 %v8486, %v8651
        %v8653 = vand.u32 %v8652, 4294901760
        %v8654 = vsub.f32 %v8652, %v8653
        %v8655 = vand.u32 %v8654, 4294901760
        %8656 = vmatprep.subr.mxu0 %v8655
        %v8657 = vand.u32 %v8485, 4294901760
        %v8658 = vsub.f32 %v8485, %v8657
        %v8659 = vand.u32 %v8658, 4294901760
        %v8660 = vsub.f32 %v8658, %v8659
        %v8661 = vand.u32 %v8660, 4294901760
        %8662 = vmatpush1.msra.mxu0 %v8661
        %v8663 = vand.u32 %v8490, 4294901760
        %v8664 = vsub.f32 %v8490, %v8663
        %v8665 = vand.u32 %v8664, 4294901760
        %v8666 = vsub.f32 %v8664, %v8665
        %v8667 = vand.u32 %v8666, 4294901760
        %8668 = vmatprep.subr.mxu0 %v8667
        %v8669 = vand.u32 %v8489, 4294901760
        %v8670 = vsub.f32 %v8489, %v8669
        %v8671 = vand.u32 %v8670, 4294901760
        %v8672 = vsub.f32 %v8670, %v8671
        %v8673 = vand.u32 %v8672, 4294901760
        %8674 = vmatpush1.msra.mxu0 %v8673
        %v8675 = vand.u32 %v8494, 4294901760
        %v8676 = vsub.f32 %v8494, %v8675
        %v8677 = vand.u32 %v8676, 4294901760
        %v8678 = vsub.f32 %v8676, %v8677
        %v8679 = vand.u32 %v8678, 4294901760
        %8680 = vmatprep.subr.mxu0 %v8679
        %v8681 = vand.u32 %v8493, 4294901760
        %v8682 = vsub.f32 %v8493, %v8681
        %v8683 = vand.u32 %v8682, 4294901760
        %v8684 = vsub.f32 %v8682, %v8683
        %v8685 = vand.u32 %v8684, 4294901760
        %8686 = vmatpush1.msra.mxu0 %v8685
        %v8687 = vand.u32 %v8498, 4294901760
        %v8688 = vsub.f32 %v8498, %v8687
        %v8689 = vand.u32 %v8688, 4294901760
        %v8690 = vsub.f32 %v8688, %v8689
        %v8691 = vand.u32 %v8690, 4294901760
        %8692 = vmatprep.subr.mxu0 %v8691
        %v8693 = vand.u32 %v8497, 4294901760
        %v8694 = vsub.f32 %v8497, %v8693
        %v8695 = vand.u32 %v8694, 4294901760
        %v8696 = vsub.f32 %v8694, %v8695
        %v8697 = vand.u32 %v8696, 4294901760
        %8698 = vmatpush1.msra.mxu0 %v8697
        %8699 = vmatprep.subr.mxu0 0.0
        %8700 = vmatpush1.msra.mxu0 0.0
        %8701 = vmatprep.subr.mxu0 0.0
        %8702 = vmatpush1.msra.mxu0 0.0
        %8703 = vmatprep.subr.mxu0 0.0
        %8704 = vmatpush1.msra.mxu0 0.0
        %8705 = vmatprep.subr.mxu0 0.0
        %8706 = vmatpush1.msra.mxu0 0.0
        %8707 = vmatprep.subr.mxu0 0.0
        %8708 = vmatpush1.msra.mxu0 0.0
        %8709 = vmatprep.subr.mxu0 0.0
        %8710 = vmatpush1.msra.mxu0 0.0
        %8711 = vmatprep.subr.mxu0 0.0
        %8712 = vmatpush1.msra.mxu0 0.0
        %8713 = vmatprep.subr.mxu0 0.0
        %8714 = vmatpush1.msra.mxu0 0.0
        %8715 = vmatprep.subr.mxu0 0.0
        %8716 = vmatpush1.msra.mxu0 0.0
        %8717 = vmatprep.subr.mxu0 0.0
        %8718 = vmatpush1.msra.mxu0 0.0
        %8719 = vmatprep.subr.mxu0 0.0
        %8720 = vmatpush1.msra.mxu0 0.0
        %8721 = vmatprep.subr.mxu0 0.0
        %8722 = vmatpush1.msra.mxu0 0.0
        %8723 = vmatprep.subr.mxu0 0.0
        %8724 = vmatpush1.msra.mxu0 0.0
        %8725 = vmatprep.subr.mxu0 0.0
        %8726 = vmatpush1.msra.mxu0 0.0
        %8727 = vmatprep.subr.mxu0 0.0
        %8728 = vmatpush1.msra.mxu0 0.0
        %8729 = vmatprep.subr.mxu0 0.0
        %8730 = vmatpush1.msra.mxu0 0.0
        %8731 = vmatprep.subr.mxu0 0.0
        %8732 = vmatpush1.msra.mxu0 0.0
        %8733 = vmatprep.subr.mxu0 0.0
        %8734 = vmatpush1.msra.mxu0 0.0
        %8735 = vmatprep.subr.mxu0 0.0
        %8736 = vmatpush1.msra.mxu0 0.0
        %8737 = vmatprep.subr.mxu0 0.0
        %8738 = vmatpush1.msra.mxu0 0.0
        %8739 = vmatprep.subr.mxu0 0.0
        %8740 = vmatpush1.msra.mxu0 0.0
        %8741 = vmatprep.subr.mxu0 0.0
        %8742 = vmatpush1.msra.mxu0 0.0
        %8743 = vmatprep.subr.mxu0 0.0
        %8744 = vmatpush1.msra.mxu0 0.0
        %8745 = vmatprep.subr.mxu0 0.0
        %8746 = vmatpush1.msra.mxu0 0.0
        %8747 = vmatprep.mubr.f32.mxu0 0.0
        %v8748 = vand.u32 %v8509, 4294901760
        %8749 = vmatmul.mubr.f32.gmra.mrb[0].mxu0 %v8748
        %v8750 = vpop.f32.mrb[0].mxu0
        %v8751 = vadd.f32 %v8599, %v8750
        %v8752 = vpop.f32.mrb[0].mxu0
        %v8753 = vadd.f32 %v8601, %v8752
        %8754 = vdwg.mxu0
        %v8755 = vand.u32 %v8470, 4294901760
        %v8756 = vsub.f32 %v8470, %v8755
        %8757 = vmatprep.subr.mxu0 %v8756
        %v8758 = vand.u32 %v8469, 4294901760
        %v8759 = vsub.f32 %v8469, %v8758
        %8760 = vmatpush1.msra.mxu0 %v8759
        %v8761 = vand.u32 %v8474, 4294901760
        %v8762 = vsub.f32 %v8474, %v8761
        %8763 = vmatprep.subr.mxu0 %v8762
        %v8764 = vand.u32 %v8473, 4294901760
        %v8765 = vsub.f32 %v8473, %v8764
        %8766 = vmatpush1.msra.mxu0 %v8765
        %v8767 = vand.u32 %v8478, 4294901760
        %v8768 = vsub.f32 %v8478, %v8767
        %8769 = vmatprep.subr.mxu0 %v8768
        %v8770 = vand.u32 %v8477, 4294901760
        %v8771 = vsub.f32 %v8477, %v8770
        %8772 = vmatpush1.msra.mxu0 %v8771
        %v8773 = vand.u32 %v8482, 4294901760
        %v8774 = vsub.f32 %v8482, %v8773
        %8775 = vmatprep.subr.mxu0 %v8774
        %v8776 = vand.u32 %v8481, 4294901760
        %v8777 = vsub.f32 %v8481, %v8776
        %8778 = vmatpush1.msra.mxu0 %v8777
        %v8779 = vand.u32 %v8486, 4294901760
        %v8780 = vsub.f32 %v8486, %v8779
        %8781 = vmatprep.subr.mxu0 %v8780
        %v8782 = vand.u32 %v8485, 4294901760
        %v8783 = vsub.f32 %v8485, %v8782
        %8784 = vmatpush1.msra.mxu0 %v8783
        %v8785 = vand.u32 %v8490, 4294901760
        %v8786 = vsub.f32 %v8490, %v8785
        %8787 = vmatprep.subr.mxu0 %v8786
        %v8788 = vand.u32 %v8489, 4294901760
        %v8789 = vsub.f32 %v8489, %v8788
        %8790 = vmatpush1.msra.mxu0 %v8789
        %v8791 = vand.u32 %v8494, 4294901760
        %v8792 = vsub.f32 %v8494, %v8791
        %8793 = vmatprep.subr.mxu0 %v8792
        %v8794 = vand.u32 %v8493, 4294901760
        %v8795 = vsub.f32 %v8493, %v8794
        %8796 = vmatpush1.msra.mxu0 %v8795
        %v8797 = vand.u32 %v8498, 4294901760
        %v8798 = vsub.f32 %v8498, %v8797
        %8799 = vmatprep.subr.mxu0 %v8798
        %v8800 = vand.u32 %v8497, 4294901760
        %v8801 = vsub.f32 %v8497, %v8800
        %8802 = vmatpush1.msra.mxu0 %v8801
        %8803 = vmatprep.subr.mxu0 0.0
        %8804 = vmatpush1.msra.mxu0 0.0
        %8805 = vmatprep.subr.mxu0 0.0
        %8806 = vmatpush1.msra.mxu0 0.0
        %8807 = vmatprep.subr.mxu0 0.0
        %8808 = vmatpush1.msra.mxu0 0.0
        %8809 = vmatprep.subr.mxu0 0.0
        %8810 = vmatpush1.msra.mxu0 0.0
        %8811 = vmatprep.subr.mxu0 0.0
        %8812 = vmatpush1.msra.mxu0 0.0
        %8813 = vmatprep.subr.mxu0 0.0
        %8814 = vmatpush1.msra.mxu0 0.0
        %8815 = vmatprep.subr.mxu0 0.0
        %8816 = vmatpush1.msra.mxu0 0.0
        %8817 = vmatprep.subr.mxu0 0.0
        %8818 = vmatpush1.msra.mxu0 0.0
        %8819 = vmatprep.subr.mxu0 0.0
        %8820 = vmatpush1.msra.mxu0 0.0
        %8821 = vmatprep.subr.mxu0 0.0
        %8822 = vmatpush1.msra.mxu0 0.0
        %8823 = vmatprep.subr.mxu0 0.0
        %8824 = vmatpush1.msra.mxu0 0.0
        %8825 = vmatprep.subr.mxu0 0.0
        %8826 = vmatpush1.msra.mxu0 0.0
        %8827 = vmatprep.subr.mxu0 0.0
        %8828 = vmatpush1.msra.mxu0 0.0
        %8829 = vmatprep.subr.mxu0 0.0
        %8830 = vmatpush1.msra.mxu0 0.0
        %8831 = vmatprep.subr.mxu0 0.0
        %8832 = vmatpush1.msra.mxu0 0.0
        %8833 = vmatprep.subr.mxu0 0.0
        %8834 = vmatpush1.msra.mxu0 0.0
        %8835 = vmatprep.subr.mxu0 0.0
        %8836 = vmatpush1.msra.mxu0 0.0
        %8837 = vmatprep.subr.mxu0 0.0
        %8838 = vmatpush1.msra.mxu0 0.0
        %8839 = vmatprep.subr.mxu0 0.0
        %8840 = vmatpush1.msra.mxu0 0.0
        %8841 = vmatprep.subr.mxu0 0.0
        %8842 = vmatpush1.msra.mxu0 0.0
        %8843 = vmatprep.subr.mxu0 0.0
        %8844 = vmatpush1.msra.mxu0 0.0
        %8845 = vmatprep.subr.mxu0 0.0
        %8846 = vmatpush1.msra.mxu0 0.0
        %8847 = vmatprep.subr.mxu0 0.0
        %8848 = vmatpush1.msra.mxu0 0.0
        %8849 = vmatprep.subr.mxu0 0.0
        %8850 = vmatpush1.msra.mxu0 0.0
        %8851 = vmatprep.mubr.f32.mxu0 0.0
        %v8852 = vand.u32 %v8509, 4294901760
        %v8853 = vsub.f32 %v8509, %v8852
        %8854 = vmatmul.mubr.f32.gmra.mrb[0].mxu0 %v8853
        %v8855 = vpop.f32.mrb[0].mxu0
        %v8856 = vadd.f32 %v8751, %v8855
        %v8857 = vpop.f32.mrb[0].mxu0
        %v8858 = vadd.f32 %v8753, %v8857
        %8859 = vdwg.mxu0
        %v8860 = vand.u32 %v8470, 4294901760
        %8861 = vmatprep.subr.mxu0 %v8860
        %v8862 = vand.u32 %v8469, 4294901760
        %8863 = vmatpush1.msra.mxu0 %v8862
        %v8864 = vand.u32 %v8474, 4294901760
        %8865 = vmatprep.subr.mxu0 %v8864
        %v8866 = vand.u32 %v8473, 4294901760
        %8867 = vmatpush1.msra.mxu0 %v8866
        %v8868 = vand.u32 %v8478, 4294901760
        %8869 = vmatprep.subr.mxu0 %v8868
        %v8870 = vand.u32 %v8477, 4294901760
        %8871 = vmatpush1.msra.mxu0 %v8870
        %v8872 = vand.u32 %v8482, 4294901760
        %8873 = vmatprep.subr.mxu0 %v8872
        %v8874 = vand.u32 %v8481, 4294901760
        %8875 = vmatpush1.msra.mxu0 %v8874
        %v8876 = vand.u32 %v8486, 4294901760
        %8877 = vmatprep.subr.mxu0 %v8876
        %v8878 = vand.u32 %v8485, 4294901760
        %8879 = vmatpush1.msra.mxu0 %v8878
        %v8880 = vand.u32 %v8490, 4294901760
        %8881 = vmatprep.subr.mxu0 %v8880
        %v8882 = vand.u32 %v8489, 4294901760
        %8883 = vmatpush1.msra.mxu0 %v8882
        %v8884 = vand.u32 %v8494, 4294901760
        %8885 = vmatprep.subr.mxu0 %v8884
        %v8886 = vand.u32 %v8493, 4294901760
        %8887 = vmatpush1.msra.mxu0 %v8886
        %v8888 = vand.u32 %v8498, 4294901760
        %8889 = vmatprep.subr.mxu0 %v8888
        %v8890 = vand.u32 %v8497, 4294901760
        %8891 = vmatpush1.msra.mxu0 %v8890
        %8892 = vmatprep.subr.mxu0 0.0
        %8893 = vmatpush1.msra.mxu0 0.0
        %8894 = vmatprep.subr.mxu0 0.0
        %8895 = vmatpush1.msra.mxu0 0.0
        %8896 = vmatprep.subr.mxu0 0.0
        %8897 = vmatpush1.msra.mxu0 0.0
        %8898 = vmatprep.subr.mxu0 0.0
        %8899 = vmatpush1.msra.mxu0 0.0
        %8900 = vmatprep.subr.mxu0 0.0
        %8901 = vmatpush1.msra.mxu0 0.0
        %8902 = vmatprep.subr.mxu0 0.0
        %8903 = vmatpush1.msra.mxu0 0.0
        %8904 = vmatprep.subr.mxu0 0.0
        %8905 = vmatpush1.msra.mxu0 0.0
        %8906 = vmatprep.subr.mxu0 0.0
        %8907 = vmatpush1.msra.mxu0 0.0
        %8908 = vmatprep.subr.mxu0 0.0
        %8909 = vmatpush1.msra.mxu0 0.0
        %8910 = vmatprep.subr.mxu0 0.0
        %8911 = vmatpush1.msra.mxu0 0.0
        %8912 = vmatprep.subr.mxu0 0.0
        %8913 = vmatpush1.msra.mxu0 0.0
        %8914 = vmatprep.subr.mxu0 0.0
        %8915 = vmatpush1.msra.mxu0 0.0
        %8916 = vmatprep.subr.mxu0 0.0
        %8917 = vmatpush1.msra.mxu0 0.0
        %8918 = vmatprep.subr.mxu0 0.0
        %8919 = vmatpush1.msra.mxu0 0.0
        %8920 = vmatprep.subr.mxu0 0.0
        %8921 = vmatpush1.msra.mxu0 0.0
        %8922 = vmatprep.subr.mxu0 0.0
        %8923 = vmatpush1.msra.mxu0 0.0
        %8924 = vmatprep.subr.mxu0 0.0
        %8925 = vmatpush1.msra.mxu0 0.0
        %8926 = vmatprep.subr.mxu0 0.0
        %8927 = vmatpush1.msra.mxu0 0.0
        %8928 = vmatprep.subr.mxu0 0.0
        %8929 = vmatpush1.msra.mxu0 0.0
        %8930 = vmatprep.subr.mxu0 0.0
        %8931 = vmatpush1.msra.mxu0 0.0
        %8932 = vmatprep.subr.mxu0 0.0
        %8933 = vmatpush1.msra.mxu0 0.0
        %8934 = vmatprep.subr.mxu0 0.0
        %8935 = vmatpush1.msra.mxu0 0.0
        %8936 = vmatprep.subr.mxu0 0.0
        %8937 = vmatpush1.msra.mxu0 0.0
        %8938 = vmatprep.subr.mxu0 0.0
        %8939 = vmatpush1.msra.mxu0 0.0
        %8940 = vmatprep.mubr.f32.mxu0 0.0
        %v8941 = vand.u32 %v8509, 4294901760
        %v8942 = vsub.f32 %v8509, %v8941
        %v8943 = vand.u32 %v8942, 4294901760
        %8944 = vmatmul.mubr.f32.gmra.mrb[0].mxu0 %v8943
        %v8945 = vpop.f32.mrb[0].mxu0
        %v8946 = vadd.f32 %v8856, %v8945
        %v8947 = vpop.f32.mrb[0].mxu0
        %v8948 = vadd.f32 %v8858, %v8947
        %8949 = vdwg.mxu0
        %v8950 = vand.u32 %v8470, 4294901760
        %v8951 = vsub.f32 %v8470, %v8950
        %v8952 = vand.u32 %v8951, 4294901760
        %8953 = vmatprep.subr.mxu0 %v8952
        %v8954 = vand.u32 %v8469, 4294901760
        %v8955 = vsub.f32 %v8469, %v8954
        %v8956 = vand.u32 %v8955, 4294901760
        %8957 = vmatpush1.msra.mxu0 %v8956
        %v8958 = vand.u32 %v8474, 4294901760
        %v8959 = vsub.f32 %v8474, %v8958
        %v8960 = vand.u32 %v8959, 4294901760
        %8961 = vmatprep.subr.mxu0 %v8960
        %v8962 = vand.u32 %v8473, 4294901760
        %v8963 = vsub.f32 %v8473, %v8962
        %v8964 = vand.u32 %v8963, 4294901760
        %8965 = vmatpush1.msra.mxu0 %v8964
        %v8966 = vand.u32 %v8478, 4294901760
        %v8967 = vsub.f32 %v8478, %v8966
        %v8968 = vand.u32 %v8967, 4294901760
        %8969 = vmatprep.subr.mxu0 %v8968
        %v8970 = vand.u32 %v8477, 4294901760
        %v8971 = vsub.f32 %v8477, %v8970
        %v8972 = vand.u32 %v8971, 4294901760
        %8973 = vmatpush1.msra.mxu0 %v8972
        %v8974 = vand.u32 %v8482, 4294901760
        %v8975 = vsub.f32 %v8482, %v8974
        %v8976 = vand.u32 %v8975, 4294901760
        %8977 = vmatprep.subr.mxu0 %v8976
        %v8978 = vand.u32 %v8481, 4294901760
        %v8979 = vsub.f32 %v8481, %v8978
        %v8980 = vand.u32 %v8979, 4294901760
        %8981 = vmatpush1.msra.mxu0 %v8980
        %v8982 = vand.u32 %v8486, 4294901760
        %v8983 = vsub.f32 %v8486, %v8982
        %v8984 = vand.u32 %v8983, 4294901760
        %8985 = vmatprep.subr.mxu0 %v8984
        %v8986 = vand.u32 %v8485, 4294901760
        %v8987 = vsub.f32 %v8485, %v8986
        %v8988 = vand.u32 %v8987, 4294901760
        %8989 = vmatpush1.msra.mxu0 %v8988
        %v8990 = vand.u32 %v8490, 4294901760
        %v8991 = vsub.f32 %v8490, %v8990
        %v8992 = vand.u32 %v8991, 4294901760
        %8993 = vmatprep.subr.mxu0 %v8992
        %v8994 = vand.u32 %v8489, 4294901760
        %v8995 = vsub.f32 %v8489, %v8994
        %v8996 = vand.u32 %v8995, 4294901760
        %8997 = vmatpush1.msra.mxu0 %v8996
        %v8998 = vand.u32 %v8494, 4294901760
        %v8999 = vsub.f32 %v8494, %v8998
        %v9000 = vand.u32 %v8999, 4294901760
        %9001 = vmatprep.subr.mxu0 %v9000
        %v9002 = vand.u32 %v8493, 4294901760
        %v9003 = vsub.f32 %v8493, %v9002
        %v9004 = vand.u32 %v9003, 4294901760
        %9005 = vmatpush1.msra.mxu0 %v9004
        %v9006 = vand.u32 %v8498, 4294901760
        %v9007 = vsub.f32 %v8498, %v9006
        %v9008 = vand.u32 %v9007, 4294901760
        %9009 = vmatprep.subr.mxu0 %v9008
        %v9010 = vand.u32 %v8497, 4294901760
        %v9011 = vsub.f32 %v8497, %v9010
        %v9012 = vand.u32 %v9011, 4294901760
        %9013 = vmatpush1.msra.mxu0 %v9012
        %9014 = vmatprep.subr.mxu0 0.0
        %9015 = vmatpush1.msra.mxu0 0.0
        %9016 = vmatprep.subr.mxu0 0.0
        %9017 = vmatpush1.msra.mxu0 0.0
        %9018 = vmatprep.subr.mxu0 0.0
        %9019 = vmatpush1.msra.mxu0 0.0
        %9020 = vmatprep.subr.mxu0 0.0
        %9021 = vmatpush1.msra.mxu0 0.0
        %9022 = vmatprep.subr.mxu0 0.0
        %9023 = vmatpush1.msra.mxu0 0.0
        %9024 = vmatprep.subr.mxu0 0.0
        %9025 = vmatpush1.msra.mxu0 0.0
        %9026 = vmatprep.subr.mxu0 0.0
        %9027 = vmatpush1.msra.mxu0 0.0
        %9028 = vmatprep.subr.mxu0 0.0
        %9029 = vmatpush1.msra.mxu0 0.0
        %9030 = vmatprep.subr.mxu0 0.0
        %9031 = vmatpush1.msra.mxu0 0.0
        %9032 = vmatprep.subr.mxu0 0.0
        %9033 = vmatpush1.msra.mxu0 0.0
        %9034 = vmatprep.subr.mxu0 0.0
        %9035 = vmatpush1.msra.mxu0 0.0
        %9036 = vmatprep.subr.mxu0 0.0
        %9037 = vmatpush1.msra.mxu0 0.0
        %9038 = vmatprep.subr.mxu0 0.0
        %9039 = vmatpush1.msra.mxu0 0.0
        %9040 = vmatprep.subr.mxu0 0.0
        %9041 = vmatpush1.msra.mxu0 0.0
        %9042 = vmatprep.subr.mxu0 0.0
        %9043 = vmatpush1.msra.mxu0 0.0
        %9044 = vmatprep.subr.mxu0 0.0
        %9045 = vmatpush1.msra.mxu0 0.0
        %9046 = vmatprep.subr.mxu0 0.0
        %9047 = vmatpush1.msra.mxu0 0.0
        %9048 = vmatprep.subr.mxu0 0.0
        %9049 = vmatpush1.msra.mxu0 0.0
        %9050 = vmatprep.subr.mxu0 0.0
        %9051 = vmatpush1.msra.mxu0 0.0
        %9052 = vmatprep.subr.mxu0 0.0
        %9053 = vmatpush1.msra.mxu0 0.0
        %9054 = vmatprep.subr.mxu0 0.0
        %9055 = vmatpush1.msra.mxu0 0.0
        %9056 = vmatprep.subr.mxu0 0.0
        %9057 = vmatpush1.msra.mxu0 0.0
        %9058 = vmatprep.subr.mxu0 0.0
        %9059 = vmatpush1.msra.mxu0 0.0
        %9060 = vmatprep.subr.mxu0 0.0
        %9061 = vmatpush1.msra.mxu0 0.0
        %9062 = vmatprep.mubr.f32.mxu0 0.0
        %v9063 = vand.u32 %v8509, 4294901760
        %9064 = vmatmul.mubr.f32.gmra.mrb[0].mxu0 %v9063
        %v9065 = vpop.f32.mrb[0].mxu0
        %v9066 = vadd.f32 %v8946, %v9065
        %v9067 = vpop.f32.mrb[0].mxu0
        %v9068 = vadd.f32 %v8948, %v9067
        %9069 = vdwg.mxu0
        %v9070 = vand.u32 %v8470, 4294901760
        %9071 = vmatprep.subr.mxu0 %v9070
        %v9072 = vand.u32 %v8469, 4294901760
        %9073 = vmatpush1.msra.mxu0 %v9072
        %v9074 = vand.u32 %v8474, 4294901760
        %9075 = vmatprep.subr.mxu0 %v9074
        %v9076 = vand.u32 %v8473, 4294901760
        %9077 = vmatpush1.msra.mxu0 %v9076
        %v9078 = vand.u32 %v8478, 4294901760
        %9079 = vmatprep.subr.mxu0 %v9078
        %v9080 = vand.u32 %v8477, 4294901760
        %9081 = vmatpush1.msra.mxu0 %v9080
        %v9082 = vand.u32 %v8482, 4294901760
        %9083 = vmatprep.subr.mxu0 %v9082
        %v9084 = vand.u32 %v8481, 4294901760
        %9085 = vmatpush1.msra.mxu0 %v9084
        %v9086 = vand.u32 %v8486, 4294901760
        %9087 = vmatprep.subr.mxu0 %v9086
        %v9088 = vand.u32 %v8485, 4294901760
        %9089 = vmatpush1.msra.mxu0 %v9088
        %v9090 = vand.u32 %v8490, 4294901760
        %9091 = vmatprep.subr.mxu0 %v9090
        %v9092 = vand.u32 %v8489, 4294901760
        %9093 = vmatpush1.msra.mxu0 %v9092
        %v9094 = vand.u32 %v8494, 4294901760
        %9095 = vmatprep.subr.mxu0 %v9094
        %v9096 = vand.u32 %v8493, 4294901760
        %9097 = vmatpush1.msra.mxu0 %v9096
        %v9098 = vand.u32 %v8498, 4294901760
        %9099 = vmatprep.subr.mxu0 %v9098
        %v9100 = vand.u32 %v8497, 4294901760
        %9101 = vmatpush1.msra.mxu0 %v9100
        %9102 = vmatprep.subr.mxu0 0.0
        %9103 = vmatpush1.msra.mxu0 0.0
        %9104 = vmatprep.subr.mxu0 0.0
        %9105 = vmatpush1.msra.mxu0 0.0
        %9106 = vmatprep.subr.mxu0 0.0
        %9107 = vmatpush1.msra.mxu0 0.0
        %9108 = vmatprep.subr.mxu0 0.0
        %9109 = vmatpush1.msra.mxu0 0.0
        %9110 = vmatprep.subr.mxu0 0.0
        %9111 = vmatpush1.msra.mxu0 0.0
        %9112 = vmatprep.subr.mxu0 0.0
        %9113 = vmatpush1.msra.mxu0 0.0
        %9114 = vmatprep.subr.mxu0 0.0
        %9115 = vmatpush1.msra.mxu0 0.0
        %9116 = vmatprep.subr.mxu0 0.0
        %9117 = vmatpush1.msra.mxu0 0.0
        %9118 = vmatprep.subr.mxu0 0.0
        %9119 = vmatpush1.msra.mxu0 0.0
        %9120 = vmatprep.subr.mxu0 0.0
        %9121 = vmatpush1.msra.mxu0 0.0
        %9122 = vmatprep.subr.mxu0 0.0
        %9123 = vmatpush1.msra.mxu0 0.0
        %9124 = vmatprep.subr.mxu0 0.0
        %9125 = vmatpush1.msra.mxu0 0.0
        %9126 = vmatprep.subr.mxu0 0.0
        %9127 = vmatpush1.msra.mxu0 0.0
        %9128 = vmatprep.subr.mxu0 0.0
        %9129 = vmatpush1.msra.mxu0 0.0
        %9130 = vmatprep.subr.mxu0 0.0
        %9131 = vmatpush1.msra.mxu0 0.0
        %9132 = vmatprep.subr.mxu0 0.0
        %9133 = vmatpush1.msra.mxu0 0.0
        %9134 = vmatprep.subr.mxu0 0.0
        %9135 = vmatpush1.msra.mxu0 0.0
        %9136 = vmatprep.subr.mxu0 0.0
        %9137 = vmatpush1.msra.mxu0 0.0
        %9138 = vmatprep.subr.mxu0 0.0
        %9139 = vmatpush1.msra.mxu0 0.0
        %9140 = vmatprep.subr.mxu0 0.0
        %9141 = vmatpush1.msra.mxu0 0.0
        %9142 = vmatprep.subr.mxu0 0.0
        %9143 = vmatpush1.msra.mxu0 0.0
        %9144 = vmatprep.subr.mxu0 0.0
        %9145 = vmatpush1.msra.mxu0 0.0
        %9146 = vmatprep.subr.mxu0 0.0
        %9147 = vmatpush1.msra.mxu0 0.0
        %9148 = vmatprep.subr.mxu0 0.0
        %9149 = vmatpush1.msra.mxu0 0.0
        %9150 = vmatprep.mubr.f32.mxu0 0.0
        %v9151 = vand.u32 %v8509, 4294901760
        %9152 = vmatmul.mubr.f32.gmra.mrb[0].mxu0 %v9151
        %v9153 = vpop.f32.mrb[0].mxu0
        %v9154 = vadd.f32 %v9066, %v9153
        %v9155 = vpop.f32.mrb[0].mxu0
        %v9156 = vadd.f32 %v9068, %v9155
        %9157 = vdwg.mxu0
        %v9158 = vand.u32 %v8472, 4294901760
        %9159 = vmatprep.subr.mxu0 %v9158
        %v9160 = vand.u32 %v8471, 4294901760
        %9161 = vmatpush1.msra.mxu0 %v9160
        %v9162 = vand.u32 %v8476, 4294901760
        %9163 = vmatprep.subr.mxu0 %v9162
        %v9164 = vand.u32 %v8475, 4294901760
        %9165 = vmatpush1.msra.mxu0 %v9164
        %v9166 = vand.u32 %v8480, 4294901760
        %9167 = vmatprep.subr.mxu0 %v9166
        %v9168 = vand.u32 %v8479, 4294901760
        %9169 = vmatpush1.msra.mxu0 %v9168
        %v9170 = vand.u32 %v8484, 4294901760
        %9171 = vmatprep.subr.mxu0 %v9170
        %v9172 = vand.u32 %v8483, 4294901760
        %9173 = vmatpush1.msra.mxu0 %v9172
        %v9174 = vand.u32 %v8488, 4294901760
        %9175 = vmatprep.subr.mxu0 %v9174
        %v9176 = vand.u32 %v8487, 4294901760
        %9177 = vmatpush1.msra.mxu0 %v9176
        %v9178 = vand.u32 %v8492, 4294901760
        %9179 = vmatprep.subr.mxu0 %v9178
        %v9180 = vand.u32 %v8491, 4294901760
        %9181 = vmatpush1.msra.mxu0 %v9180
        %v9182 = vand.u32 %v8496, 4294901760
        %9183 = vmatprep.subr.mxu0 %v9182
        %v9184 = vand.u32 %v8495, 4294901760
        %9185 = vmatpush1.msra.mxu0 %v9184
        %v9186 = vand.u32 %v8500, 4294901760
        %9187 = vmatprep.subr.mxu0 %v9186
        %v9188 = vand.u32 %v8499, 4294901760
        %9189 = vmatpush1.msra.mxu0 %v9188
        %9190 = vmatprep.subr.mxu0 0.0
        %9191 = vmatpush1.msra.mxu0 0.0
        %9192 = vmatprep.subr.mxu0 0.0
        %9193 = vmatpush1.msra.mxu0 0.0
        %9194 = vmatprep.subr.mxu0 0.0
        %9195 = vmatpush1.msra.mxu0 0.0
        %9196 = vmatprep.subr.mxu0 0.0
        %9197 = vmatpush1.msra.mxu0 0.0
        %9198 = vmatprep.subr.mxu0 0.0
        %9199 = vmatpush1.msra.mxu0 0.0
        %9200 = vmatprep.subr.mxu0 0.0
        %9201 = vmatpush1.msra.mxu0 0.0
        %9202 = vmatprep.subr.mxu0 0.0
        %9203 = vmatpush1.msra.mxu0 0.0
        %9204 = vmatprep.subr.mxu0 0.0
        %9205 = vmatpush1.msra.mxu0 0.0
        %9206 = vmatprep.subr.mxu0 0.0
        %9207 = vmatpush1.msra.mxu0 0.0
        %9208 = vmatprep.subr.mxu0 0.0
        %9209 = vmatpush1.msra.mxu0 0.0
        %9210 = vmatprep.subr.mxu0 0.0
        %9211 = vmatpush1.msra.mxu0 0.0
        %9212 = vmatprep.subr.mxu0 0.0
        %9213 = vmatpush1.msra.mxu0 0.0
        %9214 = vmatprep.subr.mxu0 0.0
        %9215 = vmatpush1.msra.mxu0 0.0
        %9216 = vmatprep.subr.mxu0 0.0
        %9217 = vmatpush1.msra.mxu0 0.0
        %9218 = vmatprep.subr.mxu0 0.0
        %9219 = vmatpush1.msra.mxu0 0.0
        %9220 = vmatprep.subr.mxu0 0.0
        %9221 = vmatpush1.msra.mxu0 0.0
        %9222 = vmatprep.subr.mxu0 0.0
        %9223 = vmatpush1.msra.mxu0 0.0
        %9224 = vmatprep.subr.mxu0 0.0
        %9225 = vmatpush1.msra.mxu0 0.0
        %9226 = vmatprep.subr.mxu0 0.0
        %9227 = vmatpush1.msra.mxu0 0.0
        %9228 = vmatprep.subr.mxu0 0.0
        %9229 = vmatpush1.msra.mxu0 0.0
        %9230 = vmatprep.subr.mxu0 0.0
        %9231 = vmatpush1.msra.mxu0 0.0
        %9232 = vmatprep.subr.mxu0 0.0
        %9233 = vmatpush1.msra.mxu0 0.0
        %9234 = vmatprep.subr.mxu0 0.0
        %9235 = vmatpush1.msra.mxu0 0.0
        %9236 = vmatprep.subr.mxu0 0.0
        %9237 = vmatpush1.msra.mxu0 0.0
        %9238 = vmatprep.mubr.f32.mxu0 0.0
        %v9239 = vand.u32 %v8509, 4294901760
        %v9240 = vsub.f32 %v8509, %v9239
        %v9241 = vand.u32 %v9240, 4294901760
        %v9242 = vsub.f32 %v9240, %v9241
        %v9243 = vand.u32 %v9242, 4294901760
        %9244 = vmatmul.mubr.f32.gmra.mrb[0].mxu0 %v9243
        %v9245 = vpop.f32.mrb[0].mxu0
        %v9246 = vadd.f32 %v8506, %v9245
        %v9247 = vpop.f32.mrb[0].mxu0
        %v9248 = vadd.f32 %v8506, %v9247
        %9249 = vdwg.mxu0
        %v9250 = vand.u32 %v8472, 4294901760
        %v9251 = vsub.f32 %v8472, %v9250
        %v9252 = vand.u32 %v9251, 4294901760
        %v9253 = vsub.f32 %v9251, %v9252
        %v9254 = vand.u32 %v9253, 4294901760
        %9255 = vmatprep.subr.mxu0 %v9254
        %v9256 = vand.u32 %v8471, 4294901760
        %v9257 = vsub.f32 %v8471, %v9256
        %v9258 = vand.u32 %v9257, 4294901760
        %v9259 = vsub.f32 %v9257, %v9258
        %v9260 = vand.u32 %v9259, 4294901760
        %9261 = vmatpush1.msra.mxu0 %v9260
        %v9262 = vand.u32 %v8476, 4294901760
        %v9263 = vsub.f32 %v8476, %v9262
        %v9264 = vand.u32 %v9263, 4294901760
        %v9265 = vsub.f32 %v9263, %v9264
        %v9266 = vand.u32 %v9265, 4294901760
        %9267 = vmatprep.subr.mxu0 %v9266
        %v9268 = vand.u32 %v8475, 4294901760
        %v9269 = vsub.f32 %v8475, %v9268
        %v9270 = vand.u32 %v9269, 4294901760
        %v9271 = vsub.f32 %v9269, %v9270
        %v9272 = vand.u32 %v9271, 4294901760
        %9273 = vmatpush1.msra.mxu0 %v9272
        %v9274 = vand.u32 %v8480, 4294901760
        %v9275 = vsub.f32 %v8480, %v9274
        %v9276 = vand.u32 %v9275, 4294901760
        %v9277 = vsub.f32 %v9275, %v9276
        %v9278 = vand.u32 %v9277, 4294901760
        %9279 = vmatprep.subr.mxu0 %v9278
        %v9280 = vand.u32 %v8479, 4294901760
        %v9281 = vsub.f32 %v8479, %v9280
        %v9282 = vand.u32 %v9281, 4294901760
        %v9283 = vsub.f32 %v9281, %v9282
        %v9284 = vand.u32 %v9283, 4294901760
        %9285 = vmatpush1.msra.mxu0 %v9284
        %v9286 = vand.u32 %v8484, 4294901760
        %v9287 = vsub.f32 %v8484, %v9286
        %v9288 = vand.u32 %v9287, 4294901760
        %v9289 = vsub.f32 %v9287, %v9288
        %v9290 = vand.u32 %v9289, 4294901760
        %9291 = vmatprep.subr.mxu0 %v9290
        %v9292 = vand.u32 %v8483, 4294901760
        %v9293 = vsub.f32 %v8483, %v9292
        %v9294 = vand.u32 %v9293, 4294901760
        %v9295 = vsub.f32 %v9293, %v9294
        %v9296 = vand.u32 %v9295, 4294901760
        %9297 = vmatpush1.msra.mxu0 %v9296
        %v9298 = vand.u32 %v8488, 4294901760
        %v9299 = vsub.f32 %v8488, %v9298
        %v9300 = vand.u32 %v9299, 4294901760
        %v9301 = vsub.f32 %v9299, %v9300
        %v9302 = vand.u32 %v9301, 4294901760
        %9303 = vmatprep.subr.mxu0 %v9302
        %v9304 = vand.u32 %v8487, 4294901760
        %v9305 = vsub.f32 %v8487, %v9304
        %v9306 = vand.u32 %v9305, 4294901760
        %v9307 = vsub.f32 %v9305, %v9306
        %v9308 = vand.u32 %v9307, 4294901760
        %9309 = vmatpush1.msra.mxu0 %v9308
        %v9310 = vand.u32 %v8492, 4294901760
        %v9311 = vsub.f32 %v8492, %v9310
        %v9312 = vand.u32 %v9311, 4294901760
        %v9313 = vsub.f32 %v9311, %v9312
        %v9314 = vand.u32 %v9313, 4294901760
        %9315 = vmatprep.subr.mxu0 %v9314
        %v9316 = vand.u32 %v8491, 4294901760
        %v9317 = vsub.f32 %v8491, %v9316
        %v9318 = vand.u32 %v9317, 4294901760
        %v9319 = vsub.f32 %v9317, %v9318
        %v9320 = vand.u32 %v9319, 4294901760
        %9321 = vmatpush1.msra.mxu0 %v9320
        %v9322 = vand.u32 %v8496, 4294901760
        %v9323 = vsub.f32 %v8496, %v9322
        %v9324 = vand.u32 %v9323, 4294901760
        %v9325 = vsub.f32 %v9323, %v9324
        %v9326 = vand.u32 %v9325, 4294901760
        %9327 = vmatprep.subr.mxu0 %v9326
        %v9328 = vand.u32 %v8495, 4294901760
        %v9329 = vsub.f32 %v8495, %v9328
        %v9330 = vand.u32 %v9329, 4294901760
        %v9331 = vsub.f32 %v9329, %v9330
        %v9332 = vand.u32 %v9331, 4294901760
        %9333 = vmatpush1.msra.mxu0 %v9332
        %v9334 = vand.u32 %v8500, 4294901760
        %v9335 = vsub.f32 %v8500, %v9334
        %v9336 = vand.u32 %v9335, 4294901760
        %v9337 = vsub.f32 %v9335, %v9336
        %v9338 = vand.u32 %v9337, 4294901760
        %9339 = vmatprep.subr.mxu0 %v9338
        %v9340 = vand.u32 %v8499, 4294901760
        %v9341 = vsub.f32 %v8499, %v9340
        %v9342 = vand.u32 %v9341, 4294901760
        %v9343 = vsub.f32 %v9341, %v9342
        %v9344 = vand.u32 %v9343, 4294901760
        %9345 = vmatpush1.msra.mxu0 %v9344
        %9346 = vmatprep.subr.mxu0 0.0
        %9347 = vmatpush1.msra.mxu0 0.0
        %9348 = vmatprep.subr.mxu0 0.0
        %9349 = vmatpush1.msra.mxu0 0.0
        %9350 = vmatprep.subr.mxu0 0.0
        %9351 = vmatpush1.msra.mxu0 0.0
        %9352 = vmatprep.subr.mxu0 0.0
        %9353 = vmatpush1.msra.mxu0 0.0
        %9354 = vmatprep.subr.mxu0 0.0
        %9355 = vmatpush1.msra.mxu0 0.0
        %9356 = vmatprep.subr.mxu0 0.0
        %9357 = vmatpush1.msra.mxu0 0.0
        %9358 = vmatprep.subr.mxu0 0.0
        %9359 = vmatpush1.msra.mxu0 0.0
        %9360 = vmatprep.subr.mxu0 0.0
        %9361 = vmatpush1.msra.mxu0 0.0
        %9362 = vmatprep.subr.mxu0 0.0
        %9363 = vmatpush1.msra.mxu0 0.0
        %9364 = vmatprep.subr.mxu0 0.0
        %9365 = vmatpush1.msra.mxu0 0.0
        %9366 = vmatprep.subr.mxu0 0.0
        %9367 = vmatpush1.msra.mxu0 0.0
        %9368 = vmatprep.subr.mxu0 0.0
        %9369 = vmatpush1.msra.mxu0 0.0
        %9370 = vmatprep.subr.mxu0 0.0
        %9371 = vmatpush1.msra.mxu0 0.0
        %9372 = vmatprep.subr.mxu0 0.0
        %9373 = vmatpush1.msra.mxu0 0.0
        %9374 = vmatprep.subr.mxu0 0.0
        %9375 = vmatpush1.msra.mxu0 0.0
        %9376 = vmatprep.subr.mxu0 0.0
        %9377 = vmatpush1.msra.mxu0 0.0
        %9378 = vmatprep.subr.mxu0 0.0
        %9379 = vmatpush1.msra.mxu0 0.0
        %9380 = vmatprep.subr.mxu0 0.0
        %9381 = vmatpush1.msra.mxu0 0.0
        %9382 = vmatprep.subr.mxu0 0.0
        %9383 = vmatpush1.msra.mxu0 0.0
        %9384 = vmatprep.subr.mxu0 0.0
        %9385 = vmatpush1.msra.mxu0 0.0
        %9386 = vmatprep.subr.mxu0 0.0
        %9387 = vmatpush1.msra.mxu0 0.0
        %9388 = vmatprep.subr.mxu0 0.0
        %9389 = vmatpush1.msra.mxu0 0.0
        %9390 = vmatprep.subr.mxu0 0.0
        %9391 = vmatpush1.msra.mxu0 0.0
        %9392 = vmatprep.subr.mxu0 0.0
        %9393 = vmatpush1.msra.mxu0 0.0
        %9394 = vmatprep.mubr.f32.mxu0 0.0
        %v9395 = vand.u32 %v8509, 4294901760
        %9396 = vmatmul.mubr.f32.gmra.mrb[0].mxu0 %v9395
        %v9397 = vpop.f32.mrb[0].mxu0
        %v9398 = vadd.f32 %v9246, %v9397
        %v9399 = vpop.f32.mrb[0].mxu0
        %v9400 = vadd.f32 %v9248, %v9399
        %9401 = vdwg.mxu0
        %v9402 = vand.u32 %v8472, 4294901760
        %v9403 = vsub.f32 %v8472, %v9402
        %9404 = vmatprep.subr.mxu0 %v9403
        %v9405 = vand.u32 %v8471, 4294901760
        %v9406 = vsub.f32 %v8471, %v9405
        %9407 = vmatpush1.msra.mxu0 %v9406
        %v9408 = vand.u32 %v8476, 4294901760
        %v9409 = vsub.f32 %v8476, %v9408
        %9410 = vmatprep.subr.mxu0 %v9409
        %v9411 = vand.u32 %v8475, 4294901760
        %v9412 = vsub.f32 %v8475, %v9411
        %9413 = vmatpush1.msra.mxu0 %v9412
        %v9414 = vand.u32 %v8480, 4294901760
        %v9415 = vsub.f32 %v8480, %v9414
        %9416 = vmatprep.subr.mxu0 %v9415
        %v9417 = vand.u32 %v8479, 4294901760
        %v9418 = vsub.f32 %v8479, %v9417
        %9419 = vmatpush1.msra.mxu0 %v9418
        %v9420 = vand.u32 %v8484, 4294901760
        %v9421 = vsub.f32 %v8484, %v9420
        %9422 = vmatprep.subr.mxu0 %v9421
        %v9423 = vand.u32 %v8483, 4294901760
        %v9424 = vsub.f32 %v8483, %v9423
        %9425 = vmatpush1.msra.mxu0 %v9424
        %v9426 = vand.u32 %v8488, 4294901760
        %v9427 = vsub.f32 %v8488, %v9426
        %9428 = vmatprep.subr.mxu0 %v9427
        %v9429 = vand.u32 %v8487, 4294901760
        %v9430 = vsub.f32 %v8487, %v9429
        %9431 = vmatpush1.msra.mxu0 %v9430
        %v9432 = vand.u32 %v8492, 4294901760
        %v9433 = vsub.f32 %v8492, %v9432
        %9434 = vmatprep.subr.mxu0 %v9433
        %v9435 = vand.u32 %v8491, 4294901760
        %v9436 = vsub.f32 %v8491, %v9435
        %9437 = vmatpush1.msra.mxu0 %v9436
        %v9438 = vand.u32 %v8496, 4294901760
        %v9439 = vsub.f32 %v8496, %v9438
        %9440 = vmatprep.subr.mxu0 %v9439
        %v9441 = vand.u32 %v8495, 4294901760
        %v9442 = vsub.f32 %v8495, %v9441
        %9443 = vmatpush1.msra.mxu0 %v9442
        %v9444 = vand.u32 %v8500, 4294901760
        %v9445 = vsub.f32 %v8500, %v9444
        %9446 = vmatprep.subr.mxu0 %v9445
        %v9447 = vand.u32 %v8499, 4294901760
        %v9448 = vsub.f32 %v8499, %v9447
        %9449 = vmatpush1.msra.mxu0 %v9448
        %9450 = vmatprep.subr.mxu0 0.0
        %9451 = vmatpush1.msra.mxu0 0.0
        %9452 = vmatprep.subr.mxu0 0.0
        %9453 = vmatpush1.msra.mxu0 0.0
        %9454 = vmatprep.subr.mxu0 0.0
        %9455 = vmatpush1.msra.mxu0 0.0
        %9456 = vmatprep.subr.mxu0 0.0
        %9457 = vmatpush1.msra.mxu0 0.0
        %9458 = vmatprep.subr.mxu0 0.0
        %9459 = vmatpush1.msra.mxu0 0.0
        %9460 = vmatprep.subr.mxu0 0.0
        %9461 = vmatpush1.msra.mxu0 0.0
        %9462 = vmatprep.subr.mxu0 0.0
        %9463 = vmatpush1.msra.mxu0 0.0
        %9464 = vmatprep.subr.mxu0 0.0
        %9465 = vmatpush1.msra.mxu0 0.0
        %9466 = vmatprep.subr.mxu0 0.0
        %9467 = vmatpush1.msra.mxu0 0.0
        %9468 = vmatprep.subr.mxu0 0.0
        %9469 = vmatpush1.msra.mxu0 0.0
        %9470 = vmatprep.subr.mxu0 0.0
        %9471 = vmatpush1.msra.mxu0 0.0
        %9472 = vmatprep.subr.mxu0 0.0
        %9473 = vmatpush1.msra.mxu0 0.0
        %9474 = vmatprep.subr.mxu0 0.0
        %9475 = vmatpush1.msra.mxu0 0.0
        %9476 = vmatprep.subr.mxu0 0.0
        %9477 = vmatpush1.msra.mxu0 0.0
        %9478 = vmatprep.subr.mxu0 0.0
        %9479 = vmatpush1.msra.mxu0 0.0
        %9480 = vmatprep.subr.mxu0 0.0
        %9481 = vmatpush1.msra.mxu0 0.0
        %9482 = vmatprep.subr.mxu0 0.0
        %9483 = vmatpush1.msra.mxu0 0.0
        %9484 = vmatprep.subr.mxu0 0.0
        %9485 = vmatpush1.msra.mxu0 0.0
        %9486 = vmatprep.subr.mxu0 0.0
        %9487 = vmatpush1.msra.mxu0 0.0
        %9488 = vmatprep.subr.mxu0 0.0
        %9489 = vmatpush1.msra.mxu0 0.0
        %9490 = vmatprep.subr.mxu0 0.0
        %9491 = vmatpush1.msra.mxu0 0.0
        %9492 = vmatprep.subr.mxu0 0.0
        %9493 = vmatpush1.msra.mxu0 0.0
        %9494 = vmatprep.subr.mxu0 0.0
        %9495 = vmatpush1.msra.mxu0 0.0
        %9496 = vmatprep.subr.mxu0 0.0
        %9497 = vmatpush1.msra.mxu0 0.0
        %9498 = vmatprep.mubr.f32.mxu0 0.0
        %v9499 = vand.u32 %v8509, 4294901760
        %v9500 = vsub.f32 %v8509, %v9499
        %9501 = vmatmul.mubr.f32.gmra.mrb[0].mxu0 %v9500
        %v9502 = vpop.f32.mrb[0].mxu0
        %v9503 = vadd.f32 %v9398, %v9502
        %v9504 = vpop.f32.mrb[0].mxu0
        %v9505 = vadd.f32 %v9400, %v9504
        %9506 = vdwg.mxu0
        %v9507 = vand.u32 %v8472, 4294901760
        %9508 = vmatprep.subr.mxu0 %v9507
        %v9509 = vand.u32 %v8471, 4294901760
        %9510 = vmatpush1.msra.mxu0 %v9509
        %v9511 = vand.u32 %v8476, 4294901760
        %9512 = vmatprep.subr.mxu0 %v9511
        %v9513 = vand.u32 %v8475, 4294901760
        %9514 = vmatpush1.msra.mxu0 %v9513
        %v9515 = vand.u32 %v8480, 4294901760
        %9516 = vmatprep.subr.mxu0 %v9515
        %v9517 = vand.u32 %v8479, 4294901760
        %9518 = vmatpush1.msra.mxu0 %v9517
        %v9519 = vand.u32 %v8484, 4294901760
        %9520 = vmatprep.subr.mxu0 %v9519
        %v9521 = vand.u32 %v8483, 4294901760
        %9522 = vmatpush1.msra.mxu0 %v9521
        %v9523 = vand.u32 %v8488, 4294901760
        %9524 = vmatprep.subr.mxu0 %v9523
        %v9525 = vand.u32 %v8487, 4294901760
        %9526 = vmatpush1.msra.mxu0 %v9525
        %v9527 = vand.u32 %v8492, 4294901760
        %9528 = vmatprep.subr.mxu0 %v9527
        %v9529 = vand.u32 %v8491, 4294901760
        %9530 = vmatpush1.msra.mxu0 %v9529
        %v9531 = vand.u32 %v8496, 4294901760
        %9532 = vmatprep.subr.mxu0 %v9531
        %v9533 = vand.u32 %v8495, 4294901760
        %9534 = vmatpush1.msra.mxu0 %v9533
        %v9535 = vand.u32 %v8500, 4294901760
        %9536 = vmatprep.subr.mxu0 %v9535
        %v9537 = vand.u32 %v8499, 4294901760
        %9538 = vmatpush1.msra.mxu0 %v9537
        %9539 = vmatprep.subr.mxu0 0.0
        %9540 = vmatpush1.msra.mxu0 0.0
        %9541 = vmatprep.subr.mxu0 0.0
        %9542 = vmatpush1.msra.mxu0 0.0
        %9543 = vmatprep.subr.mxu0 0.0
        %9544 = vmatpush1.msra.mxu0 0.0
        %9545 = vmatprep.subr.mxu0 0.0
        %9546 = vmatpush1.msra.mxu0 0.0
        %9547 = vmatprep.subr.mxu0 0.0
        %9548 = vmatpush1.msra.mxu0 0.0
        %9549 = vmatprep.subr.mxu0 0.0
        %9550 = vmatpush1.msra.mxu0 0.0
        %9551 = vmatprep.subr.mxu0 0.0
        %9552 = vmatpush1.msra.mxu0 0.0
        %9553 = vmatprep.subr.mxu0 0.0
        %9554 = vmatpush1.msra.mxu0 0.0
        %9555 = vmatprep.subr.mxu0 0.0
        %9556 = vmatpush1.msra.mxu0 0.0
        %9557 = vmatprep.subr.mxu0 0.0
        %9558 = vmatpush1.msra.mxu0 0.0
        %9559 = vmatprep.subr.mxu0 0.0
        %9560 = vmatpush1.msra.mxu0 0.0
        %9561 = vmatprep.subr.mxu0 0.0
        %9562 = vmatpush1.msra.mxu0 0.0
        %9563 = vmatprep.subr.mxu0 0.0
        %9564 = vmatpush1.msra.mxu0 0.0
        %9565 = vmatprep.subr.mxu0 0.0
        %9566 = vmatpush1.msra.mxu0 0.0
        %9567 = vmatprep.subr.mxu0 0.0
        %9568 = vmatpush1.msra.mxu0 0.0
        %9569 = vmatprep.subr.mxu0 0.0
        %9570 = vmatpush1.msra.mxu0 0.0
        %9571 = vmatprep.subr.mxu0 0.0
        %9572 = vmatpush1.msra.mxu0 0.0
        %9573 = vmatprep.subr.mxu0 0.0
        %9574 = vmatpush1.msra.mxu0 0.0
        %9575 = vmatprep.subr.mxu0 0.0
        %9576 = vmatpush1.msra.mxu0 0.0
        %9577 = vmatprep.subr.mxu0 0.0
        %9578 = vmatpush1.msra.mxu0 0.0
        %9579 = vmatprep.subr.mxu0 0.0
        %9580 = vmatpush1.msra.mxu0 0.0
        %9581 = vmatprep.subr.mxu0 0.0
        %9582 = vmatpush1.msra.mxu0 0.0
        %9583 = vmatprep.subr.mxu0 0.0
        %9584 = vmatpush1.msra.mxu0 0.0
        %9585 = vmatprep.subr.mxu0 0.0
        %9586 = vmatpush1.msra.mxu0 0.0
        %9587 = vmatprep.mubr.f32.mxu0 0.0
        %v9588 = vand.u32 %v8509, 4294901760
        %v9589 = vsub.f32 %v8509, %v9588
        %v9590 = vand.u32 %v9589, 4294901760
        %9591 = vmatmul.mubr.f32.gmra.mrb[0].mxu0 %v9590
        %v9592 = vpop.f32.mrb[0].mxu0
        %v9593 = vadd.f32 %v9503, %v9592
        %v9594 = vpop.f32.mrb[0].mxu0
        %v9595 = vadd.f32 %v9505, %v9594
        %9596 = vdwg.mxu0
        %v9597 = vand.u32 %v8472, 4294901760
        %v9598 = vsub.f32 %v8472, %v9597
        %v9599 = vand.u32 %v9598, 4294901760
        %9600 = vmatprep.subr.mxu0 %v9599
        %v9601 = vand.u32 %v8471, 4294901760
        %v9602 = vsub.f32 %v8471, %v9601
        %v9603 = vand.u32 %v9602, 4294901760
        %9604 = vmatpush1.msra.mxu0 %v9603
        %v9605 = vand.u32 %v8476, 4294901760
        %v9606 = vsub.f32 %v8476, %v9605
        %v9607 = vand.u32 %v9606, 4294901760
        %9608 = vmatprep.subr.mxu0 %v9607
        %v9609 = vand.u32 %v8475, 4294901760
        %v9610 = vsub.f32 %v8475, %v9609
        %v9611 = vand.u32 %v9610, 4294901760
        %9612 = vmatpush1.msra.mxu0 %v9611
        %v9613 = vand.u32 %v8480, 4294901760
        %v9614 = vsub.f32 %v8480, %v9613
        %v9615 = vand.u32 %v9614, 4294901760
        %9616 = vmatprep.subr.mxu0 %v9615
        %v9617 = vand.u32 %v8479, 4294901760
        %v9618 = vsub.f32 %v8479, %v9617
        %v9619 = vand.u32 %v9618, 4294901760
        %9620 = vmatpush1.msra.mxu0 %v9619
        %v9621 = vand.u32 %v8484, 4294901760
        %v9622 = vsub.f32 %v8484, %v9621
        %v9623 = vand.u32 %v9622, 4294901760
        %9624 = vmatprep.subr.mxu0 %v9623
        %v9625 = vand.u32 %v8483, 4294901760
        %v9626 = vsub.f32 %v8483, %v9625
        %v9627 = vand.u32 %v9626, 4294901760
        %9628 = vmatpush1.msra.mxu0 %v9627
        %v9629 = vand.u32 %v8488, 4294901760
        %v9630 = vsub.f32 %v8488, %v9629
        %v9631 = vand.u32 %v9630, 4294901760
        %9632 = vmatprep.subr.mxu0 %v9631
        %v9633 = vand.u32 %v8487, 4294901760
        %v9634 = vsub.f32 %v8487, %v9633
        %v9635 = vand.u32 %v9634, 4294901760
        %9636 = vmatpush1.msra.mxu0 %v9635
        %v9637 = vand.u32 %v8492, 4294901760
        %v9638 = vsub.f32 %v8492, %v9637
        %v9639 = vand.u32 %v9638, 4294901760
        %9640 = vmatprep.subr.mxu0 %v9639
        %v9641 = vand.u32 %v8491, 4294901760
        %v9642 = vsub.f32 %v8491, %v9641
        %v9643 = vand.u32 %v9642, 4294901760
        %9644 = vmatpush1.msra.mxu0 %v9643
        %v9645 = vand.u32 %v8496, 4294901760
        %v9646 = vsub.f32 %v8496, %v9645
        %v9647 = vand.u32 %v9646, 4294901760
        %9648 = vmatprep.subr.mxu0 %v9647
        %v9649 = vand.u32 %v8495, 4294901760
        %v9650 = vsub.f32 %v8495, %v9649
        %v9651 = vand.u32 %v9650, 4294901760
        %9652 = vmatpush1.msra.mxu0 %v9651
        %v9653 = vand.u32 %v8500, 4294901760
        %v9654 = vsub.f32 %v8500, %v9653
        %v9655 = vand.u32 %v9654, 4294901760
        %9656 = vmatprep.subr.mxu0 %v9655
        %v9657 = vand.u32 %v8499, 4294901760
        %v9658 = vsub.f32 %v8499, %v9657
        %v9659 = vand.u32 %v9658, 4294901760
        %9660 = vmatpush1.msra.mxu0 %v9659
        %9661 = vmatprep.subr.mxu0 0.0
        %9662 = vmatpush1.msra.mxu0 0.0
        %9663 = vmatprep.subr.mxu0 0.0
        %9664 = vmatpush1.msra.mxu0 0.0
        %9665 = vmatprep.subr.mxu0 0.0
        %9666 = vmatpush1.msra.mxu0 0.0
        %9667 = vmatprep.subr.mxu0 0.0
        %9668 = vmatpush1.msra.mxu0 0.0
        %9669 = vmatprep.subr.mxu0 0.0
        %9670 = vmatpush1.msra.mxu0 0.0
        %9671 = vmatprep.subr.mxu0 0.0
        %9672 = vmatpush1.msra.mxu0 0.0
        %9673 = vmatprep.subr.mxu0 0.0
        %9674 = vmatpush1.msra.mxu0 0.0
        %9675 = vmatprep.subr.mxu0 0.0
        %9676 = vmatpush1.msra.mxu0 0.0
        %9677 = vmatprep.subr.mxu0 0.0
        %9678 = vmatpush1.msra.mxu0 0.0
        %9679 = vmatprep.subr.mxu0 0.0
        %9680 = vmatpush1.msra.mxu0 0.0
        %9681 = vmatprep.subr.mxu0 0.0
        %9682 = vmatpush1.msra.mxu0 0.0
        %9683 = vmatprep.subr.mxu0 0.0
        %9684 = vmatpush1.msra.mxu0 0.0
        %9685 = vmatprep.subr.mxu0 0.0
        %9686 = vmatpush1.msra.mxu0 0.0
        %9687 = vmatprep.subr.mxu0 0.0
        %9688 = vmatpush1.msra.mxu0 0.0
        %9689 = vmatprep.subr.mxu0 0.0
        %9690 = vmatpush1.msra.mxu0 0.0
        %9691 = vmatprep.subr.mxu0 0.0
        %9692 = vmatpush1.msra.mxu0 0.0
        %9693 = vmatprep.subr.mxu0 0.0
        %9694 = vmatpush1.msra.mxu0 0.0
        %9695 = vmatprep.subr.mxu0 0.0
        %9696 = vmatpush1.msra.mxu0 0.0
        %9697 = vmatprep.subr.mxu0 0.0
        %9698 = vmatpush1.msra.mxu0 0.0
        %9699 = vmatprep.subr.mxu0 0.0
        %9700 = vmatpush1.msra.mxu0 0.0
        %9701 = vmatprep.subr.mxu0 0.0
        %9702 = vmatpush1.msra.mxu0 0.0
        %9703 = vmatprep.subr.mxu0 0.0
        %9704 = vmatpush1.msra.mxu0 0.0
        %9705 = vmatprep.subr.mxu0 0.0
        %9706 = vmatpush1.msra.mxu0 0.0
        %9707 = vmatprep.subr.mxu0 0.0
        %9708 = vmatpush1.msra.mxu0 0.0
        %9709 = vmatprep.mubr.f32.mxu0 0.0
        %v9710 = vand.u32 %v8509, 4294901760
        %9711 = vmatmul.mubr.f32.gmra.mrb[0].mxu0 %v9710
        %v9712 = vpop.f32.mrb[0].mxu0
        %v9713 = vadd.f32 %v9593, %v9712
        %v9714 = vpop.f32.mrb[0].mxu0
        %v9715 = vadd.f32 %v9595, %v9714
        %9716 = vdwg.mxu0
        %v9717 = vand.u32 %v8472, 4294901760
        %9718 = vmatprep.subr.mxu0 %v9717
        %v9719 = vand.u32 %v8471, 4294901760
        %9720 = vmatpush1.msra.mxu0 %v9719
        %v9721 = vand.u32 %v8476, 4294901760
        %9722 = vmatprep.subr.mxu0 %v9721
        %v9723 = vand.u32 %v8475, 4294901760
        %9724 = vmatpush1.msra.mxu0 %v9723
        %v9725 = vand.u32 %v8480, 4294901760
        %9726 = vmatprep.subr.mxu0 %v9725
        %v9727 = vand.u32 %v8479, 4294901760
        %9728 = vmatpush1.msra.mxu0 %v9727
        %v9729 = vand.u32 %v8484, 4294901760
        %9730 = vmatprep.subr.mxu0 %v9729
        %v9731 = vand.u32 %v8483, 4294901760
        %9732 = vmatpush1.msra.mxu0 %v9731
        %v9733 = vand.u32 %v8488, 4294901760
        %9734 = vmatprep.subr.mxu0 %v9733
        %v9735 = vand.u32 %v8487, 4294901760
        %9736 = vmatpush1.msra.mxu0 %v9735
        %v9737 = vand.u32 %v8492, 4294901760
        %9738 = vmatprep.subr.mxu0 %v9737
        %v9739 = vand.u32 %v8491, 4294901760
        %9740 = vmatpush1.msra.mxu0 %v9739
        %v9741 = vand.u32 %v8496, 4294901760
        %9742 = vmatprep.subr.mxu0 %v9741
        %v9743 = vand.u32 %v8495, 4294901760
        %9744 = vmatpush1.msra.mxu0 %v9743
        %v9745 = vand.u32 %v8500, 4294901760
        %9746 = vmatprep.subr.mxu0 %v9745
        %v9747 = vand.u32 %v8499, 4294901760
        %9748 = vmatpush1.msra.mxu0 %v9747
        %9749 = vmatprep.subr.mxu0 0.0
        %9750 = vmatpush1.msra.mxu0 0.0
        %9751 = vmatprep.subr.mxu0 0.0
        %9752 = vmatpush1.msra.mxu0 0.0
        %9753 = vmatprep.subr.mxu0 0.0
        %9754 = vmatpush1.msra.mxu0 0.0
        %9755 = vmatprep.subr.mxu0 0.0
        %9756 = vmatpush1.msra.mxu0 0.0
        %9757 = vmatprep.subr.mxu0 0.0
        %9758 = vmatpush1.msra.mxu0 0.0
        %9759 = vmatprep.subr.mxu0 0.0
        %9760 = vmatpush1.msra.mxu0 0.0
        %9761 = vmatprep.subr.mxu0 0.0
        %9762 = vmatpush1.msra.mxu0 0.0
        %9763 = vmatprep.subr.mxu0 0.0
        %9764 = vmatpush1.msra.mxu0 0.0
        %9765 = vmatprep.subr.mxu0 0.0
        %9766 = vmatpush1.msra.mxu0 0.0
        %9767 = vmatprep.subr.mxu0 0.0
        %9768 = vmatpush1.msra.mxu0 0.0
        %9769 = vmatprep.subr.mxu0 0.0
        %9770 = vmatpush1.msra.mxu0 0.0
        %9771 = vmatprep.subr.mxu0 0.0
        %9772 = vmatpush1.msra.mxu0 0.0
        %9773 = vmatprep.subr.mxu0 0.0
        %9774 = vmatpush1.msra.mxu0 0.0
        %9775 = vmatprep.subr.mxu0 0.0
        %9776 = vmatpush1.msra.mxu0 0.0
        %9777 = vmatprep.subr.mxu0 0.0
        %9778 = vmatpush1.msra.mxu0 0.0
        %9779 = vmatprep.subr.mxu0 0.0
        %9780 = vmatpush1.msra.mxu0 0.0
        %9781 = vmatprep.subr.mxu0 0.0
        %9782 = vmatpush1.msra.mxu0 0.0
        %9783 = vmatprep.subr.mxu0 0.0
        %9784 = vmatpush1.msra.mxu0 0.0
        %9785 = vmatprep.subr.mxu0 0.0
        %9786 = vmatpush1.msra.mxu0 0.0
        %9787 = vmatprep.subr.mxu0 0.0
        %9788 = vmatpush1.msra.mxu0 0.0
        %9789 = vmatprep.subr.mxu0 0.0
        %9790 = vmatpush1.msra.mxu0 0.0
        %9791 = vmatprep.subr.mxu0 0.0
        %9792 = vmatpush1.msra.mxu0 0.0
        %9793 = vmatprep.subr.mxu0 0.0
        %9794 = vmatpush1.msra.mxu0 0.0
        %9795 = vmatprep.subr.mxu0 0.0
        %9796 = vmatpush1.msra.mxu0 0.0
        %9797 = vmatprep.mubr.f32.mxu0 0.0
        %v9798 = vand.u32 %v8509, 4294901760
        %9799 = vmatmul.mubr.f32.gmra.mrb[0].mxu0 %v9798
        %v9800 = vpop.f32.mrb[0].mxu0
        %v9801 = vadd.f32 %v9713, %v9800
        %v9802 = vpop.f32.mrb[0].mxu0
        %v9803 = vadd.f32 %v9715, %v9802
        %9804 = vdwg.mxu0
        %v9809 = vcombine.low %v9154, %v9156
        %v9810 = vcombine.low %v9801, %v9803
        %v9812 = vunpack.c.l.s4 1983009808
        %v9813 = vunpack.c.0.s8 %v9812
        %v9814 = vlaneseq
        %v9815 = vshrl.u32 %v9814, 7
        %v9816 = vsub.s32 %v9813, %v9815
        %v9817 = vrot.slane %v9809, %v9816
        %v9819 = vunpack.c.l.s4 1983009808
        %v9820 = vunpack.c.0.s8 %v9819
        %v9821 = vlaneseq
        %v9822 = vshrl.u32 %v9821, 7
        %v9823 = vsub.s32 %v9820, %v9822
        %v9824 = vrot.slane %v9810, %v9823
        %v9825 = vcombine.low %v9817, %v9824
        %9827 = vst [vmem:[%s421] sm:$0xff] %v9825
        %s9828 = sand.u32 %s292, 1
        %s9829 = scalar_lea.sflag [#allocation3], %s9828
        %s9830 = sand.u32 %s292, 1
        %s9831 = smul.addr %s9830, 8
        %s9832 = scalar_lea.vmem [#allocation5], %s9831
        // Predicated region
        $region73: #{tpu_custom_call.1} parent=67 // pred_check
          %p9833 = pneg %p302
        $region74: #{tpu_custom_call.1} parent=67 // pred_check_branch
          %9835 = sbr.rel (%p9833) target = $region76
        $region75: #{tpu_custom_call.1} parent=67 // pred_region
          %s9836 = smul.u32 4, %s27
          %s9838 = ssub.s32 128, 128
          %9839 = vsyncadd %s9829, %s9838
          %s9840 = smul.addr %s9836, 32
          %s9841 = scalar_lea.hbm %s12, %s9840
          %s9843 = sshll.u32 %s9832, 4
          %s9844 = int_to_ptr.vmem [resolvable:$true] %s9843
          %9846 = dma.vmem_to_hbm [thread:$0]  %s9844, 128, %s9841, %s9829
        $region76: #{tpu_custom_call.1} parent=67 // pred_fallthru
          _
      $region68: #{tpu_custom_call.1} parent=5 // pred_fallthru
        _
      %p9847 = scmp.le.s32.totalorder 2, %s22
      // Predicated region
      $region77: #{tpu_custom_call.1} parent=5 // pred_check
        %p9848 = pneg %p9847
      $region78: #{tpu_custom_call.1} parent=5 // pred_check_branch
        %9850 = sbr.rel (%p9848) target = $region80
      $region79: #{tpu_custom_call.1} parent=5 // pred_region
        %s9851 = ssub.s32 %s22, 2
        // Predicated region
        $region81: #{tpu_custom_call.1} parent=79 // pred_check
          %p9852 = pneg %p308
        $region82: #{tpu_custom_call.1} parent=79 // pred_check_branch
          %9854 = sbr.rel (%p9852) target = $region84
        $region83: #{tpu_custom_call.1} parent=79 // pred_region
          %s9855 = sand.u32 %s293, 1
          %s9856 = scalar_lea.sflag [#allocation3], %s9855
          %s9857 = sand.u32 %s293, 1
          %s9858 = smul.addr %s9857, 8
          %s9859 = scalar_lea.vmem [#allocation5], %s9858
          %9860 = dma.done %s9856, 128
        $region84: #{tpu_custom_call.1} parent=79 // pred_fallthru
          _
      $region80: #{tpu_custom_call.1} parent=5 // pred_fallthru
        _
    $region6: #{tpu_custom_call.1} parent=1 // loop_footer
      %s26 = sadd.s32 1, %s22
    $region7: #{tpu_custom_call.1} parent=1 // loop_footer_branch
      %21 = sbr.rel target = $region3
    $region8: #{tpu_custom_call.1} parent=1 // loop_exit
      _
    %9861 = vsyncpa [#allocation3], 1
    %s9862 = scalar_lea.sflag [#allocation3], 1
    %9863 = vsyncpa %s9862, 1
    %9864 = vsyncpa [#allocation4], 1
    %s9865 = scalar_lea.sflag [#allocation4], 1
    %9866 = vsyncpa %s9865, 1

</llo_original>
